<compile_context>
chip_gen: v7x
topology: tpu7x:2x2x1
jax: 0.10.0
libtpu: 0.0.40
codegen_flags: <defaults>
</compile_context>

<pallas_src>
import jax
import jax.numpy as jnp
from jax import lax
from jax.experimental import pallas as pl
from jax.experimental.pallas import tpu as pltpu


# ----------------------------------------------------------------------------
# Generic matmul (+bias, +optional activation) kernel — used for every conv
# (after im2col) and for the spatial-attention 7x7 conv.
# ----------------------------------------------------------------------------
def _make_matmul_kernel(activation):
    def kernel(x_ref, w_ref, b_ref, o_ref):
        y = jnp.dot(x_ref[...], w_ref[...], preferred_element_type=jnp.float32)
        y = y + b_ref[...]
        if activation == "relu":
            y = jnp.maximum(y, 0.0)
        elif activation == "sigmoid":
            y = 1.0 / (1.0 + jnp.exp(-y))
        o_ref[...] = y.astype(o_ref.dtype)
    return kernel


def _round_up(v, m):
    return ((v + m - 1) // m) * m


def pallas_matmul(x, w, b, activation=None, tile_m=256):
    """y = x @ w + b.   x:(M,K)  w:(K,N) (already (in,out) layout)  b:(N,)."""
    M, K = x.shape
    K2, N = w.shape
    assert K == K2 and b.shape == (N,)

    N_pad = _round_up(N, 128)                       # lane-dense output stores
    tm = _round_up(min(tile_m, _round_up(M, 8)), 8)  # row tile, multiple of 8
    M_pad = _round_up(M, tm)

    xp = jnp.pad(x, ((0, M_pad - M), (0, 0)))
    wp = jnp.pad(w, ((0, 0), (0, N_pad - N)))
    bp = jnp.pad(b, (0, N_pad - N)).reshape(1, N_pad)

    out = pl.pallas_call(
        _make_matmul_kernel(activation),
        out_shape=jax.ShapeDtypeStruct((M_pad, N_pad), x.dtype),
        grid=(M_pad // tm,),
        in_specs=[
            pl.BlockSpec((tm, K), lambda i: (i, 0)),       # activations: tiled rows
            pl.BlockSpec((K, N_pad), lambda i: (0, 0)),    # weight: resident
            pl.BlockSpec((1, N_pad), lambda i: (0, 0)),    # bias:   resident
        ],
        out_specs=pl.BlockSpec((tm, N_pad), lambda i: (i, 0)),
        compiler_params=pltpu.CompilerParams(dimension_semantics=("parallel",)),
    )(xp, wp, bp)
    return out[:M, :N]


# ----------------------------------------------------------------------------
# Small element-wise / reduction kernels
# ----------------------------------------------------------------------------
def _pool_max_kernel(a_ref, b_ref, c_ref, d_ref, o_ref):
    o_ref[...] = jnp.maximum(jnp.maximum(a_ref[...], b_ref[...]),
                             jnp.maximum(c_ref[...], d_ref[...]))


def _pool_avg_kernel(a_ref, b_ref, c_ref, d_ref, o_ref):
    o_ref[...] = (a_ref[...] + b_ref[...] + c_ref[...] + d_ref[...]) * 0.25


def _add3_kernel(a_ref, b_ref, c_ref, o_ref):
    o_ref[...] = a_ref[...] + b_ref[...] + c_ref[...]


def _mul_bcast_kernel(x_ref, a_ref, o_ref):
    # (M, C) * (M, 1)
    o_ref[...] = x_ref[...] * a_ref[...]


def _spatial_stats_kernel(x_ref, mean_ref, max_ref):
    # per-pixel channel mean / max  (reduction over the lane axis)
    x = x_ref[...]
    mean_ref[...] = jnp.mean(x, axis=-1, keepdims=True)
    max_ref[...] = jnp.max(x, axis=-1, keepdims=True)


def _channel_att_kernel(x_ref, w1_ref, b1_ref, w2_ref, b2_ref, o_ref):
    # Fused ChannelAttention for one batch element:
    #   global avg/max pool over spatial, shared MLP, sigmoid gate, rescale x.
    x = x_ref[0]                                     # (HW, C)
    avg = jnp.mean(x, axis=0, keepdims=True)         # (1, C)
    mx = jnp.max(x, axis=0, keepdims=True)           # (1, C)

    def mlp(v):
        h = jnp.dot(v, w1_ref[...], preferred_element_type=jnp.float32) + b1_ref[...]
        h = jnp.maximum(h, 0.0)
        return jnp.dot(h, w2_ref[...], preferred_element_type=jnp.float32) + b2_ref[...]

    gate = 1.0 / (1.0 + jnp.exp(-(mlp(avg) + mlp(mx))))   # (1, C)
    o_ref[0] = (x * gate).astype(o_ref.dtype)


# ----------------------------------------------------------------------------
# Host-side wrappers (layout plumbing only; compute happens in the kernels)
# ----------------------------------------------------------------------------
def im2col(x, kh, kw, stride, pad):
    """x: (B,H,W,C) -> patches (B*Ho*Wo, kh*kw*C), ordering (dy, dx, c)."""
    B, H, W, C = x.shape
    if pad:
        x = jnp.pad(x, ((0, 0), (pad, pad), (pad, pad), (0, 0)))
    Ho = (H + 2 * pad - kh) // stride + 1
    Wo = (W + 2 * pad - kw) // stride + 1
    taps = []
    for dy in range(kh):
        for dx in range(kw):
            taps.append(lax.slice(
                x,
                (0, dy, dx, 0),
                (B, dy + (Ho - 1) * stride + 1, dx + (Wo - 1) * stride + 1, C),
                (1, stride, stride, 1)))
    patches = jnp.concatenate(taps, axis=-1)         # (B, Ho, Wo, kh*kw*C)
    return patches.reshape(B * Ho * Wo, kh * kw * C), Ho, Wo


def conv2d(x, w, b, stride=1, pad=0, activation=None):
    """NHWC conv with PyTorch-layout weight (O, I, kh, kw) via im2col + Pallas matmul."""
    B = x.shape[0]
    O, I, kh, kw = w.shape
    patches, Ho, Wo = im2col(x, kh, kw, stride, pad)
    w_mat = jnp.transpose(w, (2, 3, 1, 0)).reshape(kh * kw * I, O)   # (in, out)
    y = pallas_matmul(patches, w_mat, b, activation=activation)
    return y.reshape(B, Ho, Wo, O)


def pool2x2(x, kind):
    B, H, W, C = x.shape
    H2, W2 = H // 2, W // 2
    M = B * H2 * W2
    views = [x[:, dy::2, dx::2, :].reshape(M, C) for dy in (0, 1) for dx in (0, 1)]
    kernel = _pool_max_kernel if kind == "max" else _pool_avg_kernel
    out = pl.pallas_call(
        kernel,
        out_shape=jax.ShapeDtypeStruct((M, C), x.dtype),
        in_specs=[pl.BlockSpec((M, C), lambda: (0, 0))] * 4,
        out_specs=pl.BlockSpec((M, C), lambda: (0, 0)),
    )(*views)
    return out.reshape(B, H2, W2, C)


def add3(a, b, c):
    shape = a.shape
    C = shape[-1]
    M = a.size // C
    a2, b2, c2 = (t.reshape(M, C) for t in (a, b, c))
    out = pl.pallas_call(
        _add3_kernel,
        out_shape=jax.ShapeDtypeStruct((M, C), a.dtype),
        in_specs=[pl.BlockSpec((M, C), lambda: (0, 0))] * 3,
        out_specs=pl.BlockSpec((M, C), lambda: (0, 0)),
    )(a2, b2, c2)
    return out.reshape(shape)


def channel_attention(x, w1, b1, w2, b2):
    B, H, W, C = x.shape
    Cr = w1.shape[1]
    HW = H * W
    x3 = x.reshape(B, HW, C)
    out = pl.pallas_call(
        _channel_att_kernel,
        out_shape=jax.ShapeDtypeStruct((B, HW, C), x.dtype),
        grid=(B,),
        in_specs=[
            pl.BlockSpec((1, HW, C), lambda bb: (bb, 0, 0)),
            pl.BlockSpec((C, Cr), lambda bb: (0, 0)),
            pl.BlockSpec((1, Cr), lambda bb: (0, 0)),
            pl.BlockSpec((Cr, C), lambda bb: (0, 0)),
            pl.BlockSpec((1, C), lambda bb: (0, 0)),
        ],
        out_specs=pl.BlockSpec((1, HW, C), lambda bb: (bb, 0, 0)),
        compiler_params=pltpu.CompilerParams(dimension_semantics=("parallel",)),
    )(x3, w1, b1.reshape(1, Cr), w2, b2.reshape(1, C))
    return out.reshape(B, H, W, C)


def spatial_attention(x, w_conv, b_conv):
    B, H, W, C = x.shape
    M = B * H * W
    x2 = x.reshape(M, C)
    mean_c, max_c = pl.pallas_call(
        _spatial_stats_kernel,
        out_shape=(jax.ShapeDtypeStruct((M, 1), x.dtype),
                   jax.ShapeDtypeStruct((M, 1), x.dtype)),
        in_specs=[pl.BlockSpec((M, C), lambda: (0, 0))],
        out_specs=(pl.BlockSpec((M, 1), lambda: (0, 0)),
                   pl.BlockSpec((M, 1), lambda: (0, 0))),
    )(x2)
    stats = jnp.concatenate([mean_c, max_c], axis=-1).reshape(B, H, W, 2)
    patches, _, _ = im2col(stats, 7, 7, stride=1, pad=3)
    w_mat = jnp.transpose(w_conv, (2, 3, 1, 0)).reshape(7 * 7 * 2, 1)
    att = pallas_matmul(patches, w_mat, b_conv, activation="sigmoid")   # (M, 1)
    out = pl.pallas_call(
        _mul_bcast_kernel,
        out_shape=jax.ShapeDtypeStruct((M, C), x.dtype),
        in_specs=[pl.BlockSpec((M, C), lambda: (0, 0)),
                  pl.BlockSpec((M, 1), lambda: (0, 0))],
        out_specs=pl.BlockSpec((M, C), lambda: (0, 0)),
    )(x2, att)
    return out.reshape(B, H, W, C)


# ----------------------------------------------------------------------------
# BasicBlock forward (Pallas)
# ----------------------------------------------------------------------------
def basic_block_forward(x_nchw, P):
    x = jnp.transpose(x_nchw, (0, 2, 3, 1))                    # NCHW -> NHWC

    # ---- StemBlock ----
    x = conv2d(x, P["stem_c1_w"], P["stem_c1_b"], stride=2, pad=1)
    p1 = conv2d(x, P["stem_p1a_w"], P["stem_p1a_b"])
    p1 = conv2d(p1, P["stem_p1b_w"], P["stem_p1b_b"], stride=2, pad=1)
    p2 = pool2x2(x, "max")
    x = conv2d(jnp.concatenate([p1, p2], axis=-1), P["stem_f_w"], P["stem_f_b"])

    # ---- DenseBlock (loop=2, identity + 2-conv + 3-conv pathways) ----
    def dense_block(x, pfx):
        for _ in range(2):
            a = conv2d(x, P[pfx + "a1_w"], P[pfx + "a1_b"])
            a = conv2d(a, P[pfx + "a2_w"], P[pfx + "a2_b"], pad=1)
            c = conv2d(x, P[pfx + "b1_w"], P[pfx + "b1_b"])
            c = conv2d(c, P[pfx + "b2_w"], P[pfx + "b2_b"], pad=1)
            c = conv2d(c, P[pfx + "b3_w"], P[pfx + "b3_b"], pad=1)
            x = add3(x, a, c)
        return x

    x = dense_block(x, "d1_")

    # ---- TransitionLayer ----
    x = conv2d(x, P["t1_w"], P["t1_b"])
    x = pool2x2(x, "avg")

    x = dense_block(x, "d2_")

    # ---- trans2: 1x1 conv + BatchNorm2d (inference stats folded exactly) ----
    scale = P["bn_g"] / jnp.sqrt(P["bn_v"] + 1e-5)
    w_fold = P["t2_w"] * scale[:, None, None, None]
    b_fold = (P["t2_b"] - P["bn_m"]) * scale + P["bn_b"]
    x = conv2d(x, w_fold, b_fold)

    # ---- CBAM ----
    x = channel_attention(x, P["ca_w1"], P["ca_b1"], P["ca_w2"], P["ca_b2"])
    x = spatial_attention(x, P["sa_w"], P["sa_b"])

    return jnp.transpose(x, (0, 3, 1, 2))                      # NHWC -> NCHW


# ----------------------------------------------------------------------------
# Pure-JAX reference (XLA conv/pool) for correctness check
# ----------------------------------------------------------------------------
def reference_forward(x_nchw, P):
    x = jnp.transpose(x_nchw, (0, 2, 3, 1))

    def conv(x, w, b, stride=1, pad=0):
        y = lax.conv_general_dilated(
            x, w, (stride, stride), ((pad, pad), (pad, pad)),
            dimension_numbers=("NHWC", "OIHW", "NHWC"))
        return y + b.reshape(1, 1, 1, -1)

    def maxpool(x):
        return lax.reduce_window(x, -jnp.inf, lax.max, (1, 2, 2, 1), (1, 2, 2, 1), "VALID")

    def avgpool(x):
        return lax.reduce_window(x, 0.0, lax.add, (1, 2, 2, 1), (1, 2, 2, 1), "VALID") * 0.25

    x = conv(x, P["stem_c1_w"], P["stem_c1_b"], 2, 1)
    p1 = conv(x, P["stem_p1a_w"], P["stem_p1a_b"])
    p1 = conv(p1, P["stem_p1b_w"], P["stem_p1b_b"], 2, 1)
    p2 = maxpool(x)
    x = conv(jnp.concatenate([p1, p2], axis=-1), P["stem_f_w"], P["stem_f_b"])

    def dense_block(x, pfx):
        for _ in range(2):
            a = conv(x, P[pfx + "a1_w"], P[pfx + "a1_b"])
            a = conv(a, P[pfx + "a2_w"], P[pfx + "a2_b"], 1, 1)
            c = conv(x, P[pfx + "b1_w"], P[pfx + "b1_b"])
            c = conv(c, P[pfx + "b2_w"], P[pfx + "b2_b"], 1, 1)
            c = conv(c, P[pfx + "b3_w"], P[pfx + "b3_b"], 1, 1)
            x = x + a + c
        return x

    x = dense_block(x, "d1_")
    x = avgpool(conv(x, P["t1_w"], P["t1_b"]))
    x = dense_block(x, "d2_")
    x = conv(x, P["t2_w"], P["t2_b"])
    scale = P["bn_g"] / jnp.sqrt(P["bn_v"] + 1e-5)
    x = (x - P["bn_m"]) * scale + P["bn_b"]

    avg = jnp.mean(x, axis=(1, 2))
    mx = jnp.max(x, axis=(1, 2))

    def fc(v):
        h = jnp.maximum(v @ P["ca_w1"] + P["ca_b1"], 0.0)
        return h @ P["ca_w2"] + P["ca_b2"]

    gate = jax.nn.sigmoid(fc(avg) + fc(mx))
    x = x * gate[:, None, None, :]

    m = jnp.mean(x, axis=-1, keepdims=True)
    mm = jnp.max(x, axis=-1, keepdims=True)
    att = jax.nn.sigmoid(conv(jnp.concatenate([m, mm], axis=-1), P["sa_w"], P["sa_b"], 1, 3))
    x = x * att
    return jnp.transpose(x, (0, 3, 1, 2))


# ----------------------------------------------------------------------------
# Deterministic parameter init (PyTorch layouts; linear weights pre-transposed)
# ----------------------------------------------------------------------------
def init_params(key):
    keys = iter(jax.random.split(key, 64))

    def conv_p(o, i, kh, kw):
        kw_, kb_ = jax.random.split(next(keys))
        scale = 0.5 / float(i * kh * kw) ** 0.5
        return (jax.random.normal(kw_, (o, i, kh, kw), jnp.float32) * scale,
                jax.random.normal(kb_, (o,), jnp.float32) * 0.05)

    def linear_p(i, o):   # stored as (in, out) — pre-transposed for the kernel
        kw_, kb_ = jax.random.split(next(keys))
        scale = 0.5 / float(i) ** 0.5
        return (jax.random.normal(kw_, (i, o), jnp.float32) * scale,
                jax.random.normal(kb_, (o,), jnp.float32) * 0.05)

    P = {}
    P["stem_c1_w"], P["stem_c1_b"] = conv_p(32, 1, 3, 3)
    P["stem_p1a_w"], P["stem_p1a_b"] = conv_p(16, 32, 1, 1)
    P["stem_p1b_w"], P["stem_p1b_b"] = conv_p(32, 16, 3, 3)
    P["stem_f_w"], P["stem_f_b"] = conv_p(32, 64, 1, 1)

    def dense_p(pfx, c):
        P[pfx + "a1_w"], P[pfx + "a1_b"] = conv_p(2 * c, c, 1, 1)
        P[pfx + "a2_w"], P[pfx + "a2_b"] = conv_p(c, 2 * c, 3, 3)
        P[pfx + "b1_w"], P[pfx + "b1_b"] = conv_p(2 * c, c, 1, 1)
        P[pfx + "b2_w"], P[pfx + "b2_b"] = conv_p(c, 2 * c, 3, 3)
        P[pfx + "b3_w"], P[pfx + "b3_b"] = conv_p(c, c, 3, 3)

    dense_p("d1_", 32)
    P["t1_w"], P["t1_b"] = conv_p(256, 32, 1, 1)
    dense_p("d2_", 256)
    P["t2_w"], P["t2_b"] = conv_p(256, 256, 1, 1)

    P["bn_g"] = 1.0 + 0.1 * jax.random.normal(next(keys), (256,), jnp.float32)
    P["bn_b"] = 0.1 * jax.random.normal(next(keys), (256,), jnp.float32)
    P["bn_m"] = 0.1 * jax.random.normal(next(keys), (256,), jnp.float32)
    P["bn_v"] = jax.random.uniform(next(keys), (256,), jnp.float32, 0.5, 1.5)

    P["ca_w1"], P["ca_b1"] = linear_p(256, 16)
    P["ca_w2"], P["ca_b2"] = linear_p(16, 256)
    P["sa_w"], P["sa_b"] = conv_p(1, 2, 7, 7)
    return P


if __name__ == "__main__":
    key = jax.random.PRNGKey(0)
    kp, kx = jax.random.split(key)
    P = init_params(kp)
    x = jax.random.normal(kx, (2, 1, 32, 32), dtype=jnp.float32)   # NCHW, in_channels=1

    out = jax.block_until_ready(jax.jit(basic_block_forward)(x, P))
    ref = jax.block_until_ready(jax.jit(reference_forward)(x, P))

    assert out.shape == (2, 256, 4, 4), out.shape
    assert bool(jnp.all(jnp.isfinite(out)))
    err = float(jnp.max(jnp.abs(out - ref)))
    tol = 1e-2 * (1.0 + float(jnp.max(jnp.abs(ref))))
    assert err < tol, f"mismatch vs reference: max abs err {err} (tol {tol})"

    print("KERNEL_OK")
</pallas_src>

<mosaic_0001>
module attributes {stable_mosaic.version = 11 : i64} {
  func.func @kernel(%arg0: i32, %arg1: memref<256x9xf32, #tpu.memory_space<vmem>>, %arg2: memref<9x128xf32, #tpu.memory_space<vmem>>, %arg3: memref<1x128xf32, #tpu.memory_space<vmem>>, %arg4: memref<256x128xf32, #tpu.memory_space<vmem>>) attributes {dimension_semantics = [#tpu.dimension_semantics<parallel>], iteration_bounds = array<i64: 2>, scalar_prefetch = 0 : i64, scratch_operands = 0 : i64, tpu.core_type = #tpu.core_type<tc>, window_params = [{transform_indices = @transform_0, window_bounds = array<i64: 256, 9>}, {pipeline_mode = #tpu.pipeline_mode<synchronous>, transform_indices = @transform_1, window_bounds = array<i64: 9, 128>}, {pipeline_mode = #tpu.pipeline_mode<synchronous>, transform_indices = @transform_2, window_bounds = array<i64: 1, 128>}, {transform_indices = @transform_3, window_bounds = array<i64: 256, 128>}]} {
    %c0 = arith.constant 0 : index
    %c0_0 = arith.constant 0 : index
    %0 = vector.load %arg1[%c0, %c0_0] : memref<256x9xf32, #tpu.memory_space<vmem>>, vector<256x9xf32>
    %c0_1 = arith.constant 0 : index
    %c0_2 = arith.constant 0 : index
    %1 = vector.load %arg2[%c0_1, %c0_2] : memref<9x128xf32, #tpu.memory_space<vmem>>, vector<9x128xf32>
    %cst = arith.constant dense<0.000000e+00> : vector<256x128xf32>
    %2 = tpu.matmul %0, %1, %cst {dimension_numbers = #tpu.dot_dimension_numbers<[1], [0], [0], [1], [0, 0, 1, 1], [], []>} : vector<256x9xf32>, vector<9x128xf32>, vector<256x128xf32> -> vector<256x128xf32>
    %c0_3 = arith.constant 0 : index
    %c0_4 = arith.constant 0 : index
    %3 = vector.load %arg3[%c0_3, %c0_4] : memref<1x128xf32, #tpu.memory_space<vmem>>, vector<1x128xf32>
    %4 = vector.broadcast %3 : vector<1x128xf32> to vector<256x128xf32>
    %5 = arith.addf %2, %4 : vector<256x128xf32>
    %c0_5 = arith.constant 0 : index
    %c0_6 = arith.constant 0 : index
    %6 = vector.load %arg4[%c0_5, %c0_6] : memref<256x128xf32, #tpu.memory_space<vmem>>, vector<256x128xf32>
    tpu.vector_store %arg4[%c0_5, %c0_6], %5 {strides = array<i32>} : memref<256x128xf32, #tpu.memory_space<vmem>>, vector<256x128xf32>,
    return
  }
  func.func @transform_0(%arg0: i32) -> (i32, i32) {
    %c0_i32 = arith.constant 0 : i32
    %c0_i32_0 = arith.constant 0 : i32
    return %arg0, %c0_i32 : i32, i32
  }
  func.func @transform_1(%arg0: i32) -> (i32, i32) {
    %c0_i32 = arith.constant 0 : i32
    %c0_i32_0 = arith.constant 0 : i32
    %c0_i32_1 = arith.constant 0 : i32
    return %c0_i32, %c0_i32_0 : i32, i32
  }
  func.func @transform_2(%arg0: i32) -> (i32, i32) {
    %c0_i32 = arith.constant 0 : i32
    %c0_i32_0 = arith.constant 0 : i32
    %c0_i32_1 = arith.constant 0 : i32
    return %c0_i32, %c0_i32_0 : i32, i32
  }
  func.func @transform_3(%arg0: i32) -> (i32, i32) {
    %c0_i32 = arith.constant 0 : i32
    %c0_i32_0 = arith.constant 0 : i32
    return %arg0, %c0_i32 : i32, i32
  }
}

module attributes {stable_mosaic.version = 11 : i64} {
  func.func @kernel(%arg0: i32, %arg1: memref<256x32xf32, #tpu.memory_space<vmem>>, %arg2: memref<32x128xf32, #tpu.memory_space<vmem>>, %arg3: memref<1x128xf32, #tpu.memory_space<vmem>>, %arg4: memref<256x128xf32, #tpu.memory_space<vmem>>) attributes {dimension_semantics = [#tpu.dimension_semantics<parallel>], iteration_bounds = array<i64: 2>, scalar_prefetch = 0 : i64, scratch_operands = 0 : i64, tpu.core_type = #tpu.core_type<tc>, window_params = [{transform_indices = @transform_0, window_bounds = array<i64: 256, 32>}, {pipeline_mode = #tpu.pipeline_mode<synchronous>, transform_indices = @transform_1, window_bounds = array<i64: 32, 128>}, {pipeline_mode = #tpu.pipeline_mode<synchronous>, transform_indices = @transform_2, window_bounds = array<i64: 1, 128>}, {transform_indices = @transform_3, window_bounds = array<i64: 256, 128>}]} {
    %c0 = arith.constant 0 : index
    %c0_0 = arith.constant 0 : index
    %0 = vector.load %arg1[%c0, %c0_0] : memref<256x32xf32, #tpu.memory_space<vmem>>, vector<256x32xf32>
    %c0_1 = arith.constant 0 : index
    %c0_2 = arith.constant 0 : index
    %1 = vector.load %arg2[%c0_1, %c0_2] : memref<32x128xf32, #tpu.memory_space<vmem>>, vector<32x128xf32>
    %cst = arith.constant dense<0.000000e+00> : vector<256x128xf32>
    %2 = tpu.matmul %0, %1, %cst {dimension_numbers = #tpu.dot_dimension_numbers<[1], [0], [0], [1], [0, 0, 1, 1], [], []>} : vector<256x32xf32>, vector<32x128xf32>, vector<256x128xf32> -> vector<256x128xf32>
    %c0_3 = arith.constant 0 : index
    %c0_4 = arith.constant 0 : index
    %3 = vector.load %arg3[%c0_3, %c0_4] : memref<1x128xf32, #tpu.memory_space<vmem>>, vector<1x128xf32>
    %4 = vector.broadcast %3 : vector<1x128xf32> to vector<256x128xf32>
    %5 = arith.addf %2, %4 : vector<256x128xf32>
    %c0_5 = arith.constant 0 : index
    %c0_6 = arith.constant 0 : index
    %6 = vector.load %arg4[%c0_5, %c0_6] : memref<256x128xf32, #tpu.memory_space<vmem>>, vector<256x128xf32>
    tpu.vector_store %arg4[%c0_5, %c0_6], %5 {strides = array<i32>} : memref<256x128xf32, #tpu.memory_space<vmem>>, vector<256x128xf32>,
    return
  }
  func.func @transform_0(%arg0: i32) -> (i32, i32) {
    %c0_i32 = arith.constant 0 : i32
    %c0_i32_0 = arith.constant 0 : i32
    return %arg0, %c0_i32 : i32, i32
  }
  func.func @transform_1(%arg0: i32) -> (i32, i32) {
    %c0_i32 = arith.constant 0 : i32
    %c0_i32_0 = arith.constant 0 : i32
    %c0_i32_1 = arith.constant 0 : i32
    return %c0_i32, %c0_i32_0 : i32, i32
  }
  func.func @transform_2(%arg0: i32) -> (i32, i32) {
    %c0_i32 = arith.constant 0 : i32
    %c0_i32_0 = arith.constant 0 : i32
    %c0_i32_1 = arith.constant 0 : i32
    return %c0_i32, %c0_i32_0 : i32, i32
  }
  func.func @transform_3(%arg0: i32) -> (i32, i32) {
    %c0_i32 = arith.constant 0 : i32
    %c0_i32_0 = arith.constant 0 : i32
    return %arg0, %c0_i32 : i32, i32
  }
}

module attributes {stable_mosaic.version = 11 : i64} {
  func.func @kernel(%arg0: i32, %arg1: memref<128x144xf32, #tpu.memory_space<vmem>>, %arg2: memref<144x128xf32, #tpu.memory_space<vmem>>, %arg3: memref<1x128xf32, #tpu.memory_space<vmem>>, %arg4: memref<128x128xf32, #tpu.memory_space<vmem>>) attributes {dimension_semantics = [#tpu.dimension_semantics<parallel>], iteration_bounds = array<i64: 1>, scalar_prefetch = 0 : i64, scratch_operands = 0 : i64, tpu.core_type = #tpu.core_type<tc>, window_params = [{transform_indices = @transform_0, window_bounds = array<i64: 128, 144>}, {pipeline_mode = #tpu.pipeline_mode<synchronous>, transform_indices = @transform_1, window_bounds = array<i64: 144, 128>}, {pipeline_mode = #tpu.pipeline_mode<synchronous>, transform_indices = @transform_2, window_bounds = array<i64: 1, 128>}, {transform_indices = @transform_3, window_bounds = array<i64: 128, 128>}]} {
    %c0 = arith.constant 0 : index
    %c0_0 = arith.constant 0 : index
    %0 = vector.load %arg1[%c0, %c0_0] : memref<128x144xf32, #tpu.memory_space<vmem>>, vector<128x144xf32>
    %c0_1 = arith.constant 0 : index
    %c0_2 = arith.constant 0 : index
    %1 = vector.load %arg2[%c0_1, %c0_2] : memref<144x128xf32, #tpu.memory_space<vmem>>, vector<144x128xf32>
    %cst = arith.constant dense<0.000000e+00> : vector<128x128xf32>
    %2 = tpu.matmul %0, %1, %cst {dimension_numbers = #tpu.dot_dimension_numbers<[1], [0], [0], [1], [0, 0, 1, 1], [], []>} : vector<128x144xf32>, vector<144x128xf32>, vector<128x128xf32> -> vector<128x128xf32>
    %c0_3 = arith.constant 0 : index
    %c0_4 = arith.constant 0 : index
    %3 = vector.load %arg3[%c0_3, %c0_4] : memref<1x128xf32, #tpu.memory_space<vmem>>, vector<1x128xf32>
    %4 = vector.broadcast %3 : vector<1x128xf32> to vector<128x128xf32>
    %5 = arith.addf %2, %4 : vector<128x128xf32>
    %c0_5 = arith.constant 0 : index
    %c0_6 = arith.constant 0 : index
    %6 = vector.load %arg4[%c0_5, %c0_6] : memref<128x128xf32, #tpu.memory_space<vmem>>, vector<128x128xf32>
    tpu.vector_store %arg4[%c0_5, %c0_6], %5 {strides = array<i32>} : memref<128x128xf32, #tpu.memory_space<vmem>>, vector<128x128xf32>,
    return
  }
  func.func @transform_0(%arg0: i32) -> (i32, i32) {
    %c0_i32 = arith.constant 0 : i32
    %c0_i32_0 = arith.constant 0 : i32
    return %arg0, %c0_i32 : i32, i32
  }
  func.func @transform_1(%arg0: i32) -> (i32, i32) {
    %c0_i32 = arith.constant 0 : i32
    %c0_i32_0 = arith.constant 0 : i32
    %c0_i32_1 = arith.constant 0 : i32
    return %c0_i32, %c0_i32_0 : i32, i32
  }
  func.func @transform_2(%arg0: i32) -> (i32, i32) {
    %c0_i32 = arith.constant 0 : i32
    %c0_i32_0 = arith.constant 0 : i32
    %c0_i32_1 = arith.constant 0 : i32
    return %c0_i32, %c0_i32_0 : i32, i32
  }
  func.func @transform_3(%arg0: i32) -> (i32, i32) {
    %c0_i32 = arith.constant 0 : i32
    %c0_i32_0 = arith.constant 0 : i32
    return %arg0, %c0_i32 : i32, i32
  }
}

module attributes {stable_mosaic.version = 11 : i64} {
  func.func @kernel(%arg0: i32, %arg1: memref<128x64xf32, #tpu.memory_space<vmem>>, %arg2: memref<64x128xf32, #tpu.memory_space<vmem>>, %arg3: memref<1x128xf32, #tpu.memory_space<vmem>>, %arg4: memref<128x128xf32, #tpu.memory_space<vmem>>) attributes {dimension_semantics = [#tpu.dimension_semantics<parallel>], iteration_bounds = array<i64: 1>, scalar_prefetch = 0 : i64, scratch_operands = 0 : i64, tpu.core_type = #tpu.core_type<tc>, window_params = [{transform_indices = @transform_0, window_bounds = array<i64: 128, 64>}, {pipeline_mode = #tpu.pipeline_mode<synchronous>, transform_indices = @transform_1, window_bounds = array<i64: 64, 128>}, {pipeline_mode = #tpu.pipeline_mode<synchronous>, transform_indices = @transform_2, window_bounds = array<i64: 1, 128>}, {transform_indices = @transform_3, window_bounds = array<i64: 128, 128>}]} {
    %c0 = arith.constant 0 : index
    %c0_0 = arith.constant 0 : index
    %0 = vector.load %arg1[%c0, %c0_0] : memref<128x64xf32, #tpu.memory_space<vmem>>, vector<128x64xf32>
    %c0_1 = arith.constant 0 : index
    %c0_2 = arith.constant 0 : index
    %1 = vector.load %arg2[%c0_1, %c0_2] : memref<64x128xf32, #tpu.memory_space<vmem>>, vector<64x128xf32>
    %cst = arith.constant dense<0.000000e+00> : vector<128x128xf32>
    %2 = tpu.matmul %0, %1, %cst {dimension_numbers = #tpu.dot_dimension_numbers<[1], [0], [0], [1], [0, 0, 1, 1], [], []>} : vector<128x64xf32>, vector<64x128xf32>, vector<128x128xf32> -> vector<128x128xf32>
    %c0_3 = arith.constant 0 : index
    %c0_4 = arith.constant 0 : index
    %3 = vector.load %arg3[%c0_3, %c0_4] : memref<1x128xf32, #tpu.memory_space<vmem>>, vector<1x128xf32>
    %4 = vector.broadcast %3 : vector<1x128xf32> to vector<128x128xf32>
    %5 = arith.addf %2, %4 : vector<128x128xf32>
    %c0_5 = arith.constant 0 : index
    %c0_6 = arith.constant 0 : index
    %6 = vector.load %arg4[%c0_5, %c0_6] : memref<128x128xf32, #tpu.memory_space<vmem>>, vector<128x128xf32>
    tpu.vector_store %arg4[%c0_5, %c0_6], %5 {strides = array<i32>} : memref<128x128xf32, #tpu.memory_space<vmem>>, vector<128x128xf32>,
    return
  }
  func.func @transform_0(%arg0: i32) -> (i32, i32) {
    %c0_i32 = arith.constant 0 : i32
    %c0_i32_0 = arith.constant 0 : i32
    return %arg0, %c0_i32 : i32, i32
  }
  func.func @transform_1(%arg0: i32) -> (i32, i32) {
    %c0_i32 = arith.constant 0 : i32
    %c0_i32_0 = arith.constant 0 : i32
    %c0_i32_1 = arith.constant 0 : i32
    return %c0_i32, %c0_i32_0 : i32, i32
  }
  func.func @transform_2(%arg0: i32) -> (i32, i32) {
    %c0_i32 = arith.constant 0 : i32
    %c0_i32_0 = arith.constant 0 : i32
    %c0_i32_1 = arith.constant 0 : i32
    return %c0_i32, %c0_i32_0 : i32, i32
  }
  func.func @transform_3(%arg0: i32) -> (i32, i32) {
    %c0_i32 = arith.constant 0 : i32
    %c0_i32_0 = arith.constant 0 : i32
    return %arg0, %c0_i32 : i32, i32
  }
}

module attributes {stable_mosaic.version = 11 : i64} {
  func.func @kernel(%arg0: i32, %arg1: memref<128x32xf32, #tpu.memory_space<vmem>>, %arg2: memref<32x128xf32, #tpu.memory_space<vmem>>, %arg3: memref<1x128xf32, #tpu.memory_space<vmem>>, %arg4: memref<128x128xf32, #tpu.memory_space<vmem>>) attributes {dimension_semantics = [#tpu.dimension_semantics<parallel>], iteration_bounds = array<i64: 1>, scalar_prefetch = 0 : i64, scratch_operands = 0 : i64, tpu.core_type = #tpu.core_type<tc>, window_params = [{transform_indices = @transform_0, window_bounds = array<i64: 128, 32>}, {pipeline_mode = #tpu.pipeline_mode<synchronous>, transform_indices = @transform_1, window_bounds = array<i64: 32, 128>}, {pipeline_mode = #tpu.pipeline_mode<synchronous>, transform_indices = @transform_2, window_bounds = array<i64: 1, 128>}, {transform_indices = @transform_3, window_bounds = array<i64: 128, 128>}]} {
    %c0 = arith.constant 0 : index
    %c0_0 = arith.constant 0 : index
    %0 = vector.load %arg1[%c0, %c0_0] : memref<128x32xf32, #tpu.memory_space<vmem>>, vector<128x32xf32>
    %c0_1 = arith.constant 0 : index
    %c0_2 = arith.constant 0 : index
    %1 = vector.load %arg2[%c0_1, %c0_2] : memref<32x128xf32, #tpu.memory_space<vmem>>, vector<32x128xf32>
    %cst = arith.constant dense<0.000000e+00> : vector<128x128xf32>
    %2 = tpu.matmul %0, %1, %cst {dimension_numbers = #tpu.dot_dimension_numbers<[1], [0], [0], [1], [0, 0, 1, 1], [], []>} : vector<128x32xf32>, vector<32x128xf32>, vector<128x128xf32> -> vector<128x128xf32>
    %c0_3 = arith.constant 0 : index
    %c0_4 = arith.constant 0 : index
    %3 = vector.load %arg3[%c0_3, %c0_4] : memref<1x128xf32, #tpu.memory_space<vmem>>, vector<1x128xf32>
    %4 = vector.broadcast %3 : vector<1x128xf32> to vector<128x128xf32>
    %5 = arith.addf %2, %4 : vector<128x128xf32>
    %c0_5 = arith.constant 0 : index
    %c0_6 = arith.constant 0 : index
    %6 = vector.load %arg4[%c0_5, %c0_6] : memref<128x128xf32, #tpu.memory_space<vmem>>, vector<128x128xf32>
    tpu.vector_store %arg4[%c0_5, %c0_6], %5 {strides = array<i32>} : memref<128x128xf32, #tpu.memory_space<vmem>>, vector<128x128xf32>,
    return
  }
  func.func @transform_0(%arg0: i32) -> (i32, i32) {
    %c0_i32 = arith.constant 0 : i32
    %c0_i32_0 = arith.constant 0 : i32
    return %arg0, %c0_i32 : i32, i32
  }
  func.func @transform_1(%arg0: i32) -> (i32, i32) {
    %c0_i32 = arith.constant 0 : i32
    %c0_i32_0 = arith.constant 0 : i32
    %c0_i32_1 = arith.constant 0 : i32
    return %c0_i32, %c0_i32_0 : i32, i32
  }
  func.func @transform_2(%arg0: i32) -> (i32, i32) {
    %c0_i32 = arith.constant 0 : i32
    %c0_i32_0 = arith.constant 0 : i32
    %c0_i32_1 = arith.constant 0 : i32
    return %c0_i32, %c0_i32_0 : i32, i32
  }
  func.func @transform_3(%arg0: i32) -> (i32, i32) {
    %c0_i32 = arith.constant 0 : i32
    %c0_i32_0 = arith.constant 0 : i32
    return %arg0, %c0_i32 : i32, i32
  }
}

module attributes {stable_mosaic.version = 11 : i64} {
  func.func @_pool_max_kernel(%arg0: memref<128x32xf32, #tpu.memory_space<vmem>>, %arg1: memref<128x32xf32, #tpu.memory_space<vmem>>, %arg2: memref<128x32xf32, #tpu.memory_space<vmem>>, %arg3: memref<128x32xf32, #tpu.memory_space<vmem>>, %arg4: memref<128x32xf32, #tpu.memory_space<vmem>>) attributes {dimension_semantics = [], scalar_prefetch = 0 : i64, scratch_operands = 0 : i64, tpu.core_type = #tpu.core_type<tc>} {
    %c0 = arith.constant 0 : index
    %c0_0 = arith.constant 0 : index
    %0 = vector.load %arg0[%c0, %c0_0] : memref<128x32xf32, #tpu.memory_space<vmem>>, vector<128x32xf32>
    %c0_1 = arith.constant 0 : index
    %c0_2 = arith.constant 0 : index
    %1 = vector.load %arg1[%c0_1, %c0_2] : memref<128x32xf32, #tpu.memory_space<vmem>>, vector<128x32xf32>
    %2 = arith.maximumf %0, %1 : vector<128x32xf32>
    %c0_3 = arith.constant 0 : index
    %c0_4 = arith.constant 0 : index
    %3 = vector.load %arg2[%c0_3, %c0_4] : memref<128x32xf32, #tpu.memory_space<vmem>>, vector<128x32xf32>
    %c0_5 = arith.constant 0 : index
    %c0_6 = arith.constant 0 : index
    %4 = vector.load %arg3[%c0_5, %c0_6] : memref<128x32xf32, #tpu.memory_space<vmem>>, vector<128x32xf32>
    %5 = arith.maximumf %3, %4 : vector<128x32xf32>
    %6 = arith.maximumf %2, %5 : vector<128x32xf32>
    %c0_7 = arith.constant 0 : index
    %c0_8 = arith.constant 0 : index
    %7 = vector.load %arg4[%c0_7, %c0_8] : memref<128x32xf32, #tpu.memory_space<vmem>>, vector<128x32xf32>
    tpu.vector_store %arg4[%c0_7, %c0_8], %6 {strides = array<i32>} : memref<128x32xf32, #tpu.memory_space<vmem>>, vector<128x32xf32>,
    return
  }
}

module attributes {stable_mosaic.version = 11 : i64} {
  func.func @kernel(%arg0: i32, %arg1: memref<128x576xf32, #tpu.memory_space<vmem>>, %arg2: memref<576x128xf32, #tpu.memory_space<vmem>>, %arg3: memref<1x128xf32, #tpu.memory_space<vmem>>, %arg4: memref<128x128xf32, #tpu.memory_space<vmem>>) attributes {dimension_semantics = [#tpu.dimension_semantics<parallel>], iteration_bounds = array<i64: 1>, scalar_prefetch = 0 : i64, scratch_operands = 0 : i64, tpu.core_type = #tpu.core_type<tc>, window_params = [{transform_indices = @transform_0, window_bounds = array<i64: 128, 576>}, {pipeline_mode = #tpu.pipeline_mode<synchronous>, transform_indices = @transform_1, window_bounds = array<i64: 576, 128>}, {pipeline_mode = #tpu.pipeline_mode<synchronous>, transform_indices = @transform_2, window_bounds = array<i64: 1, 128>}, {transform_indices = @transform_3, window_bounds = array<i64: 128, 128>}]} {
    %c0 = arith.constant 0 : index
    %c0_0 = arith.constant 0 : index
    %0 = vector.load %arg1[%c0, %c0_0] : memref<128x576xf32, #tpu.memory_space<vmem>>, vector<128x576xf32>
    %c0_1 = arith.constant 0 : index
    %c0_2 = arith.constant 0 : index
    %1 = vector.load %arg2[%c0_1, %c0_2] : memref<576x128xf32, #tpu.memory_space<vmem>>, vector<576x128xf32>
    %cst = arith.constant dense<0.000000e+00> : vector<128x128xf32>
    %2 = tpu.matmul %0, %1, %cst {dimension_numbers = #tpu.dot_dimension_numbers<[1], [0], [0], [1], [0, 0, 1, 1], [], []>} : vector<128x576xf32>, vector<576x128xf32>, vector<128x128xf32> -> vector<128x128xf32>
    %c0_3 = arith.constant 0 : index
    %c0_4 = arith.constant 0 : index
    %3 = vector.load %arg3[%c0_3, %c0_4] : memref<1x128xf32, #tpu.memory_space<vmem>>, vector<1x128xf32>
    %4 = vector.broadcast %3 : vector<1x128xf32> to vector<128x128xf32>
    %5 = arith.addf %2, %4 : vector<128x128xf32>
    %c0_5 = arith.constant 0 : index
    %c0_6 = arith.constant 0 : index
    %6 = vector.load %arg4[%c0_5, %c0_6] : memref<128x128xf32, #tpu.memory_space<vmem>>, vector<128x128xf32>
    tpu.vector_store %arg4[%c0_5, %c0_6], %5 {strides = array<i32>} : memref<128x128xf32, #tpu.memory_space<vmem>>, vector<128x128xf32>,
    return
  }
  func.func @transform_0(%arg0: i32) -> (i32, i32) {
    %c0_i32 = arith.constant 0 : i32
    %c0_i32_0 = arith.constant 0 : i32
    return %arg0, %c0_i32 : i32, i32
  }
  func.func @transform_1(%arg0: i32) -> (i32, i32) {
    %c0_i32 = arith.constant 0 : i32
    %c0_i32_0 = arith.constant 0 : i32
    %c0_i32_1 = arith.constant 0 : i32
    return %c0_i32, %c0_i32_0 : i32, i32
  }
  func.func @transform_2(%arg0: i32) -> (i32, i32) {
    %c0_i32 = arith.constant 0 : i32
    %c0_i32_0 = arith.constant 0 : i32
    %c0_i32_1 = arith.constant 0 : i32
    return %c0_i32, %c0_i32_0 : i32, i32
  }
  func.func @transform_3(%arg0: i32) -> (i32, i32) {
    %c0_i32 = arith.constant 0 : i32
    %c0_i32_0 = arith.constant 0 : i32
    return %arg0, %c0_i32 : i32, i32
  }
}

module attributes {stable_mosaic.version = 11 : i64} {
  func.func @kernel(%arg0: i32, %arg1: memref<128x288xf32, #tpu.memory_space<vmem>>, %arg2: memref<288x128xf32, #tpu.memory_space<vmem>>, %arg3: memref<1x128xf32, #tpu.memory_space<vmem>>, %arg4: memref<128x128xf32, #tpu.memory_space<vmem>>) attributes {dimension_semantics = [#tpu.dimension_semantics<parallel>], iteration_bounds = array<i64: 1>, scalar_prefetch = 0 : i64, scratch_operands = 0 : i64, tpu.core_type = #tpu.core_type<tc>, window_params = [{transform_indices = @transform_0, window_bounds = array<i64: 128, 288>}, {pipeline_mode = #tpu.pipeline_mode<synchronous>, transform_indices = @transform_1, window_bounds = array<i64: 288, 128>}, {pipeline_mode = #tpu.pipeline_mode<synchronous>, transform_indices = @transform_2, window_bounds = array<i64: 1, 128>}, {transform_indices = @transform_3, window_bounds = array<i64: 128, 128>}]} {
    %c0 = arith.constant 0 : index
    %c0_0 = arith.constant 0 : index
    %0 = vector.load %arg1[%c0, %c0_0] : memref<128x288xf32, #tpu.memory_space<vmem>>, vector<128x288xf32>
    %c0_1 = arith.constant 0 : index
    %c0_2 = arith.constant 0 : index
    %1 = vector.load %arg2[%c0_1, %c0_2] : memref<288x128xf32, #tpu.memory_space<vmem>>, vector<288x128xf32>
    %cst = arith.constant dense<0.000000e+00> : vector<128x128xf32>
    %2 = tpu.matmul %0, %1, %cst {dimension_numbers = #tpu.dot_dimension_numbers<[1], [0], [0], [1], [0, 0, 1, 1], [], []>} : vector<128x288xf32>, vector<288x128xf32>, vector<128x128xf32> -> vector<128x128xf32>
    %c0_3 = arith.constant 0 : index
    %c0_4 = arith.constant 0 : index
    %3 = vector.load %arg3[%c0_3, %c0_4] : memref<1x128xf32, #tpu.memory_space<vmem>>, vector<1x128xf32>
    %4 = vector.broadcast %3 : vector<1x128xf32> to vector<128x128xf32>
    %5 = arith.addf %2, %4 : vector<128x128xf32>
    %c0_5 = arith.constant 0 : index
    %c0_6 = arith.constant 0 : index
    %6 = vector.load %arg4[%c0_5, %c0_6] : memref<128x128xf32, #tpu.memory_space<vmem>>, vector<128x128xf32>
    tpu.vector_store %arg4[%c0_5, %c0_6], %5 {strides = array<i32>} : memref<128x128xf32, #tpu.memory_space<vmem>>, vector<128x128xf32>,
    return
  }
  func.func @transform_0(%arg0: i32) -> (i32, i32) {
    %c0_i32 = arith.constant 0 : i32
    %c0_i32_0 = arith.constant 0 : i32
    return %arg0, %c0_i32 : i32, i32
  }
  func.func @transform_1(%arg0: i32) -> (i32, i32) {
    %c0_i32 = arith.constant 0 : i32
    %c0_i32_0 = arith.constant 0 : i32
    %c0_i32_1 = arith.constant 0 : i32
    return %c0_i32, %c0_i32_0 : i32, i32
  }
  func.func @transform_2(%arg0: i32) -> (i32, i32) {
    %c0_i32 = arith.constant 0 : i32
    %c0_i32_0 = arith.constant 0 : i32
    %c0_i32_1 = arith.constant 0 : i32
    return %c0_i32, %c0_i32_0 : i32, i32
  }
  func.func @transform_3(%arg0: i32) -> (i32, i32) {
    %c0_i32 = arith.constant 0 : i32
    %c0_i32_0 = arith.constant 0 : i32
    return %arg0, %c0_i32 : i32, i32
  }
}

module attributes {stable_mosaic.version = 11 : i64} {
  func.func @_add3_kernel(%arg0: memref<128x32xf32, #tpu.memory_space<vmem>>, %arg1: memref<128x32xf32, #tpu.memory_space<vmem>>, %arg2: memref<128x32xf32, #tpu.memory_space<vmem>>, %arg3: memref<128x32xf32, #tpu.memory_space<vmem>>) attributes {dimension_semantics = [], scalar_prefetch = 0 : i64, scratch_operands = 0 : i64, tpu.core_type = #tpu.core_type<tc>} {
    %c0 = arith.constant 0 : index
    %c0_0 = arith.constant 0 : index
    %0 = vector.load %arg0[%c0, %c0_0] : memref<128x32xf32, #tpu.memory_space<vmem>>, vector<128x32xf32>
    %c0_1 = arith.constant 0 : index
    %c0_2 = arith.constant 0 : index
    %1 = vector.load %arg1[%c0_1, %c0_2] : memref<128x32xf32, #tpu.memory_space<vmem>>, vector<128x32xf32>
    %2 = arith.addf %0, %1 : vector<128x32xf32>
    %c0_3 = arith.constant 0 : index
    %c0_4 = arith.constant 0 : index
    %3 = vector.load %arg2[%c0_3, %c0_4] : memref<128x32xf32, #tpu.memory_space<vmem>>, vector<128x32xf32>
    %4 = arith.addf %2, %3 : vector<128x32xf32>
    %c0_5 = arith.constant 0 : index
    %c0_6 = arith.constant 0 : index
    %5 = vector.load %arg3[%c0_5, %c0_6] : memref<128x32xf32, #tpu.memory_space<vmem>>, vector<128x32xf32>
    tpu.vector_store %arg3[%c0_5, %c0_6], %4 {strides = array<i32>} : memref<128x32xf32, #tpu.memory_space<vmem>>, vector<128x32xf32>,
    return
  }
}

module attributes {stable_mosaic.version = 11 : i64} {
  func.func @kernel(%arg0: i32, %arg1: memref<128x32xf32, #tpu.memory_space<vmem>>, %arg2: memref<32x256xf32, #tpu.memory_space<vmem>>, %arg3: memref<1x256xf32, #tpu.memory_space<vmem>>, %arg4: memref<128x256xf32, #tpu.memory_space<vmem>>) attributes {dimension_semantics = [#tpu.dimension_semantics<parallel>], iteration_bounds = array<i64: 1>, scalar_prefetch = 0 : i64, scratch_operands = 0 : i64, tpu.core_type = #tpu.core_type<tc>, window_params = [{transform_indices = @transform_0, window_bounds = array<i64: 128, 32>}, {pipeline_mode = #tpu.pipeline_mode<synchronous>, transform_indices = @transform_1, window_bounds = array<i64: 32, 256>}, {pipeline_mode = #tpu.pipeline_mode<synchronous>, transform_indices = @transform_2, window_bounds = array<i64: 1, 256>}, {transform_indices = @transform_3, window_bounds = array<i64: 128, 256>}]} {
    %c0 = arith.constant 0 : index
    %c0_0 = arith.constant 0 : index
    %0 = vector.load %arg1[%c0, %c0_0] : memref<128x32xf32, #tpu.memory_space<vmem>>, vector<128x32xf32>
    %c0_1 = arith.constant 0 : index
    %c0_2 = arith.constant 0 : index
    %1 = vector.load %arg2[%c0_1, %c0_2] : memref<32x256xf32, #tpu.memory_space<vmem>>, vector<32x256xf32>
    %cst = arith.constant dense<0.000000e+00> : vector<128x256xf32>
    %2 = tpu.matmul %0, %1, %cst {dimension_numbers = #tpu.dot_dimension_numbers<[1], [0], [0], [1], [0, 0, 1, 1], [], []>} : vector<128x32xf32>, vector<32x256xf32>, vector<128x256xf32> -> vector<128x256xf32>
    %c0_3 = arith.constant 0 : index
    %c0_4 = arith.constant 0 : index
    %3 = vector.load %arg3[%c0_3, %c0_4] : memref<1x256xf32, #tpu.memory_space<vmem>>, vector<1x256xf32>
    %4 = vector.broadcast %3 : vector<1x256xf32> to vector<128x256xf32>
    %5 = arith.addf %2, %4 : vector<128x256xf32>
    %c0_5 = arith.constant 0 : index
    %c0_6 = arith.constant 0 : index
    %6 = vector.load %arg4[%c0_5, %c0_6] : memref<128x256xf32, #tpu.memory_space<vmem>>, vector<128x256xf32>
    tpu.vector_store %arg4[%c0_5, %c0_6], %5 {strides = array<i32>} : memref<128x256xf32, #tpu.memory_space<vmem>>, vector<128x256xf32>,
    return
  }
  func.func @transform_0(%arg0: i32) -> (i32, i32) {
    %c0_i32 = arith.constant 0 : i32
    %c0_i32_0 = arith.constant 0 : i32
    return %arg0, %c0_i32 : i32, i32
  }
  func.func @transform_1(%arg0: i32) -> (i32, i32) {
    %c0_i32 = arith.constant 0 : i32
    %c0_i32_0 = arith.constant 0 : i32
    %c0_i32_1 = arith.constant 0 : i32
    return %c0_i32, %c0_i32_0 : i32, i32
  }
  func.func @transform_2(%arg0: i32) -> (i32, i32) {
    %c0_i32 = arith.constant 0 : i32
    %c0_i32_0 = arith.constant 0 : i32
    %c0_i32_1 = arith.constant 0 : i32
    return %c0_i32, %c0_i32_0 : i32, i32
  }
  func.func @transform_3(%arg0: i32) -> (i32, i32) {
    %c0_i32 = arith.constant 0 : i32
    %c0_i32_0 = arith.constant 0 : i32
    return %arg0, %c0_i32 : i32, i32
  }
}

module attributes {stable_mosaic.version = 11 : i64} {
  func.func @_pool_avg_kernel(%arg0: memref<32x256xf32, #tpu.memory_space<vmem>>, %arg1: memref<32x256xf32, #tpu.memory_space<vmem>>, %arg2: memref<32x256xf32, #tpu.memory_space<vmem>>, %arg3: memref<32x256xf32, #tpu.memory_space<vmem>>, %arg4: memref<32x256xf32, #tpu.memory_space<vmem>>) attributes {dimension_semantics = [], scalar_prefetch = 0 : i64, scratch_operands = 0 : i64, tpu.core_type = #tpu.core_type<tc>} {
    %c0 = arith.constant 0 : index
    %c0_0 = arith.constant 0 : index
    %0 = vector.load %arg0[%c0, %c0_0] : memref<32x256xf32, #tpu.memory_space<vmem>>, vector<32x256xf32>
    %c0_1 = arith.constant 0 : index
    %c0_2 = arith.constant 0 : index
    %1 = vector.load %arg1[%c0_1, %c0_2] : memref<32x256xf32, #tpu.memory_space<vmem>>, vector<32x256xf32>
    %2 = arith.addf %0, %1 : vector<32x256xf32>
    %c0_3 = arith.constant 0 : index
    %c0_4 = arith.constant 0 : index
    %3 = vector.load %arg2[%c0_3, %c0_4] : memref<32x256xf32, #tpu.memory_space<vmem>>, vector<32x256xf32>
    %4 = arith.addf %2, %3 : vector<32x256xf32>
    %c0_5 = arith.constant 0 : index
    %c0_6 = arith.constant 0 : index
    %5 = vector.load %arg3[%c0_5, %c0_6] : memref<32x256xf32, #tpu.memory_space<vmem>>, vector<32x256xf32>
    %6 = arith.addf %4, %5 : vector<32x256xf32>
    %cst = arith.constant 2.500000e-01 : f32
    %7 = vector.broadcast %cst : f32 to vector<32x256xf32>
    %8 = arith.mulf %6, %7 : vector<32x256xf32>
    %c0_7 = arith.constant 0 : index
    %c0_8 = arith.constant 0 : index
    %9 = vector.load %arg4[%c0_7, %c0_8] : memref<32x256xf32, #tpu.memory_space<vmem>>, vector<32x256xf32>
    tpu.vector_store %arg4[%c0_7, %c0_8], %8 {strides = array<i32>} : memref<32x256xf32, #tpu.memory_space<vmem>>, vector<32x256xf32>,
    return
  }
}

module attributes {stable_mosaic.version = 11 : i64} {
  func.func @kernel(%arg0: i32, %arg1: memref<32x256xf32, #tpu.memory_space<vmem>>, %arg2: memref<256x512xf32, #tpu.memory_space<vmem>>, %arg3: memref<1x512xf32, #tpu.memory_space<vmem>>, %arg4: memref<32x512xf32, #tpu.memory_space<vmem>>) attributes {dimension_semantics = [#tpu.dimension_semantics<parallel>], iteration_bounds = array<i64: 1>, scalar_prefetch = 0 : i64, scratch_operands = 0 : i64, tpu.core_type = #tpu.core_type<tc>, window_params = [{transform_indices = @transform_0, window_bounds = array<i64: 32, 256>}, {pipeline_mode = #tpu.pipeline_mode<synchronous>, transform_indices = @transform_1, window_bounds = array<i64: 256, 512>}, {pipeline_mode = #tpu.pipeline_mode<synchronous>, transform_indices = @transform_2, window_bounds = array<i64: 1, 512>}, {transform_indices = @transform_3, window_bounds = array<i64: 32, 512>}]} {
    %c0 = arith.constant 0 : index
    %c0_0 = arith.constant 0 : index
    %0 = vector.load %arg1[%c0, %c0_0] : memref<32x256xf32, #tpu.memory_space<vmem>>, vector<32x256xf32>
    %c0_1 = arith.constant 0 : index
    %c0_2 = arith.constant 0 : index
    %1 = vector.load %arg2[%c0_1, %c0_2] : memref<256x512xf32, #tpu.memory_space<vmem>>, vector<256x512xf32>
    %cst = arith.constant dense<0.000000e+00> : vector<32x512xf32>
    %2 = tpu.matmul %0, %1, %cst {dimension_numbers = #tpu.dot_dimension_numbers<[1], [0], [0], [1], [0, 0, 1, 1], [], []>} : vector<32x256xf32>, vector<256x512xf32>, vector<32x512xf32> -> vector<32x512xf32>
    %c0_3 = arith.constant 0 : index
    %c0_4 = arith.constant 0 : index
    %3 = vector.load %arg3[%c0_3, %c0_4] : memref<1x512xf32, #tpu.memory_space<vmem>>, vector<1x512xf32>
    %4 = vector.broadcast %3 : vector<1x512xf32> to vector<32x512xf32>
    %5 = arith.addf %2, %4 : vector<32x512xf32>
    %c0_5 = arith.constant 0 : index
    %c0_6 = arith.constant 0 : index
    %6 = vector.load %arg4[%c0_5, %c0_6] : memref<32x512xf32, #tpu.memory_space<vmem>>, vector<32x512xf32>
    tpu.vector_store %arg4[%c0_5, %c0_6], %5 {strides = array<i32>} : memref<32x512xf32, #tpu.memory_space<vmem>>, vector<32x512xf32>,
    return
  }
  func.func @transform_0(%arg0: i32) -> (i32, i32) {
    %c0_i32 = arith.constant 0 : i32
    %c0_i32_0 = arith.constant 0 : i32
    return %arg0, %c0_i32 : i32, i32
  }
  func.func @transform_1(%arg0: i32) -> (i32, i32) {
    %c0_i32 = arith.constant 0 : i32
    %c0_i32_0 = arith.constant 0 : i32
    %c0_i32_1 = arith.constant 0 : i32
    return %c0_i32, %c0_i32_0 : i32, i32
  }
  func.func @transform_2(%arg0: i32) -> (i32, i32) {
    %c0_i32 = arith.constant 0 : i32
    %c0_i32_0 = arith.constant 0 : i32
    %c0_i32_1 = arith.constant 0 : i32
    return %c0_i32, %c0_i32_0 : i32, i32
  }
  func.func @transform_3(%arg0: i32) -> (i32, i32) {
    %c0_i32 = arith.constant 0 : i32
    %c0_i32_0 = arith.constant 0 : i32
    return %arg0, %c0_i32 : i32, i32
  }
}

module attributes {stable_mosaic.version = 11 : i64} {
  func.func @kernel(%arg0: i32, %arg1: memref<32x4608xf32, #tpu.memory_space<vmem>>, %arg2: memref<4608x256xf32, #tpu.memory_space<vmem>>, %arg3: memref<1x256xf32, #tpu.memory_space<vmem>>, %arg4: memref<32x256xf32, #tpu.memory_space<vmem>>) attributes {dimension_semantics = [#tpu.dimension_semantics<parallel>], iteration_bounds = array<i64: 1>, scalar_prefetch = 0 : i64, scratch_operands = 0 : i64, tpu.core_type = #tpu.core_type<tc>, window_params = [{transform_indices = @transform_0, window_bounds = array<i64: 32, 4608>}, {pipeline_mode = #tpu.pipeline_mode<synchronous>, transform_indices = @transform_1, window_bounds = array<i64: 4608, 256>}, {pipeline_mode = #tpu.pipeline_mode<synchronous>, transform_indices = @transform_2, window_bounds = array<i64: 1, 256>}, {transform_indices = @transform_3, window_bounds = array<i64: 32, 256>}]} {
    %c0 = arith.constant 0 : index
    %c0_0 = arith.constant 0 : index
    %0 = vector.load %arg1[%c0, %c0_0] : memref<32x4608xf32, #tpu.memory_space<vmem>>, vector<32x4608xf32>
    %c0_1 = arith.constant 0 : index
    %c0_2 = arith.constant 0 : index
    %1 = vector.load %arg2[%c0_1, %c0_2] : memref<4608x256xf32, #tpu.memory_space<vmem>>, vector<4608x256xf32>
    %cst = arith.constant dense<0.000000e+00> : vector<32x256xf32>
    %2 = tpu.matmul %0, %1, %cst {dimension_numbers = #tpu.dot_dimension_numbers<[1], [0], [0], [1], [0, 0, 1, 1], [], []>} : vector<32x4608xf32>, vector<4608x256xf32>, vector<32x256xf32> -> vector<32x256xf32>
    %c0_3 = arith.constant 0 : index
    %c0_4 = arith.constant 0 : index
    %3 = vector.load %arg3[%c0_3, %c0_4] : memref<1x256xf32, #tpu.memory_space<vmem>>, vector<1x256xf32>
    %4 = vector.broadcast %3 : vector<1x256xf32> to vector<32x256xf32>
    %5 = arith.addf %2, %4 : vector<32x256xf32>
    %c0_5 = arith.constant 0 : index
    %c0_6 = arith.constant 0 : index
    %6 = vector.load %arg4[%c0_5, %c0_6] : memref<32x256xf32, #tpu.memory_space<vmem>>, vector<32x256xf32>
    tpu.vector_store %arg4[%c0_5, %c0_6], %5 {strides = array<i32>} : memref<32x256xf32, #tpu.memory_space<vmem>>, vector<32x256xf32>,
    return
  }
  func.func @transform_0(%arg0: i32) -> (i32, i32) {
    %c0_i32 = arith.constant 0 : i32
    %c0_i32_0 = arith.constant 0 : i32
    return %arg0, %c0_i32 : i32, i32
  }
  func.func @transform_1(%arg0: i32) -> (i32, i32) {
    %c0_i32 = arith.constant 0 : i32
    %c0_i32_0 = arith.constant 0 : i32
    %c0_i32_1 = arith.constant 0 : i32
    return %c0_i32, %c0_i32_0 : i32, i32
  }
  func.func @transform_2(%arg0: i32) -> (i32, i32) {
    %c0_i32 = arith.constant 0 : i32
    %c0_i32_0 = arith.constant 0 : i32
    %c0_i32_1 = arith.constant 0 : i32
    return %c0_i32, %c0_i32_0 : i32, i32
  }
  func.func @transform_3(%arg0: i32) -> (i32, i32) {
    %c0_i32 = arith.constant 0 : i32
    %c0_i32_0 = arith.constant 0 : i32
    return %arg0, %c0_i32 : i32, i32
  }
}

module attributes {stable_mosaic.version = 11 : i64} {
  func.func @kernel(%arg0: i32, %arg1: memref<32x2304xf32, #tpu.memory_space<vmem>>, %arg2: memref<2304x256xf32, #tpu.memory_space<vmem>>, %arg3: memref<1x256xf32, #tpu.memory_space<vmem>>, %arg4: memref<32x256xf32, #tpu.memory_space<vmem>>) attributes {dimension_semantics = [#tpu.dimension_semantics<parallel>], iteration_bounds = array<i64: 1>, scalar_prefetch = 0 : i64, scratch_operands = 0 : i64, tpu.core_type = #tpu.core_type<tc>, window_params = [{transform_indices = @transform_0, window_bounds = array<i64: 32, 2304>}, {pipeline_mode = #tpu.pipeline_mode<synchronous>, transform_indices = @transform_1, window_bounds = array<i64: 2304, 256>}, {pipeline_mode = #tpu.pipeline_mode<synchronous>, transform_indices = @transform_2, window_bounds = array<i64: 1, 256>}, {transform_indices = @transform_3, window_bounds = array<i64: 32, 256>}]} {
    %c0 = arith.constant 0 : index
    %c0_0 = arith.constant 0 : index
    %0 = vector.load %arg1[%c0, %c0_0] : memref<32x2304xf32, #tpu.memory_space<vmem>>, vector<32x2304xf32>
    %c0_1 = arith.constant 0 : index
    %c0_2 = arith.constant 0 : index
    %1 = vector.load %arg2[%c0_1, %c0_2] : memref<2304x256xf32, #tpu.memory_space<vmem>>, vector<2304x256xf32>
    %cst = arith.constant dense<0.000000e+00> : vector<32x256xf32>
    %2 = tpu.matmul %0, %1, %cst {dimension_numbers = #tpu.dot_dimension_numbers<[1], [0], [0], [1], [0, 0, 1, 1], [], []>} : vector<32x2304xf32>, vector<2304x256xf32>, vector<32x256xf32> -> vector<32x256xf32>
    %c0_3 = arith.constant 0 : index
    %c0_4 = arith.constant 0 : index
    %3 = vector.load %arg3[%c0_3, %c0_4] : memref<1x256xf32, #tpu.memory_space<vmem>>, vector<1x256xf32>
    %4 = vector.broadcast %3 : vector<1x256xf32> to vector<32x256xf32>
    %5 = arith.addf %2, %4 : vector<32x256xf32>
    %c0_5 = arith.constant 0 : index
    %c0_6 = arith.constant 0 : index
    %6 = vector.load %arg4[%c0_5, %c0_6] : memref<32x256xf32, #tpu.memory_space<vmem>>, vector<32x256xf32>
    tpu.vector_store %arg4[%c0_5, %c0_6], %5 {strides = array<i32>} : memref<32x256xf32, #tpu.memory_space<vmem>>, vector<32x256xf32>,
    return
  }
  func.func @transform_0(%arg0: i32) -> (i32, i32) {
    %c0_i32 = arith.constant 0 : i32
    %c0_i32_0 = arith.constant 0 : i32
    return %arg0, %c0_i32 : i32, i32
  }
  func.func @transform_1(%arg0: i32) -> (i32, i32) {
    %c0_i32 = arith.constant 0 : i32
    %c0_i32_0 = arith.constant 0 : i32
    %c0_i32_1 = arith.constant 0 : i32
    return %c0_i32, %c0_i32_0 : i32, i32
  }
  func.func @transform_2(%arg0: i32) -> (i32, i32) {
    %c0_i32 = arith.constant 0 : i32
    %c0_i32_0 = arith.constant 0 : i32
    %c0_i32_1 = arith.constant 0 : i32
    return %c0_i32, %c0_i32_0 : i32, i32
  }
  func.func @transform_3(%arg0: i32) -> (i32, i32) {
    %c0_i32 = arith.constant 0 : i32
    %c0_i32_0 = arith.constant 0 : i32
    return %arg0, %c0_i32 : i32, i32
  }
}

module attributes {stable_mosaic.version = 11 : i64} {
  func.func @_add3_kernel(%arg0: memref<32x256xf32, #tpu.memory_space<vmem>>, %arg1: memref<32x256xf32, #tpu.memory_space<vmem>>, %arg2: memref<32x256xf32, #tpu.memory_space<vmem>>, %arg3: memref<32x256xf32, #tpu.memory_space<vmem>>) attributes {dimension_semantics = [], scalar_prefetch = 0 : i64, scratch_operands = 0 : i64, tpu.core_type = #tpu.core_type<tc>} {
    %c0 = arith.constant 0 : index
    %c0_0 = arith.constant 0 : index
    %0 = vector.load %arg0[%c0, %c0_0] : memref<32x256xf32, #tpu.memory_space<vmem>>, vector<32x256xf32>
    %c0_1 = arith.constant 0 : index
    %c0_2 = arith.constant 0 : index
    %1 = vector.load %arg1[%c0_1, %c0_2] : memref<32x256xf32, #tpu.memory_space<vmem>>, vector<32x256xf32>
    %2 = arith.addf %0, %1 : vector<32x256xf32>
    %c0_3 = arith.constant 0 : index
    %c0_4 = arith.constant 0 : index
    %3 = vector.load %arg2[%c0_3, %c0_4] : memref<32x256xf32, #tpu.memory_space<vmem>>, vector<32x256xf32>
    %4 = arith.addf %2, %3 : vector<32x256xf32>
    %c0_5 = arith.constant 0 : index
    %c0_6 = arith.constant 0 : index
    %5 = vector.load %arg3[%c0_5, %c0_6] : memref<32x256xf32, #tpu.memory_space<vmem>>, vector<32x256xf32>
    tpu.vector_store %arg3[%c0_5, %c0_6], %4 {strides = array<i32>} : memref<32x256xf32, #tpu.memory_space<vmem>>, vector<32x256xf32>,
    return
  }
}

module attributes {stable_mosaic.version = 11 : i64} {
  func.func @kernel(%arg0: i32, %arg1: memref<32x256xf32, #tpu.memory_space<vmem>>, %arg2: memref<256x256xf32, #tpu.memory_space<vmem>>, %arg3: memref<1x256xf32, #tpu.memory_space<vmem>>, %arg4: memref<32x256xf32, #tpu.memory_space<vmem>>) attributes {dimension_semantics = [#tpu.dimension_semantics<parallel>], iteration_bounds = array<i64: 1>, scalar_prefetch = 0 : i64, scratch_operands = 0 : i64, tpu.core_type = #tpu.core_type<tc>, window_params = [{transform_indices = @transform_0, window_bounds = array<i64: 32, 256>}, {pipeline_mode = #tpu.pipeline_mode<synchronous>, transform_indices = @transform_1, window_bounds = array<i64: 256, 256>}, {pipeline_mode = #tpu.pipeline_mode<synchronous>, transform_indices = @transform_2, window_bounds = array<i64: 1, 256>}, {transform_indices = @transform_3, window_bounds = array<i64: 32, 256>}]} {
    %c0 = arith.constant 0 : index
    %c0_0 = arith.constant 0 : index
    %0 = vector.load %arg1[%c0, %c0_0] : memref<32x256xf32, #tpu.memory_space<vmem>>, vector<32x256xf32>
    %c0_1 = arith.constant 0 : index
    %c0_2 = arith.constant 0 : index
    %1 = vector.load %arg2[%c0_1, %c0_2] : memref<256x256xf32, #tpu.memory_space<vmem>>, vector<256x256xf32>
    %cst = arith.constant dense<0.000000e+00> : vector<32x256xf32>
    %2 = tpu.matmul %0, %1, %cst {dimension_numbers = #tpu.dot_dimension_numbers<[1], [0], [0], [1], [0, 0, 1, 1], [], []>} : vector<32x256xf32>, vector<256x256xf32>, vector<32x256xf32> -> vector<32x256xf32>
    %c0_3 = arith.constant 0 : index
    %c0_4 = arith.constant 0 : index
    %3 = vector.load %arg3[%c0_3, %c0_4] : memref<1x256xf32, #tpu.memory_space<vmem>>, vector<1x256xf32>
    %4 = vector.broadcast %3 : vector<1x256xf32> to vector<32x256xf32>
    %5 = arith.addf %2, %4 : vector<32x256xf32>
    %c0_5 = arith.constant 0 : index
    %c0_6 = arith.constant 0 : index
    %6 = vector.load %arg4[%c0_5, %c0_6] : memref<32x256xf32, #tpu.memory_space<vmem>>, vector<32x256xf32>
    tpu.vector_store %arg4[%c0_5, %c0_6], %5 {strides = array<i32>} : memref<32x256xf32, #tpu.memory_space<vmem>>, vector<32x256xf32>,
    return
  }
  func.func @transform_0(%arg0: i32) -> (i32, i32) {
    %c0_i32 = arith.constant 0 : i32
    %c0_i32_0 = arith.constant 0 : i32
    return %arg0, %c0_i32 : i32, i32
  }
  func.func @transform_1(%arg0: i32) -> (i32, i32) {
    %c0_i32 = arith.constant 0 : i32
    %c0_i32_0 = arith.constant 0 : i32
    %c0_i32_1 = arith.constant 0 : i32
    return %c0_i32, %c0_i32_0 : i32, i32
  }
  func.func @transform_2(%arg0: i32) -> (i32, i32) {
    %c0_i32 = arith.constant 0 : i32
    %c0_i32_0 = arith.constant 0 : i32
    %c0_i32_1 = arith.constant 0 : i32
    return %c0_i32, %c0_i32_0 : i32, i32
  }
  func.func @transform_3(%arg0: i32) -> (i32, i32) {
    %c0_i32 = arith.constant 0 : i32
    %c0_i32_0 = arith.constant 0 : i32
    return %arg0, %c0_i32 : i32, i32
  }
}

module attributes {stable_mosaic.version = 11 : i64} {
  func.func @_spatial_stats_kernel(%arg0: memref<32x256xf32, #tpu.memory_space<vmem>>, %arg1: memref<32x1xf32, #tpu.memory_space<vmem>>, %arg2: memref<32x1xf32, #tpu.memory_space<vmem>>) attributes {dimension_semantics = [], scalar_prefetch = 0 : i64, scratch_operands = 0 : i64, tpu.core_type = #tpu.core_type<tc>} {
    %c0 = arith.constant 0 : index
    %c0_0 = arith.constant 0 : index
    %0 = vector.load %arg0[%c0, %c0_0] : memref<32x256xf32, #tpu.memory_space<vmem>>, vector<32x256xf32>
    %cst = arith.constant dense<0.000000e+00> : vector<32xf32>
    %1 = vector.multi_reduction <add>, %0, %cst [1] : vector<32x256xf32> to vector<32xf32>
    %2 = vector.shape_cast %1 : vector<32xf32> to vector<32x1xf32>
    %cst_1 = arith.constant 2.560000e+02 : f32
    %3 = vector.broadcast %cst_1 : f32 to vector<32x1xf32>
    %4 = arith.divf %2, %3 : vector<32x1xf32>
    %c0_2 = arith.constant 0 : index
    %c0_3 = arith.constant 0 : index
    %5 = vector.load %arg1[%c0_2, %c0_3] : memref<32x1xf32, #tpu.memory_space<vmem>>, vector<32x1xf32>
    tpu.vector_store %arg1[%c0_2, %c0_3], %4 {strides = array<i32>} : memref<32x1xf32, #tpu.memory_space<vmem>>, vector<32x1xf32>,
    %cst_4 = arith.constant dense<0xFF800000> : vector<32xf32>
    %6 = vector.multi_reduction <maximumf>, %0, %cst_4 [1] : vector<32x256xf32> to vector<32xf32>
    %7 = vector.shape_cast %6 : vector<32xf32> to vector<32x1xf32>
    %c0_5 = arith.constant 0 : index
    %c0_6 = arith.constant 0 : index
    %8 = vector.load %arg2[%c0_5, %c0_6] : memref<32x1xf32, #tpu.memory_space<vmem>>, vector<32x1xf32>
    tpu.vector_store %arg2[%c0_5, %c0_6], %7 {strides = array<i32>} : memref<32x1xf32, #tpu.memory_space<vmem>>, vector<32x1xf32>,
    return
  }
}

module attributes {stable_mosaic.version = 11 : i64} {
  func.func @_channel_att_kernel(%arg0: i32, %arg1: memref<1x16x256xf32, #tpu.memory_space<vmem>>, %arg2: memref<256x16xf32, #tpu.memory_space<vmem>>, %arg3: memref<1x16xf32, #tpu.memory_space<vmem>>, %arg4: memref<16x256xf32, #tpu.memory_space<vmem>>, %arg5: memref<1x256xf32, #tpu.memory_space<vmem>>, %arg6: memref<1x16x256xf32, #tpu.memory_space<vmem>>) attributes {dimension_semantics = [#tpu.dimension_semantics<parallel>], iteration_bounds = array<i64: 2>, scalar_prefetch = 0 : i64, scratch_operands = 0 : i64, tpu.core_type = #tpu.core_type<tc>, window_params = [{transform_indices = @transform_0, window_bounds = array<i64: 1, 16, 256>}, {pipeline_mode = #tpu.pipeline_mode<synchronous>, transform_indices = @transform_1, window_bounds = array<i64: 256, 16>}, {pipeline_mode = #tpu.pipeline_mode<synchronous>, transform_indices = @transform_2, window_bounds = array<i64: 1, 16>}, {pipeline_mode = #tpu.pipeline_mode<synchronous>, transform_indices = @transform_3, window_bounds = array<i64: 16, 256>}, {pipeline_mode = #tpu.pipeline_mode<synchronous>, transform_indices = @transform_4, window_bounds = array<i64: 1, 256>}, {transform_indices = @transform_5, window_bounds = array<i64: 1, 16, 256>}]} {
    %c0 = arith.constant 0 : index
    %c0_0 = arith.constant 0 : index
    %c0_1 = arith.constant 0 : index
    %0 = vector.load %arg1[%c0, %c0_0, %c0_1] : memref<1x16x256xf32, #tpu.memory_space<vmem>>, vector<1x16x256xf32>
    %1 = vector.shape_cast %0 : vector<1x16x256xf32> to vector<16x256xf32>
    %cst = arith.constant dense<0.000000e+00> : vector<256xf32>
    %2 = vector.multi_reduction <add>, %1, %cst [0] : vector<16x256xf32> to vector<256xf32>
    %3 = vector.shape_cast %2 : vector<256xf32> to vector<1x256xf32>
    %cst_2 = arith.constant 1.600000e+01 : f32
    %4 = vector.broadcast %cst_2 : f32 to vector<1x256xf32>
    %5 = arith.divf %3, %4 : vector<1x256xf32>
    %cst_3 = arith.constant dense<0xFF800000> : vector<256xf32>
    %6 = vector.multi_reduction <maximumf>, %1, %cst_3 [0] : vector<16x256xf32> to vector<256xf32>
    %7 = vector.shape_cast %6 : vector<256xf32> to vector<1x256xf32>
    %c0_4 = arith.constant 0 : index
    %c0_5 = arith.constant 0 : index
    %8 = vector.load %arg2[%c0_4, %c0_5] : memref<256x16xf32, #tpu.memory_space<vmem>>, vector<256x16xf32>
    %cst_6 = arith.constant dense<0.000000e+00> : vector<1x16xf32>
    %9 = tpu.matmul %5, %8, %cst_6 {dimension_numbers = #tpu.dot_dimension_numbers<[1], [0], [0], [1], [0, 0, 1, 1], [], []>} : vector<1x256xf32>, vector<256x16xf32>, vector<1x16xf32> -> vector<1x16xf32>
    %c0_7 = arith.constant 0 : index
    %c0_8 = arith.constant 0 : index
    %10 = vector.load %arg3[%c0_7, %c0_8] : memref<1x16xf32, #tpu.memory_space<vmem>>, vector<1x16xf32>
    %11 = arith.addf %9, %10 : vector<1x16xf32>
    %cst_9 = arith.constant 0.000000e+00 : f32
    %12 = vector.broadcast %cst_9 : f32 to vector<1x16xf32>
    %13 = arith.maximumf %11, %12 : vector<1x16xf32>
    %c0_10 = arith.constant 0 : index
    %c0_11 = arith.constant 0 : index
    %14 = vector.load %arg4[%c0_10, %c0_11] : memref<16x256xf32, #tpu.memory_space<vmem>>, vector<16x256xf32>
    %cst_12 = arith.constant dense<0.000000e+00> : vector<1x256xf32>
    %15 = tpu.matmul %13, %14, %cst_12 {dimension_numbers = #tpu.dot_dimension_numbers<[1], [0], [0], [1], [0, 0, 1, 1], [], []>} : vector<1x16xf32>, vector<16x256xf32>, vector<1x256xf32> -> vector<1x256xf32>
    %c0_13 = arith.constant 0 : index
    %c0_14 = arith.constant 0 : index
    %16 = vector.load %arg5[%c0_13, %c0_14] : memref<1x256xf32, #tpu.memory_space<vmem>>, vector<1x256xf32>
    %17 = arith.addf %15, %16 : vector<1x256xf32>
    %c0_15 = arith.constant 0 : index
    %c0_16 = arith.constant 0 : index
    %18 = vector.load %arg2[%c0_15, %c0_16] : memref<256x16xf32, #tpu.memory_space<vmem>>, vector<256x16xf32>
    %cst_17 = arith.constant dense<0.000000e+00> : vector<1x16xf32>
    %19 = tpu.matmul %7, %18, %cst_17 {dimension_numbers = #tpu.dot_dimension_numbers<[1], [0], [0], [1], [0, 0, 1, 1], [], []>} : vector<1x256xf32>, vector<256x16xf32>, vector<1x16xf32> -> vector<1x16xf32>
    %c0_18 = arith.constant 0 : index
    %c0_19 = arith.constant 0 : index
    %20 = vector.load %arg3[%c0_18, %c0_19] : memref<1x16xf32, #tpu.memory_space<vmem>>, vector<1x16xf32>
    %21 = arith.addf %19, %20 : vector<1x16xf32>
    %cst_20 = arith.constant 0.000000e+00 : f32
    %22 = vector.broadcast %cst_20 : f32 to vector<1x16xf32>
    %23 = arith.maximumf %21, %22 : vector<1x16xf32>
    %c0_21 = arith.constant 0 : index
    %c0_22 = arith.constant 0 : index
    %24 = vector.load %arg4[%c0_21, %c0_22] : memref<16x256xf32, #tpu.memory_space<vmem>>, vector<16x256xf32>
    %cst_23 = arith.constant dense<0.000000e+00> : vector<1x256xf32>
    %25 = tpu.matmul %23, %24, %cst_23 {dimension_numbers = #tpu.dot_dimension_numbers<[1], [0], [0], [1], [0, 0, 1, 1], [], []>} : vector<1x16xf32>, vector<16x256xf32>, vector<1x256xf32> -> vector<1x256xf32>
    %c0_24 = arith.constant 0 : index
    %c0_25 = arith.constant 0 : index
    %26 = vector.load %arg5[%c0_24, %c0_25] : memref<1x256xf32, #tpu.memory_space<vmem>>, vector<1x256xf32>
    %27 = arith.addf %25, %26 : vector<1x256xf32>
    %28 = arith.addf %17, %27 : vector<1x256xf32>
    %cst_26 = arith.constant 0.000000e+00 : f32
    %29 = vector.broadcast %cst_26 : f32 to vector<1x256xf32>
    %30 = arith.subf %29, %28 : vector<1x256xf32>
    %31 = math.exp %30 : vector<1x256xf32>
    %cst_27 = arith.constant 1.000000e+00 : f32
    %32 = vector.broadcast %cst_27 : f32 to vector<1x256xf32>
    %33 = arith.addf %32, %31 : vector<1x256xf32>
    %cst_28 = arith.constant 1.000000e+00 : f32
    %34 = vector.broadcast %cst_28 : f32 to vector<1x256xf32>
    %35 = arith.divf %34, %33 : vector<1x256xf32>
    %36 = vector.broadcast %35 : vector<1x256xf32> to vector<16x256xf32>
    %37 = arith.mulf %1, %36 : vector<16x256xf32>
    %c0_29 = arith.constant 0 : index
    %c0_30 = arith.constant 0 : index
    %c0_31 = arith.constant 0 : index
    %38 = vector.load %arg6[%c0_29, %c0_30, %c0_31] : memref<1x16x256xf32, #tpu.memory_space<vmem>>, vector<1x16x256xf32>
    %39 = vector.shape_cast %38 : vector<1x16x256xf32> to vector<16x256xf32>
    %40 = vector.shape_cast %37 : vector<16x256xf32> to vector<1x16x256xf32>
    tpu.vector_store %arg6[%c0_29, %c0_30, %c0_31], %40 {strides = array<i32>} : memref<1x16x256xf32, #tpu.memory_space<vmem>>, vector<1x16x256xf32>,
    return
  }
  func.func @transform_0(%arg0: i32) -> (i32, i32, i32) {
    %c0_i32 = arith.constant 0 : i32
    %c0_i32_0 = arith.constant 0 : i32
    %c0_i32_1 = arith.constant 0 : i32
    return %arg0, %c0_i32, %c0_i32_0 : i32, i32, i32
  }
  func.func @transform_1(%arg0: i32) -> (i32, i32) {
    %c0_i32 = arith.constant 0 : i32
    %c0_i32_0 = arith.constant 0 : i32
    %c0_i32_1 = arith.constant 0 : i32
    return %c0_i32, %c0_i32_0 : i32, i32
  }
  func.func @transform_2(%arg0: i32) -> (i32, i32) {
    %c0_i32 = arith.constant 0 : i32
    %c0_i32_0 = arith.constant 0 : i32
    %c0_i32_1 = arith.constant 0 : i32
    return %c0_i32, %c0_i32_0 : i32, i32
  }
  func.func @transform_3(%arg0: i32) -> (i32, i32) {
    %c0_i32 = arith.constant 0 : i32
    %c0_i32_0 = arith.constant 0 : i32
    %c0_i32_1 = arith.constant 0 : i32
    return %c0_i32, %c0_i32_0 : i32, i32
  }
  func.func @transform_4(%arg0: i32) -> (i32, i32) {
    %c0_i32 = arith.constant 0 : i32
    %c0_i32_0 = arith.constant 0 : i32
    %c0_i32_1 = arith.constant 0 : i32
    return %c0_i32, %c0_i32_0 : i32, i32
  }
  func.func @transform_5(%arg0: i32) -> (i32, i32, i32) {
    %c0_i32 = arith.constant 0 : i32
    %c0_i32_0 = arith.constant 0 : i32
    %c0_i32_1 = arith.constant 0 : i32
    return %arg0, %c0_i32, %c0_i32_0 : i32, i32, i32
  }
}

module attributes {stable_mosaic.version = 11 : i64} {
  func.func @_mul_bcast_kernel(%arg0: memref<32x256xf32, #tpu.memory_space<vmem>>, %arg1: memref<32x1xf32, #tpu.memory_space<vmem>>, %arg2: memref<32x256xf32, #tpu.memory_space<vmem>>) attributes {dimension_semantics = [], scalar_prefetch = 0 : i64, scratch_operands = 0 : i64, tpu.core_type = #tpu.core_type<tc>} {
    %c0 = arith.constant 0 : index
    %c0_0 = arith.constant 0 : index
    %0 = vector.load %arg0[%c0, %c0_0] : memref<32x256xf32, #tpu.memory_space<vmem>>, vector<32x256xf32>
    %c0_1 = arith.constant 0 : index
    %c0_2 = arith.constant 0 : index
    %1 = vector.load %arg1[%c0_1, %c0_2] : memref<32x1xf32, #tpu.memory_space<vmem>>, vector<32x1xf32>
    %2 = vector.broadcast %1 : vector<32x1xf32> to vector<32x256xf32>
    %3 = arith.mulf %0, %2 : vector<32x256xf32>
    %c0_3 = arith.constant 0 : index
    %c0_4 = arith.constant 0 : index
    %4 = vector.load %arg2[%c0_3, %c0_4] : memref<32x256xf32, #tpu.memory_space<vmem>>, vector<32x256xf32>
    tpu.vector_store %arg2[%c0_3, %c0_4], %3 {strides = array<i32>} : memref<32x256xf32, #tpu.memory_space<vmem>>, vector<32x256xf32>,
    return
  }
}

module attributes {stable_mosaic.version = 11 : i64} {
  func.func @kernel(%arg0: i32, %arg1: memref<32x98xf32, #tpu.memory_space<vmem>>, %arg2: memref<98x128xf32, #tpu.memory_space<vmem>>, %arg3: memref<1x128xf32, #tpu.memory_space<vmem>>, %arg4: memref<32x128xf32, #tpu.memory_space<vmem>>) attributes {dimension_semantics = [#tpu.dimension_semantics<parallel>], iteration_bounds = array<i64: 1>, scalar_prefetch = 0 : i64, scratch_operands = 0 : i64, tpu.core_type = #tpu.core_type<tc>, window_params = [{transform_indices = @transform_0, window_bounds = array<i64: 32, 98>}, {pipeline_mode = #tpu.pipeline_mode<synchronous>, transform_indices = @transform_1, window_bounds = array<i64: 98, 128>}, {pipeline_mode = #tpu.pipeline_mode<synchronous>, transform_indices = @transform_2, window_bounds = array<i64: 1, 128>}, {transform_indices = @transform_3, window_bounds = array<i64: 32, 128>}]} {
    %c0 = arith.constant 0 : index
    %c0_0 = arith.constant 0 : index
    %0 = vector.load %arg1[%c0, %c0_0] : memref<32x98xf32, #tpu.memory_space<vmem>>, vector<32x98xf32>
    %c0_1 = arith.constant 0 : index
    %c0_2 = arith.constant 0 : index
    %1 = vector.load %arg2[%c0_1, %c0_2] : memref<98x128xf32, #tpu.memory_space<vmem>>, vector<98x128xf32>
    %cst = arith.constant dense<0.000000e+00> : vector<32x128xf32>
    %2 = tpu.matmul %0, %1, %cst {dimension_numbers = #tpu.dot_dimension_numbers<[1], [0], [0], [1], [0, 0, 1, 1], [], []>} : vector<32x98xf32>, vector<98x128xf32>, vector<32x128xf32> -> vector<32x128xf32>
    %c0_3 = arith.constant 0 : index
    %c0_4 = arith.constant 0 : index
    %3 = vector.load %arg3[%c0_3, %c0_4] : memref<1x128xf32, #tpu.memory_space<vmem>>, vector<1x128xf32>
    %4 = vector.broadcast %3 : vector<1x128xf32> to vector<32x128xf32>
    %5 = arith.addf %2, %4 : vector<32x128xf32>
    %cst_5 = arith.constant 0.000000e+00 : f32
    %6 = vector.broadcast %cst_5 : f32 to vector<32x128xf32>
    %7 = arith.subf %6, %5 : vector<32x128xf32>
    %8 = math.exp %7 : vector<32x128xf32>
    %cst_6 = arith.constant 1.000000e+00 : f32
    %9 = vector.broadcast %cst_6 : f32 to vector<32x128xf32>
    %10 = arith.addf %9, %8 : vector<32x128xf32>
    %cst_7 = arith.constant 1.000000e+00 : f32
    %11 = vector.broadcast %cst_7 : f32 to vector<32x128xf32>
    %12 = arith.divf %11, %10 : vector<32x128xf32>
    %c0_8 = arith.constant 0 : index
    %c0_9 = arith.constant 0 : index
    %13 = vector.load %arg4[%c0_8, %c0_9] : memref<32x128xf32, #tpu.memory_space<vmem>>, vector<32x128xf32>
    tpu.vector_store %arg4[%c0_8, %c0_9], %12 {strides = array<i32>} : memref<32x128xf32, #tpu.memory_space<vmem>>, vector<32x128xf32>,
    return
  }
  func.func @transform_0(%arg0: i32) -> (i32, i32) {
    %c0_i32 = arith.constant 0 : i32
    %c0_i32_0 = arith.constant 0 : i32
    return %arg0, %c0_i32 : i32, i32
  }
  func.func @transform_1(%arg0: i32) -> (i32, i32) {
    %c0_i32 = arith.constant 0 : i32
    %c0_i32_0 = arith.constant 0 : i32
    %c0_i32_1 = arith.constant 0 : i32
    return %c0_i32, %c0_i32_0 : i32, i32
  }
  func.func @transform_2(%arg0: i32) -> (i32, i32) {
    %c0_i32 = arith.constant 0 : i32
    %c0_i32_0 = arith.constant 0 : i32
    %c0_i32_1 = arith.constant 0 : i32
    return %c0_i32, %c0_i32_0 : i32, i32
  }
  func.func @transform_3(%arg0: i32) -> (i32, i32) {
    %c0_i32 = arith.constant 0 : i32
    %c0_i32_0 = arith.constant 0 : i32
    return %arg0, %c0_i32 : i32, i32
  }
}

</mosaic_0001>

<llo_original>
// kernel: basic_block_forward.37
$region0: #{basic_block_forward.37}
  #allocation0 [shape = 'u32[]', space=smem, size = 0x4, offset = 0x4, fixed_abs, tag = 'smem constant byte address 0x4 - core index']
  #allocation1 [shape = 'u32[144,128]{1,0:T(1,128)}', space=vmem, size = 0x12000, scoped, tag = 'internal scratch']
  %s0 = inlined_call_operand.vmem [shape: f32[512,32], index: 0, kind: input, shape index: {}]
  %s1 = inlined_call_operand.vmem [shape: f32[32,128], index: 1, kind: input, shape index: {}]
  %s2 = inlined_call_operand.vmem [shape: f32[1,128], index: 2, kind: input, shape index: {}]
  %s3 = inlined_call_operand.vmem [shape: f32[512,128], index: 3, kind: output, shape index: {}]
  %s4 = sld [smem:[#allocation0]]
  $region45: #{basic_block_forward.37} parent=0
    _
  %s6 = ssub.s32 1, %s4
  %s7 = scalar_select 0, %s6, %s4
  loop: start=0, step=1, limit=4
  $region2: #{basic_block_forward.37} parent=0 // loop_pre_header
    _
  $region3: #{basic_block_forward.37} parent=0 // loop_header
    %s9 = sphi 0, %s13
    %p10 = scmp.ge.s32.totalorder %s9, 4
    %s19 = sphi 0, %s21
    %s22 = sphi 0, %s19
    %s23 = sphi 0, %s22
    %s39 = sphi 0, %s23
    %s43 = sphi 0, %s43
    %s45 = sphi 0, %s43
    %s46 = sphi 0, %s45
    %s60 = sphi 0, %s46
    %s64 = sphi 0, %s64
    %s66 = sphi 0, %s64
    %s67 = sphi 0, %s66
    %s81 = sphi 0, %s67
    %s87 = sphi 0, %s89
    %s90 = sphi 0, %s87
    %s91 = sphi 0, %s90
    %s107 = sphi 0, %s91
  $region4: #{basic_block_forward.37} parent=0 // loop_header_branch
    %12 = sbr.rel (%p10) target = $region8
  $region5: #{basic_block_forward.37} parent=0 // loop_body
    %s14 = ssub.s32 %s9, 1
    %s15 = ssub.s32 %s9, 2
    %s16 = sadd.s32 %s9, 1
    %s17 = ssub.s32 %s9, %s16
    %p18 = scmp.eq.s32.totalorder %s17, 0
    %s20 = sadd.s32 %s19, 1
    %s21 = scalar_select %p18, %s19, %s20
    %p24 = pneg %p18
    %p25 = scmp.eq.s32.totalorder %s9, 1
    %p26 = por %p24, %p25
    %p27 = scmp.ne.s32.totalorder %s19, %s22
    %p28 = scmp.eq.s32.totalorder %s9, 0
    %p29 = por %p27, %p28
    %p30 = scmp.ne.s32.totalorder %s19, %s22
    %p31 = scmp.eq.s32.totalorder %s14, 1
    %p32 = por %p30, %p31
    %p33 = scmp.ne.s32.totalorder %s22, %s23
    %p34 = scmp.eq.s32.totalorder %s14, 0
    %p35 = por %p33, %p34
    %p36 = scmp.ne.s32.totalorder %s22, %s23
    %p37 = scmp.eq.s32.totalorder %s15, 1
    %p38 = por %p36, %p37
    %p40 = scmp.ne.s32.totalorder %s23, %s39
    %p41 = scmp.eq.s32.totalorder %s15, 0
    %p42 = por %p40, %p41
    %s44 = sadd.s32 %s43, 1
    %p47 = scmp.eq.s32.totalorder %s9, 1
    %p48 = scmp.ne.s32.totalorder %s43, %s45
    %p49 = scmp.eq.s32.totalorder %s9, 0
    %p50 = por %p48, %p49
    %p51 = scmp.ne.s32.totalorder %s43, %s45
    %p52 = scmp.eq.s32.totalorder %s14, 1
    %p53 = por %p51, %p52
    %p54 = scmp.ne.s32.totalorder %s45, %s46
    %p55 = scmp.eq.s32.totalorder %s14, 0
    %p56 = por %p54, %p55
    %p57 = scmp.ne.s32.totalorder %s45, %s46
    %p58 = scmp.eq.s32.totalorder %s15, 1
    %p59 = por %p57, %p58
    %p61 = scmp.ne.s32.totalorder %s46, %s60
    %p62 = scmp.eq.s32.totalorder %s15, 0
    %p63 = por %p61, %p62
    %s65 = sadd.s32 %s64, 1
    %p68 = scmp.eq.s32.totalorder %s9, 1
    %p69 = scmp.ne.s32.totalorder %s64, %s66
    %p70 = scmp.eq.s32.totalorder %s9, 0
    %p71 = por %p69, %p70
    %p72 = scmp.ne.s32.totalorder %s64, %s66
    %p73 = scmp.eq.s32.totalorder %s14, 1
    %p74 = por %p72, %p73
    %p75 = scmp.ne.s32.totalorder %s66, %s67
    %p76 = scmp.eq.s32.totalorder %s14, 0
    %p77 = por %p75, %p76
    %p78 = scmp.ne.s32.totalorder %s66, %s67
    %p79 = scmp.eq.s32.totalorder %s15, 1
    %p80 = por %p78, %p79
    %p82 = scmp.ne.s32.totalorder %s67, %s81
    %p83 = scmp.eq.s32.totalorder %s15, 0
    %p84 = por %p82, %p83
    %s85 = ssub.s32 %s9, %s16
    %p86 = scmp.eq.s32.totalorder %s85, 0
    %s88 = sadd.s32 %s87, 1
    %s89 = scalar_select %p86, %s87, %s88
    %p92 = pneg %p86
    %p93 = scmp.eq.s32.totalorder %s9, 1
    %p94 = por %p92, %p93
    %p95 = scmp.ne.s32.totalorder %s87, %s90
    %p96 = scmp.eq.s32.totalorder %s9, 0
    %p97 = por %p95, %p96
    %p98 = scmp.ne.s32.totalorder %s87, %s90
    %p99 = scmp.eq.s32.totalorder %s14, 1
    %p100 = por %p98, %p99
    %p101 = scmp.ne.s32.totalorder %s90, %s91
    %p102 = scmp.eq.s32.totalorder %s14, 0
    %p103 = por %p101, %p102
    %p104 = scmp.ne.s32.totalorder %s90, %s91
    %p105 = scmp.eq.s32.totalorder %s15, 1
    %p106 = por %p104, %p105
    %p108 = scmp.ne.s32.totalorder %s91, %s107
    %p109 = scmp.eq.s32.totalorder %s15, 0
    %p110 = por %p108, %p109
    %p111 = scmp.le.s32.totalorder 1, %s9
    %p112 = scmp.lt.s32.totalorder %s9, 3
    %p113 = pnand %p111, %p112
    %p114 = pneg %p113
    // Predicated region
    $region9: #{basic_block_forward.37} parent=5 // pred_check
      _
    $region10: #{basic_block_forward.37} parent=5 // pred_check_branch
      %116 = sbr.rel (%p113) target = $region12
    $region11: #{basic_block_forward.37} parent=5 // pred_region
      %s117 = ssub.s32 %s9, 1
      // Predicated region
      $region13: #{basic_block_forward.37} parent=11 // pred_check
        %p118 = pneg %p56
      $region14: #{basic_block_forward.37} parent=11 // pred_check_branch
        %120 = sbr.rel (%p118) target = $region16
      $region15: #{basic_block_forward.37} parent=11 // pred_region
        _
      $region16: #{basic_block_forward.37} parent=11 // pred_fallthru
        _
      // Predicated region
      $region17: #{basic_block_forward.37} parent=11 // pred_check
        %p121 = pneg %p77
      $region18: #{basic_block_forward.37} parent=11 // pred_check_branch
        %123 = sbr.rel (%p121) target = $region20
      $region19: #{basic_block_forward.37} parent=11 // pred_region
        _
      $region20: #{basic_block_forward.37} parent=11 // pred_fallthru
        _
    $region12: #{basic_block_forward.37} parent=5 // pred_fallthru
      _
    %p124 = scmp.lt.s32.totalorder %s9, 2
    // Predicated region
    $region21: #{basic_block_forward.37} parent=5 // pred_check
      %p125 = pneg %p124
    $region22: #{basic_block_forward.37} parent=5 // pred_check_branch
      %127 = sbr.rel (%p125) target = $region24
    $region23: #{basic_block_forward.37} parent=5 // pred_region
      // Predicated region
      $region25: #{basic_block_forward.37} parent=23 // pred_check
        %p128 = pneg %p29
      $region26: #{basic_block_forward.37} parent=23 // pred_check_branch
        %130 = sbr.rel (%p128) target = $region28
      $region27: #{basic_block_forward.37} parent=23 // pred_region
        %s131 = smul.u32 32, %s9
        %p132 = scmp.lt.s32.totalorder %s131, 63
        %s133 = scalar_select %p132, %s131, 63
        %s134 = smul.addr %s133, 8
        %s135 = scalar_lea.vmem %s0, %s134
        %s136 = smul.u32 32, %s9
      $region28: #{basic_block_forward.37} parent=23 // pred_fallthru
        _
    $region24: #{basic_block_forward.37} parent=5 // pred_fallthru
      _
    %p137 = scmp.le.s32.totalorder 1, %s9
    %p138 = scmp.lt.s32.totalorder %s9, 3
    %p139 = pnand %p137, %p138
    %p140 = pneg %p139
    // Predicated region
    $region29: #{basic_block_forward.37} parent=5 // pred_check
      _
    $region30: #{basic_block_forward.37} parent=5 // pred_check_branch
      %142 = sbr.rel (%p139) target = $region32
    $region31: #{basic_block_forward.37} parent=5 // pred_region
      %s143 = ssub.s32 %s9, 1
      %s144 = smul.u32 32, %s14
      %p145 = scmp.lt.s32.totalorder %s144, 63
      %s146 = scalar_select %p145, %s144, 63
      %s147 = smul.addr %s146, 8
      %s148 = scalar_lea.vmem %s0, %s147
      %p149 = pneg %p35
      %p150 = pneg %p32
      %p151 = pneg %p56
      %p152 = pneg %p53
      %p153 = pneg %p77
      %p154 = pneg %p74
      %p155 = pneg %p103
      %p156 = pneg %p100
      %s157 = smul.u32 32, %s14
      %p158 = scmp.lt.s32.totalorder %s157, 63
      %s159 = scalar_select %p158, %s157, 63
      %s160 = smul.addr %s159, 8
      %s161 = scalar_lea.vmem %s3, %s160
      %s162 = smul.u32 32, %s14
      %p163 = scmp.lt.s32.totalorder %s162, 63
      %s164 = scalar_select %p163, %s162, 63
      %s165 = smul.addr %s164, 8
      %s166 = scalar_lea.vmem %s0, %s165
      %s167 = smul.u32 32, %s14
      %s168 = smul.u32 32, %s14
      %p169 = scmp.lt.s32.totalorder %s168, 63
      %s170 = scalar_select %p169, %s168, 63
      %s171 = smul.addr %s170, 8
      %s172 = scalar_lea.vmem %s3, %s171
      %s173 = smul.u32 32, %s14
      %v174 = vld [vmem:[%s166] sm:$0xff]
      %v175 = vld [vmem:[%s166 + $0x8] sm:$0xff]
      %v176 = vld [vmem:[%s166 + $0x10] sm:$0xff]
      %v177 = vld [vmem:[%s166 + $0x18] sm:$0xff]
      %v178 = vld [vmem:[%s166 + $0x20] sm:$0xff]
      %v179 = vld [vmem:[%s166 + $0x28] sm:$0xff]
      %v180 = vld [vmem:[%s166 + $0x30] sm:$0xff]
      %v181 = vld [vmem:[%s166 + $0x38] sm:$0xff]
      %v182 = vld [vmem:[%s166 + $0x40] sm:$0xff]
      %v183 = vld [vmem:[%s166 + $0x48] sm:$0xff]
      %v184 = vld [vmem:[%s166 + $0x50] sm:$0xff]
      %v185 = vld [vmem:[%s166 + $0x58] sm:$0xff]
      %v186 = vld [vmem:[%s166 + $0x60] sm:$0xff]
      %v187 = vld [vmem:[%s166 + $0x68] sm:$0xff]
      %v188 = vld [vmem:[%s166 + $0x70] sm:$0xff]
      %v189 = vld [vmem:[%s166 + $0x78] sm:$0xff]
      %v190 = vld [vmem:[%s166 + $0x80] sm:$0xff]
      %v191 = vld [vmem:[%s166 + $0x88] sm:$0xff]
      %v192 = vld [vmem:[%s166 + $0x90] sm:$0xff]
      %v193 = vld [vmem:[%s166 + $0x98] sm:$0xff]
      %v194 = vld [vmem:[%s166 + $0xa0] sm:$0xff]
      %v195 = vld [vmem:[%s166 + $0xa8] sm:$0xff]
      %v196 = vld [vmem:[%s166 + $0xb0] sm:$0xff]
      %v197 = vld [vmem:[%s166 + $0xb8] sm:$0xff]
      %v198 = vld [vmem:[%s166 + $0xc0] sm:$0xff]
      %v199 = vld [vmem:[%s166 + $0xc8] sm:$0xff]
      %v200 = vld [vmem:[%s166 + $0xd0] sm:$0xff]
      %v201 = vld [vmem:[%s166 + $0xd8] sm:$0xff]
      %v202 = vld [vmem:[%s166 + $0xe0] sm:$0xff]
      %v203 = vld [vmem:[%s166 + $0xe8] sm:$0xff]
      %v204 = vld [vmem:[%s166 + $0xf0] sm:$0xff]
      %v205 = vld [vmem:[%s166 + $0xf8] sm:$0xff]
      %v206 = vld [vmem:[%s1] sm:$0xff]
      %v207 = vld [vmem:[%s1 + $0x8] sm:$0xff]
      %v208 = vld [vmem:[%s1 + $0x10] sm:$0xff]
      %v209 = vld [vmem:[%s1 + $0x18] sm:$0xff]
      %v210 = vld [vmem:[%s2] sm:$0x1]
      %v212 = vlaneseq
      %v213 = vshrl.u32 %v212, 7
      %v214 = vsub.s32 0, %v213
      %v215 = vrot.slane %v210, %v214
      %vm217 = vcmask 261120
      %v219 = vsel %vm217, %v174, 0
      %v222 = vsel %vm217, %v175, 0
      %v225 = vsel %vm217, %v176, 0
      %v228 = vsel %vm217, %v177, 0
      %v231 = vsel %vm217, %v178, 0
      %v234 = vsel %vm217, %v179, 0
      %v237 = vsel %vm217, %v180, 0
      %v240 = vsel %vm217, %v181, 0
      %v243 = vsel %vm217, %v182, 0
      %v246 = vsel %vm217, %v183, 0
      %v249 = vsel %vm217, %v184, 0
      %v252 = vsel %vm217, %v185, 0
      %v255 = vsel %vm217, %v186, 0
      %v258 = vsel %vm217, %v187, 0
      %v261 = vsel %vm217, %v188, 0
      %v264 = vsel %vm217, %v189, 0
      %v267 = vsel %vm217, %v190, 0
      %v270 = vsel %vm217, %v191, 0
      %v273 = vsel %vm217, %v192, 0
      %v276 = vsel %vm217, %v193, 0
      %v279 = vsel %vm217, %v194, 0
      %v282 = vsel %vm217, %v195, 0
      %v285 = vsel %vm217, %v196, 0
      %v288 = vsel %vm217, %v197, 0
      %v291 = vsel %vm217, %v198, 0
      %v294 = vsel %vm217, %v199, 0
      %v297 = vsel %vm217, %v200, 0
      %v300 = vsel %vm217, %v201, 0
      %v303 = vsel %vm217, %v202, 0
      %v306 = vsel %vm217, %v203, 0
      %v309 = vsel %vm217, %v204, 0
      %v312 = vsel %vm217, %v205, 0
      %314 = vmatprep.subr.mxu0 0.0
      %315 = vmatpush1.msra.mxu0 %v206
      %316 = vmatprep.subr.mxu0 0.0
      %317 = vmatpush1.msra.mxu0 %v207
      %318 = vmatprep.subr.mxu0 0.0
      %319 = vmatpush1.msra.mxu0 %v208
      %320 = vmatprep.subr.mxu0 0.0
      %321 = vmatpush1.msra.mxu0 %v209
      %322 = vmatprep.subr.mxu0 0.0
      %323 = vmatpush1.msra.mxu0 0.0
      %324 = vmatprep.subr.mxu0 0.0
      %325 = vmatpush1.msra.mxu0 0.0
      %326 = vmatprep.subr.mxu0 0.0
      %327 = vmatpush1.msra.mxu0 0.0
      %328 = vmatprep.subr.mxu0 0.0
      %329 = vmatpush1.msra.mxu0 0.0
      %330 = vmatprep.subr.mxu0 0.0
      %331 = vmatpush1.msra.mxu0 0.0
      %332 = vmatprep.subr.mxu0 0.0
      %333 = vmatpush1.msra.mxu0 0.0
      %334 = vmatprep.subr.mxu0 0.0
      %335 = vmatpush1.msra.mxu0 0.0
      %336 = vmatprep.subr.mxu0 0.0
      %337 = vmatpush1.msra.mxu0 0.0
      %338 = vmatprep.subr.mxu0 0.0
      %339 = vmatpush1.msra.mxu0 0.0
      %340 = vmatprep.subr.mxu0 0.0
      %341 = vmatpush1.msra.mxu0 0.0
      %342 = vmatprep.subr.mxu0 0.0
      %343 = vmatpush1.msra.mxu0 0.0
      %344 = vmatprep.subr.mxu0 0.0
      %345 = vmatpush1.msra.mxu0 0.0
      %346 = vmatprep.subr.mxu0 0.0
      %347 = vmatpush1.msra.mxu0 0.0
      %348 = vmatprep.subr.mxu0 0.0
      %349 = vmatpush1.msra.mxu0 0.0
      %350 = vmatprep.subr.mxu0 0.0
      %351 = vmatpush1.msra.mxu0 0.0
      %352 = vmatprep.subr.mxu0 0.0
      %353 = vmatpush1.msra.mxu0 0.0
      %354 = vmatprep.subr.mxu0 0.0
      %355 = vmatpush1.msra.mxu0 0.0
      %356 = vmatprep.subr.mxu0 0.0
      %357 = vmatpush1.msra.mxu0 0.0
      %358 = vmatprep.subr.mxu0 0.0
      %359 = vmatpush1.msra.mxu0 0.0
      %360 = vmatprep.subr.mxu0 0.0
      %361 = vmatpush1.msra.mxu0 0.0
      %362 = vmatprep.subr.mxu0 0.0
      %363 = vmatpush1.msra.mxu0 0.0
      %364 = vmatprep.subr.mxu0 0.0
      %365 = vmatpush1.msra.mxu0 0.0
      %366 = vmatprep.subr.mxu0 0.0
      %367 = vmatpush1.msra.mxu0 0.0
      %368 = vmatprep.subr.mxu0 0.0
      %369 = vmatpush1.msra.mxu0 0.0
      %370 = vmatprep.subr.mxu0 0.0
      %371 = vmatpush1.msra.mxu0 0.0
      %372 = vmatprep.subr.mxu0 0.0
      %373 = vmatpush1.msra.mxu0 0.0
      %374 = vmatprep.subr.mxu0 0.0
      %375 = vmatpush1.msra.mxu0 0.0
      %376 = vmatprep.subr.mxu0 0.0
      %377 = vmatpush1.msra.mxu0 0.0
      %378 = vmatprep.mubr.f32.mxu0 0.0
      %379 = vmatmul.mubr.f32.gmra.mrb[0].mxu0 %v219
      %v380 = vpop.f32.mrb[0].mxu0
      %v381 = vadd.f32 %v215, %v380
      %v382 = vpop.f32.mrb[0].mxu0
      %383 = vmatprep.mubr.f32.mxu0 0.0
      %384 = vmatmul.mubr.f32.gmra.mrb[0].mxu0 %v222
      %v385 = vpop.f32.mrb[0].mxu0
      %v386 = vadd.f32 %v215, %v385
      %v387 = vpop.f32.mrb[0].mxu0
      %388 = vmatprep.mubr.f32.mxu0 0.0
      %389 = vmatmul.mubr.f32.gmra.mrb[0].mxu0 %v225
      %v390 = vpop.f32.mrb[0].mxu0
      %v391 = vadd.f32 %v215, %v390
      %v392 = vpop.f32.mrb[0].mxu0
      %393 = vmatprep.mubr.f32.mxu0 0.0
      %394 = vmatmul.mubr.f32.gmra.mrb[0].mxu0 %v228
      %v395 = vpop.f32.mrb[0].mxu0
      %v396 = vadd.f32 %v215, %v395
      %v397 = vpop.f32.mrb[0].mxu0
      %398 = vmatprep.mubr.f32.mxu0 0.0
      %399 = vmatmul.mubr.f32.gmra.mrb[0].mxu0 %v231
      %v400 = vpop.f32.mrb[0].mxu0
      %v401 = vadd.f32 %v215, %v400
      %v402 = vpop.f32.mrb[0].mxu0
      %403 = vmatprep.mubr.f32.mxu0 0.0
      %404 = vmatmul.mubr.f32.gmra.mrb[0].mxu0 %v234
      %v405 = vpop.f32.mrb[0].mxu0
      %v406 = vadd.f32 %v215, %v405
      %v407 = vpop.f32.mrb[0].mxu0
      %408 = vmatprep.mubr.f32.mxu0 0.0
      %409 = vmatmul.mubr.f32.gmra.mrb[0].mxu0 %v237
      %v410 = vpop.f32.mrb[0].mxu0
      %v411 = vadd.f32 %v215, %v410
      %v412 = vpop.f32.mrb[0].mxu0
      %413 = vmatprep.mubr.f32.mxu0 0.0
      %414 = vmatmul.mubr.f32.gmra.mrb[0].mxu0 %v240
      %v415 = vpop.f32.mrb[0].mxu0
      %v416 = vadd.f32 %v215, %v415
      %v417 = vpop.f32.mrb[0].mxu0
      %418 = vmatprep.mubr.f32.mxu0 0.0
      %419 = vmatmul.mubr.f32.gmra.mrb[0].mxu0 %v243
      %v420 = vpop.f32.mrb[0].mxu0
      %v421 = vadd.f32 %v215, %v420
      %v422 = vpop.f32.mrb[0].mxu0
      %423 = vmatprep.mubr.f32.mxu0 0.0
      %424 = vmatmul.mubr.f32.gmra.mrb[0].mxu0 %v246
      %v425 = vpop.f32.mrb[0].mxu0
      %v426 = vadd.f32 %v215, %v425
      %v427 = vpop.f32.mrb[0].mxu0
      %428 = vmatprep.mubr.f32.mxu0 0.0
      %429 = vmatmul.mubr.f32.gmra.mrb[0].mxu0 %v249
      %v430 = vpop.f32.mrb[0].mxu0
      %v431 = vadd.f32 %v215, %v430
      %v432 = vpop.f32.mrb[0].mxu0
      %433 = vmatprep.mubr.f32.mxu0 0.0
      %434 = vmatmul.mubr.f32.gmra.mrb[0].mxu0 %v252
      %v435 = vpop.f32.mrb[0].mxu0
      %v436 = vadd.f32 %v215, %v435
      %v437 = vpop.f32.mrb[0].mxu0
      %438 = vmatprep.mubr.f32.mxu0 0.0
      %439 = vmatmul.mubr.f32.gmra.mrb[0].mxu0 %v255
      %v440 = vpop.f32.mrb[0].mxu0
      %v441 = vadd.f32 %v215, %v440
      %v442 = vpop.f32.mrb[0].mxu0
      %443 = vmatprep.mubr.f32.mxu0 0.0
      %444 = vmatmul.mubr.f32.gmra.mrb[0].mxu0 %v258
      %v445 = vpop.f32.mrb[0].mxu0
      %v446 = vadd.f32 %v215, %v445
      %v447 = vpop.f32.mrb[0].mxu0
      %448 = vmatprep.mubr.f32.mxu0 0.0
      %449 = vmatmul.mubr.f32.gmra.mrb[0].mxu0 %v261
      %v450 = vpop.f32.mrb[0].mxu0
      %v451 = vadd.f32 %v215, %v450
      %v452 = vpop.f32.mrb[0].mxu0
      %453 = vmatprep.mubr.f32.mxu0 0.0
      %454 = vmatmul.mubr.f32.gmra.mrb[0].mxu0 %v264
      %v455 = vpop.f32.mrb[0].mxu0
      %v456 = vadd.f32 %v215, %v455
      %v457 = vpop.f32.mrb[0].mxu0
      %458 = vmatprep.mubr.f32.mxu0 0.0
      %459 = vmatmul.mubr.f32.gmra.mrb[0].mxu0 %v267
      %v460 = vpop.f32.mrb[0].mxu0
      %v461 = vadd.f32 %v215, %v460
      %v462 = vpop.f32.mrb[0].mxu0
      %463 = vmatprep.mubr.f32.mxu0 0.0
      %464 = vmatmul.mubr.f32.gmra.mrb[0].mxu0 %v270
      %v465 = vpop.f32.mrb[0].mxu0
      %v466 = vadd.f32 %v215, %v465
      %v467 = vpop.f32.mrb[0].mxu0
      %468 = vmatprep.mubr.f32.mxu0 0.0
      %469 = vmatmul.mubr.f32.gmra.mrb[0].mxu0 %v273
      %v470 = vpop.f32.mrb[0].mxu0
      %v471 = vadd.f32 %v215, %v470
      %v472 = vpop.f32.mrb[0].mxu0
      %473 = vmatprep.mubr.f32.mxu0 0.0
      %474 = vmatmul.mubr.f32.gmra.mrb[0].mxu0 %v276
      %v475 = vpop.f32.mrb[0].mxu0
      %v476 = vadd.f32 %v215, %v475
      %v477 = vpop.f32.mrb[0].mxu0
      %478 = vmatprep.mubr.f32.mxu0 0.0
      %479 = vmatmul.mubr.f32.gmra.mrb[0].mxu0 %v279
      %v480 = vpop.f32.mrb[0].mxu0
      %v481 = vadd.f32 %v215, %v480
      %v482 = vpop.f32.mrb[0].mxu0
      %483 = vmatprep.mubr.f32.mxu0 0.0
      %484 = vmatmul.mubr.f32.gmra.mrb[0].mxu0 %v282
      %v485 = vpop.f32.mrb[0].mxu0
      %v486 = vadd.f32 %v215, %v485
      %v487 = vpop.f32.mrb[0].mxu0
      %488 = vmatprep.mubr.f32.mxu0 0.0
      %489 = vmatmul.mubr.f32.gmra.mrb[0].mxu0 %v285
      %v490 = vpop.f32.mrb[0].mxu0
      %v491 = vadd.f32 %v215, %v490
      %v492 = vpop.f32.mrb[0].mxu0
      %493 = vmatprep.mubr.f32.mxu0 0.0
      %494 = vmatmul.mubr.f32.gmra.mrb[0].mxu0 %v288
      %v495 = vpop.f32.mrb[0].mxu0
      %v496 = vadd.f32 %v215, %v495
      %v497 = vpop.f32.mrb[0].mxu0
      %498 = vmatprep.mubr.f32.mxu0 0.0
      %499 = vmatmul.mubr.f32.gmra.mrb[0].mxu0 %v291
      %v500 = vpop.f32.mrb[0].mxu0
      %v501 = vadd.f32 %v215, %v500
      %v502 = vpop.f32.mrb[0].mxu0
      %503 = vmatprep.mubr.f32.mxu0 0.0
      %504 = vmatmul.mubr.f32.gmra.mrb[0].mxu0 %v294
      %v505 = vpop.f32.mrb[0].mxu0
      %v506 = vadd.f32 %v215, %v505
      %v507 = vpop.f32.mrb[0].mxu0
      %508 = vmatprep.mubr.f32.mxu0 0.0
      %509 = vmatmul.mubr.f32.gmra.mrb[0].mxu0 %v297
      %v510 = vpop.f32.mrb[0].mxu0
      %v511 = vadd.f32 %v215, %v510
      %v512 = vpop.f32.mrb[0].mxu0
      %513 = vmatprep.mubr.f32.mxu0 0.0
      %514 = vmatmul.mubr.f32.gmra.mrb[0].mxu0 %v300
      %v515 = vpop.f32.mrb[0].mxu0
      %v516 = vadd.f32 %v215, %v515
      %v517 = vpop.f32.mrb[0].mxu0
      %518 = vmatprep.mubr.f32.mxu0 0.0
      %519 = vmatmul.mubr.f32.gmra.mrb[0].mxu0 %v303
      %v520 = vpop.f32.mrb[0].mxu0
      %v521 = vadd.f32 %v215, %v520
      %v522 = vpop.f32.mrb[0].mxu0
      %523 = vmatprep.mubr.f32.mxu0 0.0
      %524 = vmatmul.mubr.f32.gmra.mrb[0].mxu0 %v306
      %v525 = vpop.f32.mrb[0].mxu0
      %v526 = vadd.f32 %v215, %v525
      %v527 = vpop.f32.mrb[0].mxu0
      %528 = vmatprep.mubr.f32.mxu0 0.0
      %529 = vmatmul.mubr.f32.gmra.mrb[0].mxu0 %v309
      %v530 = vpop.f32.mrb[0].mxu0
      %v531 = vadd.f32 %v215, %v530
      %v532 = vpop.f32.mrb[0].mxu0
      %533 = vmatprep.mubr.f32.mxu0 0.0
      %534 = vmatmul.mubr.f32.gmra.mrb[0].mxu0 %v312
      %v535 = vpop.f32.mrb[0].mxu0
      %v536 = vadd.f32 %v215, %v535
      %v537 = vpop.f32.mrb[0].mxu0
      %538 = vdwg.mxu0
      %539 = vst [vmem:[%s172] sm:$0xff] %v381
      %540 = vst [vmem:[%s172 + $0x8] sm:$0xff] %v386
      %541 = vst [vmem:[%s172 + $0x10] sm:$0xff] %v391
      %542 = vst [vmem:[%s172 + $0x18] sm:$0xff] %v396
      %543 = vst [vmem:[%s172 + $0x20] sm:$0xff] %v401
      %544 = vst [vmem:[%s172 + $0x28] sm:$0xff] %v406
      %545 = vst [vmem:[%s172 + $0x30] sm:$0xff] %v411
      %546 = vst [vmem:[%s172 + $0x38] sm:$0xff] %v416
      %547 = vst [vmem:[%s172 + $0x40] sm:$0xff] %v421
      %548 = vst [vmem:[%s172 + $0x48] sm:$0xff] %v426
      %549 = vst [vmem:[%s172 + $0x50] sm:$0xff] %v431
      %550 = vst [vmem:[%s172 + $0x58] sm:$0xff] %v436
      %551 = vst [vmem:[%s172 + $0x60] sm:$0xff] %v441
      %552 = vst [vmem:[%s172 + $0x68] sm:$0xff] %v446
      %553 = vst [vmem:[%s172 + $0x70] sm:$0xff] %v451
      %554 = vst [vmem:[%s172 + $0x78] sm:$0xff] %v456
      %555 = vst [vmem:[%s172 + $0x80] sm:$0xff] %v461
      %556 = vst [vmem:[%s172 + $0x88] sm:$0xff] %v466
      %557 = vst [vmem:[%s172 + $0x90] sm:$0xff] %v471
      %558 = vst [vmem:[%s172 + $0x98] sm:$0xff] %v476
      %559 = vst [vmem:[%s172 + $0xa0] sm:$0xff] %v481
      %560 = vst [vmem:[%s172 + $0xa8] sm:$0xff] %v486
      %561 = vst [vmem:[%s172 + $0xb0] sm:$0xff] %v491
      %562 = vst [vmem:[%s172 + $0xb8] sm:$0xff] %v496
      %563 = vst [vmem:[%s172 + $0xc0] sm:$0xff] %v501
      %564 = vst [vmem:[%s172 + $0xc8] sm:$0xff] %v506
      %565 = vst [vmem:[%s172 + $0xd0] sm:$0xff] %v511
      %566 = vst [vmem:[%s172 + $0xd8] sm:$0xff] %v516
      %567 = vst [vmem:[%s172 + $0xe0] sm:$0xff] %v521
      %568 = vst [vmem:[%s172 + $0xe8] sm:$0xff] %v526
      %569 = vst [vmem:[%s172 + $0xf0] sm:$0xff] %v531
      %570 = vst [vmem:[%s172 + $0xf8] sm:$0xff] %v536
      %s571 = smul.u32 32, %s14
      %p572 = scmp.lt.s32.totalorder %s571, 63
      %s573 = scalar_select %p572, %s571, 63
      %s574 = smul.addr %s573, 8
      %s575 = scalar_lea.vmem %s3, %s574
      // Predicated region
      $region33: #{basic_block_forward.37} parent=31 // pred_check
        %p576 = pneg %p100
      $region34: #{basic_block_forward.37} parent=31 // pred_check_branch
        %578 = sbr.rel (%p576) target = $region36
      $region35: #{basic_block_forward.37} parent=31 // pred_region
        %s579 = smul.u32 32, %s14
      $region36: #{basic_block_forward.37} parent=31 // pred_fallthru
        _
    $region32: #{basic_block_forward.37} parent=5 // pred_fallthru
      _
    %p580 = scmp.le.s32.totalorder 2, %s9
    // Predicated region
    $region37: #{basic_block_forward.37} parent=5 // pred_check
      %p581 = pneg %p580
    $region38: #{basic_block_forward.37} parent=5 // pred_check_branch
      %583 = sbr.rel (%p581) target = $region40
    $region39: #{basic_block_forward.37} parent=5 // pred_region
      %s584 = ssub.s32 %s9, 2
      // Predicated region
      $region41: #{basic_block_forward.37} parent=39 // pred_check
        %p585 = pneg %p106
      $region42: #{basic_block_forward.37} parent=39 // pred_check_branch
        %587 = sbr.rel (%p585) target = $region44
      $region43: #{basic_block_forward.37} parent=39 // pred_region
        %s588 = smul.u32 32, %s15
        %p589 = scmp.lt.s32.totalorder %s588, 63
        %s590 = scalar_select %p589, %s588, 63
        %s591 = smul.addr %s590, 8
        %s592 = scalar_lea.vmem %s3, %s591
      $region44: #{basic_block_forward.37} parent=39 // pred_fallthru
        _
    $region40: #{basic_block_forward.37} parent=5 // pred_fallthru
      _
  $region6: #{basic_block_forward.37} parent=0 // loop_footer
    %s13 = sadd.s32 1, %s9
  $region7: #{basic_block_forward.37} parent=0 // loop_footer_branch
    %8 = sbr.rel target = $region3
  $region8: #{basic_block_forward.37} parent=0 // loop_exit
    _

// kernel: basic_block_forward.36
$region0: #{basic_block_forward.36}
  #allocation0 [shape = 'u32[]', space=smem, size = 0x4, offset = 0x4, fixed_abs, tag = 'smem constant byte address 0x4 - core index']
  #allocation1 [shape = 'u32[144,128]{1,0:T(1,128)}', space=vmem, size = 0x12000, scoped, tag = 'internal scratch']
  %s0 = inlined_call_operand.vmem [shape: f32[512,9], index: 0, kind: input, shape index: {}]
  %s1 = inlined_call_operand.vmem [shape: f32[9,128], index: 1, kind: input, shape index: {}]
  %s2 = inlined_call_operand.vmem [shape: f32[1,128], index: 2, kind: input, shape index: {}]
  %s3 = inlined_call_operand.vmem [shape: f32[512,128], index: 3, kind: output, shape index: {}]
  %s4 = sld [smem:[#allocation0]]
  $region45: #{basic_block_forward.36} parent=0
    _
  %s6 = ssub.s32 1, %s4
  %s7 = scalar_select 0, %s6, %s4
  loop: start=0, step=1, limit=4
  $region2: #{basic_block_forward.36} parent=0 // loop_pre_header
    _
  $region3: #{basic_block_forward.36} parent=0 // loop_header
    %s9 = sphi 0, %s13
    %p10 = scmp.ge.s32.totalorder %s9, 4
    %s19 = sphi 0, %s21
    %s22 = sphi 0, %s19
    %s23 = sphi 0, %s22
    %s39 = sphi 0, %s23
    %s43 = sphi 0, %s43
    %s45 = sphi 0, %s43
    %s46 = sphi 0, %s45
    %s60 = sphi 0, %s46
    %s64 = sphi 0, %s64
    %s66 = sphi 0, %s64
    %s67 = sphi 0, %s66
    %s81 = sphi 0, %s67
    %s87 = sphi 0, %s89
    %s90 = sphi 0, %s87
    %s91 = sphi 0, %s90
    %s107 = sphi 0, %s91
  $region4: #{basic_block_forward.36} parent=0 // loop_header_branch
    %12 = sbr.rel (%p10) target = $region8
  $region5: #{basic_block_forward.36} parent=0 // loop_body
    %s14 = ssub.s32 %s9, 1
    %s15 = ssub.s32 %s9, 2
    %s16 = sadd.s32 %s9, 1
    %s17 = ssub.s32 %s9, %s16
    %p18 = scmp.eq.s32.totalorder %s17, 0
    %s20 = sadd.s32 %s19, 1
    %s21 = scalar_select %p18, %s19, %s20
    %p24 = pneg %p18
    %p25 = scmp.eq.s32.totalorder %s9, 1
    %p26 = por %p24, %p25
    %p27 = scmp.ne.s32.totalorder %s19, %s22
    %p28 = scmp.eq.s32.totalorder %s9, 0
    %p29 = por %p27, %p28
    %p30 = scmp.ne.s32.totalorder %s19, %s22
    %p31 = scmp.eq.s32.totalorder %s14, 1
    %p32 = por %p30, %p31
    %p33 = scmp.ne.s32.totalorder %s22, %s23
    %p34 = scmp.eq.s32.totalorder %s14, 0
    %p35 = por %p33, %p34
    %p36 = scmp.ne.s32.totalorder %s22, %s23
    %p37 = scmp.eq.s32.totalorder %s15, 1
    %p38 = por %p36, %p37
    %p40 = scmp.ne.s32.totalorder %s23, %s39
    %p41 = scmp.eq.s32.totalorder %s15, 0
    %p42 = por %p40, %p41
    %s44 = sadd.s32 %s43, 1
    %p47 = scmp.eq.s32.totalorder %s9, 1
    %p48 = scmp.ne.s32.totalorder %s43, %s45
    %p49 = scmp.eq.s32.totalorder %s9, 0
    %p50 = por %p48, %p49
    %p51 = scmp.ne.s32.totalorder %s43, %s45
    %p52 = scmp.eq.s32.totalorder %s14, 1
    %p53 = por %p51, %p52
    %p54 = scmp.ne.s32.totalorder %s45, %s46
    %p55 = scmp.eq.s32.totalorder %s14, 0
    %p56 = por %p54, %p55
    %p57 = scmp.ne.s32.totalorder %s45, %s46
    %p58 = scmp.eq.s32.totalorder %s15, 1
    %p59 = por %p57, %p58
    %p61 = scmp.ne.s32.totalorder %s46, %s60
    %p62 = scmp.eq.s32.totalorder %s15, 0
    %p63 = por %p61, %p62
    %s65 = sadd.s32 %s64, 1
    %p68 = scmp.eq.s32.totalorder %s9, 1
    %p69 = scmp.ne.s32.totalorder %s64, %s66
    %p70 = scmp.eq.s32.totalorder %s9, 0
    %p71 = por %p69, %p70
    %p72 = scmp.ne.s32.totalorder %s64, %s66
    %p73 = scmp.eq.s32.totalorder %s14, 1
    %p74 = por %p72, %p73
    %p75 = scmp.ne.s32.totalorder %s66, %s67
    %p76 = scmp.eq.s32.totalorder %s14, 0
    %p77 = por %p75, %p76
    %p78 = scmp.ne.s32.totalorder %s66, %s67
    %p79 = scmp.eq.s32.totalorder %s15, 1
    %p80 = por %p78, %p79
    %p82 = scmp.ne.s32.totalorder %s67, %s81
    %p83 = scmp.eq.s32.totalorder %s15, 0
    %p84 = por %p82, %p83
    %s85 = ssub.s32 %s9, %s16
    %p86 = scmp.eq.s32.totalorder %s85, 0
    %s88 = sadd.s32 %s87, 1
    %s89 = scalar_select %p86, %s87, %s88
    %p92 = pneg %p86
    %p93 = scmp.eq.s32.totalorder %s9, 1
    %p94 = por %p92, %p93
    %p95 = scmp.ne.s32.totalorder %s87, %s90
    %p96 = scmp.eq.s32.totalorder %s9, 0
    %p97 = por %p95, %p96
    %p98 = scmp.ne.s32.totalorder %s87, %s90
    %p99 = scmp.eq.s32.totalorder %s14, 1
    %p100 = por %p98, %p99
    %p101 = scmp.ne.s32.totalorder %s90, %s91
    %p102 = scmp.eq.s32.totalorder %s14, 0
    %p103 = por %p101, %p102
    %p104 = scmp.ne.s32.totalorder %s90, %s91
    %p105 = scmp.eq.s32.totalorder %s15, 1
    %p106 = por %p104, %p105
    %p108 = scmp.ne.s32.totalorder %s91, %s107
    %p109 = scmp.eq.s32.totalorder %s15, 0
    %p110 = por %p108, %p109
    %p111 = scmp.le.s32.totalorder 1, %s9
    %p112 = scmp.lt.s32.totalorder %s9, 3
    %p113 = pnand %p111, %p112
    %p114 = pneg %p113
    // Predicated region
    $region9: #{basic_block_forward.36} parent=5 // pred_check
      _
    $region10: #{basic_block_forward.36} parent=5 // pred_check_branch
      %116 = sbr.rel (%p113) target = $region12
    $region11: #{basic_block_forward.36} parent=5 // pred_region
      %s117 = ssub.s32 %s9, 1
      // Predicated region
      $region13: #{basic_block_forward.36} parent=11 // pred_check
        %p118 = pneg %p56
      $region14: #{basic_block_forward.36} parent=11 // pred_check_branch
        %120 = sbr.rel (%p118) target = $region16
      $region15: #{basic_block_forward.36} parent=11 // pred_region
        _
      $region16: #{basic_block_forward.36} parent=11 // pred_fallthru
        _
      // Predicated region
      $region17: #{basic_block_forward.36} parent=11 // pred_check
        %p121 = pneg %p77
      $region18: #{basic_block_forward.36} parent=11 // pred_check_branch
        %123 = sbr.rel (%p121) target = $region20
      $region19: #{basic_block_forward.36} parent=11 // pred_region
        _
      $region20: #{basic_block_forward.36} parent=11 // pred_fallthru
        _
    $region12: #{basic_block_forward.36} parent=5 // pred_fallthru
      _
    %p124 = scmp.lt.s32.totalorder %s9, 2
    // Predicated region
    $region21: #{basic_block_forward.36} parent=5 // pred_check
      %p125 = pneg %p124
    $region22: #{basic_block_forward.36} parent=5 // pred_check_branch
      %127 = sbr.rel (%p125) target = $region24
    $region23: #{basic_block_forward.36} parent=5 // pred_region
      // Predicated region
      $region25: #{basic_block_forward.36} parent=23 // pred_check
        %p128 = pneg %p29
      $region26: #{basic_block_forward.36} parent=23 // pred_check_branch
        %130 = sbr.rel (%p128) target = $region28
      $region27: #{basic_block_forward.36} parent=23 // pred_region
        %s131 = smul.u32 32, %s9
        %p132 = scmp.lt.s32.totalorder %s131, 63
        %s133 = scalar_select %p132, %s131, 63
        %s134 = smul.addr %s133, 8
        %s135 = scalar_lea.vmem %s0, %s134
        %s136 = smul.u32 32, %s9
      $region28: #{basic_block_forward.36} parent=23 // pred_fallthru
        _
    $region24: #{basic_block_forward.36} parent=5 // pred_fallthru
      _
    %p137 = scmp.le.s32.totalorder 1, %s9
    %p138 = scmp.lt.s32.totalorder %s9, 3
    %p139 = pnand %p137, %p138
    %p140 = pneg %p139
    // Predicated region
    $region29: #{basic_block_forward.36} parent=5 // pred_check
      _
    $region30: #{basic_block_forward.36} parent=5 // pred_check_branch
      %142 = sbr.rel (%p139) target = $region32
    $region31: #{basic_block_forward.36} parent=5 // pred_region
      %s143 = ssub.s32 %s9, 1
      %s144 = smul.u32 32, %s14
      %p145 = scmp.lt.s32.totalorder %s144, 63
      %s146 = scalar_select %p145, %s144, 63
      %s147 = smul.addr %s146, 8
      %s148 = scalar_lea.vmem %s0, %s147
      %p149 = pneg %p35
      %p150 = pneg %p32
      %p151 = pneg %p56
      %p152 = pneg %p53
      %p153 = pneg %p77
      %p154 = pneg %p74
      %p155 = pneg %p103
      %p156 = pneg %p100
      %s157 = smul.u32 32, %s14
      %p158 = scmp.lt.s32.totalorder %s157, 63
      %s159 = scalar_select %p158, %s157, 63
      %s160 = smul.addr %s159, 8
      %s161 = scalar_lea.vmem %s3, %s160
      %s162 = smul.u32 32, %s14
      %p163 = scmp.lt.s32.totalorder %s162, 63
      %s164 = scalar_select %p163, %s162, 63
      %s165 = smul.addr %s164, 8
      %s166 = scalar_lea.vmem %s0, %s165
      %s167 = smul.u32 32, %s14
      %s168 = smul.u32 32, %s14
      %p169 = scmp.lt.s32.totalorder %s168, 63
      %s170 = scalar_select %p169, %s168, 63
      %s171 = smul.addr %s170, 8
      %s172 = scalar_lea.vmem %s3, %s171
      %s173 = smul.u32 32, %s14
      %v174 = vld [vmem:[%s166] sm:$0xff]
      %v175 = vld [vmem:[%s166 + $0x8] sm:$0xff]
      %v176 = vld [vmem:[%s166 + $0x10] sm:$0xff]
      %v177 = vld [vmem:[%s166 + $0x18] sm:$0xff]
      %v178 = vld [vmem:[%s166 + $0x20] sm:$0xff]
      %v179 = vld [vmem:[%s166 + $0x28] sm:$0xff]
      %v180 = vld [vmem:[%s166 + $0x30] sm:$0xff]
      %v181 = vld [vmem:[%s166 + $0x38] sm:$0xff]
      %v182 = vld [vmem:[%s166 + $0x40] sm:$0xff]
      %v183 = vld [vmem:[%s166 + $0x48] sm:$0xff]
      %v184 = vld [vmem:[%s166 + $0x50] sm:$0xff]
      %v185 = vld [vmem:[%s166 + $0x58] sm:$0xff]
      %v186 = vld [vmem:[%s166 + $0x60] sm:$0xff]
      %v187 = vld [vmem:[%s166 + $0x68] sm:$0xff]
      %v188 = vld [vmem:[%s166 + $0x70] sm:$0xff]
      %v189 = vld [vmem:[%s166 + $0x78] sm:$0xff]
      %v190 = vld [vmem:[%s166 + $0x80] sm:$0xff]
      %v191 = vld [vmem:[%s166 + $0x88] sm:$0xff]
      %v192 = vld [vmem:[%s166 + $0x90] sm:$0xff]
      %v193 = vld [vmem:[%s166 + $0x98] sm:$0xff]
      %v194 = vld [vmem:[%s166 + $0xa0] sm:$0xff]
      %v195 = vld [vmem:[%s166 + $0xa8] sm:$0xff]
      %v196 = vld [vmem:[%s166 + $0xb0] sm:$0xff]
      %v197 = vld [vmem:[%s166 + $0xb8] sm:$0xff]
      %v198 = vld [vmem:[%s166 + $0xc0] sm:$0xff]
      %v199 = vld [vmem:[%s166 + $0xc8] sm:$0xff]
      %v200 = vld [vmem:[%s166 + $0xd0] sm:$0xff]
      %v201 = vld [vmem:[%s166 + $0xd8] sm:$0xff]
      %v202 = vld [vmem:[%s166 + $0xe0] sm:$0xff]
      %v203 = vld [vmem:[%s166 + $0xe8] sm:$0xff]
      %v204 = vld [vmem:[%s166 + $0xf0] sm:$0xff]
      %v205 = vld [vmem:[%s166 + $0xf8] sm:$0xff]
      %v206 = vld [vmem:[%s1] sm:$0xff]
      %v207 = vld [vmem:[%s1 + $0x8] sm:$0x1]
      %v208 = vld [vmem:[%s2] sm:$0x1]
      %v210 = vlaneseq
      %v211 = vshrl.u32 %v210, 7
      %v212 = vsub.s32 0, %v211
      %v213 = vrot.slane %v208, %v212
      %vm215 = vcmask 72704
      %v217 = vsel %vm215, %v174, 0
      %v220 = vsel %vm215, %v175, 0
      %v223 = vsel %vm215, %v176, 0
      %v226 = vsel %vm215, %v177, 0
      %v229 = vsel %vm215, %v178, 0
      %v232 = vsel %vm215, %v179, 0
      %v235 = vsel %vm215, %v180, 0
      %v238 = vsel %vm215, %v181, 0
      %v241 = vsel %vm215, %v182, 0
      %v244 = vsel %vm215, %v183, 0
      %v247 = vsel %vm215, %v184, 0
      %v250 = vsel %vm215, %v185, 0
      %v253 = vsel %vm215, %v186, 0
      %v256 = vsel %vm215, %v187, 0
      %v259 = vsel %vm215, %v188, 0
      %v262 = vsel %vm215, %v189, 0
      %v265 = vsel %vm215, %v190, 0
      %v268 = vsel %vm215, %v191, 0
      %v271 = vsel %vm215, %v192, 0
      %v274 = vsel %vm215, %v193, 0
      %v277 = vsel %vm215, %v194, 0
      %v280 = vsel %vm215, %v195, 0
      %v283 = vsel %vm215, %v196, 0
      %v286 = vsel %vm215, %v197, 0
      %v289 = vsel %vm215, %v198, 0
      %v292 = vsel %vm215, %v199, 0
      %v295 = vsel %vm215, %v200, 0
      %v298 = vsel %vm215, %v201, 0
      %v301 = vsel %vm215, %v202, 0
      %v304 = vsel %vm215, %v203, 0
      %v307 = vsel %vm215, %v204, 0
      %v310 = vsel %vm215, %v205, 0
      %vm312 = vcmask 1040384
      %v314 = vsel %vm312, %v207, 0
      %316 = vmatprep.subr.mxu0 0.0
      %317 = vmatpush1.msra.mxu0 %v206
      %318 = vmatprep.subr.mxu0 0.0
      %319 = vmatpush1.msra.mxu0 %v314
      %320 = vmatprep.subr.mxu0 0.0
      %321 = vmatpush1.msra.mxu0 0.0
      %322 = vmatprep.subr.mxu0 0.0
      %323 = vmatpush1.msra.mxu0 0.0
      %324 = vmatprep.subr.mxu0 0.0
      %325 = vmatpush1.msra.mxu0 0.0
      %326 = vmatprep.subr.mxu0 0.0
      %327 = vmatpush1.msra.mxu0 0.0
      %328 = vmatprep.subr.mxu0 0.0
      %329 = vmatpush1.msra.mxu0 0.0
      %330 = vmatprep.subr.mxu0 0.0
      %331 = vmatpush1.msra.mxu0 0.0
      %332 = vmatprep.subr.mxu0 0.0
      %333 = vmatpush1.msra.mxu0 0.0
      %334 = vmatprep.subr.mxu0 0.0
      %335 = vmatpush1.msra.mxu0 0.0
      %336 = vmatprep.subr.mxu0 0.0
      %337 = vmatpush1.msra.mxu0 0.0
      %338 = vmatprep.subr.mxu0 0.0
      %339 = vmatpush1.msra.mxu0 0.0
      %340 = vmatprep.subr.mxu0 0.0
      %341 = vmatpush1.msra.mxu0 0.0
      %342 = vmatprep.subr.mxu0 0.0
      %343 = vmatpush1.msra.mxu0 0.0
      %344 = vmatprep.subr.mxu0 0.0
      %345 = vmatpush1.msra.mxu0 0.0
      %346 = vmatprep.subr.mxu0 0.0
      %347 = vmatpush1.msra.mxu0 0.0
      %348 = vmatprep.subr.mxu0 0.0
      %349 = vmatpush1.msra.mxu0 0.0
      %350 = vmatprep.subr.mxu0 0.0
      %351 = vmatpush1.msra.mxu0 0.0
      %352 = vmatprep.subr.mxu0 0.0
      %353 = vmatpush1.msra.mxu0 0.0
      %354 = vmatprep.subr.mxu0 0.0
      %355 = vmatpush1.msra.mxu0 0.0
      %356 = vmatprep.subr.mxu0 0.0
      %357 = vmatpush1.msra.mxu0 0.0
      %358 = vmatprep.subr.mxu0 0.0
      %359 = vmatpush1.msra.mxu0 0.0
      %360 = vmatprep.subr.mxu0 0.0
      %361 = vmatpush1.msra.mxu0 0.0
      %362 = vmatprep.subr.mxu0 0.0
      %363 = vmatpush1.msra.mxu0 0.0
      %364 = vmatprep.subr.mxu0 0.0
      %365 = vmatpush1.msra.mxu0 0.0
      %366 = vmatprep.subr.mxu0 0.0
      %367 = vmatpush1.msra.mxu0 0.0
      %368 = vmatprep.subr.mxu0 0.0
      %369 = vmatpush1.msra.mxu0 0.0
      %370 = vmatprep.subr.mxu0 0.0
      %371 = vmatpush1.msra.mxu0 0.0
      %372 = vmatprep.subr.mxu0 0.0
      %373 = vmatpush1.msra.mxu0 0.0
      %374 = vmatprep.subr.mxu0 0.0
      %375 = vmatpush1.msra.mxu0 0.0
      %376 = vmatprep.subr.mxu0 0.0
      %377 = vmatpush1.msra.mxu0 0.0
      %378 = vmatprep.subr.mxu0 0.0
      %379 = vmatpush1.msra.mxu0 0.0
      %380 = vmatprep.mubr.f32.mxu0 0.0
      %381 = vmatmul.mubr.f32.gmra.mrb[0].mxu0 %v217
      %v382 = vpop.f32.mrb[0].mxu0
      %v383 = vadd.f32 %v213, %v382
      %v384 = vpop.f32.mrb[0].mxu0
      %385 = vmatprep.mubr.f32.mxu0 0.0
      %386 = vmatmul.mubr.f32.gmra.mrb[0].mxu0 %v220
      %v387 = vpop.f32.mrb[0].mxu0
      %v388 = vadd.f32 %v213, %v387
      %v389 = vpop.f32.mrb[0].mxu0
      %390 = vmatprep.mubr.f32.mxu0 0.0
      %391 = vmatmul.mubr.f32.gmra.mrb[0].mxu0 %v223
      %v392 = vpop.f32.mrb[0].mxu0
      %v393 = vadd.f32 %v213, %v392
      %v394 = vpop.f32.mrb[0].mxu0
      %395 = vmatprep.mubr.f32.mxu0 0.0
      %396 = vmatmul.mubr.f32.gmra.mrb[0].mxu0 %v226
      %v397 = vpop.f32.mrb[0].mxu0
      %v398 = vadd.f32 %v213, %v397
      %v399 = vpop.f32.mrb[0].mxu0
      %400 = vmatprep.mubr.f32.mxu0 0.0
      %401 = vmatmul.mubr.f32.gmra.mrb[0].mxu0 %v229
      %v402 = vpop.f32.mrb[0].mxu0
      %v403 = vadd.f32 %v213, %v402
      %v404 = vpop.f32.mrb[0].mxu0
      %405 = vmatprep.mubr.f32.mxu0 0.0
      %406 = vmatmul.mubr.f32.gmra.mrb[0].mxu0 %v232
      %v407 = vpop.f32.mrb[0].mxu0
      %v408 = vadd.f32 %v213, %v407
      %v409 = vpop.f32.mrb[0].mxu0
      %410 = vmatprep.mubr.f32.mxu0 0.0
      %411 = vmatmul.mubr.f32.gmra.mrb[0].mxu0 %v235
      %v412 = vpop.f32.mrb[0].mxu0
      %v413 = vadd.f32 %v213, %v412
      %v414 = vpop.f32.mrb[0].mxu0
      %415 = vmatprep.mubr.f32.mxu0 0.0
      %416 = vmatmul.mubr.f32.gmra.mrb[0].mxu0 %v238
      %v417 = vpop.f32.mrb[0].mxu0
      %v418 = vadd.f32 %v213, %v417
      %v419 = vpop.f32.mrb[0].mxu0
      %420 = vmatprep.mubr.f32.mxu0 0.0
      %421 = vmatmul.mubr.f32.gmra.mrb[0].mxu0 %v241
      %v422 = vpop.f32.mrb[0].mxu0
      %v423 = vadd.f32 %v213, %v422
      %v424 = vpop.f32.mrb[0].mxu0
      %425 = vmatprep.mubr.f32.mxu0 0.0
      %426 = vmatmul.mubr.f32.gmra.mrb[0].mxu0 %v244
      %v427 = vpop.f32.mrb[0].mxu0
      %v428 = vadd.f32 %v213, %v427
      %v429 = vpop.f32.mrb[0].mxu0
      %430 = vmatprep.mubr.f32.mxu0 0.0
      %431 = vmatmul.mubr.f32.gmra.mrb[0].mxu0 %v247
      %v432 = vpop.f32.mrb[0].mxu0
      %v433 = vadd.f32 %v213, %v432
      %v434 = vpop.f32.mrb[0].mxu0
      %435 = vmatprep.mubr.f32.mxu0 0.0
      %436 = vmatmul.mubr.f32.gmra.mrb[0].mxu0 %v250
      %v437 = vpop.f32.mrb[0].mxu0
      %v438 = vadd.f32 %v213, %v437
      %v439 = vpop.f32.mrb[0].mxu0
      %440 = vmatprep.mubr.f32.mxu0 0.0
      %441 = vmatmul.mubr.f32.gmra.mrb[0].mxu0 %v253
      %v442 = vpop.f32.mrb[0].mxu0
      %v443 = vadd.f32 %v213, %v442
      %v444 = vpop.f32.mrb[0].mxu0
      %445 = vmatprep.mubr.f32.mxu0 0.0
      %446 = vmatmul.mubr.f32.gmra.mrb[0].mxu0 %v256
      %v447 = vpop.f32.mrb[0].mxu0
      %v448 = vadd.f32 %v213, %v447
      %v449 = vpop.f32.mrb[0].mxu0
      %450 = vmatprep.mubr.f32.mxu0 0.0
      %451 = vmatmul.mubr.f32.gmra.mrb[0].mxu0 %v259
      %v452 = vpop.f32.mrb[0].mxu0
      %v453 = vadd.f32 %v213, %v452
      %v454 = vpop.f32.mrb[0].mxu0
      %455 = vmatprep.mubr.f32.mxu0 0.0
      %456 = vmatmul.mubr.f32.gmra.mrb[0].mxu0 %v262
      %v457 = vpop.f32.mrb[0].mxu0
      %v458 = vadd.f32 %v213, %v457
      %v459 = vpop.f32.mrb[0].mxu0
      %460 = vmatprep.mubr.f32.mxu0 0.0
      %461 = vmatmul.mubr.f32.gmra.mrb[0].mxu0 %v265
      %v462 = vpop.f32.mrb[0].mxu0
      %v463 = vadd.f32 %v213, %v462
      %v464 = vpop.f32.mrb[0].mxu0
      %465 = vmatprep.mubr.f32.mxu0 0.0
      %466 = vmatmul.mubr.f32.gmra.mrb[0].mxu0 %v268
      %v467 = vpop.f32.mrb[0].mxu0
      %v468 = vadd.f32 %v213, %v467
      %v469 = vpop.f32.mrb[0].mxu0
      %470 = vmatprep.mubr.f32.mxu0 0.0
      %471 = vmatmul.mubr.f32.gmra.mrb[0].mxu0 %v271
      %v472 = vpop.f32.mrb[0].mxu0
      %v473 = vadd.f32 %v213, %v472
      %v474 = vpop.f32.mrb[0].mxu0
      %475 = vmatprep.mubr.f32.mxu0 0.0
      %476 = vmatmul.mubr.f32.gmra.mrb[0].mxu0 %v274
      %v477 = vpop.f32.mrb[0].mxu0
      %v478 = vadd.f32 %v213, %v477
      %v479 = vpop.f32.mrb[0].mxu0
      %480 = vmatprep.mubr.f32.mxu0 0.0
      %481 = vmatmul.mubr.f32.gmra.mrb[0].mxu0 %v277
      %v482 = vpop.f32.mrb[0].mxu0
      %v483 = vadd.f32 %v213, %v482
      %v484 = vpop.f32.mrb[0].mxu0
      %485 = vmatprep.mubr.f32.mxu0 0.0
      %486 = vmatmul.mubr.f32.gmra.mrb[0].mxu0 %v280
      %v487 = vpop.f32.mrb[0].mxu0
      %v488 = vadd.f32 %v213, %v487
      %v489 = vpop.f32.mrb[0].mxu0
      %490 = vmatprep.mubr.f32.mxu0 0.0
      %491 = vmatmul.mubr.f32.gmra.mrb[0].mxu0 %v283
      %v492 = vpop.f32.mrb[0].mxu0
      %v493 = vadd.f32 %v213, %v492
      %v494 = vpop.f32.mrb[0].mxu0
      %495 = vmatprep.mubr.f32.mxu0 0.0
      %496 = vmatmul.mubr.f32.gmra.mrb[0].mxu0 %v286
      %v497 = vpop.f32.mrb[0].mxu0
      %v498 = vadd.f32 %v213, %v497
      %v499 = vpop.f32.mrb[0].mxu0
      %500 = vmatprep.mubr.f32.mxu0 0.0
      %501 = vmatmul.mubr.f32.gmra.mrb[0].mxu0 %v289
      %v502 = vpop.f32.mrb[0].mxu0
      %v503 = vadd.f32 %v213, %v502
      %v504 = vpop.f32.mrb[0].mxu0
      %505 = vmatprep.mubr.f32.mxu0 0.0
      %506 = vmatmul.mubr.f32.gmra.mrb[0].mxu0 %v292
      %v507 = vpop.f32.mrb[0].mxu0
      %v508 = vadd.f32 %v213, %v507
      %v509 = vpop.f32.mrb[0].mxu0
      %510 = vmatprep.mubr.f32.mxu0 0.0
      %511 = vmatmul.mubr.f32.gmra.mrb[0].mxu0 %v295
      %v512 = vpop.f32.mrb[0].mxu0
      %v513 = vadd.f32 %v213, %v512
      %v514 = vpop.f32.mrb[0].mxu0
      %515 = vmatprep.mubr.f32.mxu0 0.0
      %516 = vmatmul.mubr.f32.gmra.mrb[0].mxu0 %v298
      %v517 = vpop.f32.mrb[0].mxu0
      %v518 = vadd.f32 %v213, %v517
      %v519 = vpop.f32.mrb[0].mxu0
      %520 = vmatprep.mubr.f32.mxu0 0.0
      %521 = vmatmul.mubr.f32.gmra.mrb[0].mxu0 %v301
      %v522 = vpop.f32.mrb[0].mxu0
      %v523 = vadd.f32 %v213, %v522
      %v524 = vpop.f32.mrb[0].mxu0
      %525 = vmatprep.mubr.f32.mxu0 0.0
      %526 = vmatmul.mubr.f32.gmra.mrb[0].mxu0 %v304
      %v527 = vpop.f32.mrb[0].mxu0
      %v528 = vadd.f32 %v213, %v527
      %v529 = vpop.f32.mrb[0].mxu0
      %530 = vmatprep.mubr.f32.mxu0 0.0
      %531 = vmatmul.mubr.f32.gmra.mrb[0].mxu0 %v307
      %v532 = vpop.f32.mrb[0].mxu0
      %v533 = vadd.f32 %v213, %v532
      %v534 = vpop.f32.mrb[0].mxu0
      %535 = vmatprep.mubr.f32.mxu0 0.0
      %536 = vmatmul.mubr.f32.gmra.mrb[0].mxu0 %v310
      %v537 = vpop.f32.mrb[0].mxu0
      %v538 = vadd.f32 %v213, %v537
      %v539 = vpop.f32.mrb[0].mxu0
      %540 = vdwg.mxu0
      %541 = vst [vmem:[%s172] sm:$0xff] %v383
      %542 = vst [vmem:[%s172 + $0x8] sm:$0xff] %v388
      %543 = vst [vmem:[%s172 + $0x10] sm:$0xff] %v393
      %544 = vst [vmem:[%s172 + $0x18] sm:$0xff] %v398
      %545 = vst [vmem:[%s172 + $0x20] sm:$0xff] %v403
      %546 = vst [vmem:[%s172 + $0x28] sm:$0xff] %v408
      %547 = vst [vmem:[%s172 + $0x30] sm:$0xff] %v413
      %548 = vst [vmem:[%s172 + $0x38] sm:$0xff] %v418
      %549 = vst [vmem:[%s172 + $0x40] sm:$0xff] %v423
      %550 = vst [vmem:[%s172 + $0x48] sm:$0xff] %v428
      %551 = vst [vmem:[%s172 + $0x50] sm:$0xff] %v433
      %552 = vst [vmem:[%s172 + $0x58] sm:$0xff] %v438
      %553 = vst [vmem:[%s172 + $0x60] sm:$0xff] %v443
      %554 = vst [vmem:[%s172 + $0x68] sm:$0xff] %v448
      %555 = vst [vmem:[%s172 + $0x70] sm:$0xff] %v453
      %556 = vst [vmem:[%s172 + $0x78] sm:$0xff] %v458
      %557 = vst [vmem:[%s172 + $0x80] sm:$0xff] %v463
      %558 = vst [vmem:[%s172 + $0x88] sm:$0xff] %v468
      %559 = vst [vmem:[%s172 + $0x90] sm:$0xff] %v473
      %560 = vst [vmem:[%s172 + $0x98] sm:$0xff] %v478
      %561 = vst [vmem:[%s172 + $0xa0] sm:$0xff] %v483
      %562 = vst [vmem:[%s172 + $0xa8] sm:$0xff] %v488
      %563 = vst [vmem:[%s172 + $0xb0] sm:$0xff] %v493
      %564 = vst [vmem:[%s172 + $0xb8] sm:$0xff] %v498
      %565 = vst [vmem:[%s172 + $0xc0] sm:$0xff] %v503
      %566 = vst [vmem:[%s172 + $0xc8] sm:$0xff] %v508
      %567 = vst [vmem:[%s172 + $0xd0] sm:$0xff] %v513
      %568 = vst [vmem:[%s172 + $0xd8] sm:$0xff] %v518
      %569 = vst [vmem:[%s172 + $0xe0] sm:$0xff] %v523
      %570 = vst [vmem:[%s172 + $0xe8] sm:$0xff] %v528
      %571 = vst [vmem:[%s172 + $0xf0] sm:$0xff] %v533
      %572 = vst [vmem:[%s172 + $0xf8] sm:$0xff] %v538
      %s573 = smul.u32 32, %s14
      %p574 = scmp.lt.s32.totalorder %s573, 63
      %s575 = scalar_select %p574, %s573, 63
      %s576 = smul.addr %s575, 8
      %s577 = scalar_lea.vmem %s3, %s576
      // Predicated region
      $region33: #{basic_block_forward.36} parent=31 // pred_check
        %p578 = pneg %p100
      $region34: #{basic_block_forward.36} parent=31 // pred_check_branch
        %580 = sbr.rel (%p578) target = $region36
      $region35: #{basic_block_forward.36} parent=31 // pred_region
        %s581 = smul.u32 32, %s14
      $region36: #{basic_block_forward.36} parent=31 // pred_fallthru
        _
    $region32: #{basic_block_forward.36} parent=5 // pred_fallthru
      _
    %p582 = scmp.le.s32.totalorder 2, %s9
    // Predicated region
    $region37: #{basic_block_forward.36} parent=5 // pred_check
      %p583 = pneg %p582
    $region38: #{basic_block_forward.36} parent=5 // pred_check_branch
      %585 = sbr.rel (%p583) target = $region40
    $region39: #{basic_block_forward.36} parent=5 // pred_region
      %s586 = ssub.s32 %s9, 2
      // Predicated region
      $region41: #{basic_block_forward.36} parent=39 // pred_check
        %p587 = pneg %p106
      $region42: #{basic_block_forward.36} parent=39 // pred_check_branch
        %589 = sbr.rel (%p587) target = $region44
      $region43: #{basic_block_forward.36} parent=39 // pred_region
        %s590 = smul.u32 32, %s15
        %p591 = scmp.lt.s32.totalorder %s590, 63
        %s592 = scalar_select %p591, %s590, 63
        %s593 = smul.addr %s592, 8
        %s594 = scalar_lea.vmem %s3, %s593
      $region44: #{basic_block_forward.36} parent=39 // pred_fallthru
        _
    $region40: #{basic_block_forward.36} parent=5 // pred_fallthru
      _
  $region6: #{basic_block_forward.36} parent=0 // loop_footer
    %s13 = sadd.s32 1, %s9
  $region7: #{basic_block_forward.36} parent=0 // loop_footer_branch
    %8 = sbr.rel target = $region3
  $region8: #{basic_block_forward.36} parent=0 // loop_exit
    _

// kernel: basic_block_forward.38
$region0: #{basic_block_forward.38}
  #allocation0 [shape = 'u32[]', space=smem, size = 0x4, offset = 0x4, fixed_abs, tag = 'smem constant byte address 0x4 - core index']
  #allocation1 [shape = 'u32[144,128]{1,0:T(1,128)}', space=vmem, size = 0x12000, scoped, tag = 'internal scratch']
  %s0 = inlined_call_operand.vmem [shape: f32[128,144], index: 0, kind: input, shape index: {}]
  %s1 = inlined_call_operand.vmem [shape: f32[144,128], index: 1, kind: input, shape index: {}]
  %s2 = inlined_call_operand.vmem [shape: f32[1,128], index: 2, kind: input, shape index: {}]
  %s3 = inlined_call_operand.vmem [shape: f32[128,128], index: 3, kind: output, shape index: {}]
  %s4 = sld [smem:[#allocation0]]
  $region22: #{basic_block_forward.38} parent=0
    _
  %s6 = ssub.s32 1, %s4
  %s7 = scalar_select 0, %s6, %s4
  // Predicated region
  $region2: #{basic_block_forward.38} parent=0 // pred_check
    _
  $region3: #{basic_block_forward.38} parent=0 // pred_check_branch
    %9 = sbr.rel (0) target = $region5
  $region4: #{basic_block_forward.38} parent=0 // pred_region
    _
  $region5: #{basic_block_forward.38} parent=0 // pred_fallthru
    _
  // Predicated region
  $region6: #{basic_block_forward.38} parent=0 // pred_check
    _
  $region7: #{basic_block_forward.38} parent=0 // pred_check_branch
    %11 = sbr.rel (0) target = $region9
  $region8: #{basic_block_forward.38} parent=0 // pred_region
    _
  $region9: #{basic_block_forward.38} parent=0 // pred_fallthru
    _
  // Predicated region
  $region10: #{basic_block_forward.38} parent=0 // pred_check
    _
  $region11: #{basic_block_forward.38} parent=0 // pred_check_branch
    %13 = sbr.rel (0) target = $region13
  $region12: #{basic_block_forward.38} parent=0 // pred_region
    _
  $region13: #{basic_block_forward.38} parent=0 // pred_fallthru
    _
  %v14 = vld [vmem:[%s0] sm:$0xff]
  %v15 = vld [vmem:[%s0 + $0x8] sm:$0xff]
  %v16 = vld [vmem:[%s0 + $0x10] sm:$0xff]
  %v17 = vld [vmem:[%s0 + $0x18] sm:$0xff]
  %v18 = vld [vmem:[%s0 + $0x20] sm:$0xff]
  %v19 = vld [vmem:[%s0 + $0x28] sm:$0xff]
  %v20 = vld [vmem:[%s0 + $0x30] sm:$0xff]
  %v21 = vld [vmem:[%s0 + $0x38] sm:$0xff]
  %v22 = vld [vmem:[%s0 + $0x40] sm:$0xff]
  %v23 = vld [vmem:[%s0 + $0x48] sm:$0xff]
  %v24 = vld [vmem:[%s0 + $0x50] sm:$0xff]
  %v25 = vld [vmem:[%s0 + $0x58] sm:$0xff]
  %v26 = vld [vmem:[%s0 + $0x60] sm:$0xff]
  %v27 = vld [vmem:[%s0 + $0x68] sm:$0xff]
  %v28 = vld [vmem:[%s0 + $0x70] sm:$0xff]
  %v29 = vld [vmem:[%s0 + $0x78] sm:$0xff]
  %v30 = vld [vmem:[%s0 + $0x80] sm:$0xff]
  %v31 = vld [vmem:[%s0 + $0x88] sm:$0xff]
  %v32 = vld [vmem:[%s0 + $0x90] sm:$0xff]
  %v33 = vld [vmem:[%s0 + $0x98] sm:$0xff]
  %v34 = vld [vmem:[%s0 + $0xa0] sm:$0xff]
  %v35 = vld [vmem:[%s0 + $0xa8] sm:$0xff]
  %v36 = vld [vmem:[%s0 + $0xb0] sm:$0xff]
  %v37 = vld [vmem:[%s0 + $0xb8] sm:$0xff]
  %v38 = vld [vmem:[%s0 + $0xc0] sm:$0xff]
  %v39 = vld [vmem:[%s0 + $0xc8] sm:$0xff]
  %v40 = vld [vmem:[%s0 + $0xd0] sm:$0xff]
  %v41 = vld [vmem:[%s0 + $0xd8] sm:$0xff]
  %v42 = vld [vmem:[%s0 + $0xe0] sm:$0xff]
  %v43 = vld [vmem:[%s0 + $0xe8] sm:$0xff]
  %v44 = vld [vmem:[%s0 + $0xf0] sm:$0xff]
  %v45 = vld [vmem:[%s0 + $0xf8] sm:$0xff]
  %v46 = vld [vmem:[%s1] sm:$0xff]
  %v47 = vld [vmem:[%s1 + $0x8] sm:$0xff]
  %v48 = vld [vmem:[%s1 + $0x10] sm:$0xff]
  %v49 = vld [vmem:[%s1 + $0x18] sm:$0xff]
  %v50 = vld [vmem:[%s1 + $0x20] sm:$0xff]
  %v51 = vld [vmem:[%s1 + $0x28] sm:$0xff]
  %v52 = vld [vmem:[%s1 + $0x30] sm:$0xff]
  %v53 = vld [vmem:[%s1 + $0x38] sm:$0xff]
  %v54 = vld [vmem:[%s1 + $0x40] sm:$0xff]
  %v55 = vld [vmem:[%s1 + $0x48] sm:$0xff]
  %v56 = vld [vmem:[%s1 + $0x50] sm:$0xff]
  %v57 = vld [vmem:[%s1 + $0x58] sm:$0xff]
  %v58 = vld [vmem:[%s1 + $0x60] sm:$0xff]
  %v59 = vld [vmem:[%s1 + $0x68] sm:$0xff]
  %v60 = vld [vmem:[%s1 + $0x70] sm:$0xff]
  %v61 = vld [vmem:[%s1 + $0x78] sm:$0xff]
  %v62 = vld [vmem:[%s1 + $0x80] sm:$0xff]
  %v63 = vld [vmem:[%s1 + $0x88] sm:$0xff]
  %v64 = vld [vmem:[%s2] sm:$0x1]
  %v66 = vlaneseq
  %v67 = vshrl.u32 %v66, 7
  %v68 = vsub.s32 0, %v67
  %v69 = vrot.slane %v64, %v68
  %vm71 = vcmask 130048
  %v73 = vsel %vm71, %v15, 0
  %v76 = vsel %vm71, %v17, 0
  %v79 = vsel %vm71, %v19, 0
  %v82 = vsel %vm71, %v21, 0
  %v85 = vsel %vm71, %v23, 0
  %v88 = vsel %vm71, %v25, 0
  %v91 = vsel %vm71, %v27, 0
  %v94 = vsel %vm71, %v29, 0
  %v97 = vsel %vm71, %v31, 0
  %v100 = vsel %vm71, %v33, 0
  %v103 = vsel %vm71, %v35, 0
  %v106 = vsel %vm71, %v37, 0
  %v109 = vsel %vm71, %v39, 0
  %v112 = vsel %vm71, %v41, 0
  %v115 = vsel %vm71, %v43, 0
  %v118 = vsel %vm71, %v45, 0
  %120 = vmatprep.subr.mxu0 0.0
  %121 = vmatpush1.msra.mxu0 %v46
  %122 = vmatprep.subr.mxu0 0.0
  %123 = vmatpush1.msra.mxu0 %v47
  %124 = vmatprep.subr.mxu0 0.0
  %125 = vmatpush1.msra.mxu0 %v48
  %126 = vmatprep.subr.mxu0 0.0
  %127 = vmatpush1.msra.mxu0 %v49
  %128 = vmatprep.subr.mxu0 0.0
  %129 = vmatpush1.msra.mxu0 %v50
  %130 = vmatprep.subr.mxu0 0.0
  %131 = vmatpush1.msra.mxu0 %v51
  %132 = vmatprep.subr.mxu0 0.0
  %133 = vmatpush1.msra.mxu0 %v52
  %134 = vmatprep.subr.mxu0 0.0
  %135 = vmatpush1.msra.mxu0 %v53
  %136 = vmatprep.subr.mxu0 0.0
  %137 = vmatpush1.msra.mxu0 %v54
  %138 = vmatprep.subr.mxu0 0.0
  %139 = vmatpush1.msra.mxu0 %v55
  %140 = vmatprep.subr.mxu0 0.0
  %141 = vmatpush1.msra.mxu0 %v56
  %142 = vmatprep.subr.mxu0 0.0
  %143 = vmatpush1.msra.mxu0 %v57
  %144 = vmatprep.subr.mxu0 0.0
  %145 = vmatpush1.msra.mxu0 %v58
  %146 = vmatprep.subr.mxu0 0.0
  %147 = vmatpush1.msra.mxu0 %v59
  %148 = vmatprep.subr.mxu0 0.0
  %149 = vmatpush1.msra.mxu0 %v60
  %150 = vmatprep.subr.mxu0 0.0
  %151 = vmatpush1.msra.mxu0 %v61
  %152 = vmatprep.subr.mxu0 0.0
  %153 = vmatpush1.msra.mxu0 %v62
  %154 = vmatprep.subr.mxu0 0.0
  %155 = vmatpush1.msra.mxu0 %v63
  %156 = vmatprep.subr.mxu0 0.0
  %157 = vmatpush1.msra.mxu0 0.0
  %158 = vmatprep.subr.mxu0 0.0
  %159 = vmatpush1.msra.mxu0 0.0
  %160 = vmatprep.subr.mxu0 0.0
  %161 = vmatpush1.msra.mxu0 0.0
  %162 = vmatprep.subr.mxu0 0.0
  %163 = vmatpush1.msra.mxu0 0.0
  %164 = vmatprep.subr.mxu0 0.0
  %165 = vmatpush1.msra.mxu0 0.0
  %166 = vmatprep.subr.mxu0 0.0
  %167 = vmatpush1.msra.mxu0 0.0
  %168 = vmatprep.subr.mxu0 0.0
  %169 = vmatpush1.msra.mxu0 0.0
  %170 = vmatprep.subr.mxu0 0.0
  %171 = vmatpush1.msra.mxu0 0.0
  %172 = vmatprep.subr.mxu0 0.0
  %173 = vmatpush1.msra.mxu0 0.0
  %174 = vmatprep.subr.mxu0 0.0
  %175 = vmatpush1.msra.mxu0 0.0
  %176 = vmatprep.subr.mxu0 0.0
  %177 = vmatpush1.msra.mxu0 0.0
  %178 = vmatprep.subr.mxu0 0.0
  %179 = vmatpush1.msra.mxu0 0.0
  %180 = vmatprep.subr.mxu0 0.0
  %181 = vmatpush1.msra.mxu0 0.0
  %182 = vmatprep.subr.mxu0 0.0
  %183 = vmatpush1.msra.mxu0 0.0
  %184 = vmatprep.mubr.f32.mxu0 %v73
  %185 = vmatmul.mubr.f32.gmra.mrb[0].mxu0 %v14
  %v186 = vpop.f32.mrb[0].mxu0
  %v187 = vadd.f32 %v69, %v186
  %v188 = vpop.f32.mrb[0].mxu0
  %189 = vmatprep.mubr.f32.mxu0 %v76
  %190 = vmatmul.mubr.f32.gmra.mrb[0].mxu0 %v16
  %v191 = vpop.f32.mrb[0].mxu0
  %v192 = vadd.f32 %v69, %v191
  %v193 = vpop.f32.mrb[0].mxu0
  %194 = vmatprep.mubr.f32.mxu0 %v79
  %195 = vmatmul.mubr.f32.gmra.mrb[0].mxu0 %v18
  %v196 = vpop.f32.mrb[0].mxu0
  %v197 = vadd.f32 %v69, %v196
  %v198 = vpop.f32.mrb[0].mxu0
  %199 = vmatprep.mubr.f32.mxu0 %v82
  %200 = vmatmul.mubr.f32.gmra.mrb[0].mxu0 %v20
  %v201 = vpop.f32.mrb[0].mxu0
  %v202 = vadd.f32 %v69, %v201
  %v203 = vpop.f32.mrb[0].mxu0
  %204 = vmatprep.mubr.f32.mxu0 %v85
  %205 = vmatmul.mubr.f32.gmra.mrb[0].mxu0 %v22
  %v206 = vpop.f32.mrb[0].mxu0
  %v207 = vadd.f32 %v69, %v206
  %v208 = vpop.f32.mrb[0].mxu0
  %209 = vmatprep.mubr.f32.mxu0 %v88
  %210 = vmatmul.mubr.f32.gmra.mrb[0].mxu0 %v24
  %v211 = vpop.f32.mrb[0].mxu0
  %v212 = vadd.f32 %v69, %v211
  %v213 = vpop.f32.mrb[0].mxu0
  %214 = vmatprep.mubr.f32.mxu0 %v91
  %215 = vmatmul.mubr.f32.gmra.mrb[0].mxu0 %v26
  %v216 = vpop.f32.mrb[0].mxu0
  %v217 = vadd.f32 %v69, %v216
  %v218 = vpop.f32.mrb[0].mxu0
  %219 = vmatprep.mubr.f32.mxu0 %v94
  %220 = vmatmul.mubr.f32.gmra.mrb[0].mxu0 %v28
  %v221 = vpop.f32.mrb[0].mxu0
  %v222 = vadd.f32 %v69, %v221
  %v223 = vpop.f32.mrb[0].mxu0
  %224 = vmatprep.mubr.f32.mxu0 %v97
  %225 = vmatmul.mubr.f32.gmra.mrb[0].mxu0 %v30
  %v226 = vpop.f32.mrb[0].mxu0
  %v227 = vadd.f32 %v69, %v226
  %v228 = vpop.f32.mrb[0].mxu0
  %229 = vmatprep.mubr.f32.mxu0 %v100
  %230 = vmatmul.mubr.f32.gmra.mrb[0].mxu0 %v32
  %v231 = vpop.f32.mrb[0].mxu0
  %v232 = vadd.f32 %v69, %v231
  %v233 = vpop.f32.mrb[0].mxu0
  %234 = vmatprep.mubr.f32.mxu0 %v103
  %235 = vmatmul.mubr.f32.gmra.mrb[0].mxu0 %v34
  %v236 = vpop.f32.mrb[0].mxu0
  %v237 = vadd.f32 %v69, %v236
  %v238 = vpop.f32.mrb[0].mxu0
  %239 = vmatprep.mubr.f32.mxu0 %v106
  %240 = vmatmul.mubr.f32.gmra.mrb[0].mxu0 %v36
  %v241 = vpop.f32.mrb[0].mxu0
  %v242 = vadd.f32 %v69, %v241
  %v243 = vpop.f32.mrb[0].mxu0
  %244 = vmatprep.mubr.f32.mxu0 %v109
  %245 = vmatmul.mubr.f32.gmra.mrb[0].mxu0 %v38
  %v246 = vpop.f32.mrb[0].mxu0
  %v247 = vadd.f32 %v69, %v246
  %v248 = vpop.f32.mrb[0].mxu0
  %249 = vmatprep.mubr.f32.mxu0 %v112
  %250 = vmatmul.mubr.f32.gmra.mrb[0].mxu0 %v40
  %v251 = vpop.f32.mrb[0].mxu0
  %v252 = vadd.f32 %v69, %v251
  %v253 = vpop.f32.mrb[0].mxu0
  %254 = vmatprep.mubr.f32.mxu0 %v115
  %255 = vmatmul.mubr.f32.gmra.mrb[0].mxu0 %v42
  %v256 = vpop.f32.mrb[0].mxu0
  %v257 = vadd.f32 %v69, %v256
  %v258 = vpop.f32.mrb[0].mxu0
  %259 = vmatprep.mubr.f32.mxu0 %v118
  %260 = vmatmul.mubr.f32.gmra.mrb[0].mxu0 %v44
  %v261 = vpop.f32.mrb[0].mxu0
  %v262 = vadd.f32 %v69, %v261
  %v263 = vpop.f32.mrb[0].mxu0
  %264 = vdwg.mxu0
  %265 = vst [vmem:[%s3] sm:$0xff] %v187
  %266 = vst [vmem:[%s3 + $0x8] sm:$0xff] %v192
  %267 = vst [vmem:[%s3 + $0x10] sm:$0xff] %v197
  %268 = vst [vmem:[%s3 + $0x18] sm:$0xff] %v202
  %269 = vst [vmem:[%s3 + $0x20] sm:$0xff] %v207
  %270 = vst [vmem:[%s3 + $0x28] sm:$0xff] %v212
  %271 = vst [vmem:[%s3 + $0x30] sm:$0xff] %v217
  %272 = vst [vmem:[%s3 + $0x38] sm:$0xff] %v222
  %273 = vst [vmem:[%s3 + $0x40] sm:$0xff] %v227
  %274 = vst [vmem:[%s3 + $0x48] sm:$0xff] %v232
  %275 = vst [vmem:[%s3 + $0x50] sm:$0xff] %v237
  %276 = vst [vmem:[%s3 + $0x58] sm:$0xff] %v242
  %277 = vst [vmem:[%s3 + $0x60] sm:$0xff] %v247
  %278 = vst [vmem:[%s3 + $0x68] sm:$0xff] %v252
  %279 = vst [vmem:[%s3 + $0x70] sm:$0xff] %v257
  %280 = vst [vmem:[%s3 + $0x78] sm:$0xff] %v262
  // Predicated region
  $region14: #{basic_block_forward.38} parent=0 // pred_check
    _
  $region15: #{basic_block_forward.38} parent=0 // pred_check_branch
    %282 = sbr.rel (0) target = $region17
  $region16: #{basic_block_forward.38} parent=0 // pred_region
    _
  $region17: #{basic_block_forward.38} parent=0 // pred_fallthru
    _
  // Predicated region
  $region18: #{basic_block_forward.38} parent=0 // pred_check
    _
  $region19: #{basic_block_forward.38} parent=0 // pred_check_branch
    %284 = sbr.rel (0) target = $region21
  $region20: #{basic_block_forward.38} parent=0 // pred_region
    _
  $region21: #{basic_block_forward.38} parent=0 // pred_fallthru
    _

// kernel: basic_block_forward.40
$region0: #{basic_block_forward.40}
  #allocation0 [shape = 'u32[]', space=smem, size = 0x4, offset = 0x4, fixed_abs, tag = 'smem constant byte address 0x4 - core index']
  #allocation1 [shape = 'u32[144,128]{1,0:T(1,128)}', space=vmem, size = 0x12000, scoped, tag = 'internal scratch']
  %s0 = inlined_call_operand.vmem [shape: f32[128,64], index: 0, kind: input, shape index: {}]
  %s1 = inlined_call_operand.vmem [shape: f32[64,128], index: 1, kind: input, shape index: {}]
  %s2 = inlined_call_operand.vmem [shape: f32[1,128], index: 2, kind: input, shape index: {}]
  %s3 = inlined_call_operand.vmem [shape: f32[128,128], index: 3, kind: output, shape index: {}]
  %s4 = sld [smem:[#allocation0]]
  $region22: #{basic_block_forward.40} parent=0
    _
  %s6 = ssub.s32 1, %s4
  %s7 = scalar_select 0, %s6, %s4
  // Predicated region
  $region2: #{basic_block_forward.40} parent=0 // pred_check
    _
  $region3: #{basic_block_forward.40} parent=0 // pred_check_branch
    %9 = sbr.rel (0) target = $region5
  $region4: #{basic_block_forward.40} parent=0 // pred_region
    _
  $region5: #{basic_block_forward.40} parent=0 // pred_fallthru
    _
  // Predicated region
  $region6: #{basic_block_forward.40} parent=0 // pred_check
    _
  $region7: #{basic_block_forward.40} parent=0 // pred_check_branch
    %11 = sbr.rel (0) target = $region9
  $region8: #{basic_block_forward.40} parent=0 // pred_region
    _
  $region9: #{basic_block_forward.40} parent=0 // pred_fallthru
    _
  // Predicated region
  $region10: #{basic_block_forward.40} parent=0 // pred_check
    _
  $region11: #{basic_block_forward.40} parent=0 // pred_check_branch
    %13 = sbr.rel (0) target = $region13
  $region12: #{basic_block_forward.40} parent=0 // pred_region
    _
  $region13: #{basic_block_forward.40} parent=0 // pred_fallthru
    _
  %v14 = vld [vmem:[%s0] sm:$0xff]
  %v15 = vld [vmem:[%s0 + $0x8] sm:$0xff]
  %v16 = vld [vmem:[%s0 + $0x10] sm:$0xff]
  %v17 = vld [vmem:[%s0 + $0x18] sm:$0xff]
  %v18 = vld [vmem:[%s0 + $0x20] sm:$0xff]
  %v19 = vld [vmem:[%s0 + $0x28] sm:$0xff]
  %v20 = vld [vmem:[%s0 + $0x30] sm:$0xff]
  %v21 = vld [vmem:[%s0 + $0x38] sm:$0xff]
  %v22 = vld [vmem:[%s0 + $0x40] sm:$0xff]
  %v23 = vld [vmem:[%s0 + $0x48] sm:$0xff]
  %v24 = vld [vmem:[%s0 + $0x50] sm:$0xff]
  %v25 = vld [vmem:[%s0 + $0x58] sm:$0xff]
  %v26 = vld [vmem:[%s0 + $0x60] sm:$0xff]
  %v27 = vld [vmem:[%s0 + $0x68] sm:$0xff]
  %v28 = vld [vmem:[%s0 + $0x70] sm:$0xff]
  %v29 = vld [vmem:[%s0 + $0x78] sm:$0xff]
  %v30 = vld [vmem:[%s1] sm:$0xff]
  %v31 = vld [vmem:[%s1 + $0x8] sm:$0xff]
  %v32 = vld [vmem:[%s1 + $0x10] sm:$0xff]
  %v33 = vld [vmem:[%s1 + $0x18] sm:$0xff]
  %v34 = vld [vmem:[%s1 + $0x20] sm:$0xff]
  %v35 = vld [vmem:[%s1 + $0x28] sm:$0xff]
  %v36 = vld [vmem:[%s1 + $0x30] sm:$0xff]
  %v37 = vld [vmem:[%s1 + $0x38] sm:$0xff]
  %v38 = vld [vmem:[%s2] sm:$0x1]
  %v40 = vlaneseq
  %v41 = vshrl.u32 %v40, 7
  %v42 = vsub.s32 0, %v41
  %v43 = vrot.slane %v38, %v42
  %vm45 = vcmask 523264
  %v47 = vsel %vm45, %v14, 0
  %v50 = vsel %vm45, %v15, 0
  %v53 = vsel %vm45, %v16, 0
  %v56 = vsel %vm45, %v17, 0
  %v59 = vsel %vm45, %v18, 0
  %v62 = vsel %vm45, %v19, 0
  %v65 = vsel %vm45, %v20, 0
  %v68 = vsel %vm45, %v21, 0
  %v71 = vsel %vm45, %v22, 0
  %v74 = vsel %vm45, %v23, 0
  %v77 = vsel %vm45, %v24, 0
  %v80 = vsel %vm45, %v25, 0
  %v83 = vsel %vm45, %v26, 0
  %v86 = vsel %vm45, %v27, 0
  %v89 = vsel %vm45, %v28, 0
  %v92 = vsel %vm45, %v29, 0
  %94 = vmatprep.subr.mxu0 0.0
  %95 = vmatpush1.msra.mxu0 %v30
  %96 = vmatprep.subr.mxu0 0.0
  %97 = vmatpush1.msra.mxu0 %v31
  %98 = vmatprep.subr.mxu0 0.0
  %99 = vmatpush1.msra.mxu0 %v32
  %100 = vmatprep.subr.mxu0 0.0
  %101 = vmatpush1.msra.mxu0 %v33
  %102 = vmatprep.subr.mxu0 0.0
  %103 = vmatpush1.msra.mxu0 %v34
  %104 = vmatprep.subr.mxu0 0.0
  %105 = vmatpush1.msra.mxu0 %v35
  %106 = vmatprep.subr.mxu0 0.0
  %107 = vmatpush1.msra.mxu0 %v36
  %108 = vmatprep.subr.mxu0 0.0
  %109 = vmatpush1.msra.mxu0 %v37
  %110 = vmatprep.subr.mxu0 0.0
  %111 = vmatpush1.msra.mxu0 0.0
  %112 = vmatprep.subr.mxu0 0.0
  %113 = vmatpush1.msra.mxu0 0.0
  %114 = vmatprep.subr.mxu0 0.0
  %115 = vmatpush1.msra.mxu0 0.0
  %116 = vmatprep.subr.mxu0 0.0
  %117 = vmatpush1.msra.mxu0 0.0
  %118 = vmatprep.subr.mxu0 0.0
  %119 = vmatpush1.msra.mxu0 0.0
  %120 = vmatprep.subr.mxu0 0.0
  %121 = vmatpush1.msra.mxu0 0.0
  %122 = vmatprep.subr.mxu0 0.0
  %123 = vmatpush1.msra.mxu0 0.0
  %124 = vmatprep.subr.mxu0 0.0
  %125 = vmatpush1.msra.mxu0 0.0
  %126 = vmatprep.subr.mxu0 0.0
  %127 = vmatpush1.msra.mxu0 0.0
  %128 = vmatprep.subr.mxu0 0.0
  %129 = vmatpush1.msra.mxu0 0.0
  %130 = vmatprep.subr.mxu0 0.0
  %131 = vmatpush1.msra.mxu0 0.0
  %132 = vmatprep.subr.mxu0 0.0
  %133 = vmatpush1.msra.mxu0 0.0
  %134 = vmatprep.subr.mxu0 0.0
  %135 = vmatpush1.msra.mxu0 0.0
  %136 = vmatprep.subr.mxu0 0.0
  %137 = vmatpush1.msra.mxu0 0.0
  %138 = vmatprep.subr.mxu0 0.0
  %139 = vmatpush1.msra.mxu0 0.0
  %140 = vmatprep.subr.mxu0 0.0
  %141 = vmatpush1.msra.mxu0 0.0
  %142 = vmatprep.subr.mxu0 0.0
  %143 = vmatpush1.msra.mxu0 0.0
  %144 = vmatprep.subr.mxu0 0.0
  %145 = vmatpush1.msra.mxu0 0.0
  %146 = vmatprep.subr.mxu0 0.0
  %147 = vmatpush1.msra.mxu0 0.0
  %148 = vmatprep.subr.mxu0 0.0
  %149 = vmatpush1.msra.mxu0 0.0
  %150 = vmatprep.subr.mxu0 0.0
  %151 = vmatpush1.msra.mxu0 0.0
  %152 = vmatprep.subr.mxu0 0.0
  %153 = vmatpush1.msra.mxu0 0.0
  %154 = vmatprep.subr.mxu0 0.0
  %155 = vmatpush1.msra.mxu0 0.0
  %156 = vmatprep.subr.mxu0 0.0
  %157 = vmatpush1.msra.mxu0 0.0
  %158 = vmatprep.mubr.f32.mxu0 0.0
  %159 = vmatmul.mubr.f32.gmra.mrb[0].mxu0 %v47
  %v160 = vpop.f32.mrb[0].mxu0
  %v161 = vadd.f32 %v43, %v160
  %v162 = vpop.f32.mrb[0].mxu0
  %163 = vmatprep.mubr.f32.mxu0 0.0
  %164 = vmatmul.mubr.f32.gmra.mrb[0].mxu0 %v50
  %v165 = vpop.f32.mrb[0].mxu0
  %v166 = vadd.f32 %v43, %v165
  %v167 = vpop.f32.mrb[0].mxu0
  %168 = vmatprep.mubr.f32.mxu0 0.0
  %169 = vmatmul.mubr.f32.gmra.mrb[0].mxu0 %v53
  %v170 = vpop.f32.mrb[0].mxu0
  %v171 = vadd.f32 %v43, %v170
  %v172 = vpop.f32.mrb[0].mxu0
  %173 = vmatprep.mubr.f32.mxu0 0.0
  %174 = vmatmul.mubr.f32.gmra.mrb[0].mxu0 %v56
  %v175 = vpop.f32.mrb[0].mxu0
  %v176 = vadd.f32 %v43, %v175
  %v177 = vpop.f32.mrb[0].mxu0
  %178 = vmatprep.mubr.f32.mxu0 0.0
  %179 = vmatmul.mubr.f32.gmra.mrb[0].mxu0 %v59
  %v180 = vpop.f32.mrb[0].mxu0
  %v181 = vadd.f32 %v43, %v180
  %v182 = vpop.f32.mrb[0].mxu0
  %183 = vmatprep.mubr.f32.mxu0 0.0
  %184 = vmatmul.mubr.f32.gmra.mrb[0].mxu0 %v62
  %v185 = vpop.f32.mrb[0].mxu0
  %v186 = vadd.f32 %v43, %v185
  %v187 = vpop.f32.mrb[0].mxu0
  %188 = vmatprep.mubr.f32.mxu0 0.0
  %189 = vmatmul.mubr.f32.gmra.mrb[0].mxu0 %v65
  %v190 = vpop.f32.mrb[0].mxu0
  %v191 = vadd.f32 %v43, %v190
  %v192 = vpop.f32.mrb[0].mxu0
  %193 = vmatprep.mubr.f32.mxu0 0.0
  %194 = vmatmul.mubr.f32.gmra.mrb[0].mxu0 %v68
  %v195 = vpop.f32.mrb[0].mxu0
  %v196 = vadd.f32 %v43, %v195
  %v197 = vpop.f32.mrb[0].mxu0
  %198 = vmatprep.mubr.f32.mxu0 0.0
  %199 = vmatmul.mubr.f32.gmra.mrb[0].mxu0 %v71
  %v200 = vpop.f32.mrb[0].mxu0
  %v201 = vadd.f32 %v43, %v200
  %v202 = vpop.f32.mrb[0].mxu0
  %203 = vmatprep.mubr.f32.mxu0 0.0
  %204 = vmatmul.mubr.f32.gmra.mrb[0].mxu0 %v74
  %v205 = vpop.f32.mrb[0].mxu0
  %v206 = vadd.f32 %v43, %v205
  %v207 = vpop.f32.mrb[0].mxu0
  %208 = vmatprep.mubr.f32.mxu0 0.0
  %209 = vmatmul.mubr.f32.gmra.mrb[0].mxu0 %v77
  %v210 = vpop.f32.mrb[0].mxu0
  %v211 = vadd.f32 %v43, %v210
  %v212 = vpop.f32.mrb[0].mxu0
  %213 = vmatprep.mubr.f32.mxu0 0.0
  %214 = vmatmul.mubr.f32.gmra.mrb[0].mxu0 %v80
  %v215 = vpop.f32.mrb[0].mxu0
  %v216 = vadd.f32 %v43, %v215
  %v217 = vpop.f32.mrb[0].mxu0
  %218 = vmatprep.mubr.f32.mxu0 0.0
  %219 = vmatmul.mubr.f32.gmra.mrb[0].mxu0 %v83
  %v220 = vpop.f32.mrb[0].mxu0
  %v221 = vadd.f32 %v43, %v220
  %v222 = vpop.f32.mrb[0].mxu0
  %223 = vmatprep.mubr.f32.mxu0 0.0
  %224 = vmatmul.mubr.f32.gmra.mrb[0].mxu0 %v86
  %v225 = vpop.f32.mrb[0].mxu0
  %v226 = vadd.f32 %v43, %v225
  %v227 = vpop.f32.mrb[0].mxu0
  %228 = vmatprep.mubr.f32.mxu0 0.0
  %229 = vmatmul.mubr.f32.gmra.mrb[0].mxu0 %v89
  %v230 = vpop.f32.mrb[0].mxu0
  %v231 = vadd.f32 %v43, %v230
  %v232 = vpop.f32.mrb[0].mxu0
  %233 = vmatprep.mubr.f32.mxu0 0.0
  %234 = vmatmul.mubr.f32.gmra.mrb[0].mxu0 %v92
  %v235 = vpop.f32.mrb[0].mxu0
  %v236 = vadd.f32 %v43, %v235
  %v237 = vpop.f32.mrb[0].mxu0
  %238 = vdwg.mxu0
  %239 = vst [vmem:[%s3] sm:$0xff] %v161
  %240 = vst [vmem:[%s3 + $0x8] sm:$0xff] %v166
  %241 = vst [vmem:[%s3 + $0x10] sm:$0xff] %v171
  %242 = vst [vmem:[%s3 + $0x18] sm:$0xff] %v176
  %243 = vst [vmem:[%s3 + $0x20] sm:$0xff] %v181
  %244 = vst [vmem:[%s3 + $0x28] sm:$0xff] %v186
  %245 = vst [vmem:[%s3 + $0x30] sm:$0xff] %v191
  %246 = vst [vmem:[%s3 + $0x38] sm:$0xff] %v196
  %247 = vst [vmem:[%s3 + $0x40] sm:$0xff] %v201
  %248 = vst [vmem:[%s3 + $0x48] sm:$0xff] %v206
  %249 = vst [vmem:[%s3 + $0x50] sm:$0xff] %v211
  %250 = vst [vmem:[%s3 + $0x58] sm:$0xff] %v216
  %251 = vst [vmem:[%s3 + $0x60] sm:$0xff] %v221
  %252 = vst [vmem:[%s3 + $0x68] sm:$0xff] %v226
  %253 = vst [vmem:[%s3 + $0x70] sm:$0xff] %v231
  %254 = vst [vmem:[%s3 + $0x78] sm:$0xff] %v236
  // Predicated region
  $region14: #{basic_block_forward.40} parent=0 // pred_check
    _
  $region15: #{basic_block_forward.40} parent=0 // pred_check_branch
    %256 = sbr.rel (0) target = $region17
  $region16: #{basic_block_forward.40} parent=0 // pred_region
    _
  $region17: #{basic_block_forward.40} parent=0 // pred_fallthru
    _
  // Predicated region
  $region18: #{basic_block_forward.40} parent=0 // pred_check
    _
  $region19: #{basic_block_forward.40} parent=0 // pred_check_branch
    %258 = sbr.rel (0) target = $region21
  $region20: #{basic_block_forward.40} parent=0 // pred_region
    _
  $region21: #{basic_block_forward.40} parent=0 // pred_fallthru
    _

// kernel: basic_block_forward.39
$region0: #{basic_block_forward.39}
  #allocation0 [shape = 'u32[]', space=smem, size = 0x4, offset = 0x4, fixed_abs, tag = 'smem constant byte address 0x4 - core index']
  #allocation1 [shape = 'u32[144,128]{1,0:T(1,128)}', space=vmem, size = 0x12000, scoped, tag = 'internal scratch']
  %s0 = inlined_call_operand.vmem [shape: f32[128,32], index: 0, kind: input, shape index: {}]
  %s1 = inlined_call_operand.vmem [shape: f32[128,32], index: 1, kind: input, shape index: {}]
  %s2 = inlined_call_operand.vmem [shape: f32[128,32], index: 2, kind: input, shape index: {}]
  %s3 = inlined_call_operand.vmem [shape: f32[128,32], index: 3, kind: input, shape index: {}]
  %s4 = inlined_call_operand.vmem [shape: f32[128,32], index: 4, kind: output, shape index: {}]
  %s5 = sld [smem:[#allocation0]]
  $region26: #{basic_block_forward.39} parent=0
    _
  %s7 = ssub.s32 1, %s5
  %s8 = scalar_select 0, %s7, %s5
  // Predicated region
  $region2: #{basic_block_forward.39} parent=0 // pred_check
    _
  $region3: #{basic_block_forward.39} parent=0 // pred_check_branch
    %10 = sbr.rel (0) target = $region5
  $region4: #{basic_block_forward.39} parent=0 // pred_region
    _
  $region5: #{basic_block_forward.39} parent=0 // pred_fallthru
    _
  // Predicated region
  $region6: #{basic_block_forward.39} parent=0 // pred_check
    _
  $region7: #{basic_block_forward.39} parent=0 // pred_check_branch
    %12 = sbr.rel (0) target = $region9
  $region8: #{basic_block_forward.39} parent=0 // pred_region
    _
  $region9: #{basic_block_forward.39} parent=0 // pred_fallthru
    _
  // Predicated region
  $region10: #{basic_block_forward.39} parent=0 // pred_check
    _
  $region11: #{basic_block_forward.39} parent=0 // pred_check_branch
    %14 = sbr.rel (0) target = $region13
  $region12: #{basic_block_forward.39} parent=0 // pred_region
    _
  $region13: #{basic_block_forward.39} parent=0 // pred_fallthru
    _
  // Predicated region
  $region14: #{basic_block_forward.39} parent=0 // pred_check
    _
  $region15: #{basic_block_forward.39} parent=0 // pred_check_branch
    %16 = sbr.rel (0) target = $region17
  $region16: #{basic_block_forward.39} parent=0 // pred_region
    _
  $region17: #{basic_block_forward.39} parent=0 // pred_fallthru
    _
  %v17 = vld [vmem:[%s0] sm:$0xff]
  %v18 = vld [vmem:[%s0 + $0x8] sm:$0xff]
  %v19 = vld [vmem:[%s0 + $0x10] sm:$0xff]
  %v20 = vld [vmem:[%s0 + $0x18] sm:$0xff]
  %v21 = vld [vmem:[%s0 + $0x20] sm:$0xff]
  %v22 = vld [vmem:[%s0 + $0x28] sm:$0xff]
  %v23 = vld [vmem:[%s0 + $0x30] sm:$0xff]
  %v24 = vld [vmem:[%s0 + $0x38] sm:$0xff]
  %v25 = vld [vmem:[%s0 + $0x40] sm:$0xff]
  %v26 = vld [vmem:[%s0 + $0x48] sm:$0xff]
  %v27 = vld [vmem:[%s0 + $0x50] sm:$0xff]
  %v28 = vld [vmem:[%s0 + $0x58] sm:$0xff]
  %v29 = vld [vmem:[%s0 + $0x60] sm:$0xff]
  %v30 = vld [vmem:[%s0 + $0x68] sm:$0xff]
  %v31 = vld [vmem:[%s0 + $0x70] sm:$0xff]
  %v32 = vld [vmem:[%s0 + $0x78] sm:$0xff]
  %v33 = vld [vmem:[%s1] sm:$0xff]
  %v34 = vld [vmem:[%s1 + $0x8] sm:$0xff]
  %v35 = vld [vmem:[%s1 + $0x10] sm:$0xff]
  %v36 = vld [vmem:[%s1 + $0x18] sm:$0xff]
  %v37 = vld [vmem:[%s1 + $0x20] sm:$0xff]
  %v38 = vld [vmem:[%s1 + $0x28] sm:$0xff]
  %v39 = vld [vmem:[%s1 + $0x30] sm:$0xff]
  %v40 = vld [vmem:[%s1 + $0x38] sm:$0xff]
  %v41 = vld [vmem:[%s1 + $0x40] sm:$0xff]
  %v42 = vld [vmem:[%s1 + $0x48] sm:$0xff]
  %v43 = vld [vmem:[%s1 + $0x50] sm:$0xff]
  %v44 = vld [vmem:[%s1 + $0x58] sm:$0xff]
  %v45 = vld [vmem:[%s1 + $0x60] sm:$0xff]
  %v46 = vld [vmem:[%s1 + $0x68] sm:$0xff]
  %v47 = vld [vmem:[%s1 + $0x70] sm:$0xff]
  %v48 = vld [vmem:[%s1 + $0x78] sm:$0xff]
  %v49 = vmax.f32 %v17, %v33
  %v50 = vmax.f32 %v18, %v34
  %v51 = vmax.f32 %v19, %v35
  %v52 = vmax.f32 %v20, %v36
  %v53 = vmax.f32 %v21, %v37
  %v54 = vmax.f32 %v22, %v38
  %v55 = vmax.f32 %v23, %v39
  %v56 = vmax.f32 %v24, %v40
  %v57 = vmax.f32 %v25, %v41
  %v58 = vmax.f32 %v26, %v42
  %v59 = vmax.f32 %v27, %v43
  %v60 = vmax.f32 %v28, %v44
  %v61 = vmax.f32 %v29, %v45
  %v62 = vmax.f32 %v30, %v46
  %v63 = vmax.f32 %v31, %v47
  %v64 = vmax.f32 %v32, %v48
  %v65 = vld [vmem:[%s2] sm:$0xff]
  %v66 = vld [vmem:[%s2 + $0x8] sm:$0xff]
  %v67 = vld [vmem:[%s2 + $0x10] sm:$0xff]
  %v68 = vld [vmem:[%s2 + $0x18] sm:$0xff]
  %v69 = vld [vmem:[%s2 + $0x20] sm:$0xff]
  %v70 = vld [vmem:[%s2 + $0x28] sm:$0xff]
  %v71 = vld [vmem:[%s2 + $0x30] sm:$0xff]
  %v72 = vld [vmem:[%s2 + $0x38] sm:$0xff]
  %v73 = vld [vmem:[%s2 + $0x40] sm:$0xff]
  %v74 = vld [vmem:[%s2 + $0x48] sm:$0xff]
  %v75 = vld [vmem:[%s2 + $0x50] sm:$0xff]
  %v76 = vld [vmem:[%s2 + $0x58] sm:$0xff]
  %v77 = vld [vmem:[%s2 + $0x60] sm:$0xff]
  %v78 = vld [vmem:[%s2 + $0x68] sm:$0xff]
  %v79 = vld [vmem:[%s2 + $0x70] sm:$0xff]
  %v80 = vld [vmem:[%s2 + $0x78] sm:$0xff]
  %v81 = vld [vmem:[%s3] sm:$0xff]
  %v82 = vld [vmem:[%s3 + $0x8] sm:$0xff]
  %v83 = vld [vmem:[%s3 + $0x10] sm:$0xff]
  %v84 = vld [vmem:[%s3 + $0x18] sm:$0xff]
  %v85 = vld [vmem:[%s3 + $0x20] sm:$0xff]
  %v86 = vld [vmem:[%s3 + $0x28] sm:$0xff]
  %v87 = vld [vmem:[%s3 + $0x30] sm:$0xff]
  %v88 = vld [vmem:[%s3 + $0x38] sm:$0xff]
  %v89 = vld [vmem:[%s3 + $0x40] sm:$0xff]
  %v90 = vld [vmem:[%s3 + $0x48] sm:$0xff]
  %v91 = vld [vmem:[%s3 + $0x50] sm:$0xff]
  %v92 = vld [vmem:[%s3 + $0x58] sm:$0xff]
  %v93 = vld [vmem:[%s3 + $0x60] sm:$0xff]
  %v94 = vld [vmem:[%s3 + $0x68] sm:$0xff]
  %v95 = vld [vmem:[%s3 + $0x70] sm:$0xff]
  %v96 = vld [vmem:[%s3 + $0x78] sm:$0xff]
  %v97 = vmax.f32 %v65, %v81
  %v98 = vmax.f32 %v66, %v82
  %v99 = vmax.f32 %v67, %v83
  %v100 = vmax.f32 %v68, %v84
  %v101 = vmax.f32 %v69, %v85
  %v102 = vmax.f32 %v70, %v86
  %v103 = vmax.f32 %v71, %v87
  %v104 = vmax.f32 %v72, %v88
  %v105 = vmax.f32 %v73, %v89
  %v106 = vmax.f32 %v74, %v90
  %v107 = vmax.f32 %v75, %v91
  %v108 = vmax.f32 %v76, %v92
  %v109 = vmax.f32 %v77, %v93
  %v110 = vmax.f32 %v78, %v94
  %v111 = vmax.f32 %v79, %v95
  %v112 = vmax.f32 %v80, %v96
  %v113 = vmax.f32 %v49, %v97
  %v114 = vmax.f32 %v50, %v98
  %v115 = vmax.f32 %v51, %v99
  %v116 = vmax.f32 %v52, %v100
  %v117 = vmax.f32 %v53, %v101
  %v118 = vmax.f32 %v54, %v102
  %v119 = vmax.f32 %v55, %v103
  %v120 = vmax.f32 %v56, %v104
  %v121 = vmax.f32 %v57, %v105
  %v122 = vmax.f32 %v58, %v106
  %v123 = vmax.f32 %v59, %v107
  %v124 = vmax.f32 %v60, %v108
  %v125 = vmax.f32 %v61, %v109
  %v126 = vmax.f32 %v62, %v110
  %v127 = vmax.f32 %v63, %v111
  %v128 = vmax.f32 %v64, %v112
  %vm129 = vcmask 261120
  %130 = vst.msk [vmem:[%s4] sm:$0xff] %vm129, %v113
  %131 = vst.msk [vmem:[%s4 + $0x8] sm:$0xff] %vm129, %v114
  %132 = vst.msk [vmem:[%s4 + $0x10] sm:$0xff] %vm129, %v115
  %133 = vst.msk [vmem:[%s4 + $0x18] sm:$0xff] %vm129, %v116
  %134 = vst.msk [vmem:[%s4 + $0x20] sm:$0xff] %vm129, %v117
  %135 = vst.msk [vmem:[%s4 + $0x28] sm:$0xff] %vm129, %v118
  %136 = vst.msk [vmem:[%s4 + $0x30] sm:$0xff] %vm129, %v119
  %137 = vst.msk [vmem:[%s4 + $0x38] sm:$0xff] %vm129, %v120
  %138 = vst.msk [vmem:[%s4 + $0x40] sm:$0xff] %vm129, %v121
  %139 = vst.msk [vmem:[%s4 + $0x48] sm:$0xff] %vm129, %v122
  %140 = vst.msk [vmem:[%s4 + $0x50] sm:$0xff] %vm129, %v123
  %141 = vst.msk [vmem:[%s4 + $0x58] sm:$0xff] %vm129, %v124
  %142 = vst.msk [vmem:[%s4 + $0x60] sm:$0xff] %vm129, %v125
  %143 = vst.msk [vmem:[%s4 + $0x68] sm:$0xff] %vm129, %v126
  %144 = vst.msk [vmem:[%s4 + $0x70] sm:$0xff] %vm129, %v127
  %145 = vst.msk [vmem:[%s4 + $0x78] sm:$0xff] %vm129, %v128
  // Predicated region
  $region18: #{basic_block_forward.39} parent=0 // pred_check
    _
  $region19: #{basic_block_forward.39} parent=0 // pred_check_branch
    %147 = sbr.rel (0) target = $region21
  $region20: #{basic_block_forward.39} parent=0 // pred_region
    _
  $region21: #{basic_block_forward.39} parent=0 // pred_fallthru
    _
  // Predicated region
  $region22: #{basic_block_forward.39} parent=0 // pred_check
    _
  $region23: #{basic_block_forward.39} parent=0 // pred_check_branch
    %149 = sbr.rel (0) target = $region25
  $region24: #{basic_block_forward.39} parent=0 // pred_region
    _
  $region25: #{basic_block_forward.39} parent=0 // pred_fallthru
    _

// kernel: basic_block_forward.43
$region0: #{basic_block_forward.43}
  #allocation0 [shape = 'u32[]', space=smem, size = 0x4, offset = 0x4, fixed_abs, tag = 'smem constant byte address 0x4 - core index']
  #allocation1 [shape = 'u32[144,128]{1,0:T(1,128)}', space=vmem, size = 0x12000, scoped, tag = 'internal scratch']
  %s0 = inlined_call_operand.vmem [shape: f32[128,32], index: 0, kind: input, shape index: {}]
  %s1 = inlined_call_operand.vmem [shape: f32[32,128], index: 1, kind: input, shape index: {}]
  %s2 = inlined_call_operand.vmem [shape: f32[1,128], index: 2, kind: input, shape index: {}]
  %s3 = inlined_call_operand.vmem [shape: f32[128,128], index: 3, kind: output, shape index: {}]
  %s4 = sld [smem:[#allocation0]]
  $region22: #{basic_block_forward.43} parent=0
    _
  %s6 = ssub.s32 1, %s4
  %s7 = scalar_select 0, %s6, %s4
  // Predicated region
  $region2: #{basic_block_forward.43} parent=0 // pred_check
    _
  $region3: #{basic_block_forward.43} parent=0 // pred_check_branch
    %9 = sbr.rel (0) target = $region5
  $region4: #{basic_block_forward.43} parent=0 // pred_region
    _
  $region5: #{basic_block_forward.43} parent=0 // pred_fallthru
    _
  // Predicated region
  $region6: #{basic_block_forward.43} parent=0 // pred_check
    _
  $region7: #{basic_block_forward.43} parent=0 // pred_check_branch
    %11 = sbr.rel (0) target = $region9
  $region8: #{basic_block_forward.43} parent=0 // pred_region
    _
  $region9: #{basic_block_forward.43} parent=0 // pred_fallthru
    _
  // Predicated region
  $region10: #{basic_block_forward.43} parent=0 // pred_check
    _
  $region11: #{basic_block_forward.43} parent=0 // pred_check_branch
    %13 = sbr.rel (0) target = $region13
  $region12: #{basic_block_forward.43} parent=0 // pred_region
    _
  $region13: #{basic_block_forward.43} parent=0 // pred_fallthru
    _
  %v14 = vld [vmem:[%s0] sm:$0xff]
  %v15 = vld [vmem:[%s0 + $0x8] sm:$0xff]
  %v16 = vld [vmem:[%s0 + $0x10] sm:$0xff]
  %v17 = vld [vmem:[%s0 + $0x18] sm:$0xff]
  %v18 = vld [vmem:[%s0 + $0x20] sm:$0xff]
  %v19 = vld [vmem:[%s0 + $0x28] sm:$0xff]
  %v20 = vld [vmem:[%s0 + $0x30] sm:$0xff]
  %v21 = vld [vmem:[%s0 + $0x38] sm:$0xff]
  %v22 = vld [vmem:[%s0 + $0x40] sm:$0xff]
  %v23 = vld [vmem:[%s0 + $0x48] sm:$0xff]
  %v24 = vld [vmem:[%s0 + $0x50] sm:$0xff]
  %v25 = vld [vmem:[%s0 + $0x58] sm:$0xff]
  %v26 = vld [vmem:[%s0 + $0x60] sm:$0xff]
  %v27 = vld [vmem:[%s0 + $0x68] sm:$0xff]
  %v28 = vld [vmem:[%s0 + $0x70] sm:$0xff]
  %v29 = vld [vmem:[%s0 + $0x78] sm:$0xff]
  %v30 = vld [vmem:[%s1] sm:$0xff]
  %v31 = vld [vmem:[%s1 + $0x8] sm:$0xff]
  %v32 = vld [vmem:[%s1 + $0x10] sm:$0xff]
  %v33 = vld [vmem:[%s1 + $0x18] sm:$0xff]
  %v34 = vld [vmem:[%s2] sm:$0x1]
  %v36 = vlaneseq
  %v37 = vshrl.u32 %v36, 7
  %v38 = vsub.s32 0, %v37
  %v39 = vrot.slane %v34, %v38
  %vm41 = vcmask 261120
  %v43 = vsel %vm41, %v14, 0
  %v46 = vsel %vm41, %v15, 0
  %v49 = vsel %vm41, %v16, 0
  %v52 = vsel %vm41, %v17, 0
  %v55 = vsel %vm41, %v18, 0
  %v58 = vsel %vm41, %v19, 0
  %v61 = vsel %vm41, %v20, 0
  %v64 = vsel %vm41, %v21, 0
  %v67 = vsel %vm41, %v22, 0
  %v70 = vsel %vm41, %v23, 0
  %v73 = vsel %vm41, %v24, 0
  %v76 = vsel %vm41, %v25, 0
  %v79 = vsel %vm41, %v26, 0
  %v82 = vsel %vm41, %v27, 0
  %v85 = vsel %vm41, %v28, 0
  %v88 = vsel %vm41, %v29, 0
  %90 = vmatprep.subr.mxu0 0.0
  %91 = vmatpush1.msra.mxu0 %v30
  %92 = vmatprep.subr.mxu0 0.0
  %93 = vmatpush1.msra.mxu0 %v31
  %94 = vmatprep.subr.mxu0 0.0
  %95 = vmatpush1.msra.mxu0 %v32
  %96 = vmatprep.subr.mxu0 0.0
  %97 = vmatpush1.msra.mxu0 %v33
  %98 = vmatprep.subr.mxu0 0.0
  %99 = vmatpush1.msra.mxu0 0.0
  %100 = vmatprep.subr.mxu0 0.0
  %101 = vmatpush1.msra.mxu0 0.0
  %102 = vmatprep.subr.mxu0 0.0
  %103 = vmatpush1.msra.mxu0 0.0
  %104 = vmatprep.subr.mxu0 0.0
  %105 = vmatpush1.msra.mxu0 0.0
  %106 = vmatprep.subr.mxu0 0.0
  %107 = vmatpush1.msra.mxu0 0.0
  %108 = vmatprep.subr.mxu0 0.0
  %109 = vmatpush1.msra.mxu0 0.0
  %110 = vmatprep.subr.mxu0 0.0
  %111 = vmatpush1.msra.mxu0 0.0
  %112 = vmatprep.subr.mxu0 0.0
  %113 = vmatpush1.msra.mxu0 0.0
  %114 = vmatprep.subr.mxu0 0.0
  %115 = vmatpush1.msra.mxu0 0.0
  %116 = vmatprep.subr.mxu0 0.0
  %117 = vmatpush1.msra.mxu0 0.0
  %118 = vmatprep.subr.mxu0 0.0
  %119 = vmatpush1.msra.mxu0 0.0
  %120 = vmatprep.subr.mxu0 0.0
  %121 = vmatpush1.msra.mxu0 0.0
  %122 = vmatprep.subr.mxu0 0.0
  %123 = vmatpush1.msra.mxu0 0.0
  %124 = vmatprep.subr.mxu0 0.0
  %125 = vmatpush1.msra.mxu0 0.0
  %126 = vmatprep.subr.mxu0 0.0
  %127 = vmatpush1.msra.mxu0 0.0
  %128 = vmatprep.subr.mxu0 0.0
  %129 = vmatpush1.msra.mxu0 0.0
  %130 = vmatprep.subr.mxu0 0.0
  %131 = vmatpush1.msra.mxu0 0.0
  %132 = vmatprep.subr.mxu0 0.0
  %133 = vmatpush1.msra.mxu0 0.0
  %134 = vmatprep.subr.mxu0 0.0
  %135 = vmatpush1.msra.mxu0 0.0
  %136 = vmatprep.subr.mxu0 0.0
  %137 = vmatpush1.msra.mxu0 0.0
  %138 = vmatprep.subr.mxu0 0.0
  %139 = vmatpush1.msra.mxu0 0.0
  %140 = vmatprep.subr.mxu0 0.0
  %141 = vmatpush1.msra.mxu0 0.0
  %142 = vmatprep.subr.mxu0 0.0
  %143 = vmatpush1.msra.mxu0 0.0
  %144 = vmatprep.subr.mxu0 0.0
  %145 = vmatpush1.msra.mxu0 0.0
  %146 = vmatprep.subr.mxu0 0.0
  %147 = vmatpush1.msra.mxu0 0.0
  %148 = vmatprep.subr.mxu0 0.0
  %149 = vmatpush1.msra.mxu0 0.0
  %150 = vmatprep.subr.mxu0 0.0
  %151 = vmatpush1.msra.mxu0 0.0
  %152 = vmatprep.subr.mxu0 0.0
  %153 = vmatpush1.msra.mxu0 0.0
  %154 = vmatprep.mubr.f32.mxu0 0.0
  %155 = vmatmul.mubr.f32.gmra.mrb[0].mxu0 %v43
  %v156 = vpop.f32.mrb[0].mxu0
  %v157 = vadd.f32 %v39, %v156
  %v158 = vpop.f32.mrb[0].mxu0
  %159 = vmatprep.mubr.f32.mxu0 0.0
  %160 = vmatmul.mubr.f32.gmra.mrb[0].mxu0 %v46
  %v161 = vpop.f32.mrb[0].mxu0
  %v162 = vadd.f32 %v39, %v161
  %v163 = vpop.f32.mrb[0].mxu0
  %164 = vmatprep.mubr.f32.mxu0 0.0
  %165 = vmatmul.mubr.f32.gmra.mrb[0].mxu0 %v49
  %v166 = vpop.f32.mrb[0].mxu0
  %v167 = vadd.f32 %v39, %v166
  %v168 = vpop.f32.mrb[0].mxu0
  %169 = vmatprep.mubr.f32.mxu0 0.0
  %170 = vmatmul.mubr.f32.gmra.mrb[0].mxu0 %v52
  %v171 = vpop.f32.mrb[0].mxu0
  %v172 = vadd.f32 %v39, %v171
  %v173 = vpop.f32.mrb[0].mxu0
  %174 = vmatprep.mubr.f32.mxu0 0.0
  %175 = vmatmul.mubr.f32.gmra.mrb[0].mxu0 %v55
  %v176 = vpop.f32.mrb[0].mxu0
  %v177 = vadd.f32 %v39, %v176
  %v178 = vpop.f32.mrb[0].mxu0
  %179 = vmatprep.mubr.f32.mxu0 0.0
  %180 = vmatmul.mubr.f32.gmra.mrb[0].mxu0 %v58
  %v181 = vpop.f32.mrb[0].mxu0
  %v182 = vadd.f32 %v39, %v181
  %v183 = vpop.f32.mrb[0].mxu0
  %184 = vmatprep.mubr.f32.mxu0 0.0
  %185 = vmatmul.mubr.f32.gmra.mrb[0].mxu0 %v61
  %v186 = vpop.f32.mrb[0].mxu0
  %v187 = vadd.f32 %v39, %v186
  %v188 = vpop.f32.mrb[0].mxu0
  %189 = vmatprep.mubr.f32.mxu0 0.0
  %190 = vmatmul.mubr.f32.gmra.mrb[0].mxu0 %v64
  %v191 = vpop.f32.mrb[0].mxu0
  %v192 = vadd.f32 %v39, %v191
  %v193 = vpop.f32.mrb[0].mxu0
  %194 = vmatprep.mubr.f32.mxu0 0.0
  %195 = vmatmul.mubr.f32.gmra.mrb[0].mxu0 %v67
  %v196 = vpop.f32.mrb[0].mxu0
  %v197 = vadd.f32 %v39, %v196
  %v198 = vpop.f32.mrb[0].mxu0
  %199 = vmatprep.mubr.f32.mxu0 0.0
  %200 = vmatmul.mubr.f32.gmra.mrb[0].mxu0 %v70
  %v201 = vpop.f32.mrb[0].mxu0
  %v202 = vadd.f32 %v39, %v201
  %v203 = vpop.f32.mrb[0].mxu0
  %204 = vmatprep.mubr.f32.mxu0 0.0
  %205 = vmatmul.mubr.f32.gmra.mrb[0].mxu0 %v73
  %v206 = vpop.f32.mrb[0].mxu0
  %v207 = vadd.f32 %v39, %v206
  %v208 = vpop.f32.mrb[0].mxu0
  %209 = vmatprep.mubr.f32.mxu0 0.0
  %210 = vmatmul.mubr.f32.gmra.mrb[0].mxu0 %v76
  %v211 = vpop.f32.mrb[0].mxu0
  %v212 = vadd.f32 %v39, %v211
  %v213 = vpop.f32.mrb[0].mxu0
  %214 = vmatprep.mubr.f32.mxu0 0.0
  %215 = vmatmul.mubr.f32.gmra.mrb[0].mxu0 %v79
  %v216 = vpop.f32.mrb[0].mxu0
  %v217 = vadd.f32 %v39, %v216
  %v218 = vpop.f32.mrb[0].mxu0
  %219 = vmatprep.mubr.f32.mxu0 0.0
  %220 = vmatmul.mubr.f32.gmra.mrb[0].mxu0 %v82
  %v221 = vpop.f32.mrb[0].mxu0
  %v222 = vadd.f32 %v39, %v221
  %v223 = vpop.f32.mrb[0].mxu0
  %224 = vmatprep.mubr.f32.mxu0 0.0
  %225 = vmatmul.mubr.f32.gmra.mrb[0].mxu0 %v85
  %v226 = vpop.f32.mrb[0].mxu0
  %v227 = vadd.f32 %v39, %v226
  %v228 = vpop.f32.mrb[0].mxu0
  %229 = vmatprep.mubr.f32.mxu0 0.0
  %230 = vmatmul.mubr.f32.gmra.mrb[0].mxu0 %v88
  %v231 = vpop.f32.mrb[0].mxu0
  %v232 = vadd.f32 %v39, %v231
  %v233 = vpop.f32.mrb[0].mxu0
  %234 = vdwg.mxu0
  %235 = vst [vmem:[%s3] sm:$0xff] %v157
  %236 = vst [vmem:[%s3 + $0x8] sm:$0xff] %v162
  %237 = vst [vmem:[%s3 + $0x10] sm:$0xff] %v167
  %238 = vst [vmem:[%s3 + $0x18] sm:$0xff] %v172
  %239 = vst [vmem:[%s3 + $0x20] sm:$0xff] %v177
  %240 = vst [vmem:[%s3 + $0x28] sm:$0xff] %v182
  %241 = vst [vmem:[%s3 + $0x30] sm:$0xff] %v187
  %242 = vst [vmem:[%s3 + $0x38] sm:$0xff] %v192
  %243 = vst [vmem:[%s3 + $0x40] sm:$0xff] %v197
  %244 = vst [vmem:[%s3 + $0x48] sm:$0xff] %v202
  %245 = vst [vmem:[%s3 + $0x50] sm:$0xff] %v207
  %246 = vst [vmem:[%s3 + $0x58] sm:$0xff] %v212
  %247 = vst [vmem:[%s3 + $0x60] sm:$0xff] %v217
  %248 = vst [vmem:[%s3 + $0x68] sm:$0xff] %v222
  %249 = vst [vmem:[%s3 + $0x70] sm:$0xff] %v227
  %250 = vst [vmem:[%s3 + $0x78] sm:$0xff] %v232
  // Predicated region
  $region14: #{basic_block_forward.43} parent=0 // pred_check
    _
  $region15: #{basic_block_forward.43} parent=0 // pred_check_branch
    %252 = sbr.rel (0) target = $region17
  $region16: #{basic_block_forward.43} parent=0 // pred_region
    _
  $region17: #{basic_block_forward.43} parent=0 // pred_fallthru
    _
  // Predicated region
  $region18: #{basic_block_forward.43} parent=0 // pred_check
    _
  $region19: #{basic_block_forward.43} parent=0 // pred_check_branch
    %254 = sbr.rel (0) target = $region21
  $region20: #{basic_block_forward.43} parent=0 // pred_region
    _
  $region21: #{basic_block_forward.43} parent=0 // pred_fallthru
    _

// kernel: basic_block_forward.46
$region0: #{basic_block_forward.46}
  #allocation0 [shape = 'u32[]', space=smem, size = 0x4, offset = 0x4, fixed_abs, tag = 'smem constant byte address 0x4 - core index']
  #allocation1 [shape = 'u32[144,128]{1,0:T(1,128)}', space=vmem, size = 0x12000, scoped, tag = 'internal scratch']
  %s0 = inlined_call_operand.vmem [shape: f32[128,32], index: 0, kind: input, shape index: {}]
  %s1 = inlined_call_operand.vmem [shape: f32[128,32], index: 1, kind: input, shape index: {}]
  %s2 = inlined_call_operand.vmem [shape: f32[128,32], index: 2, kind: input, shape index: {}]
  %s3 = inlined_call_operand.vmem [shape: f32[128,32], index: 3, kind: output, shape index: {}]
  %s4 = sld [smem:[#allocation0]]
  $region22: #{basic_block_forward.46} parent=0
    _
  %s6 = ssub.s32 1, %s4
  %s7 = scalar_select 0, %s6, %s4
  // Predicated region
  $region2: #{basic_block_forward.46} parent=0 // pred_check
    _
  $region3: #{basic_block_forward.46} parent=0 // pred_check_branch
    %9 = sbr.rel (0) target = $region5
  $region4: #{basic_block_forward.46} parent=0 // pred_region
    _
  $region5: #{basic_block_forward.46} parent=0 // pred_fallthru
    _
  // Predicated region
  $region6: #{basic_block_forward.46} parent=0 // pred_check
    _
  $region7: #{basic_block_forward.46} parent=0 // pred_check_branch
    %11 = sbr.rel (0) target = $region9
  $region8: #{basic_block_forward.46} parent=0 // pred_region
    _
  $region9: #{basic_block_forward.46} parent=0 // pred_fallthru
    _
  // Predicated region
  $region10: #{basic_block_forward.46} parent=0 // pred_check
    _
  $region11: #{basic_block_forward.46} parent=0 // pred_check_branch
    %13 = sbr.rel (0) target = $region13
  $region12: #{basic_block_forward.46} parent=0 // pred_region
    _
  $region13: #{basic_block_forward.46} parent=0 // pred_fallthru
    _
  %v14 = vld [vmem:[%s0] sm:$0xff]
  %v15 = vld [vmem:[%s0 + $0x8] sm:$0xff]
  %v16 = vld [vmem:[%s0 + $0x10] sm:$0xff]
  %v17 = vld [vmem:[%s0 + $0x18] sm:$0xff]
  %v18 = vld [vmem:[%s0 + $0x20] sm:$0xff]
  %v19 = vld [vmem:[%s0 + $0x28] sm:$0xff]
  %v20 = vld [vmem:[%s0 + $0x30] sm:$0xff]
  %v21 = vld [vmem:[%s0 + $0x38] sm:$0xff]
  %v22 = vld [vmem:[%s0 + $0x40] sm:$0xff]
  %v23 = vld [vmem:[%s0 + $0x48] sm:$0xff]
  %v24 = vld [vmem:[%s0 + $0x50] sm:$0xff]
  %v25 = vld [vmem:[%s0 + $0x58] sm:$0xff]
  %v26 = vld [vmem:[%s0 + $0x60] sm:$0xff]
  %v27 = vld [vmem:[%s0 + $0x68] sm:$0xff]
  %v28 = vld [vmem:[%s0 + $0x70] sm:$0xff]
  %v29 = vld [vmem:[%s0 + $0x78] sm:$0xff]
  %v30 = vld [vmem:[%s1] sm:$0xff]
  %v31 = vld [vmem:[%s1 + $0x8] sm:$0xff]
  %v32 = vld [vmem:[%s1 + $0x10] sm:$0xff]
  %v33 = vld [vmem:[%s1 + $0x18] sm:$0xff]
  %v34 = vld [vmem:[%s1 + $0x20] sm:$0xff]
  %v35 = vld [vmem:[%s1 + $0x28] sm:$0xff]
  %v36 = vld [vmem:[%s1 + $0x30] sm:$0xff]
  %v37 = vld [vmem:[%s1 + $0x38] sm:$0xff]
  %v38 = vld [vmem:[%s1 + $0x40] sm:$0xff]
  %v39 = vld [vmem:[%s1 + $0x48] sm:$0xff]
  %v40 = vld [vmem:[%s1 + $0x50] sm:$0xff]
  %v41 = vld [vmem:[%s1 + $0x58] sm:$0xff]
  %v42 = vld [vmem:[%s1 + $0x60] sm:$0xff]
  %v43 = vld [vmem:[%s1 + $0x68] sm:$0xff]
  %v44 = vld [vmem:[%s1 + $0x70] sm:$0xff]
  %v45 = vld [vmem:[%s1 + $0x78] sm:$0xff]
  %v46 = vadd.f32 %v14, %v30
  %v47 = vadd.f32 %v15, %v31
  %v48 = vadd.f32 %v16, %v32
  %v49 = vadd.f32 %v17, %v33
  %v50 = vadd.f32 %v18, %v34
  %v51 = vadd.f32 %v19, %v35
  %v52 = vadd.f32 %v20, %v36
  %v53 = vadd.f32 %v21, %v37
  %v54 = vadd.f32 %v22, %v38
  %v55 = vadd.f32 %v23, %v39
  %v56 = vadd.f32 %v24, %v40
  %v57 = vadd.f32 %v25, %v41
  %v58 = vadd.f32 %v26, %v42
  %v59 = vadd.f32 %v27, %v43
  %v60 = vadd.f32 %v28, %v44
  %v61 = vadd.f32 %v29, %v45
  %v62 = vld [vmem:[%s2] sm:$0xff]
  %v63 = vld [vmem:[%s2 + $0x8] sm:$0xff]
  %v64 = vld [vmem:[%s2 + $0x10] sm:$0xff]
  %v65 = vld [vmem:[%s2 + $0x18] sm:$0xff]
  %v66 = vld [vmem:[%s2 + $0x20] sm:$0xff]
  %v67 = vld [vmem:[%s2 + $0x28] sm:$0xff]
  %v68 = vld [vmem:[%s2 + $0x30] sm:$0xff]
  %v69 = vld [vmem:[%s2 + $0x38] sm:$0xff]
  %v70 = vld [vmem:[%s2 + $0x40] sm:$0xff]
  %v71 = vld [vmem:[%s2 + $0x48] sm:$0xff]
  %v72 = vld [vmem:[%s2 + $0x50] sm:$0xff]
  %v73 = vld [vmem:[%s2 + $0x58] sm:$0xff]
  %v74 = vld [vmem:[%s2 + $0x60] sm:$0xff]
  %v75 = vld [vmem:[%s2 + $0x68] sm:$0xff]
  %v76 = vld [vmem:[%s2 + $0x70] sm:$0xff]
  %v77 = vld [vmem:[%s2 + $0x78] sm:$0xff]
  %v78 = vadd.f32 %v46, %v62
  %v79 = vadd.f32 %v47, %v63
  %v80 = vadd.f32 %v48, %v64
  %v81 = vadd.f32 %v49, %v65
  %v82 = vadd.f32 %v50, %v66
  %v83 = vadd.f32 %v51, %v67
  %v84 = vadd.f32 %v52, %v68
  %v85 = vadd.f32 %v53, %v69
  %v86 = vadd.f32 %v54, %v70
  %v87 = vadd.f32 %v55, %v71
  %v88 = vadd.f32 %v56, %v72
  %v89 = vadd.f32 %v57, %v73
  %v90 = vadd.f32 %v58, %v74
  %v91 = vadd.f32 %v59, %v75
  %v92 = vadd.f32 %v60, %v76
  %v93 = vadd.f32 %v61, %v77
  %vm94 = vcmask 261120
  %95 = vst.msk [vmem:[%s3] sm:$0xff] %vm94, %v78
  %96 = vst.msk [vmem:[%s3 + $0x8] sm:$0xff] %vm94, %v79
  %97 = vst.msk [vmem:[%s3 + $0x10] sm:$0xff] %vm94, %v80
  %98 = vst.msk [vmem:[%s3 + $0x18] sm:$0xff] %vm94, %v81
  %99 = vst.msk [vmem:[%s3 + $0x20] sm:$0xff] %vm94, %v82
  %100 = vst.msk [vmem:[%s3 + $0x28] sm:$0xff] %vm94, %v83
  %101 = vst.msk [vmem:[%s3 + $0x30] sm:$0xff] %vm94, %v84
  %102 = vst.msk [vmem:[%s3 + $0x38] sm:$0xff] %vm94, %v85
  %103 = vst.msk [vmem:[%s3 + $0x40] sm:$0xff] %vm94, %v86
  %104 = vst.msk [vmem:[%s3 + $0x48] sm:$0xff] %vm94, %v87
  %105 = vst.msk [vmem:[%s3 + $0x50] sm:$0xff] %vm94, %v88
  %106 = vst.msk [vmem:[%s3 + $0x58] sm:$0xff] %vm94, %v89
  %107 = vst.msk [vmem:[%s3 + $0x60] sm:$0xff] %vm94, %v90
  %108 = vst.msk [vmem:[%s3 + $0x68] sm:$0xff] %vm94, %v91
  %109 = vst.msk [vmem:[%s3 + $0x70] sm:$0xff] %vm94, %v92
  %110 = vst.msk [vmem:[%s3 + $0x78] sm:$0xff] %vm94, %v93
  // Predicated region
  $region14: #{basic_block_forward.46} parent=0 // pred_check
    _
  $region15: #{basic_block_forward.46} parent=0 // pred_check_branch
    %112 = sbr.rel (0) target = $region17
  $region16: #{basic_block_forward.46} parent=0 // pred_region
    _
  $region17: #{basic_block_forward.46} parent=0 // pred_fallthru
    _
  // Predicated region
  $region18: #{basic_block_forward.46} parent=0 // pred_check
    _
  $region19: #{basic_block_forward.46} parent=0 // pred_check_branch
    %114 = sbr.rel (0) target = $region21
  $region20: #{basic_block_forward.46} parent=0 // pred_region
    _
  $region21: #{basic_block_forward.46} parent=0 // pred_fallthru
    _

// kernel: basic_block_forward.44
$region0: #{basic_block_forward.44}
  #allocation0 [shape = 'u32[]', space=smem, size = 0x4, offset = 0x4, fixed_abs, tag = 'smem constant byte address 0x4 - core index']
  #allocation1 [shape = 'u32[144,128]{1,0:T(1,128)}', space=vmem, size = 0x12000, scoped, tag = 'internal scratch']
  %s0 = inlined_call_operand.vmem [shape: f32[128,576], index: 0, kind: input, shape index: {}]
  %s1 = inlined_call_operand.vmem [shape: f32[576,128], index: 1, kind: input, shape index: {}]
  %s2 = inlined_call_operand.vmem [shape: f32[1,128], index: 2, kind: input, shape index: {}]
  %s3 = inlined_call_operand.vmem [shape: f32[128,128], index: 3, kind: output, shape index: {}]
  %s4 = sld [smem:[#allocation0]]
  $region22: #{basic_block_forward.44} parent=0
    _
  %s6 = ssub.s32 1, %s4
  %s7 = scalar_select 0, %s6, %s4
  // Predicated region
  $region2: #{basic_block_forward.44} parent=0 // pred_check
    _
  $region3: #{basic_block_forward.44} parent=0 // pred_check_branch
    %9 = sbr.rel (0) target = $region5
  $region4: #{basic_block_forward.44} parent=0 // pred_region
    _
  $region5: #{basic_block_forward.44} parent=0 // pred_fallthru
    _
  // Predicated region
  $region6: #{basic_block_forward.44} parent=0 // pred_check
    _
  $region7: #{basic_block_forward.44} parent=0 // pred_check_branch
    %11 = sbr.rel (0) target = $region9
  $region8: #{basic_block_forward.44} parent=0 // pred_region
    _
  $region9: #{basic_block_forward.44} parent=0 // pred_fallthru
    _
  // Predicated region
  $region10: #{basic_block_forward.44} parent=0 // pred_check
    _
  $region11: #{basic_block_forward.44} parent=0 // pred_check_branch
    %13 = sbr.rel (0) target = $region13
  $region12: #{basic_block_forward.44} parent=0 // pred_region
    _
  $region13: #{basic_block_forward.44} parent=0 // pred_fallthru
    _
  %v14 = vld [vmem:[%s0] sm:$0xff]
  %v15 = vld [vmem:[%s0 + $0x8] sm:$0xff]
  %v16 = vld [vmem:[%s0 + $0x10] sm:$0xff]
  %v17 = vld [vmem:[%s0 + $0x18] sm:$0xff]
  %v18 = vld [vmem:[%s0 + $0x20] sm:$0xff]
  %v19 = vld [vmem:[%s0 + $0x28] sm:$0xff]
  %v20 = vld [vmem:[%s0 + $0x30] sm:$0xff]
  %v21 = vld [vmem:[%s0 + $0x38] sm:$0xff]
  %v22 = vld [vmem:[%s0 + $0x40] sm:$0xff]
  %v23 = vld [vmem:[%s0 + $0x48] sm:$0xff]
  %v24 = vld [vmem:[%s0 + $0x50] sm:$0xff]
  %v25 = vld [vmem:[%s0 + $0x58] sm:$0xff]
  %v26 = vld [vmem:[%s0 + $0x60] sm:$0xff]
  %v27 = vld [vmem:[%s0 + $0x68] sm:$0xff]
  %v28 = vld [vmem:[%s0 + $0x70] sm:$0xff]
  %v29 = vld [vmem:[%s0 + $0x78] sm:$0xff]
  %v30 = vld [vmem:[%s0 + $0x80] sm:$0xff]
  %v31 = vld [vmem:[%s0 + $0x88] sm:$0xff]
  %v32 = vld [vmem:[%s0 + $0x90] sm:$0xff]
  %v33 = vld [vmem:[%s0 + $0x98] sm:$0xff]
  %v34 = vld [vmem:[%s0 + $0xa0] sm:$0xff]
  %v35 = vld [vmem:[%s0 + $0xa8] sm:$0xff]
  %v36 = vld [vmem:[%s0 + $0xb0] sm:$0xff]
  %v37 = vld [vmem:[%s0 + $0xb8] sm:$0xff]
  %v38 = vld [vmem:[%s0 + $0xc0] sm:$0xff]
  %v39 = vld [vmem:[%s0 + $0xc8] sm:$0xff]
  %v40 = vld [vmem:[%s0 + $0xd0] sm:$0xff]
  %v41 = vld [vmem:[%s0 + $0xd8] sm:$0xff]
  %v42 = vld [vmem:[%s0 + $0xe0] sm:$0xff]
  %v43 = vld [vmem:[%s0 + $0xe8] sm:$0xff]
  %v44 = vld [vmem:[%s0 + $0xf0] sm:$0xff]
  %v45 = vld [vmem:[%s0 + $0xf8] sm:$0xff]
  %v46 = vld [vmem:[%s0 + $0x100] sm:$0xff]
  %v47 = vld [vmem:[%s0 + $0x108] sm:$0xff]
  %v48 = vld [vmem:[%s0 + $0x110] sm:$0xff]
  %v49 = vld [vmem:[%s0 + $0x118] sm:$0xff]
  %v50 = vld [vmem:[%s0 + $0x120] sm:$0xff]
  %v51 = vld [vmem:[%s0 + $0x128] sm:$0xff]
  %v52 = vld [vmem:[%s0 + $0x130] sm:$0xff]
  %v53 = vld [vmem:[%s0 + $0x138] sm:$0xff]
  %v54 = vld [vmem:[%s0 + $0x140] sm:$0xff]
  %v55 = vld [vmem:[%s0 + $0x148] sm:$0xff]
  %v56 = vld [vmem:[%s0 + $0x150] sm:$0xff]
  %v57 = vld [vmem:[%s0 + $0x158] sm:$0xff]
  %v58 = vld [vmem:[%s0 + $0x160] sm:$0xff]
  %v59 = vld [vmem:[%s0 + $0x168] sm:$0xff]
  %v60 = vld [vmem:[%s0 + $0x170] sm:$0xff]
  %v61 = vld [vmem:[%s0 + $0x178] sm:$0xff]
  %v62 = vld [vmem:[%s0 + $0x180] sm:$0xff]
  %v63 = vld [vmem:[%s0 + $0x188] sm:$0xff]
  %v64 = vld [vmem:[%s0 + $0x190] sm:$0xff]
  %v65 = vld [vmem:[%s0 + $0x198] sm:$0xff]
  %v66 = vld [vmem:[%s0 + $0x1a0] sm:$0xff]
  %v67 = vld [vmem:[%s0 + $0x1a8] sm:$0xff]
  %v68 = vld [vmem:[%s0 + $0x1b0] sm:$0xff]
  %v69 = vld [vmem:[%s0 + $0x1b8] sm:$0xff]
  %v70 = vld [vmem:[%s0 + $0x1c0] sm:$0xff]
  %v71 = vld [vmem:[%s0 + $0x1c8] sm:$0xff]
  %v72 = vld [vmem:[%s0 + $0x1d0] sm:$0xff]
  %v73 = vld [vmem:[%s0 + $0x1d8] sm:$0xff]
  %v74 = vld [vmem:[%s0 + $0x1e0] sm:$0xff]
  %v75 = vld [vmem:[%s0 + $0x1e8] sm:$0xff]
  %v76 = vld [vmem:[%s0 + $0x1f0] sm:$0xff]
  %v77 = vld [vmem:[%s0 + $0x1f8] sm:$0xff]
  %v78 = vld [vmem:[%s0 + $0x200] sm:$0xff]
  %v79 = vld [vmem:[%s0 + $0x208] sm:$0xff]
  %v80 = vld [vmem:[%s0 + $0x210] sm:$0xff]
  %v81 = vld [vmem:[%s0 + $0x218] sm:$0xff]
  %v82 = vld [vmem:[%s0 + $0x220] sm:$0xff]
  %v83 = vld [vmem:[%s0 + $0x228] sm:$0xff]
  %v84 = vld [vmem:[%s0 + $0x230] sm:$0xff]
  %v85 = vld [vmem:[%s0 + $0x238] sm:$0xff]
  %v86 = vld [vmem:[%s0 + $0x240] sm:$0xff]
  %v87 = vld [vmem:[%s0 + $0x248] sm:$0xff]
  %v88 = vld [vmem:[%s0 + $0x250] sm:$0xff]
  %v89 = vld [vmem:[%s0 + $0x258] sm:$0xff]
  %v90 = vld [vmem:[%s0 + $0x260] sm:$0xff]
  %v91 = vld [vmem:[%s0 + $0x268] sm:$0xff]
  %v92 = vld [vmem:[%s0 + $0x270] sm:$0xff]
  %v93 = vld [vmem:[%s0 + $0x278] sm:$0xff]
  %v94 = vld [vmem:[%s1] sm:$0xff]
  %v95 = vld [vmem:[%s1 + $0x8] sm:$0xff]
  %v96 = vld [vmem:[%s1 + $0x10] sm:$0xff]
  %v97 = vld [vmem:[%s1 + $0x18] sm:$0xff]
  %v98 = vld [vmem:[%s1 + $0x20] sm:$0xff]
  %v99 = vld [vmem:[%s1 + $0x28] sm:$0xff]
  %v100 = vld [vmem:[%s1 + $0x30] sm:$0xff]
  %v101 = vld [vmem:[%s1 + $0x38] sm:$0xff]
  %v102 = vld [vmem:[%s1 + $0x40] sm:$0xff]
  %v103 = vld [vmem:[%s1 + $0x48] sm:$0xff]
  %v104 = vld [vmem:[%s1 + $0x50] sm:$0xff]
  %v105 = vld [vmem:[%s1 + $0x58] sm:$0xff]
  %v106 = vld [vmem:[%s1 + $0x60] sm:$0xff]
  %v107 = vld [vmem:[%s1 + $0x68] sm:$0xff]
  %v108 = vld [vmem:[%s1 + $0x70] sm:$0xff]
  %v109 = vld [vmem:[%s1 + $0x78] sm:$0xff]
  %v110 = vld [vmem:[%s1 + $0x80] sm:$0xff]
  %v111 = vld [vmem:[%s1 + $0x88] sm:$0xff]
  %v112 = vld [vmem:[%s1 + $0x90] sm:$0xff]
  %v113 = vld [vmem:[%s1 + $0x98] sm:$0xff]
  %v114 = vld [vmem:[%s1 + $0xa0] sm:$0xff]
  %v115 = vld [vmem:[%s1 + $0xa8] sm:$0xff]
  %v116 = vld [vmem:[%s1 + $0xb0] sm:$0xff]
  %v117 = vld [vmem:[%s1 + $0xb8] sm:$0xff]
  %v118 = vld [vmem:[%s1 + $0xc0] sm:$0xff]
  %v119 = vld [vmem:[%s1 + $0xc8] sm:$0xff]
  %v120 = vld [vmem:[%s1 + $0xd0] sm:$0xff]
  %v121 = vld [vmem:[%s1 + $0xd8] sm:$0xff]
  %v122 = vld [vmem:[%s1 + $0xe0] sm:$0xff]
  %v123 = vld [vmem:[%s1 + $0xe8] sm:$0xff]
  %v124 = vld [vmem:[%s1 + $0xf0] sm:$0xff]
  %v125 = vld [vmem:[%s1 + $0xf8] sm:$0xff]
  %v126 = vld [vmem:[%s1 + $0x100] sm:$0xff]
  %v127 = vld [vmem:[%s1 + $0x108] sm:$0xff]
  %v128 = vld [vmem:[%s1 + $0x110] sm:$0xff]
  %v129 = vld [vmem:[%s1 + $0x118] sm:$0xff]
  %v130 = vld [vmem:[%s1 + $0x120] sm:$0xff]
  %v131 = vld [vmem:[%s1 + $0x128] sm:$0xff]
  %v132 = vld [vmem:[%s1 + $0x130] sm:$0xff]
  %v133 = vld [vmem:[%s1 + $0x138] sm:$0xff]
  %v134 = vld [vmem:[%s1 + $0x140] sm:$0xff]
  %v135 = vld [vmem:[%s1 + $0x148] sm:$0xff]
  %v136 = vld [vmem:[%s1 + $0x150] sm:$0xff]
  %v137 = vld [vmem:[%s1 + $0x158] sm:$0xff]
  %v138 = vld [vmem:[%s1 + $0x160] sm:$0xff]
  %v139 = vld [vmem:[%s1 + $0x168] sm:$0xff]
  %v140 = vld [vmem:[%s1 + $0x170] sm:$0xff]
  %v141 = vld [vmem:[%s1 + $0x178] sm:$0xff]
  %v142 = vld [vmem:[%s1 + $0x180] sm:$0xff]
  %v143 = vld [vmem:[%s1 + $0x188] sm:$0xff]
  %v144 = vld [vmem:[%s1 + $0x190] sm:$0xff]
  %v145 = vld [vmem:[%s1 + $0x198] sm:$0xff]
  %v146 = vld [vmem:[%s1 + $0x1a0] sm:$0xff]
  %v147 = vld [vmem:[%s1 + $0x1a8] sm:$0xff]
  %v148 = vld [vmem:[%s1 + $0x1b0] sm:$0xff]
  %v149 = vld [vmem:[%s1 + $0x1b8] sm:$0xff]
  %v150 = vld [vmem:[%s1 + $0x1c0] sm:$0xff]
  %v151 = vld [vmem:[%s1 + $0x1c8] sm:$0xff]
  %v152 = vld [vmem:[%s1 + $0x1d0] sm:$0xff]
  %v153 = vld [vmem:[%s1 + $0x1d8] sm:$0xff]
  %v154 = vld [vmem:[%s1 + $0x1e0] sm:$0xff]
  %v155 = vld [vmem:[%s1 + $0x1e8] sm:$0xff]
  %v156 = vld [vmem:[%s1 + $0x1f0] sm:$0xff]
  %v157 = vld [vmem:[%s1 + $0x1f8] sm:$0xff]
  %v158 = vld [vmem:[%s1 + $0x200] sm:$0xff]
  %v159 = vld [vmem:[%s1 + $0x208] sm:$0xff]
  %v160 = vld [vmem:[%s1 + $0x210] sm:$0xff]
  %v161 = vld [vmem:[%s1 + $0x218] sm:$0xff]
  %v162 = vld [vmem:[%s1 + $0x220] sm:$0xff]
  %v163 = vld [vmem:[%s1 + $0x228] sm:$0xff]
  %v164 = vld [vmem:[%s1 + $0x230] sm:$0xff]
  %v165 = vld [vmem:[%s1 + $0x238] sm:$0xff]
  %v166 = vld [vmem:[%s2] sm:$0x1]
  %v168 = vlaneseq
  %v169 = vshrl.u32 %v168, 7
  %v170 = vsub.s32 0, %v169
  %v171 = vrot.slane %v166, %v170
  %vm173 = vcmask 523264
  %v175 = vsel %vm173, %v18, 0
  %v178 = vsel %vm173, %v23, 0
  %v181 = vsel %vm173, %v28, 0
  %v184 = vsel %vm173, %v33, 0
  %v187 = vsel %vm173, %v38, 0
  %v190 = vsel %vm173, %v43, 0
  %v193 = vsel %vm173, %v48, 0
  %v196 = vsel %vm173, %v53, 0
  %v199 = vsel %vm173, %v58, 0
  %v202 = vsel %vm173, %v63, 0
  %v205 = vsel %vm173, %v68, 0
  %v208 = vsel %vm173, %v73, 0
  %v211 = vsel %vm173, %v78, 0
  %v214 = vsel %vm173, %v83, 0
  %v217 = vsel %vm173, %v88, 0
  %v220 = vsel %vm173, %v93, 0
  %222 = vmatprep.subr.mxu0 0.0
  %223 = vmatpush1.msra.mxu0 %v94
  %224 = vmatprep.subr.mxu0 0.0
  %225 = vmatpush1.msra.mxu0 %v95
  %226 = vmatprep.subr.mxu0 0.0
  %227 = vmatpush1.msra.mxu0 %v96
  %228 = vmatprep.subr.mxu0 0.0
  %229 = vmatpush1.msra.mxu0 %v97
  %230 = vmatprep.subr.mxu0 0.0
  %231 = vmatpush1.msra.mxu0 %v98
  %232 = vmatprep.subr.mxu0 0.0
  %233 = vmatpush1.msra.mxu0 %v99
  %234 = vmatprep.subr.mxu0 0.0
  %235 = vmatpush1.msra.mxu0 %v100
  %236 = vmatprep.subr.mxu0 0.0
  %237 = vmatpush1.msra.mxu0 %v101
  %238 = vmatprep.subr.mxu0 0.0
  %239 = vmatpush1.msra.mxu0 %v102
  %240 = vmatprep.subr.mxu0 0.0
  %241 = vmatpush1.msra.mxu0 %v103
  %242 = vmatprep.subr.mxu0 0.0
  %243 = vmatpush1.msra.mxu0 %v104
  %244 = vmatprep.subr.mxu0 0.0
  %245 = vmatpush1.msra.mxu0 %v105
  %246 = vmatprep.subr.mxu0 0.0
  %247 = vmatpush1.msra.mxu0 %v106
  %248 = vmatprep.subr.mxu0 0.0
  %249 = vmatpush1.msra.mxu0 %v107
  %250 = vmatprep.subr.mxu0 0.0
  %251 = vmatpush1.msra.mxu0 %v108
  %252 = vmatprep.subr.mxu0 0.0
  %253 = vmatpush1.msra.mxu0 %v109
  %254 = vmatprep.subr.mxu0 0.0
  %255 = vmatpush1.msra.mxu0 %v110
  %256 = vmatprep.subr.mxu0 0.0
  %257 = vmatpush1.msra.mxu0 %v111
  %258 = vmatprep.subr.mxu0 0.0
  %259 = vmatpush1.msra.mxu0 %v112
  %260 = vmatprep.subr.mxu0 0.0
  %261 = vmatpush1.msra.mxu0 %v113
  %262 = vmatprep.subr.mxu0 0.0
  %263 = vmatpush1.msra.mxu0 %v114
  %264 = vmatprep.subr.mxu0 0.0
  %265 = vmatpush1.msra.mxu0 %v115
  %266 = vmatprep.subr.mxu0 0.0
  %267 = vmatpush1.msra.mxu0 %v116
  %268 = vmatprep.subr.mxu0 0.0
  %269 = vmatpush1.msra.mxu0 %v117
  %270 = vmatprep.subr.mxu0 0.0
  %271 = vmatpush1.msra.mxu0 %v118
  %272 = vmatprep.subr.mxu0 0.0
  %273 = vmatpush1.msra.mxu0 %v119
  %274 = vmatprep.subr.mxu0 0.0
  %275 = vmatpush1.msra.mxu0 %v120
  %276 = vmatprep.subr.mxu0 0.0
  %277 = vmatpush1.msra.mxu0 %v121
  %278 = vmatprep.subr.mxu0 0.0
  %279 = vmatpush1.msra.mxu0 %v122
  %280 = vmatprep.subr.mxu0 0.0
  %281 = vmatpush1.msra.mxu0 %v123
  %282 = vmatprep.subr.mxu0 0.0
  %283 = vmatpush1.msra.mxu0 %v124
  %284 = vmatprep.subr.mxu0 0.0
  %285 = vmatpush1.msra.mxu0 %v125
  %286 = vmatprep.mubr.f32.mxu0 %v15
  %287 = vmatmul.mubr.f32.gmra.mrb[0].mxu0 %v14
  %v288 = vpop.f32.mrb[0].mxu0
  %v289 = vadd.f32 %v171, %v288
  %v290 = vpop.f32.mrb[0].mxu0
  %291 = vmatprep.mubr.f32.mxu0 %v20
  %292 = vmatmul.mubr.f32.gmra.mrb[0].mxu0 %v19
  %v293 = vpop.f32.mrb[0].mxu0
  %v294 = vadd.f32 %v171, %v293
  %v295 = vpop.f32.mrb[0].mxu0
  %296 = vmatprep.mubr.f32.mxu0 %v25
  %297 = vmatmul.mubr.f32.gmra.mrb[0].mxu0 %v24
  %v298 = vpop.f32.mrb[0].mxu0
  %v299 = vadd.f32 %v171, %v298
  %v300 = vpop.f32.mrb[0].mxu0
  %301 = vmatprep.mubr.f32.mxu0 %v30
  %302 = vmatmul.mubr.f32.gmra.mrb[0].mxu0 %v29
  %v303 = vpop.f32.mrb[0].mxu0
  %v304 = vadd.f32 %v171, %v303
  %v305 = vpop.f32.mrb[0].mxu0
  %306 = vmatprep.mubr.f32.mxu0 %v35
  %307 = vmatmul.mubr.f32.gmra.mrb[0].mxu0 %v34
  %v308 = vpop.f32.mrb[0].mxu0
  %v309 = vadd.f32 %v171, %v308
  %v310 = vpop.f32.mrb[0].mxu0
  %311 = vmatprep.mubr.f32.mxu0 %v40
  %312 = vmatmul.mubr.f32.gmra.mrb[0].mxu0 %v39
  %v313 = vpop.f32.mrb[0].mxu0
  %v314 = vadd.f32 %v171, %v313
  %v315 = vpop.f32.mrb[0].mxu0
  %316 = vmatprep.mubr.f32.mxu0 %v45
  %317 = vmatmul.mubr.f32.gmra.mrb[0].mxu0 %v44
  %v318 = vpop.f32.mrb[0].mxu0
  %v319 = vadd.f32 %v171, %v318
  %v320 = vpop.f32.mrb[0].mxu0
  %321 = vmatprep.mubr.f32.mxu0 %v50
  %322 = vmatmul.mubr.f32.gmra.mrb[0].mxu0 %v49
  %v323 = vpop.f32.mrb[0].mxu0
  %v324 = vadd.f32 %v171, %v323
  %v325 = vpop.f32.mrb[0].mxu0
  %326 = vmatprep.mubr.f32.mxu0 %v55
  %327 = vmatmul.mubr.f32.gmra.mrb[0].mxu0 %v54
  %v328 = vpop.f32.mrb[0].mxu0
  %v329 = vadd.f32 %v171, %v328
  %v330 = vpop.f32.mrb[0].mxu0
  %331 = vmatprep.mubr.f32.mxu0 %v60
  %332 = vmatmul.mubr.f32.gmra.mrb[0].mxu0 %v59
  %v333 = vpop.f32.mrb[0].mxu0
  %v334 = vadd.f32 %v171, %v333
  %v335 = vpop.f32.mrb[0].mxu0
  %336 = vmatprep.mubr.f32.mxu0 %v65
  %337 = vmatmul.mubr.f32.gmra.mrb[0].mxu0 %v64
  %v338 = vpop.f32.mrb[0].mxu0
  %v339 = vadd.f32 %v171, %v338
  %v340 = vpop.f32.mrb[0].mxu0
  %341 = vmatprep.mubr.f32.mxu0 %v70
  %342 = vmatmul.mubr.f32.gmra.mrb[0].mxu0 %v69
  %v343 = vpop.f32.mrb[0].mxu0
  %v344 = vadd.f32 %v171, %v343
  %v345 = vpop.f32.mrb[0].mxu0
  %346 = vmatprep.mubr.f32.mxu0 %v75
  %347 = vmatmul.mubr.f32.gmra.mrb[0].mxu0 %v74
  %v348 = vpop.f32.mrb[0].mxu0
  %v349 = vadd.f32 %v171, %v348
  %v350 = vpop.f32.mrb[0].mxu0
  %351 = vmatprep.mubr.f32.mxu0 %v80
  %352 = vmatmul.mubr.f32.gmra.mrb[0].mxu0 %v79
  %v353 = vpop.f32.mrb[0].mxu0
  %v354 = vadd.f32 %v171, %v353
  %v355 = vpop.f32.mrb[0].mxu0
  %356 = vmatprep.mubr.f32.mxu0 %v85
  %357 = vmatmul.mubr.f32.gmra.mrb[0].mxu0 %v84
  %v358 = vpop.f32.mrb[0].mxu0
  %v359 = vadd.f32 %v171, %v358
  %v360 = vpop.f32.mrb[0].mxu0
  %361 = vmatprep.mubr.f32.mxu0 %v90
  %362 = vmatmul.mubr.f32.gmra.mrb[0].mxu0 %v89
  %v363 = vpop.f32.mrb[0].mxu0
  %v364 = vadd.f32 %v171, %v363
  %v365 = vpop.f32.mrb[0].mxu0
  %366 = vdwg.mxu0
  %367 = vmatprep.subr.mxu0 0.0
  %368 = vmatpush1.msra.mxu0 %v126
  %369 = vmatprep.subr.mxu0 0.0
  %370 = vmatpush1.msra.mxu0 %v127
  %371 = vmatprep.subr.mxu0 0.0
  %372 = vmatpush1.msra.mxu0 %v128
  %373 = vmatprep.subr.mxu0 0.0
  %374 = vmatpush1.msra.mxu0 %v129
  %375 = vmatprep.subr.mxu0 0.0
  %376 = vmatpush1.msra.mxu0 %v130
  %377 = vmatprep.subr.mxu0 0.0
  %378 = vmatpush1.msra.mxu0 %v131
  %379 = vmatprep.subr.mxu0 0.0
  %380 = vmatpush1.msra.mxu0 %v132
  %381 = vmatprep.subr.mxu0 0.0
  %382 = vmatpush1.msra.mxu0 %v133
  %383 = vmatprep.subr.mxu0 0.0
  %384 = vmatpush1.msra.mxu0 %v134
  %385 = vmatprep.subr.mxu0 0.0
  %386 = vmatpush1.msra.mxu0 %v135
  %387 = vmatprep.subr.mxu0 0.0
  %388 = vmatpush1.msra.mxu0 %v136
  %389 = vmatprep.subr.mxu0 0.0
  %390 = vmatpush1.msra.mxu0 %v137
  %391 = vmatprep.subr.mxu0 0.0
  %392 = vmatpush1.msra.mxu0 %v138
  %393 = vmatprep.subr.mxu0 0.0
  %394 = vmatpush1.msra.mxu0 %v139
  %395 = vmatprep.subr.mxu0 0.0
  %396 = vmatpush1.msra.mxu0 %v140
  %397 = vmatprep.subr.mxu0 0.0
  %398 = vmatpush1.msra.mxu0 %v141
  %399 = vmatprep.subr.mxu0 0.0
  %400 = vmatpush1.msra.mxu0 %v142
  %401 = vmatprep.subr.mxu0 0.0
  %402 = vmatpush1.msra.mxu0 %v143
  %403 = vmatprep.subr.mxu0 0.0
  %404 = vmatpush1.msra.mxu0 %v144
  %405 = vmatprep.subr.mxu0 0.0
  %406 = vmatpush1.msra.mxu0 %v145
  %407 = vmatprep.subr.mxu0 0.0
  %408 = vmatpush1.msra.mxu0 %v146
  %409 = vmatprep.subr.mxu0 0.0
  %410 = vmatpush1.msra.mxu0 %v147
  %411 = vmatprep.subr.mxu0 0.0
  %412 = vmatpush1.msra.mxu0 %v148
  %413 = vmatprep.subr.mxu0 0.0
  %414 = vmatpush1.msra.mxu0 %v149
  %415 = vmatprep.subr.mxu0 0.0
  %416 = vmatpush1.msra.mxu0 %v150
  %417 = vmatprep.subr.mxu0 0.0
  %418 = vmatpush1.msra.mxu0 %v151
  %419 = vmatprep.subr.mxu0 0.0
  %420 = vmatpush1.msra.mxu0 %v152
  %421 = vmatprep.subr.mxu0 0.0
  %422 = vmatpush1.msra.mxu0 %v153
  %423 = vmatprep.subr.mxu0 0.0
  %424 = vmatpush1.msra.mxu0 %v154
  %425 = vmatprep.subr.mxu0 0.0
  %426 = vmatpush1.msra.mxu0 %v155
  %427 = vmatprep.subr.mxu0 0.0
  %428 = vmatpush1.msra.mxu0 %v156
  %429 = vmatprep.subr.mxu0 0.0
  %430 = vmatpush1.msra.mxu0 %v157
  %431 = vmatprep.mubr.f32.mxu0 %v17
  %432 = vmatmul.mubr.f32.gmra.mrb[0].mxu0 %v16
  %v433 = vpop.f32.mrb[0].mxu0
  %v434 = vadd.f32 %v289, %v433
  %v435 = vpop.f32.mrb[0].mxu0
  %436 = vmatprep.mubr.f32.mxu0 %v22
  %437 = vmatmul.mubr.f32.gmra.mrb[0].mxu0 %v21
  %v438 = vpop.f32.mrb[0].mxu0
  %v439 = vadd.f32 %v294, %v438
  %v440 = vpop.f32.mrb[0].mxu0
  %441 = vmatprep.mubr.f32.mxu0 %v27
  %442 = vmatmul.mubr.f32.gmra.mrb[0].mxu0 %v26
  %v443 = vpop.f32.mrb[0].mxu0
  %v444 = vadd.f32 %v299, %v443
  %v445 = vpop.f32.mrb[0].mxu0
  %446 = vmatprep.mubr.f32.mxu0 %v32
  %447 = vmatmul.mubr.f32.gmra.mrb[0].mxu0 %v31
  %v448 = vpop.f32.mrb[0].mxu0
  %v449 = vadd.f32 %v304, %v448
  %v450 = vpop.f32.mrb[0].mxu0
  %451 = vmatprep.mubr.f32.mxu0 %v37
  %452 = vmatmul.mubr.f32.gmra.mrb[0].mxu0 %v36
  %v453 = vpop.f32.mrb[0].mxu0
  %v454 = vadd.f32 %v309, %v453
  %v455 = vpop.f32.mrb[0].mxu0
  %456 = vmatprep.mubr.f32.mxu0 %v42
  %457 = vmatmul.mubr.f32.gmra.mrb[0].mxu0 %v41
  %v458 = vpop.f32.mrb[0].mxu0
  %v459 = vadd.f32 %v314, %v458
  %v460 = vpop.f32.mrb[0].mxu0
  %461 = vmatprep.mubr.f32.mxu0 %v47
  %462 = vmatmul.mubr.f32.gmra.mrb[0].mxu0 %v46
  %v463 = vpop.f32.mrb[0].mxu0
  %v464 = vadd.f32 %v319, %v463
  %v465 = vpop.f32.mrb[0].mxu0
  %466 = vmatprep.mubr.f32.mxu0 %v52
  %467 = vmatmul.mubr.f32.gmra.mrb[0].mxu0 %v51
  %v468 = vpop.f32.mrb[0].mxu0
  %v469 = vadd.f32 %v324, %v468
  %v470 = vpop.f32.mrb[0].mxu0
  %471 = vmatprep.mubr.f32.mxu0 %v57
  %472 = vmatmul.mubr.f32.gmra.mrb[0].mxu0 %v56
  %v473 = vpop.f32.mrb[0].mxu0
  %v474 = vadd.f32 %v329, %v473
  %v475 = vpop.f32.mrb[0].mxu0
  %476 = vmatprep.mubr.f32.mxu0 %v62
  %477 = vmatmul.mubr.f32.gmra.mrb[0].mxu0 %v61
  %v478 = vpop.f32.mrb[0].mxu0
  %v479 = vadd.f32 %v334, %v478
  %v480 = vpop.f32.mrb[0].mxu0
  %481 = vmatprep.mubr.f32.mxu0 %v67
  %482 = vmatmul.mubr.f32.gmra.mrb[0].mxu0 %v66
  %v483 = vpop.f32.mrb[0].mxu0
  %v484 = vadd.f32 %v339, %v483
  %v485 = vpop.f32.mrb[0].mxu0
  %486 = vmatprep.mubr.f32.mxu0 %v72
  %487 = vmatmul.mubr.f32.gmra.mrb[0].mxu0 %v71
  %v488 = vpop.f32.mrb[0].mxu0
  %v489 = vadd.f32 %v344, %v488
  %v490 = vpop.f32.mrb[0].mxu0
  %491 = vmatprep.mubr.f32.mxu0 %v77
  %492 = vmatmul.mubr.f32.gmra.mrb[0].mxu0 %v76
  %v493 = vpop.f32.mrb[0].mxu0
  %v494 = vadd.f32 %v349, %v493
  %v495 = vpop.f32.mrb[0].mxu0
  %496 = vmatprep.mubr.f32.mxu0 %v82
  %497 = vmatmul.mubr.f32.gmra.mrb[0].mxu0 %v81
  %v498 = vpop.f32.mrb[0].mxu0
  %v499 = vadd.f32 %v354, %v498
  %v500 = vpop.f32.mrb[0].mxu0
  %501 = vmatprep.mubr.f32.mxu0 %v87
  %502 = vmatmul.mubr.f32.gmra.mrb[0].mxu0 %v86
  %v503 = vpop.f32.mrb[0].mxu0
  %v504 = vadd.f32 %v359, %v503
  %v505 = vpop.f32.mrb[0].mxu0
  %506 = vmatprep.mubr.f32.mxu0 %v92
  %507 = vmatmul.mubr.f32.gmra.mrb[0].mxu0 %v91
  %v508 = vpop.f32.mrb[0].mxu0
  %v509 = vadd.f32 %v364, %v508
  %v510 = vpop.f32.mrb[0].mxu0
  %511 = vdwg.mxu0
  %512 = vmatprep.subr.mxu0 0.0
  %513 = vmatpush1.msra.mxu0 %v158
  %514 = vmatprep.subr.mxu0 0.0
  %515 = vmatpush1.msra.mxu0 %v159
  %516 = vmatprep.subr.mxu0 0.0
  %517 = vmatpush1.msra.mxu0 %v160
  %518 = vmatprep.subr.mxu0 0.0
  %519 = vmatpush1.msra.mxu0 %v161
  %520 = vmatprep.subr.mxu0 0.0
  %521 = vmatpush1.msra.mxu0 %v162
  %522 = vmatprep.subr.mxu0 0.0
  %523 = vmatpush1.msra.mxu0 %v163
  %524 = vmatprep.subr.mxu0 0.0
  %525 = vmatpush1.msra.mxu0 %v164
  %526 = vmatprep.subr.mxu0 0.0
  %527 = vmatpush1.msra.mxu0 %v165
  %528 = vmatprep.subr.mxu0 0.0
  %529 = vmatpush1.msra.mxu0 0.0
  %530 = vmatprep.subr.mxu0 0.0
  %531 = vmatpush1.msra.mxu0 0.0
  %532 = vmatprep.subr.mxu0 0.0
  %533 = vmatpush1.msra.mxu0 0.0
  %534 = vmatprep.subr.mxu0 0.0
  %535 = vmatpush1.msra.mxu0 0.0
  %536 = vmatprep.subr.mxu0 0.0
  %537 = vmatpush1.msra.mxu0 0.0
  %538 = vmatprep.subr.mxu0 0.0
  %539 = vmatpush1.msra.mxu0 0.0
  %540 = vmatprep.subr.mxu0 0.0
  %541 = vmatpush1.msra.mxu0 0.0
  %542 = vmatprep.subr.mxu0 0.0
  %543 = vmatpush1.msra.mxu0 0.0
  %544 = vmatprep.subr.mxu0 0.0
  %545 = vmatpush1.msra.mxu0 0.0
  %546 = vmatprep.subr.mxu0 0.0
  %547 = vmatpush1.msra.mxu0 0.0
  %548 = vmatprep.subr.mxu0 0.0
  %549 = vmatpush1.msra.mxu0 0.0
  %550 = vmatprep.subr.mxu0 0.0
  %551 = vmatpush1.msra.mxu0 0.0
  %552 = vmatprep.subr.mxu0 0.0
  %553 = vmatpush1.msra.mxu0 0.0
  %554 = vmatprep.subr.mxu0 0.0
  %555 = vmatpush1.msra.mxu0 0.0
  %556 = vmatprep.subr.mxu0 0.0
  %557 = vmatpush1.msra.mxu0 0.0
  %558 = vmatprep.subr.mxu0 0.0
  %559 = vmatpush1.msra.mxu0 0.0
  %560 = vmatprep.subr.mxu0 0.0
  %561 = vmatpush1.msra.mxu0 0.0
  %562 = vmatprep.subr.mxu0 0.0
  %563 = vmatpush1.msra.mxu0 0.0
  %564 = vmatprep.subr.mxu0 0.0
  %565 = vmatpush1.msra.mxu0 0.0
  %566 = vmatprep.subr.mxu0 0.0
  %567 = vmatpush1.msra.mxu0 0.0
  %568 = vmatprep.subr.mxu0 0.0
  %569 = vmatpush1.msra.mxu0 0.0
  %570 = vmatprep.subr.mxu0 0.0
  %571 = vmatpush1.msra.mxu0 0.0
  %572 = vmatprep.subr.mxu0 0.0
  %573 = vmatpush1.msra.mxu0 0.0
  %574 = vmatprep.subr.mxu0 0.0
  %575 = vmatpush1.msra.mxu0 0.0
  %576 = vmatprep.mubr.f32.mxu0 0.0
  %577 = vmatmul.mubr.f32.gmra.mrb[0].mxu0 %v175
  %v578 = vpop.f32.mrb[0].mxu0
  %v579 = vadd.f32 %v434, %v578
  %v580 = vpop.f32.mrb[0].mxu0
  %581 = vmatprep.mubr.f32.mxu0 0.0
  %582 = vmatmul.mubr.f32.gmra.mrb[0].mxu0 %v178
  %v583 = vpop.f32.mrb[0].mxu0
  %v584 = vadd.f32 %v439, %v583
  %v585 = vpop.f32.mrb[0].mxu0
  %586 = vmatprep.mubr.f32.mxu0 0.0
  %587 = vmatmul.mubr.f32.gmra.mrb[0].mxu0 %v181
  %v588 = vpop.f32.mrb[0].mxu0
  %v589 = vadd.f32 %v444, %v588
  %v590 = vpop.f32.mrb[0].mxu0
  %591 = vmatprep.mubr.f32.mxu0 0.0
  %592 = vmatmul.mubr.f32.gmra.mrb[0].mxu0 %v184
  %v593 = vpop.f32.mrb[0].mxu0
  %v594 = vadd.f32 %v449, %v593
  %v595 = vpop.f32.mrb[0].mxu0
  %596 = vmatprep.mubr.f32.mxu0 0.0
  %597 = vmatmul.mubr.f32.gmra.mrb[0].mxu0 %v187
  %v598 = vpop.f32.mrb[0].mxu0
  %v599 = vadd.f32 %v454, %v598
  %v600 = vpop.f32.mrb[0].mxu0
  %601 = vmatprep.mubr.f32.mxu0 0.0
  %602 = vmatmul.mubr.f32.gmra.mrb[0].mxu0 %v190
  %v603 = vpop.f32.mrb[0].mxu0
  %v604 = vadd.f32 %v459, %v603
  %v605 = vpop.f32.mrb[0].mxu0
  %606 = vmatprep.mubr.f32.mxu0 0.0
  %607 = vmatmul.mubr.f32.gmra.mrb[0].mxu0 %v193
  %v608 = vpop.f32.mrb[0].mxu0
  %v609 = vadd.f32 %v464, %v608
  %v610 = vpop.f32.mrb[0].mxu0
  %611 = vmatprep.mubr.f32.mxu0 0.0
  %612 = vmatmul.mubr.f32.gmra.mrb[0].mxu0 %v196
  %v613 = vpop.f32.mrb[0].mxu0
  %v614 = vadd.f32 %v469, %v613
  %v615 = vpop.f32.mrb[0].mxu0
  %616 = vmatprep.mubr.f32.mxu0 0.0
  %617 = vmatmul.mubr.f32.gmra.mrb[0].mxu0 %v199
  %v618 = vpop.f32.mrb[0].mxu0
  %v619 = vadd.f32 %v474, %v618
  %v620 = vpop.f32.mrb[0].mxu0
  %621 = vmatprep.mubr.f32.mxu0 0.0
  %622 = vmatmul.mubr.f32.gmra.mrb[0].mxu0 %v202
  %v623 = vpop.f32.mrb[0].mxu0
  %v624 = vadd.f32 %v479, %v623
  %v625 = vpop.f32.mrb[0].mxu0
  %626 = vmatprep.mubr.f32.mxu0 0.0
  %627 = vmatmul.mubr.f32.gmra.mrb[0].mxu0 %v205
  %v628 = vpop.f32.mrb[0].mxu0
  %v629 = vadd.f32 %v484, %v628
  %v630 = vpop.f32.mrb[0].mxu0
  %631 = vmatprep.mubr.f32.mxu0 0.0
  %632 = vmatmul.mubr.f32.gmra.mrb[0].mxu0 %v208
  %v633 = vpop.f32.mrb[0].mxu0
  %v634 = vadd.f32 %v489, %v633
  %v635 = vpop.f32.mrb[0].mxu0
  %636 = vmatprep.mubr.f32.mxu0 0.0
  %637 = vmatmul.mubr.f32.gmra.mrb[0].mxu0 %v211
  %v638 = vpop.f32.mrb[0].mxu0
  %v639 = vadd.f32 %v494, %v638
  %v640 = vpop.f32.mrb[0].mxu0
  %641 = vmatprep.mubr.f32.mxu0 0.0
  %642 = vmatmul.mubr.f32.gmra.mrb[0].mxu0 %v214
  %v643 = vpop.f32.mrb[0].mxu0
  %v644 = vadd.f32 %v499, %v643
  %v645 = vpop.f32.mrb[0].mxu0
  %646 = vmatprep.mubr.f32.mxu0 0.0
  %647 = vmatmul.mubr.f32.gmra.mrb[0].mxu0 %v217
  %v648 = vpop.f32.mrb[0].mxu0
  %v649 = vadd.f32 %v504, %v648
  %v650 = vpop.f32.mrb[0].mxu0
  %651 = vmatprep.mubr.f32.mxu0 0.0
  %652 = vmatmul.mubr.f32.gmra.mrb[0].mxu0 %v220
  %v653 = vpop.f32.mrb[0].mxu0
  %v654 = vadd.f32 %v509, %v653
  %v655 = vpop.f32.mrb[0].mxu0
  %656 = vdwg.mxu0
  %657 = vst [vmem:[%s3] sm:$0xff] %v579
  %658 = vst [vmem:[%s3 + $0x8] sm:$0xff] %v584
  %659 = vst [vmem:[%s3 + $0x10] sm:$0xff] %v589
  %660 = vst [vmem:[%s3 + $0x18] sm:$0xff] %v594
  %661 = vst [vmem:[%s3 + $0x20] sm:$0xff] %v599
  %662 = vst [vmem:[%s3 + $0x28] sm:$0xff] %v604
  %663 = vst [vmem:[%s3 + $0x30] sm:$0xff] %v609
  %664 = vst [vmem:[%s3 + $0x38] sm:$0xff] %v614
  %665 = vst [vmem:[%s3 + $0x40] sm:$0xff] %v619
  %666 = vst [vmem:[%s3 + $0x48] sm:$0xff] %v624
  %667 = vst [vmem:[%s3 + $0x50] sm:$0xff] %v629
  %668 = vst [vmem:[%s3 + $0x58] sm:$0xff] %v634
  %669 = vst [vmem:[%s3 + $0x60] sm:$0xff] %v639
  %670 = vst [vmem:[%s3 + $0x68] sm:$0xff] %v644
  %671 = vst [vmem:[%s3 + $0x70] sm:$0xff] %v649
  %672 = vst [vmem:[%s3 + $0x78] sm:$0xff] %v654
  // Predicated region
  $region14: #{basic_block_forward.44} parent=0 // pred_check
    _
  $region15: #{basic_block_forward.44} parent=0 // pred_check_branch
    %674 = sbr.rel (0) target = $region17
  $region16: #{basic_block_forward.44} parent=0 // pred_region
    _
  $region17: #{basic_block_forward.44} parent=0 // pred_fallthru
    _
  // Predicated region
  $region18: #{basic_block_forward.44} parent=0 // pred_check
    _
  $region19: #{basic_block_forward.44} parent=0 // pred_check_branch
    %676 = sbr.rel (0) target = $region21
  $region20: #{basic_block_forward.44} parent=0 // pred_region
    _
  $region21: #{basic_block_forward.44} parent=0 // pred_fallthru
    _

// kernel: basic_block_forward.45
$region0: #{basic_block_forward.45}
  #allocation0 [shape = 'u32[]', space=smem, size = 0x4, offset = 0x4, fixed_abs, tag = 'smem constant byte address 0x4 - core index']
  #allocation1 [shape = 'u32[144,128]{1,0:T(1,128)}', space=vmem, size = 0x12000, scoped, tag = 'internal scratch']
  %s0 = inlined_call_operand.vmem [shape: f32[128,288], index: 0, kind: input, shape index: {}]
  %s1 = inlined_call_operand.vmem [shape: f32[288,128], index: 1, kind: input, shape index: {}]
  %s2 = inlined_call_operand.vmem [shape: f32[1,128], index: 2, kind: input, shape index: {}]
  %s3 = inlined_call_operand.vmem [shape: f32[128,128], index: 3, kind: output, shape index: {}]
  %s4 = sld [smem:[#allocation0]]
  $region22: #{basic_block_forward.45} parent=0
    _
  %s6 = ssub.s32 1, %s4
  %s7 = scalar_select 0, %s6, %s4
  // Predicated region
  $region2: #{basic_block_forward.45} parent=0 // pred_check
    _
  $region3: #{basic_block_forward.45} parent=0 // pred_check_branch
    %9 = sbr.rel (0) target = $region5
  $region4: #{basic_block_forward.45} parent=0 // pred_region
    _
  $region5: #{basic_block_forward.45} parent=0 // pred_fallthru
    _
  // Predicated region
  $region6: #{basic_block_forward.45} parent=0 // pred_check
    _
  $region7: #{basic_block_forward.45} parent=0 // pred_check_branch
    %11 = sbr.rel (0) target = $region9
  $region8: #{basic_block_forward.45} parent=0 // pred_region
    _
  $region9: #{basic_block_forward.45} parent=0 // pred_fallthru
    _
  // Predicated region
  $region10: #{basic_block_forward.45} parent=0 // pred_check
    _
  $region11: #{basic_block_forward.45} parent=0 // pred_check_branch
    %13 = sbr.rel (0) target = $region13
  $region12: #{basic_block_forward.45} parent=0 // pred_region
    _
  $region13: #{basic_block_forward.45} parent=0 // pred_fallthru
    _
  %v14 = vld [vmem:[%s0] sm:$0xff]
  %v15 = vld [vmem:[%s0 + $0x8] sm:$0xff]
  %v16 = vld [vmem:[%s0 + $0x10] sm:$0xff]
  %v17 = vld [vmem:[%s0 + $0x18] sm:$0xff]
  %v18 = vld [vmem:[%s0 + $0x20] sm:$0xff]
  %v19 = vld [vmem:[%s0 + $0x28] sm:$0xff]
  %v20 = vld [vmem:[%s0 + $0x30] sm:$0xff]
  %v21 = vld [vmem:[%s0 + $0x38] sm:$0xff]
  %v22 = vld [vmem:[%s0 + $0x40] sm:$0xff]
  %v23 = vld [vmem:[%s0 + $0x48] sm:$0xff]
  %v24 = vld [vmem:[%s0 + $0x50] sm:$0xff]
  %v25 = vld [vmem:[%s0 + $0x58] sm:$0xff]
  %v26 = vld [vmem:[%s0 + $0x60] sm:$0xff]
  %v27 = vld [vmem:[%s0 + $0x68] sm:$0xff]
  %v28 = vld [vmem:[%s0 + $0x70] sm:$0xff]
  %v29 = vld [vmem:[%s0 + $0x78] sm:$0xff]
  %v30 = vld [vmem:[%s0 + $0x80] sm:$0xff]
  %v31 = vld [vmem:[%s0 + $0x88] sm:$0xff]
  %v32 = vld [vmem:[%s0 + $0x90] sm:$0xff]
  %v33 = vld [vmem:[%s0 + $0x98] sm:$0xff]
  %v34 = vld [vmem:[%s0 + $0xa0] sm:$0xff]
  %v35 = vld [vmem:[%s0 + $0xa8] sm:$0xff]
  %v36 = vld [vmem:[%s0 + $0xb0] sm:$0xff]
  %v37 = vld [vmem:[%s0 + $0xb8] sm:$0xff]
  %v38 = vld [vmem:[%s0 + $0xc0] sm:$0xff]
  %v39 = vld [vmem:[%s0 + $0xc8] sm:$0xff]
  %v40 = vld [vmem:[%s0 + $0xd0] sm:$0xff]
  %v41 = vld [vmem:[%s0 + $0xd8] sm:$0xff]
  %v42 = vld [vmem:[%s0 + $0xe0] sm:$0xff]
  %v43 = vld [vmem:[%s0 + $0xe8] sm:$0xff]
  %v44 = vld [vmem:[%s0 + $0xf0] sm:$0xff]
  %v45 = vld [vmem:[%s0 + $0xf8] sm:$0xff]
  %v46 = vld [vmem:[%s0 + $0x100] sm:$0xff]
  %v47 = vld [vmem:[%s0 + $0x108] sm:$0xff]
  %v48 = vld [vmem:[%s0 + $0x110] sm:$0xff]
  %v49 = vld [vmem:[%s0 + $0x118] sm:$0xff]
  %v50 = vld [vmem:[%s0 + $0x120] sm:$0xff]
  %v51 = vld [vmem:[%s0 + $0x128] sm:$0xff]
  %v52 = vld [vmem:[%s0 + $0x130] sm:$0xff]
  %v53 = vld [vmem:[%s0 + $0x138] sm:$0xff]
  %v54 = vld [vmem:[%s0 + $0x140] sm:$0xff]
  %v55 = vld [vmem:[%s0 + $0x148] sm:$0xff]
  %v56 = vld [vmem:[%s0 + $0x150] sm:$0xff]
  %v57 = vld [vmem:[%s0 + $0x158] sm:$0xff]
  %v58 = vld [vmem:[%s0 + $0x160] sm:$0xff]
  %v59 = vld [vmem:[%s0 + $0x168] sm:$0xff]
  %v60 = vld [vmem:[%s0 + $0x170] sm:$0xff]
  %v61 = vld [vmem:[%s0 + $0x178] sm:$0xff]
  %v62 = vld [vmem:[%s1] sm:$0xff]
  %v63 = vld [vmem:[%s1 + $0x8] sm:$0xff]
  %v64 = vld [vmem:[%s1 + $0x10] sm:$0xff]
  %v65 = vld [vmem:[%s1 + $0x18] sm:$0xff]
  %v66 = vld [vmem:[%s1 + $0x20] sm:$0xff]
  %v67 = vld [vmem:[%s1 + $0x28] sm:$0xff]
  %v68 = vld [vmem:[%s1 + $0x30] sm:$0xff]
  %v69 = vld [vmem:[%s1 + $0x38] sm:$0xff]
  %v70 = vld [vmem:[%s1 + $0x40] sm:$0xff]
  %v71 = vld [vmem:[%s1 + $0x48] sm:$0xff]
  %v72 = vld [vmem:[%s1 + $0x50] sm:$0xff]
  %v73 = vld [vmem:[%s1 + $0x58] sm:$0xff]
  %v74 = vld [vmem:[%s1 + $0x60] sm:$0xff]
  %v75 = vld [vmem:[%s1 + $0x68] sm:$0xff]
  %v76 = vld [vmem:[%s1 + $0x70] sm:$0xff]
  %v77 = vld [vmem:[%s1 + $0x78] sm:$0xff]
  %v78 = vld [vmem:[%s1 + $0x80] sm:$0xff]
  %v79 = vld [vmem:[%s1 + $0x88] sm:$0xff]
  %v80 = vld [vmem:[%s1 + $0x90] sm:$0xff]
  %v81 = vld [vmem:[%s1 + $0x98] sm:$0xff]
  %v82 = vld [vmem:[%s1 + $0xa0] sm:$0xff]
  %v83 = vld [vmem:[%s1 + $0xa8] sm:$0xff]
  %v84 = vld [vmem:[%s1 + $0xb0] sm:$0xff]
  %v85 = vld [vmem:[%s1 + $0xb8] sm:$0xff]
  %v86 = vld [vmem:[%s1 + $0xc0] sm:$0xff]
  %v87 = vld [vmem:[%s1 + $0xc8] sm:$0xff]
  %v88 = vld [vmem:[%s1 + $0xd0] sm:$0xff]
  %v89 = vld [vmem:[%s1 + $0xd8] sm:$0xff]
  %v90 = vld [vmem:[%s1 + $0xe0] sm:$0xff]
  %v91 = vld [vmem:[%s1 + $0xe8] sm:$0xff]
  %v92 = vld [vmem:[%s1 + $0xf0] sm:$0xff]
  %v93 = vld [vmem:[%s1 + $0xf8] sm:$0xff]
  %v94 = vld [vmem:[%s1 + $0x100] sm:$0xff]
  %v95 = vld [vmem:[%s1 + $0x108] sm:$0xff]
  %v96 = vld [vmem:[%s1 + $0x110] sm:$0xff]
  %v97 = vld [vmem:[%s1 + $0x118] sm:$0xff]
  %v98 = vld [vmem:[%s2] sm:$0x1]
  %v100 = vlaneseq
  %v101 = vshrl.u32 %v100, 7
  %v102 = vsub.s32 0, %v101
  %v103 = vrot.slane %v98, %v102
  %vm105 = vcmask 261120
  %v107 = vsel %vm105, %v16, 0
  %v110 = vsel %vm105, %v19, 0
  %v113 = vsel %vm105, %v22, 0
  %v116 = vsel %vm105, %v25, 0
  %v119 = vsel %vm105, %v28, 0
  %v122 = vsel %vm105, %v31, 0
  %v125 = vsel %vm105, %v34, 0
  %v128 = vsel %vm105, %v37, 0
  %v131 = vsel %vm105, %v40, 0
  %v134 = vsel %vm105, %v43, 0
  %v137 = vsel %vm105, %v46, 0
  %v140 = vsel %vm105, %v49, 0
  %v143 = vsel %vm105, %v52, 0
  %v146 = vsel %vm105, %v55, 0
  %v149 = vsel %vm105, %v58, 0
  %v152 = vsel %vm105, %v61, 0
  %154 = vmatprep.subr.mxu0 0.0
  %155 = vmatpush1.msra.mxu0 %v62
  %156 = vmatprep.subr.mxu0 0.0
  %157 = vmatpush1.msra.mxu0 %v63
  %158 = vmatprep.subr.mxu0 0.0
  %159 = vmatpush1.msra.mxu0 %v64
  %160 = vmatprep.subr.mxu0 0.0
  %161 = vmatpush1.msra.mxu0 %v65
  %162 = vmatprep.subr.mxu0 0.0
  %163 = vmatpush1.msra.mxu0 %v66
  %164 = vmatprep.subr.mxu0 0.0
  %165 = vmatpush1.msra.mxu0 %v67
  %166 = vmatprep.subr.mxu0 0.0
  %167 = vmatpush1.msra.mxu0 %v68
  %168 = vmatprep.subr.mxu0 0.0
  %169 = vmatpush1.msra.mxu0 %v69
  %170 = vmatprep.subr.mxu0 0.0
  %171 = vmatpush1.msra.mxu0 %v70
  %172 = vmatprep.subr.mxu0 0.0
  %173 = vmatpush1.msra.mxu0 %v71
  %174 = vmatprep.subr.mxu0 0.0
  %175 = vmatpush1.msra.mxu0 %v72
  %176 = vmatprep.subr.mxu0 0.0
  %177 = vmatpush1.msra.mxu0 %v73
  %178 = vmatprep.subr.mxu0 0.0
  %179 = vmatpush1.msra.mxu0 %v74
  %180 = vmatprep.subr.mxu0 0.0
  %181 = vmatpush1.msra.mxu0 %v75
  %182 = vmatprep.subr.mxu0 0.0
  %183 = vmatpush1.msra.mxu0 %v76
  %184 = vmatprep.subr.mxu0 0.0
  %185 = vmatpush1.msra.mxu0 %v77
  %186 = vmatprep.subr.mxu0 0.0
  %187 = vmatpush1.msra.mxu0 %v78
  %188 = vmatprep.subr.mxu0 0.0
  %189 = vmatpush1.msra.mxu0 %v79
  %190 = vmatprep.subr.mxu0 0.0
  %191 = vmatpush1.msra.mxu0 %v80
  %192 = vmatprep.subr.mxu0 0.0
  %193 = vmatpush1.msra.mxu0 %v81
  %194 = vmatprep.subr.mxu0 0.0
  %195 = vmatpush1.msra.mxu0 %v82
  %196 = vmatprep.subr.mxu0 0.0
  %197 = vmatpush1.msra.mxu0 %v83
  %198 = vmatprep.subr.mxu0 0.0
  %199 = vmatpush1.msra.mxu0 %v84
  %200 = vmatprep.subr.mxu0 0.0
  %201 = vmatpush1.msra.mxu0 %v85
  %202 = vmatprep.subr.mxu0 0.0
  %203 = vmatpush1.msra.mxu0 %v86
  %204 = vmatprep.subr.mxu0 0.0
  %205 = vmatpush1.msra.mxu0 %v87
  %206 = vmatprep.subr.mxu0 0.0
  %207 = vmatpush1.msra.mxu0 %v88
  %208 = vmatprep.subr.mxu0 0.0
  %209 = vmatpush1.msra.mxu0 %v89
  %210 = vmatprep.subr.mxu0 0.0
  %211 = vmatpush1.msra.mxu0 %v90
  %212 = vmatprep.subr.mxu0 0.0
  %213 = vmatpush1.msra.mxu0 %v91
  %214 = vmatprep.subr.mxu0 0.0
  %215 = vmatpush1.msra.mxu0 %v92
  %216 = vmatprep.subr.mxu0 0.0
  %217 = vmatpush1.msra.mxu0 %v93
  %218 = vmatprep.mubr.f32.mxu0 %v15
  %219 = vmatmul.mubr.f32.gmra.mrb[0].mxu0 %v14
  %v220 = vpop.f32.mrb[0].mxu0
  %v221 = vadd.f32 %v103, %v220
  %v222 = vpop.f32.mrb[0].mxu0
  %223 = vmatprep.mubr.f32.mxu0 %v18
  %224 = vmatmul.mubr.f32.gmra.mrb[0].mxu0 %v17
  %v225 = vpop.f32.mrb[0].mxu0
  %v226 = vadd.f32 %v103, %v225
  %v227 = vpop.f32.mrb[0].mxu0
  %228 = vmatprep.mubr.f32.mxu0 %v21
  %229 = vmatmul.mubr.f32.gmra.mrb[0].mxu0 %v20
  %v230 = vpop.f32.mrb[0].mxu0
  %v231 = vadd.f32 %v103, %v230
  %v232 = vpop.f32.mrb[0].mxu0
  %233 = vmatprep.mubr.f32.mxu0 %v24
  %234 = vmatmul.mubr.f32.gmra.mrb[0].mxu0 %v23
  %v235 = vpop.f32.mrb[0].mxu0
  %v236 = vadd.f32 %v103, %v235
  %v237 = vpop.f32.mrb[0].mxu0
  %238 = vmatprep.mubr.f32.mxu0 %v27
  %239 = vmatmul.mubr.f32.gmra.mrb[0].mxu0 %v26
  %v240 = vpop.f32.mrb[0].mxu0
  %v241 = vadd.f32 %v103, %v240
  %v242 = vpop.f32.mrb[0].mxu0
  %243 = vmatprep.mubr.f32.mxu0 %v30
  %244 = vmatmul.mubr.f32.gmra.mrb[0].mxu0 %v29
  %v245 = vpop.f32.mrb[0].mxu0
  %v246 = vadd.f32 %v103, %v245
  %v247 = vpop.f32.mrb[0].mxu0
  %248 = vmatprep.mubr.f32.mxu0 %v33
  %249 = vmatmul.mubr.f32.gmra.mrb[0].mxu0 %v32
  %v250 = vpop.f32.mrb[0].mxu0
  %v251 = vadd.f32 %v103, %v250
  %v252 = vpop.f32.mrb[0].mxu0
  %253 = vmatprep.mubr.f32.mxu0 %v36
  %254 = vmatmul.mubr.f32.gmra.mrb[0].mxu0 %v35
  %v255 = vpop.f32.mrb[0].mxu0
  %v256 = vadd.f32 %v103, %v255
  %v257 = vpop.f32.mrb[0].mxu0
  %258 = vmatprep.mubr.f32.mxu0 %v39
  %259 = vmatmul.mubr.f32.gmra.mrb[0].mxu0 %v38
  %v260 = vpop.f32.mrb[0].mxu0
  %v261 = vadd.f32 %v103, %v260
  %v262 = vpop.f32.mrb[0].mxu0
  %263 = vmatprep.mubr.f32.mxu0 %v42
  %264 = vmatmul.mubr.f32.gmra.mrb[0].mxu0 %v41
  %v265 = vpop.f32.mrb[0].mxu0
  %v266 = vadd.f32 %v103, %v265
  %v267 = vpop.f32.mrb[0].mxu0
  %268 = vmatprep.mubr.f32.mxu0 %v45
  %269 = vmatmul.mubr.f32.gmra.mrb[0].mxu0 %v44
  %v270 = vpop.f32.mrb[0].mxu0
  %v271 = vadd.f32 %v103, %v270
  %v272 = vpop.f32.mrb[0].mxu0
  %273 = vmatprep.mubr.f32.mxu0 %v48
  %274 = vmatmul.mubr.f32.gmra.mrb[0].mxu0 %v47
  %v275 = vpop.f32.mrb[0].mxu0
  %v276 = vadd.f32 %v103, %v275
  %v277 = vpop.f32.mrb[0].mxu0
  %278 = vmatprep.mubr.f32.mxu0 %v51
  %279 = vmatmul.mubr.f32.gmra.mrb[0].mxu0 %v50
  %v280 = vpop.f32.mrb[0].mxu0
  %v281 = vadd.f32 %v103, %v280
  %v282 = vpop.f32.mrb[0].mxu0
  %283 = vmatprep.mubr.f32.mxu0 %v54
  %284 = vmatmul.mubr.f32.gmra.mrb[0].mxu0 %v53
  %v285 = vpop.f32.mrb[0].mxu0
  %v286 = vadd.f32 %v103, %v285
  %v287 = vpop.f32.mrb[0].mxu0
  %288 = vmatprep.mubr.f32.mxu0 %v57
  %289 = vmatmul.mubr.f32.gmra.mrb[0].mxu0 %v56
  %v290 = vpop.f32.mrb[0].mxu0
  %v291 = vadd.f32 %v103, %v290
  %v292 = vpop.f32.mrb[0].mxu0
  %293 = vmatprep.mubr.f32.mxu0 %v60
  %294 = vmatmul.mubr.f32.gmra.mrb[0].mxu0 %v59
  %v295 = vpop.f32.mrb[0].mxu0
  %v296 = vadd.f32 %v103, %v295
  %v297 = vpop.f32.mrb[0].mxu0
  %298 = vdwg.mxu0
  %299 = vmatprep.subr.mxu0 0.0
  %300 = vmatpush1.msra.mxu0 %v94
  %301 = vmatprep.subr.mxu0 0.0
  %302 = vmatpush1.msra.mxu0 %v95
  %303 = vmatprep.subr.mxu0 0.0
  %304 = vmatpush1.msra.mxu0 %v96
  %305 = vmatprep.subr.mxu0 0.0
  %306 = vmatpush1.msra.mxu0 %v97
  %307 = vmatprep.subr.mxu0 0.0
  %308 = vmatpush1.msra.mxu0 0.0
  %309 = vmatprep.subr.mxu0 0.0
  %310 = vmatpush1.msra.mxu0 0.0
  %311 = vmatprep.subr.mxu0 0.0
  %312 = vmatpush1.msra.mxu0 0.0
  %313 = vmatprep.subr.mxu0 0.0
  %314 = vmatpush1.msra.mxu0 0.0
  %315 = vmatprep.subr.mxu0 0.0
  %316 = vmatpush1.msra.mxu0 0.0
  %317 = vmatprep.subr.mxu0 0.0
  %318 = vmatpush1.msra.mxu0 0.0
  %319 = vmatprep.subr.mxu0 0.0
  %320 = vmatpush1.msra.mxu0 0.0
  %321 = vmatprep.subr.mxu0 0.0
  %322 = vmatpush1.msra.mxu0 0.0
  %323 = vmatprep.subr.mxu0 0.0
  %324 = vmatpush1.msra.mxu0 0.0
  %325 = vmatprep.subr.mxu0 0.0
  %326 = vmatpush1.msra.mxu0 0.0
  %327 = vmatprep.subr.mxu0 0.0
  %328 = vmatpush1.msra.mxu0 0.0
  %329 = vmatprep.subr.mxu0 0.0
  %330 = vmatpush1.msra.mxu0 0.0
  %331 = vmatprep.subr.mxu0 0.0
  %332 = vmatpush1.msra.mxu0 0.0
  %333 = vmatprep.subr.mxu0 0.0
  %334 = vmatpush1.msra.mxu0 0.0
  %335 = vmatprep.subr.mxu0 0.0
  %336 = vmatpush1.msra.mxu0 0.0
  %337 = vmatprep.subr.mxu0 0.0
  %338 = vmatpush1.msra.mxu0 0.0
  %339 = vmatprep.subr.mxu0 0.0
  %340 = vmatpush1.msra.mxu0 0.0
  %341 = vmatprep.subr.mxu0 0.0
  %342 = vmatpush1.msra.mxu0 0.0
  %343 = vmatprep.subr.mxu0 0.0
  %344 = vmatpush1.msra.mxu0 0.0
  %345 = vmatprep.subr.mxu0 0.0
  %346 = vmatpush1.msra.mxu0 0.0
  %347 = vmatprep.subr.mxu0 0.0
  %348 = vmatpush1.msra.mxu0 0.0
  %349 = vmatprep.subr.mxu0 0.0
  %350 = vmatpush1.msra.mxu0 0.0
  %351 = vmatprep.subr.mxu0 0.0
  %352 = vmatpush1.msra.mxu0 0.0
  %353 = vmatprep.subr.mxu0 0.0
  %354 = vmatpush1.msra.mxu0 0.0
  %355 = vmatprep.subr.mxu0 0.0
  %356 = vmatpush1.msra.mxu0 0.0
  %357 = vmatprep.subr.mxu0 0.0
  %358 = vmatpush1.msra.mxu0 0.0
  %359 = vmatprep.subr.mxu0 0.0
  %360 = vmatpush1.msra.mxu0 0.0
  %361 = vmatprep.subr.mxu0 0.0
  %362 = vmatpush1.msra.mxu0 0.0
  %363 = vmatprep.mubr.f32.mxu0 0.0
  %364 = vmatmul.mubr.f32.gmra.mrb[0].mxu0 %v107
  %v365 = vpop.f32.mrb[0].mxu0
  %v366 = vadd.f32 %v221, %v365
  %v367 = vpop.f32.mrb[0].mxu0
  %368 = vmatprep.mubr.f32.mxu0 0.0
  %369 = vmatmul.mubr.f32.gmra.mrb[0].mxu0 %v110
  %v370 = vpop.f32.mrb[0].mxu0
  %v371 = vadd.f32 %v226, %v370
  %v372 = vpop.f32.mrb[0].mxu0
  %373 = vmatprep.mubr.f32.mxu0 0.0
  %374 = vmatmul.mubr.f32.gmra.mrb[0].mxu0 %v113
  %v375 = vpop.f32.mrb[0].mxu0
  %v376 = vadd.f32 %v231, %v375
  %v377 = vpop.f32.mrb[0].mxu0
  %378 = vmatprep.mubr.f32.mxu0 0.0
  %379 = vmatmul.mubr.f32.gmra.mrb[0].mxu0 %v116
  %v380 = vpop.f32.mrb[0].mxu0
  %v381 = vadd.f32 %v236, %v380
  %v382 = vpop.f32.mrb[0].mxu0
  %383 = vmatprep.mubr.f32.mxu0 0.0
  %384 = vmatmul.mubr.f32.gmra.mrb[0].mxu0 %v119
  %v385 = vpop.f32.mrb[0].mxu0
  %v386 = vadd.f32 %v241, %v385
  %v387 = vpop.f32.mrb[0].mxu0
  %388 = vmatprep.mubr.f32.mxu0 0.0
  %389 = vmatmul.mubr.f32.gmra.mrb[0].mxu0 %v122
  %v390 = vpop.f32.mrb[0].mxu0
  %v391 = vadd.f32 %v246, %v390
  %v392 = vpop.f32.mrb[0].mxu0
  %393 = vmatprep.mubr.f32.mxu0 0.0
  %394 = vmatmul.mubr.f32.gmra.mrb[0].mxu0 %v125
  %v395 = vpop.f32.mrb[0].mxu0
  %v396 = vadd.f32 %v251, %v395
  %v397 = vpop.f32.mrb[0].mxu0
  %398 = vmatprep.mubr.f32.mxu0 0.0
  %399 = vmatmul.mubr.f32.gmra.mrb[0].mxu0 %v128
  %v400 = vpop.f32.mrb[0].mxu0
  %v401 = vadd.f32 %v256, %v400
  %v402 = vpop.f32.mrb[0].mxu0
  %403 = vmatprep.mubr.f32.mxu0 0.0
  %404 = vmatmul.mubr.f32.gmra.mrb[0].mxu0 %v131
  %v405 = vpop.f32.mrb[0].mxu0
  %v406 = vadd.f32 %v261, %v405
  %v407 = vpop.f32.mrb[0].mxu0
  %408 = vmatprep.mubr.f32.mxu0 0.0
  %409 = vmatmul.mubr.f32.gmra.mrb[0].mxu0 %v134
  %v410 = vpop.f32.mrb[0].mxu0
  %v411 = vadd.f32 %v266, %v410
  %v412 = vpop.f32.mrb[0].mxu0
  %413 = vmatprep.mubr.f32.mxu0 0.0
  %414 = vmatmul.mubr.f32.gmra.mrb[0].mxu0 %v137
  %v415 = vpop.f32.mrb[0].mxu0
  %v416 = vadd.f32 %v271, %v415
  %v417 = vpop.f32.mrb[0].mxu0
  %418 = vmatprep.mubr.f32.mxu0 0.0
  %419 = vmatmul.mubr.f32.gmra.mrb[0].mxu0 %v140
  %v420 = vpop.f32.mrb[0].mxu0
  %v421 = vadd.f32 %v276, %v420
  %v422 = vpop.f32.mrb[0].mxu0
  %423 = vmatprep.mubr.f32.mxu0 0.0
  %424 = vmatmul.mubr.f32.gmra.mrb[0].mxu0 %v143
  %v425 = vpop.f32.mrb[0].mxu0
  %v426 = vadd.f32 %v281, %v425
  %v427 = vpop.f32.mrb[0].mxu0
  %428 = vmatprep.mubr.f32.mxu0 0.0
  %429 = vmatmul.mubr.f32.gmra.mrb[0].mxu0 %v146
  %v430 = vpop.f32.mrb[0].mxu0
  %v431 = vadd.f32 %v286, %v430
  %v432 = vpop.f32.mrb[0].mxu0
  %433 = vmatprep.mubr.f32.mxu0 0.0
  %434 = vmatmul.mubr.f32.gmra.mrb[0].mxu0 %v149
  %v435 = vpop.f32.mrb[0].mxu0
  %v436 = vadd.f32 %v291, %v435
  %v437 = vpop.f32.mrb[0].mxu0
  %438 = vmatprep.mubr.f32.mxu0 0.0
  %439 = vmatmul.mubr.f32.gmra.mrb[0].mxu0 %v152
  %v440 = vpop.f32.mrb[0].mxu0
  %v441 = vadd.f32 %v296, %v440
  %v442 = vpop.f32.mrb[0].mxu0
  %443 = vdwg.mxu0
  %444 = vst [vmem:[%s3] sm:$0xff] %v366
  %445 = vst [vmem:[%s3 + $0x8] sm:$0xff] %v371
  %446 = vst [vmem:[%s3 + $0x10] sm:$0xff] %v376
  %447 = vst [vmem:[%s3 + $0x18] sm:$0xff] %v381
  %448 = vst [vmem:[%s3 + $0x20] sm:$0xff] %v386
  %449 = vst [vmem:[%s3 + $0x28] sm:$0xff] %v391
  %450 = vst [vmem:[%s3 + $0x30] sm:$0xff] %v396
  %451 = vst [vmem:[%s3 + $0x38] sm:$0xff] %v401
  %452 = vst [vmem:[%s3 + $0x40] sm:$0xff] %v406
  %453 = vst [vmem:[%s3 + $0x48] sm:$0xff] %v411
  %454 = vst [vmem:[%s3 + $0x50] sm:$0xff] %v416
  %455 = vst [vmem:[%s3 + $0x58] sm:$0xff] %v421
  %456 = vst [vmem:[%s3 + $0x60] sm:$0xff] %v426
  %457 = vst [vmem:[%s3 + $0x68] sm:$0xff] %v431
  %458 = vst [vmem:[%s3 + $0x70] sm:$0xff] %v436
  %459 = vst [vmem:[%s3 + $0x78] sm:$0xff] %v441
  // Predicated region
  $region14: #{basic_block_forward.45} parent=0 // pred_check
    _
  $region15: #{basic_block_forward.45} parent=0 // pred_check_branch
    %461 = sbr.rel (0) target = $region17
  $region16: #{basic_block_forward.45} parent=0 // pred_region
    _
  $region17: #{basic_block_forward.45} parent=0 // pred_fallthru
    _
  // Predicated region
  $region18: #{basic_block_forward.45} parent=0 // pred_check
    _
  $region19: #{basic_block_forward.45} parent=0 // pred_check_branch
    %463 = sbr.rel (0) target = $region21
  $region20: #{basic_block_forward.45} parent=0 // pred_region
    _
  $region21: #{basic_block_forward.45} parent=0 // pred_fallthru
    _

// kernel: basic_block_forward.53
$region0: #{basic_block_forward.53}
  #allocation0 [shape = 'u32[]', space=smem, size = 0x4, offset = 0x4, fixed_abs, tag = 'smem constant byte address 0x4 - core index']
  #allocation1 [shape = 'u32[144,128]{1,0:T(1,128)}', space=vmem, size = 0x12000, scoped, tag = 'internal scratch']
  %s0 = inlined_call_operand.vmem [shape: f32[128,32], index: 0, kind: input, shape index: {}]
  %s1 = inlined_call_operand.vmem [shape: f32[32,256], index: 1, kind: input, shape index: {}]
  %s2 = inlined_call_operand.vmem [shape: f32[1,256], index: 2, kind: input, shape index: {}]
  %s3 = inlined_call_operand.vmem [shape: f32[128,256], index: 3, kind: output, shape index: {}]
  %s4 = sld [smem:[#allocation0]]
  $region22: #{basic_block_forward.53} parent=0
    _
  %s6 = ssub.s32 1, %s4
  %s7 = scalar_select 0, %s6, %s4
  // Predicated region
  $region2: #{basic_block_forward.53} parent=0 // pred_check
    _
  $region3: #{basic_block_forward.53} parent=0 // pred_check_branch
    %9 = sbr.rel (0) target = $region5
  $region4: #{basic_block_forward.53} parent=0 // pred_region
    _
  $region5: #{basic_block_forward.53} parent=0 // pred_fallthru
    _
  // Predicated region
  $region6: #{basic_block_forward.53} parent=0 // pred_check
    _
  $region7: #{basic_block_forward.53} parent=0 // pred_check_branch
    %11 = sbr.rel (0) target = $region9
  $region8: #{basic_block_forward.53} parent=0 // pred_region
    _
  $region9: #{basic_block_forward.53} parent=0 // pred_fallthru
    _
  // Predicated region
  $region10: #{basic_block_forward.53} parent=0 // pred_check
    _
  $region11: #{basic_block_forward.53} parent=0 // pred_check_branch
    %13 = sbr.rel (0) target = $region13
  $region12: #{basic_block_forward.53} parent=0 // pred_region
    _
  $region13: #{basic_block_forward.53} parent=0 // pred_fallthru
    _
  %v14 = vld [vmem:[%s0] sm:$0xff]
  %v15 = vld [vmem:[%s0 + $0x8] sm:$0xff]
  %v16 = vld [vmem:[%s0 + $0x10] sm:$0xff]
  %v17 = vld [vmem:[%s0 + $0x18] sm:$0xff]
  %v18 = vld [vmem:[%s0 + $0x20] sm:$0xff]
  %v19 = vld [vmem:[%s0 + $0x28] sm:$0xff]
  %v20 = vld [vmem:[%s0 + $0x30] sm:$0xff]
  %v21 = vld [vmem:[%s0 + $0x38] sm:$0xff]
  %v22 = vld [vmem:[%s0 + $0x40] sm:$0xff]
  %v23 = vld [vmem:[%s0 + $0x48] sm:$0xff]
  %v24 = vld [vmem:[%s0 + $0x50] sm:$0xff]
  %v25 = vld [vmem:[%s0 + $0x58] sm:$0xff]
  %v26 = vld [vmem:[%s0 + $0x60] sm:$0xff]
  %v27 = vld [vmem:[%s0 + $0x68] sm:$0xff]
  %v28 = vld [vmem:[%s0 + $0x70] sm:$0xff]
  %v29 = vld [vmem:[%s0 + $0x78] sm:$0xff]
  %v30 = vld [vmem:[%s1] sm:$0xff]
  %v31 = vld [vmem:[%s1 + $0x8] sm:$0xff]
  %v32 = vld [vmem:[%s1 + $0x10] sm:$0xff]
  %v33 = vld [vmem:[%s1 + $0x18] sm:$0xff]
  %v34 = vld [vmem:[%s1 + $0x20] sm:$0xff]
  %v35 = vld [vmem:[%s1 + $0x28] sm:$0xff]
  %v36 = vld [vmem:[%s1 + $0x30] sm:$0xff]
  %v37 = vld [vmem:[%s1 + $0x38] sm:$0xff]
  %v38 = vld [vmem:[%s2] sm:$0x3]
  %v40 = vlaneseq
  %v41 = vshrl.u32 %v40, 7
  %v42 = vsub.s32 0, %v41
  %v43 = vrot.slane %v38, %v42
  %v44 = vlaneseq
  %v45 = vshrl.u32 %v44, 7
  %v46 = vsub.s32 1, %v45
  %v47 = vrot.slane %v38, %v46
  %vm50 = vcmask 261120
  %v52 = vsel %vm50, %v14, 0
  %v55 = vsel %vm50, %v15, 0
  %v58 = vsel %vm50, %v16, 0
  %v61 = vsel %vm50, %v17, 0
  %v64 = vsel %vm50, %v18, 0
  %v67 = vsel %vm50, %v19, 0
  %v70 = vsel %vm50, %v20, 0
  %v73 = vsel %vm50, %v21, 0
  %v76 = vsel %vm50, %v22, 0
  %v79 = vsel %vm50, %v23, 0
  %v82 = vsel %vm50, %v24, 0
  %v85 = vsel %vm50, %v25, 0
  %v88 = vsel %vm50, %v26, 0
  %v91 = vsel %vm50, %v27, 0
  %v94 = vsel %vm50, %v28, 0
  %v97 = vsel %vm50, %v29, 0
  %99 = vmatprep.subr.mxu0 %v31
  %100 = vmatpush1.msra.mxu0 %v30
  %101 = vmatprep.subr.mxu0 %v33
  %102 = vmatpush1.msra.mxu0 %v32
  %103 = vmatprep.subr.mxu0 %v35
  %104 = vmatpush1.msra.mxu0 %v34
  %105 = vmatprep.subr.mxu0 %v37
  %106 = vmatpush1.msra.mxu0 %v36
  %107 = vmatprep.subr.mxu0 0.0
  %108 = vmatpush1.msra.mxu0 0.0
  %109 = vmatprep.subr.mxu0 0.0
  %110 = vmatpush1.msra.mxu0 0.0
  %111 = vmatprep.subr.mxu0 0.0
  %112 = vmatpush1.msra.mxu0 0.0
  %113 = vmatprep.subr.mxu0 0.0
  %114 = vmatpush1.msra.mxu0 0.0
  %115 = vmatprep.subr.mxu0 0.0
  %116 = vmatpush1.msra.mxu0 0.0
  %117 = vmatprep.subr.mxu0 0.0
  %118 = vmatpush1.msra.mxu0 0.0
  %119 = vmatprep.subr.mxu0 0.0
  %120 = vmatpush1.msra.mxu0 0.0
  %121 = vmatprep.subr.mxu0 0.0
  %122 = vmatpush1.msra.mxu0 0.0
  %123 = vmatprep.subr.mxu0 0.0
  %124 = vmatpush1.msra.mxu0 0.0
  %125 = vmatprep.subr.mxu0 0.0
  %126 = vmatpush1.msra.mxu0 0.0
  %127 = vmatprep.subr.mxu0 0.0
  %128 = vmatpush1.msra.mxu0 0.0
  %129 = vmatprep.subr.mxu0 0.0
  %130 = vmatpush1.msra.mxu0 0.0
  %131 = vmatprep.subr.mxu0 0.0
  %132 = vmatpush1.msra.mxu0 0.0
  %133 = vmatprep.subr.mxu0 0.0
  %134 = vmatpush1.msra.mxu0 0.0
  %135 = vmatprep.subr.mxu0 0.0
  %136 = vmatpush1.msra.mxu0 0.0
  %137 = vmatprep.subr.mxu0 0.0
  %138 = vmatpush1.msra.mxu0 0.0
  %139 = vmatprep.subr.mxu0 0.0
  %140 = vmatpush1.msra.mxu0 0.0
  %141 = vmatprep.subr.mxu0 0.0
  %142 = vmatpush1.msra.mxu0 0.0
  %143 = vmatprep.subr.mxu0 0.0
  %144 = vmatpush1.msra.mxu0 0.0
  %145 = vmatprep.subr.mxu0 0.0
  %146 = vmatpush1.msra.mxu0 0.0
  %147 = vmatprep.subr.mxu0 0.0
  %148 = vmatpush1.msra.mxu0 0.0
  %149 = vmatprep.subr.mxu0 0.0
  %150 = vmatpush1.msra.mxu0 0.0
  %151 = vmatprep.subr.mxu0 0.0
  %152 = vmatpush1.msra.mxu0 0.0
  %153 = vmatprep.subr.mxu0 0.0
  %154 = vmatpush1.msra.mxu0 0.0
  %155 = vmatprep.subr.mxu0 0.0
  %156 = vmatpush1.msra.mxu0 0.0
  %157 = vmatprep.subr.mxu0 0.0
  %158 = vmatpush1.msra.mxu0 0.0
  %159 = vmatprep.subr.mxu0 0.0
  %160 = vmatpush1.msra.mxu0 0.0
  %161 = vmatprep.subr.mxu0 0.0
  %162 = vmatpush1.msra.mxu0 0.0
  %163 = vmatprep.mubr.f32.mxu0 0.0
  %164 = vmatmul.mubr.f32.gmra.mrb[0].mxu0 %v52
  %v165 = vpop.f32.mrb[0].mxu0
  %v166 = vadd.f32 %v43, %v165
  %v167 = vpop.f32.mrb[0].mxu0
  %v168 = vadd.f32 %v47, %v167
  %169 = vmatprep.mubr.f32.mxu0 0.0
  %170 = vmatmul.mubr.f32.gmra.mrb[0].mxu0 %v55
  %v171 = vpop.f32.mrb[0].mxu0
  %v172 = vadd.f32 %v43, %v171
  %v173 = vpop.f32.mrb[0].mxu0
  %v174 = vadd.f32 %v47, %v173
  %175 = vmatprep.mubr.f32.mxu0 0.0
  %176 = vmatmul.mubr.f32.gmra.mrb[0].mxu0 %v58
  %v177 = vpop.f32.mrb[0].mxu0
  %v178 = vadd.f32 %v43, %v177
  %v179 = vpop.f32.mrb[0].mxu0
  %v180 = vadd.f32 %v47, %v179
  %181 = vmatprep.mubr.f32.mxu0 0.0
  %182 = vmatmul.mubr.f32.gmra.mrb[0].mxu0 %v61
  %v183 = vpop.f32.mrb[0].mxu0
  %v184 = vadd.f32 %v43, %v183
  %v185 = vpop.f32.mrb[0].mxu0
  %v186 = vadd.f32 %v47, %v185
  %187 = vmatprep.mubr.f32.mxu0 0.0
  %188 = vmatmul.mubr.f32.gmra.mrb[0].mxu0 %v64
  %v189 = vpop.f32.mrb[0].mxu0
  %v190 = vadd.f32 %v43, %v189
  %v191 = vpop.f32.mrb[0].mxu0
  %v192 = vadd.f32 %v47, %v191
  %193 = vmatprep.mubr.f32.mxu0 0.0
  %194 = vmatmul.mubr.f32.gmra.mrb[0].mxu0 %v67
  %v195 = vpop.f32.mrb[0].mxu0
  %v196 = vadd.f32 %v43, %v195
  %v197 = vpop.f32.mrb[0].mxu0
  %v198 = vadd.f32 %v47, %v197
  %199 = vmatprep.mubr.f32.mxu0 0.0
  %200 = vmatmul.mubr.f32.gmra.mrb[0].mxu0 %v70
  %v201 = vpop.f32.mrb[0].mxu0
  %v202 = vadd.f32 %v43, %v201
  %v203 = vpop.f32.mrb[0].mxu0
  %v204 = vadd.f32 %v47, %v203
  %205 = vmatprep.mubr.f32.mxu0 0.0
  %206 = vmatmul.mubr.f32.gmra.mrb[0].mxu0 %v73
  %v207 = vpop.f32.mrb[0].mxu0
  %v208 = vadd.f32 %v43, %v207
  %v209 = vpop.f32.mrb[0].mxu0
  %v210 = vadd.f32 %v47, %v209
  %211 = vmatprep.mubr.f32.mxu0 0.0
  %212 = vmatmul.mubr.f32.gmra.mrb[0].mxu0 %v76
  %v213 = vpop.f32.mrb[0].mxu0
  %v214 = vadd.f32 %v43, %v213
  %v215 = vpop.f32.mrb[0].mxu0
  %v216 = vadd.f32 %v47, %v215
  %217 = vmatprep.mubr.f32.mxu0 0.0
  %218 = vmatmul.mubr.f32.gmra.mrb[0].mxu0 %v79
  %v219 = vpop.f32.mrb[0].mxu0
  %v220 = vadd.f32 %v43, %v219
  %v221 = vpop.f32.mrb[0].mxu0
  %v222 = vadd.f32 %v47, %v221
  %223 = vmatprep.mubr.f32.mxu0 0.0
  %224 = vmatmul.mubr.f32.gmra.mrb[0].mxu0 %v82
  %v225 = vpop.f32.mrb[0].mxu0
  %v226 = vadd.f32 %v43, %v225
  %v227 = vpop.f32.mrb[0].mxu0
  %v228 = vadd.f32 %v47, %v227
  %229 = vmatprep.mubr.f32.mxu0 0.0
  %230 = vmatmul.mubr.f32.gmra.mrb[0].mxu0 %v85
  %v231 = vpop.f32.mrb[0].mxu0
  %v232 = vadd.f32 %v43, %v231
  %v233 = vpop.f32.mrb[0].mxu0
  %v234 = vadd.f32 %v47, %v233
  %235 = vmatprep.mubr.f32.mxu0 0.0
  %236 = vmatmul.mubr.f32.gmra.mrb[0].mxu0 %v88
  %v237 = vpop.f32.mrb[0].mxu0
  %v238 = vadd.f32 %v43, %v237
  %v239 = vpop.f32.mrb[0].mxu0
  %v240 = vadd.f32 %v47, %v239
  %241 = vmatprep.mubr.f32.mxu0 0.0
  %242 = vmatmul.mubr.f32.gmra.mrb[0].mxu0 %v91
  %v243 = vpop.f32.mrb[0].mxu0
  %v244 = vadd.f32 %v43, %v243
  %v245 = vpop.f32.mrb[0].mxu0
  %v246 = vadd.f32 %v47, %v245
  %247 = vmatprep.mubr.f32.mxu0 0.0
  %248 = vmatmul.mubr.f32.gmra.mrb[0].mxu0 %v94
  %v249 = vpop.f32.mrb[0].mxu0
  %v250 = vadd.f32 %v43, %v249
  %v251 = vpop.f32.mrb[0].mxu0
  %v252 = vadd.f32 %v47, %v251
  %253 = vmatprep.mubr.f32.mxu0 0.0
  %254 = vmatmul.mubr.f32.gmra.mrb[0].mxu0 %v97
  %v255 = vpop.f32.mrb[0].mxu0
  %v256 = vadd.f32 %v43, %v255
  %v257 = vpop.f32.mrb[0].mxu0
  %v258 = vadd.f32 %v47, %v257
  %259 = vdwg.mxu0
  %260 = vst [vmem:[%s3] sm:$0xff] %v166
  %261 = vst [vmem:[%s3 + $0x8] sm:$0xff] %v168
  %262 = vst [vmem:[%s3 + $0x10] sm:$0xff] %v172
  %263 = vst [vmem:[%s3 + $0x18] sm:$0xff] %v174
  %264 = vst [vmem:[%s3 + $0x20] sm:$0xff] %v178
  %265 = vst [vmem:[%s3 + $0x28] sm:$0xff] %v180
  %266 = vst [vmem:[%s3 + $0x30] sm:$0xff] %v184
  %267 = vst [vmem:[%s3 + $0x38] sm:$0xff] %v186
  %268 = vst [vmem:[%s3 + $0x40] sm:$0xff] %v190
  %269 = vst [vmem:[%s3 + $0x48] sm:$0xff] %v192
  %270 = vst [vmem:[%s3 + $0x50] sm:$0xff] %v196
  %271 = vst [vmem:[%s3 + $0x58] sm:$0xff] %v198
  %272 = vst [vmem:[%s3 + $0x60] sm:$0xff] %v202
  %273 = vst [vmem:[%s3 + $0x68] sm:$0xff] %v204
  %274 = vst [vmem:[%s3 + $0x70] sm:$0xff] %v208
  %275 = vst [vmem:[%s3 + $0x78] sm:$0xff] %v210
  %276 = vst [vmem:[%s3 + $0x80] sm:$0xff] %v214
  %277 = vst [vmem:[%s3 + $0x88] sm:$0xff] %v216
  %278 = vst [vmem:[%s3 + $0x90] sm:$0xff] %v220
  %279 = vst [vmem:[%s3 + $0x98] sm:$0xff] %v222
  %280 = vst [vmem:[%s3 + $0xa0] sm:$0xff] %v226
  %281 = vst [vmem:[%s3 + $0xa8] sm:$0xff] %v228
  %282 = vst [vmem:[%s3 + $0xb0] sm:$0xff] %v232
  %283 = vst [vmem:[%s3 + $0xb8] sm:$0xff] %v234
  %284 = vst [vmem:[%s3 + $0xc0] sm:$0xff] %v238
  %285 = vst [vmem:[%s3 + $0xc8] sm:$0xff] %v240
  %286 = vst [vmem:[%s3 + $0xd0] sm:$0xff] %v244
  %287 = vst [vmem:[%s3 + $0xd8] sm:$0xff] %v246
  %288 = vst [vmem:[%s3 + $0xe0] sm:$0xff] %v250
  %289 = vst [vmem:[%s3 + $0xe8] sm:$0xff] %v252
  %290 = vst [vmem:[%s3 + $0xf0] sm:$0xff] %v256
  %291 = vst [vmem:[%s3 + $0xf8] sm:$0xff] %v258
  // Predicated region
  $region14: #{basic_block_forward.53} parent=0 // pred_check
    _
  $region15: #{basic_block_forward.53} parent=0 // pred_check_branch
    %293 = sbr.rel (0) target = $region17
  $region16: #{basic_block_forward.53} parent=0 // pred_region
    _
  $region17: #{basic_block_forward.53} parent=0 // pred_fallthru
    _
  // Predicated region
  $region18: #{basic_block_forward.53} parent=0 // pred_check
    _
  $region19: #{basic_block_forward.53} parent=0 // pred_check_branch
    %295 = sbr.rel (0) target = $region21
  $region20: #{basic_block_forward.53} parent=0 // pred_region
    _
  $region21: #{basic_block_forward.53} parent=0 // pred_fallthru
    _

// kernel: basic_block_forward.54
$region0: #{basic_block_forward.54}
  #allocation0 [shape = 'u32[]', space=smem, size = 0x4, offset = 0x4, fixed_abs, tag = 'smem constant byte address 0x4 - core index']
  #allocation1 [shape = 'u32[144,128]{1,0:T(1,128)}', space=vmem, size = 0x12000, scoped, tag = 'internal scratch']
  %s0 = inlined_call_operand.vmem [shape: f32[32,256], index: 0, kind: input, shape index: {}]
  %s1 = inlined_call_operand.vmem [shape: f32[32,256], index: 1, kind: input, shape index: {}]
  %s2 = inlined_call_operand.vmem [shape: f32[32,256], index: 2, kind: input, shape index: {}]
  %s3 = inlined_call_operand.vmem [shape: f32[32,256], index: 3, kind: input, shape index: {}]
  %s4 = inlined_call_operand.vmem [shape: f32[32,256], index: 4, kind: output, shape index: {}]
  %s5 = sld [smem:[#allocation0]]
  $region26: #{basic_block_forward.54} parent=0
    _
  %s7 = ssub.s32 1, %s5
  %s8 = scalar_select 0, %s7, %s5
  // Predicated region
  $region2: #{basic_block_forward.54} parent=0 // pred_check
    _
  $region3: #{basic_block_forward.54} parent=0 // pred_check_branch
    %10 = sbr.rel (0) target = $region5
  $region4: #{basic_block_forward.54} parent=0 // pred_region
    _
  $region5: #{basic_block_forward.54} parent=0 // pred_fallthru
    _
  // Predicated region
  $region6: #{basic_block_forward.54} parent=0 // pred_check
    _
  $region7: #{basic_block_forward.54} parent=0 // pred_check_branch
    %12 = sbr.rel (0) target = $region9
  $region8: #{basic_block_forward.54} parent=0 // pred_region
    _
  $region9: #{basic_block_forward.54} parent=0 // pred_fallthru
    _
  // Predicated region
  $region10: #{basic_block_forward.54} parent=0 // pred_check
    _
  $region11: #{basic_block_forward.54} parent=0 // pred_check_branch
    %14 = sbr.rel (0) target = $region13
  $region12: #{basic_block_forward.54} parent=0 // pred_region
    _
  $region13: #{basic_block_forward.54} parent=0 // pred_fallthru
    _
  // Predicated region
  $region14: #{basic_block_forward.54} parent=0 // pred_check
    _
  $region15: #{basic_block_forward.54} parent=0 // pred_check_branch
    %16 = sbr.rel (0) target = $region17
  $region16: #{basic_block_forward.54} parent=0 // pred_region
    _
  $region17: #{basic_block_forward.54} parent=0 // pred_fallthru
    _
  %v17 = vld [vmem:[%s0] sm:$0xff]
  %v18 = vld [vmem:[%s0 + $0x8] sm:$0xff]
  %v19 = vld [vmem:[%s0 + $0x10] sm:$0xff]
  %v20 = vld [vmem:[%s0 + $0x18] sm:$0xff]
  %v21 = vld [vmem:[%s0 + $0x20] sm:$0xff]
  %v22 = vld [vmem:[%s0 + $0x28] sm:$0xff]
  %v23 = vld [vmem:[%s0 + $0x30] sm:$0xff]
  %v24 = vld [vmem:[%s0 + $0x38] sm:$0xff]
  %v25 = vld [vmem:[%s1] sm:$0xff]
  %v26 = vld [vmem:[%s1 + $0x8] sm:$0xff]
  %v27 = vld [vmem:[%s1 + $0x10] sm:$0xff]
  %v28 = vld [vmem:[%s1 + $0x18] sm:$0xff]
  %v29 = vld [vmem:[%s1 + $0x20] sm:$0xff]
  %v30 = vld [vmem:[%s1 + $0x28] sm:$0xff]
  %v31 = vld [vmem:[%s1 + $0x30] sm:$0xff]
  %v32 = vld [vmem:[%s1 + $0x38] sm:$0xff]
  %v33 = vadd.f32 %v17, %v25
  %v34 = vadd.f32 %v18, %v26
  %v35 = vadd.f32 %v19, %v27
  %v36 = vadd.f32 %v20, %v28
  %v37 = vadd.f32 %v21, %v29
  %v38 = vadd.f32 %v22, %v30
  %v39 = vadd.f32 %v23, %v31
  %v40 = vadd.f32 %v24, %v32
  %v41 = vld [vmem:[%s2] sm:$0xff]
  %v42 = vld [vmem:[%s2 + $0x8] sm:$0xff]
  %v43 = vld [vmem:[%s2 + $0x10] sm:$0xff]
  %v44 = vld [vmem:[%s2 + $0x18] sm:$0xff]
  %v45 = vld [vmem:[%s2 + $0x20] sm:$0xff]
  %v46 = vld [vmem:[%s2 + $0x28] sm:$0xff]
  %v47 = vld [vmem:[%s2 + $0x30] sm:$0xff]
  %v48 = vld [vmem:[%s2 + $0x38] sm:$0xff]
  %v49 = vadd.f32 %v33, %v41
  %v50 = vadd.f32 %v34, %v42
  %v51 = vadd.f32 %v35, %v43
  %v52 = vadd.f32 %v36, %v44
  %v53 = vadd.f32 %v37, %v45
  %v54 = vadd.f32 %v38, %v46
  %v55 = vadd.f32 %v39, %v47
  %v56 = vadd.f32 %v40, %v48
  %v57 = vld [vmem:[%s3] sm:$0xff]
  %v58 = vld [vmem:[%s3 + $0x8] sm:$0xff]
  %v59 = vld [vmem:[%s3 + $0x10] sm:$0xff]
  %v60 = vld [vmem:[%s3 + $0x18] sm:$0xff]
  %v61 = vld [vmem:[%s3 + $0x20] sm:$0xff]
  %v62 = vld [vmem:[%s3 + $0x28] sm:$0xff]
  %v63 = vld [vmem:[%s3 + $0x30] sm:$0xff]
  %v64 = vld [vmem:[%s3 + $0x38] sm:$0xff]
  %v65 = vadd.f32 %v49, %v57
  %v66 = vadd.f32 %v50, %v58
  %v67 = vadd.f32 %v51, %v59
  %v68 = vadd.f32 %v52, %v60
  %v69 = vadd.f32 %v53, %v61
  %v70 = vadd.f32 %v54, %v62
  %v71 = vadd.f32 %v55, %v63
  %v72 = vadd.f32 %v56, %v64
  %v73 = vmul.f32 %v65, 0.25
  %v74 = vmul.f32 %v66, 0.25
  %v75 = vmul.f32 %v67, 0.25
  %v76 = vmul.f32 %v68, 0.25
  %v77 = vmul.f32 %v69, 0.25
  %v78 = vmul.f32 %v70, 0.25
  %v79 = vmul.f32 %v71, 0.25
  %v80 = vmul.f32 %v72, 0.25
  %81 = vst [vmem:[%s4] sm:$0xff] %v73
  %82 = vst [vmem:[%s4 + $0x8] sm:$0xff] %v74
  %83 = vst [vmem:[%s4 + $0x10] sm:$0xff] %v75
  %84 = vst [vmem:[%s4 + $0x18] sm:$0xff] %v76
  %85 = vst [vmem:[%s4 + $0x20] sm:$0xff] %v77
  %86 = vst [vmem:[%s4 + $0x28] sm:$0xff] %v78
  %87 = vst [vmem:[%s4 + $0x30] sm:$0xff] %v79
  %88 = vst [vmem:[%s4 + $0x38] sm:$0xff] %v80
  // Predicated region
  $region18: #{basic_block_forward.54} parent=0 // pred_check
    _
  $region19: #{basic_block_forward.54} parent=0 // pred_check_branch
    %90 = sbr.rel (0) target = $region21
  $region20: #{basic_block_forward.54} parent=0 // pred_region
    _
  $region21: #{basic_block_forward.54} parent=0 // pred_fallthru
    _
  // Predicated region
  $region22: #{basic_block_forward.54} parent=0 // pred_check
    _
  $region23: #{basic_block_forward.54} parent=0 // pred_check_branch
    %92 = sbr.rel (0) target = $region25
  $region24: #{basic_block_forward.54} parent=0 // pred_region
    _
  $region25: #{basic_block_forward.54} parent=0 // pred_fallthru
    _

// kernel: basic_block_forward.57
$region0: #{basic_block_forward.57}
  #allocation0 [shape = 'u32[]', space=smem, size = 0x4, offset = 0x4, fixed_abs, tag = 'smem constant byte address 0x4 - core index']
  #allocation1 [shape = 'u32[144,128]{1,0:T(1,128)}', space=vmem, size = 0x12000, scoped, tag = 'internal scratch']
  %s0 = inlined_call_operand.vmem [shape: f32[32,256], index: 0, kind: input, shape index: {}]
  %s1 = inlined_call_operand.vmem [shape: f32[256,512], index: 1, kind: input, shape index: {}]
  %s2 = inlined_call_operand.vmem [shape: f32[1,512], index: 2, kind: input, shape index: {}]
  %s3 = inlined_call_operand.vmem [shape: f32[32,512], index: 3, kind: output, shape index: {}]
  %s4 = sld [smem:[#allocation0]]
  $region22: #{basic_block_forward.57} parent=0
    _
  %s6 = ssub.s32 1, %s4
  %s7 = scalar_select 0, %s6, %s4
  // Predicated region
  $region2: #{basic_block_forward.57} parent=0 // pred_check
    _
  $region3: #{basic_block_forward.57} parent=0 // pred_check_branch
    %9 = sbr.rel (0) target = $region5
  $region4: #{basic_block_forward.57} parent=0 // pred_region
    _
  $region5: #{basic_block_forward.57} parent=0 // pred_fallthru
    _
  // Predicated region
  $region6: #{basic_block_forward.57} parent=0 // pred_check
    _
  $region7: #{basic_block_forward.57} parent=0 // pred_check_branch
    %11 = sbr.rel (0) target = $region9
  $region8: #{basic_block_forward.57} parent=0 // pred_region
    _
  $region9: #{basic_block_forward.57} parent=0 // pred_fallthru
    _
  // Predicated region
  $region10: #{basic_block_forward.57} parent=0 // pred_check
    _
  $region11: #{basic_block_forward.57} parent=0 // pred_check_branch
    %13 = sbr.rel (0) target = $region13
  $region12: #{basic_block_forward.57} parent=0 // pred_region
    _
  $region13: #{basic_block_forward.57} parent=0 // pred_fallthru
    _
  %v14 = vld [vmem:[%s0] sm:$0xff]
  %v15 = vld [vmem:[%s0 + $0x8] sm:$0xff]
  %v16 = vld [vmem:[%s0 + $0x10] sm:$0xff]
  %v17 = vld [vmem:[%s0 + $0x18] sm:$0xff]
  %v18 = vld [vmem:[%s0 + $0x20] sm:$0xff]
  %v19 = vld [vmem:[%s0 + $0x28] sm:$0xff]
  %v20 = vld [vmem:[%s0 + $0x30] sm:$0xff]
  %v21 = vld [vmem:[%s0 + $0x38] sm:$0xff]
  %v22 = vld [vmem:[%s1] sm:$0xff]
  %v23 = vld [vmem:[%s1 + $0x8] sm:$0xff]
  %v24 = vld [vmem:[%s1 + $0x10] sm:$0xff]
  %v25 = vld [vmem:[%s1 + $0x18] sm:$0xff]
  %v26 = vld [vmem:[%s1 + $0x20] sm:$0xff]
  %v27 = vld [vmem:[%s1 + $0x28] sm:$0xff]
  %v28 = vld [vmem:[%s1 + $0x30] sm:$0xff]
  %v29 = vld [vmem:[%s1 + $0x38] sm:$0xff]
  %v30 = vld [vmem:[%s1 + $0x40] sm:$0xff]
  %v31 = vld [vmem:[%s1 + $0x48] sm:$0xff]
  %v32 = vld [vmem:[%s1 + $0x50] sm:$0xff]
  %v33 = vld [vmem:[%s1 + $0x58] sm:$0xff]
  %v34 = vld [vmem:[%s1 + $0x60] sm:$0xff]
  %v35 = vld [vmem:[%s1 + $0x68] sm:$0xff]
  %v36 = vld [vmem:[%s1 + $0x70] sm:$0xff]
  %v37 = vld [vmem:[%s1 + $0x78] sm:$0xff]
  %v38 = vld [vmem:[%s1 + $0x80] sm:$0xff]
  %v39 = vld [vmem:[%s1 + $0x88] sm:$0xff]
  %v40 = vld [vmem:[%s1 + $0x90] sm:$0xff]
  %v41 = vld [vmem:[%s1 + $0x98] sm:$0xff]
  %v42 = vld [vmem:[%s1 + $0xa0] sm:$0xff]
  %v43 = vld [vmem:[%s1 + $0xa8] sm:$0xff]
  %v44 = vld [vmem:[%s1 + $0xb0] sm:$0xff]
  %v45 = vld [vmem:[%s1 + $0xb8] sm:$0xff]
  %v46 = vld [vmem:[%s1 + $0xc0] sm:$0xff]
  %v47 = vld [vmem:[%s1 + $0xc8] sm:$0xff]
  %v48 = vld [vmem:[%s1 + $0xd0] sm:$0xff]
  %v49 = vld [vmem:[%s1 + $0xd8] sm:$0xff]
  %v50 = vld [vmem:[%s1 + $0xe0] sm:$0xff]
  %v51 = vld [vmem:[%s1 + $0xe8] sm:$0xff]
  %v52 = vld [vmem:[%s1 + $0xf0] sm:$0xff]
  %v53 = vld [vmem:[%s1 + $0xf8] sm:$0xff]
  %v54 = vld [vmem:[%s1 + $0x100] sm:$0xff]
  %v55 = vld [vmem:[%s1 + $0x108] sm:$0xff]
  %v56 = vld [vmem:[%s1 + $0x110] sm:$0xff]
  %v57 = vld [vmem:[%s1 + $0x118] sm:$0xff]
  %v58 = vld [vmem:[%s1 + $0x120] sm:$0xff]
  %v59 = vld [vmem:[%s1 + $0x128] sm:$0xff]
  %v60 = vld [vmem:[%s1 + $0x130] sm:$0xff]
  %v61 = vld [vmem:[%s1 + $0x138] sm:$0xff]
  %v62 = vld [vmem:[%s1 + $0x140] sm:$0xff]
  %v63 = vld [vmem:[%s1 + $0x148] sm:$0xff]
  %v64 = vld [vmem:[%s1 + $0x150] sm:$0xff]
  %v65 = vld [vmem:[%s1 + $0x158] sm:$0xff]
  %v66 = vld [vmem:[%s1 + $0x160] sm:$0xff]
  %v67 = vld [vmem:[%s1 + $0x168] sm:$0xff]
  %v68 = vld [vmem:[%s1 + $0x170] sm:$0xff]
  %v69 = vld [vmem:[%s1 + $0x178] sm:$0xff]
  %v70 = vld [vmem:[%s1 + $0x180] sm:$0xff]
  %v71 = vld [vmem:[%s1 + $0x188] sm:$0xff]
  %v72 = vld [vmem:[%s1 + $0x190] sm:$0xff]
  %v73 = vld [vmem:[%s1 + $0x198] sm:$0xff]
  %v74 = vld [vmem:[%s1 + $0x1a0] sm:$0xff]
  %v75 = vld [vmem:[%s1 + $0x1a8] sm:$0xff]
  %v76 = vld [vmem:[%s1 + $0x1b0] sm:$0xff]
  %v77 = vld [vmem:[%s1 + $0x1b8] sm:$0xff]
  %v78 = vld [vmem:[%s1 + $0x1c0] sm:$0xff]
  %v79 = vld [vmem:[%s1 + $0x1c8] sm:$0xff]
  %v80 = vld [vmem:[%s1 + $0x1d0] sm:$0xff]
  %v81 = vld [vmem:[%s1 + $0x1d8] sm:$0xff]
  %v82 = vld [vmem:[%s1 + $0x1e0] sm:$0xff]
  %v83 = vld [vmem:[%s1 + $0x1e8] sm:$0xff]
  %v84 = vld [vmem:[%s1 + $0x1f0] sm:$0xff]
  %v85 = vld [vmem:[%s1 + $0x1f8] sm:$0xff]
  %v86 = vld [vmem:[%s1 + $0x200] sm:$0xff]
  %v87 = vld [vmem:[%s1 + $0x208] sm:$0xff]
  %v88 = vld [vmem:[%s1 + $0x210] sm:$0xff]
  %v89 = vld [vmem:[%s1 + $0x218] sm:$0xff]
  %v90 = vld [vmem:[%s1 + $0x220] sm:$0xff]
  %v91 = vld [vmem:[%s1 + $0x228] sm:$0xff]
  %v92 = vld [vmem:[%s1 + $0x230] sm:$0xff]
  %v93 = vld [vmem:[%s1 + $0x238] sm:$0xff]
  %v94 = vld [vmem:[%s1 + $0x240] sm:$0xff]
  %v95 = vld [vmem:[%s1 + $0x248] sm:$0xff]
  %v96 = vld [vmem:[%s1 + $0x250] sm:$0xff]
  %v97 = vld [vmem:[%s1 + $0x258] sm:$0xff]
  %v98 = vld [vmem:[%s1 + $0x260] sm:$0xff]
  %v99 = vld [vmem:[%s1 + $0x268] sm:$0xff]
  %v100 = vld [vmem:[%s1 + $0x270] sm:$0xff]
  %v101 = vld [vmem:[%s1 + $0x278] sm:$0xff]
  %v102 = vld [vmem:[%s1 + $0x280] sm:$0xff]
  %v103 = vld [vmem:[%s1 + $0x288] sm:$0xff]
  %v104 = vld [vmem:[%s1 + $0x290] sm:$0xff]
  %v105 = vld [vmem:[%s1 + $0x298] sm:$0xff]
  %v106 = vld [vmem:[%s1 + $0x2a0] sm:$0xff]
  %v107 = vld [vmem:[%s1 + $0x2a8] sm:$0xff]
  %v108 = vld [vmem:[%s1 + $0x2b0] sm:$0xff]
  %v109 = vld [vmem:[%s1 + $0x2b8] sm:$0xff]
  %v110 = vld [vmem:[%s1 + $0x2c0] sm:$0xff]
  %v111 = vld [vmem:[%s1 + $0x2c8] sm:$0xff]
  %v112 = vld [vmem:[%s1 + $0x2d0] sm:$0xff]
  %v113 = vld [vmem:[%s1 + $0x2d8] sm:$0xff]
  %v114 = vld [vmem:[%s1 + $0x2e0] sm:$0xff]
  %v115 = vld [vmem:[%s1 + $0x2e8] sm:$0xff]
  %v116 = vld [vmem:[%s1 + $0x2f0] sm:$0xff]
  %v117 = vld [vmem:[%s1 + $0x2f8] sm:$0xff]
  %v118 = vld [vmem:[%s1 + $0x300] sm:$0xff]
  %v119 = vld [vmem:[%s1 + $0x308] sm:$0xff]
  %v120 = vld [vmem:[%s1 + $0x310] sm:$0xff]
  %v121 = vld [vmem:[%s1 + $0x318] sm:$0xff]
  %v122 = vld [vmem:[%s1 + $0x320] sm:$0xff]
  %v123 = vld [vmem:[%s1 + $0x328] sm:$0xff]
  %v124 = vld [vmem:[%s1 + $0x330] sm:$0xff]
  %v125 = vld [vmem:[%s1 + $0x338] sm:$0xff]
  %v126 = vld [vmem:[%s1 + $0x340] sm:$0xff]
  %v127 = vld [vmem:[%s1 + $0x348] sm:$0xff]
  %v128 = vld [vmem:[%s1 + $0x350] sm:$0xff]
  %v129 = vld [vmem:[%s1 + $0x358] sm:$0xff]
  %v130 = vld [vmem:[%s1 + $0x360] sm:$0xff]
  %v131 = vld [vmem:[%s1 + $0x368] sm:$0xff]
  %v132 = vld [vmem:[%s1 + $0x370] sm:$0xff]
  %v133 = vld [vmem:[%s1 + $0x378] sm:$0xff]
  %v134 = vld [vmem:[%s1 + $0x380] sm:$0xff]
  %v135 = vld [vmem:[%s1 + $0x388] sm:$0xff]
  %v136 = vld [vmem:[%s1 + $0x390] sm:$0xff]
  %v137 = vld [vmem:[%s1 + $0x398] sm:$0xff]
  %v138 = vld [vmem:[%s1 + $0x3a0] sm:$0xff]
  %v139 = vld [vmem:[%s1 + $0x3a8] sm:$0xff]
  %v140 = vld [vmem:[%s1 + $0x3b0] sm:$0xff]
  %v141 = vld [vmem:[%s1 + $0x3b8] sm:$0xff]
  %v142 = vld [vmem:[%s1 + $0x3c0] sm:$0xff]
  %v143 = vld [vmem:[%s1 + $0x3c8] sm:$0xff]
  %v144 = vld [vmem:[%s1 + $0x3d0] sm:$0xff]
  %v145 = vld [vmem:[%s1 + $0x3d8] sm:$0xff]
  %v146 = vld [vmem:[%s1 + $0x3e0] sm:$0xff]
  %v147 = vld [vmem:[%s1 + $0x3e8] sm:$0xff]
  %v148 = vld [vmem:[%s1 + $0x3f0] sm:$0xff]
  %v149 = vld [vmem:[%s1 + $0x3f8] sm:$0xff]
  %v150 = vld [vmem:[%s2] sm:$0xf]
  %v152 = vlaneseq
  %v153 = vshrl.u32 %v152, 7
  %v154 = vsub.s32 0, %v153
  %v155 = vrot.slane %v150, %v154
  %v156 = vlaneseq
  %v157 = vshrl.u32 %v156, 7
  %v158 = vsub.s32 1, %v157
  %v159 = vrot.slane %v150, %v158
  %v160 = vlaneseq
  %v161 = vshrl.u32 %v160, 7
  %v162 = vsub.s32 2, %v161
  %v163 = vrot.slane %v150, %v162
  %v164 = vlaneseq
  %v165 = vshrl.u32 %v164, 7
  %v166 = vsub.s32 3, %v165
  %v167 = vrot.slane %v150, %v166
  %172 = vmatprep.subr.mxu0 %v23
  %173 = vmatpush1.msra.mxu0 %v22
  %174 = vmatprep.subr.mxu0 %v27
  %175 = vmatpush1.msra.mxu0 %v26
  %176 = vmatprep.subr.mxu0 %v31
  %177 = vmatpush1.msra.mxu0 %v30
  %178 = vmatprep.subr.mxu0 %v35
  %179 = vmatpush1.msra.mxu0 %v34
  %180 = vmatprep.subr.mxu0 %v39
  %181 = vmatpush1.msra.mxu0 %v38
  %182 = vmatprep.subr.mxu0 %v43
  %183 = vmatpush1.msra.mxu0 %v42
  %184 = vmatprep.subr.mxu0 %v47
  %185 = vmatpush1.msra.mxu0 %v46
  %186 = vmatprep.subr.mxu0 %v51
  %187 = vmatpush1.msra.mxu0 %v50
  %188 = vmatprep.subr.mxu0 %v55
  %189 = vmatpush1.msra.mxu0 %v54
  %190 = vmatprep.subr.mxu0 %v59
  %191 = vmatpush1.msra.mxu0 %v58
  %192 = vmatprep.subr.mxu0 %v63
  %193 = vmatpush1.msra.mxu0 %v62
  %194 = vmatprep.subr.mxu0 %v67
  %195 = vmatpush1.msra.mxu0 %v66
  %196 = vmatprep.subr.mxu0 %v71
  %197 = vmatpush1.msra.mxu0 %v70
  %198 = vmatprep.subr.mxu0 %v75
  %199 = vmatpush1.msra.mxu0 %v74
  %200 = vmatprep.subr.mxu0 %v79
  %201 = vmatpush1.msra.mxu0 %v78
  %202 = vmatprep.subr.mxu0 %v83
  %203 = vmatpush1.msra.mxu0 %v82
  %204 = vmatprep.subr.mxu0 %v87
  %205 = vmatpush1.msra.mxu0 %v86
  %206 = vmatprep.subr.mxu0 %v91
  %207 = vmatpush1.msra.mxu0 %v90
  %208 = vmatprep.subr.mxu0 %v95
  %209 = vmatpush1.msra.mxu0 %v94
  %210 = vmatprep.subr.mxu0 %v99
  %211 = vmatpush1.msra.mxu0 %v98
  %212 = vmatprep.subr.mxu0 %v103
  %213 = vmatpush1.msra.mxu0 %v102
  %214 = vmatprep.subr.mxu0 %v107
  %215 = vmatpush1.msra.mxu0 %v106
  %216 = vmatprep.subr.mxu0 %v111
  %217 = vmatpush1.msra.mxu0 %v110
  %218 = vmatprep.subr.mxu0 %v115
  %219 = vmatpush1.msra.mxu0 %v114
  %220 = vmatprep.subr.mxu0 %v119
  %221 = vmatpush1.msra.mxu0 %v118
  %222 = vmatprep.subr.mxu0 %v123
  %223 = vmatpush1.msra.mxu0 %v122
  %224 = vmatprep.subr.mxu0 %v127
  %225 = vmatpush1.msra.mxu0 %v126
  %226 = vmatprep.subr.mxu0 %v131
  %227 = vmatpush1.msra.mxu0 %v130
  %228 = vmatprep.subr.mxu0 %v135
  %229 = vmatpush1.msra.mxu0 %v134
  %230 = vmatprep.subr.mxu0 %v139
  %231 = vmatpush1.msra.mxu0 %v138
  %232 = vmatprep.subr.mxu0 %v143
  %233 = vmatpush1.msra.mxu0 %v142
  %234 = vmatprep.subr.mxu0 %v147
  %235 = vmatpush1.msra.mxu0 %v146
  %236 = vmatprep.mubr.f32.mxu0 %v15
  %237 = vmatmul.mubr.f32.gmra.mrb[0].mxu0 %v14
  %v238 = vpop.f32.mrb[0].mxu0
  %v239 = vadd.f32 %v155, %v238
  %v240 = vpop.f32.mrb[0].mxu0
  %v241 = vadd.f32 %v159, %v240
  %242 = vmatprep.mubr.f32.mxu0 %v17
  %243 = vmatmul.mubr.f32.gmra.mrb[0].mxu0 %v16
  %v244 = vpop.f32.mrb[0].mxu0
  %v245 = vadd.f32 %v155, %v244
  %v246 = vpop.f32.mrb[0].mxu0
  %v247 = vadd.f32 %v159, %v246
  %248 = vmatprep.mubr.f32.mxu0 %v19
  %249 = vmatmul.mubr.f32.gmra.mrb[0].mxu0 %v18
  %v250 = vpop.f32.mrb[0].mxu0
  %v251 = vadd.f32 %v155, %v250
  %v252 = vpop.f32.mrb[0].mxu0
  %v253 = vadd.f32 %v159, %v252
  %254 = vmatprep.mubr.f32.mxu0 %v21
  %255 = vmatmul.mubr.f32.gmra.mrb[0].mxu0 %v20
  %v256 = vpop.f32.mrb[0].mxu0
  %v257 = vadd.f32 %v155, %v256
  %v258 = vpop.f32.mrb[0].mxu0
  %v259 = vadd.f32 %v159, %v258
  %260 = vdwg.mxu0
  %261 = vmatprep.subr.mxu0 %v25
  %262 = vmatpush1.msra.mxu0 %v24
  %263 = vmatprep.subr.mxu0 %v29
  %264 = vmatpush1.msra.mxu0 %v28
  %265 = vmatprep.subr.mxu0 %v33
  %266 = vmatpush1.msra.mxu0 %v32
  %267 = vmatprep.subr.mxu0 %v37
  %268 = vmatpush1.msra.mxu0 %v36
  %269 = vmatprep.subr.mxu0 %v41
  %270 = vmatpush1.msra.mxu0 %v40
  %271 = vmatprep.subr.mxu0 %v45
  %272 = vmatpush1.msra.mxu0 %v44
  %273 = vmatprep.subr.mxu0 %v49
  %274 = vmatpush1.msra.mxu0 %v48
  %275 = vmatprep.subr.mxu0 %v53
  %276 = vmatpush1.msra.mxu0 %v52
  %277 = vmatprep.subr.mxu0 %v57
  %278 = vmatpush1.msra.mxu0 %v56
  %279 = vmatprep.subr.mxu0 %v61
  %280 = vmatpush1.msra.mxu0 %v60
  %281 = vmatprep.subr.mxu0 %v65
  %282 = vmatpush1.msra.mxu0 %v64
  %283 = vmatprep.subr.mxu0 %v69
  %284 = vmatpush1.msra.mxu0 %v68
  %285 = vmatprep.subr.mxu0 %v73
  %286 = vmatpush1.msra.mxu0 %v72
  %287 = vmatprep.subr.mxu0 %v77
  %288 = vmatpush1.msra.mxu0 %v76
  %289 = vmatprep.subr.mxu0 %v81
  %290 = vmatpush1.msra.mxu0 %v80
  %291 = vmatprep.subr.mxu0 %v85
  %292 = vmatpush1.msra.mxu0 %v84
  %293 = vmatprep.subr.mxu0 %v89
  %294 = vmatpush1.msra.mxu0 %v88
  %295 = vmatprep.subr.mxu0 %v93
  %296 = vmatpush1.msra.mxu0 %v92
  %297 = vmatprep.subr.mxu0 %v97
  %298 = vmatpush1.msra.mxu0 %v96
  %299 = vmatprep.subr.mxu0 %v101
  %300 = vmatpush1.msra.mxu0 %v100
  %301 = vmatprep.subr.mxu0 %v105
  %302 = vmatpush1.msra.mxu0 %v104
  %303 = vmatprep.subr.mxu0 %v109
  %304 = vmatpush1.msra.mxu0 %v108
  %305 = vmatprep.subr.mxu0 %v113
  %306 = vmatpush1.msra.mxu0 %v112
  %307 = vmatprep.subr.mxu0 %v117
  %308 = vmatpush1.msra.mxu0 %v116
  %309 = vmatprep.subr.mxu0 %v121
  %310 = vmatpush1.msra.mxu0 %v120
  %311 = vmatprep.subr.mxu0 %v125
  %312 = vmatpush1.msra.mxu0 %v124
  %313 = vmatprep.subr.mxu0 %v129
  %314 = vmatpush1.msra.mxu0 %v128
  %315 = vmatprep.subr.mxu0 %v133
  %316 = vmatpush1.msra.mxu0 %v132
  %317 = vmatprep.subr.mxu0 %v137
  %318 = vmatpush1.msra.mxu0 %v136
  %319 = vmatprep.subr.mxu0 %v141
  %320 = vmatpush1.msra.mxu0 %v140
  %321 = vmatprep.subr.mxu0 %v145
  %322 = vmatpush1.msra.mxu0 %v144
  %323 = vmatprep.subr.mxu0 %v149
  %324 = vmatpush1.msra.mxu0 %v148
  %325 = vmatprep.mubr.f32.mxu0 %v15
  %326 = vmatmul.mubr.f32.gmra.mrb[0].mxu0 %v14
  %v327 = vpop.f32.mrb[0].mxu0
  %v328 = vadd.f32 %v163, %v327
  %v329 = vpop.f32.mrb[0].mxu0
  %v330 = vadd.f32 %v167, %v329
  %331 = vmatprep.mubr.f32.mxu0 %v17
  %332 = vmatmul.mubr.f32.gmra.mrb[0].mxu0 %v16
  %v333 = vpop.f32.mrb[0].mxu0
  %v334 = vadd.f32 %v163, %v333
  %v335 = vpop.f32.mrb[0].mxu0
  %v336 = vadd.f32 %v167, %v335
  %337 = vmatprep.mubr.f32.mxu0 %v19
  %338 = vmatmul.mubr.f32.gmra.mrb[0].mxu0 %v18
  %v339 = vpop.f32.mrb[0].mxu0
  %v340 = vadd.f32 %v163, %v339
  %v341 = vpop.f32.mrb[0].mxu0
  %v342 = vadd.f32 %v167, %v341
  %343 = vmatprep.mubr.f32.mxu0 %v21
  %344 = vmatmul.mubr.f32.gmra.mrb[0].mxu0 %v20
  %v345 = vpop.f32.mrb[0].mxu0
  %v346 = vadd.f32 %v163, %v345
  %v347 = vpop.f32.mrb[0].mxu0
  %v348 = vadd.f32 %v167, %v347
  %349 = vdwg.mxu0
  %350 = vst [vmem:[%s3] sm:$0xff] %v239
  %351 = vst [vmem:[%s3 + $0x8] sm:$0xff] %v241
  %352 = vst [vmem:[%s3 + $0x10] sm:$0xff] %v328
  %353 = vst [vmem:[%s3 + $0x18] sm:$0xff] %v330
  %354 = vst [vmem:[%s3 + $0x20] sm:$0xff] %v245
  %355 = vst [vmem:[%s3 + $0x28] sm:$0xff] %v247
  %356 = vst [vmem:[%s3 + $0x30] sm:$0xff] %v334
  %357 = vst [vmem:[%s3 + $0x38] sm:$0xff] %v336
  %358 = vst [vmem:[%s3 + $0x40] sm:$0xff] %v251
  %359 = vst [vmem:[%s3 + $0x48] sm:$0xff] %v253
  %360 = vst [vmem:[%s3 + $0x50] sm:$0xff] %v340
  %361 = vst [vmem:[%s3 + $0x58] sm:$0xff] %v342
  %362 = vst [vmem:[%s3 + $0x60] sm:$0xff] %v257
  %363 = vst [vmem:[%s3 + $0x68] sm:$0xff] %v259
  %364 = vst [vmem:[%s3 + $0x70] sm:$0xff] %v346
  %365 = vst [vmem:[%s3 + $0x78] sm:$0xff] %v348
  // Predicated region
  $region14: #{basic_block_forward.57} parent=0 // pred_check
    _
  $region15: #{basic_block_forward.57} parent=0 // pred_check_branch
    %367 = sbr.rel (0) target = $region17
  $region16: #{basic_block_forward.57} parent=0 // pred_region
    _
  $region17: #{basic_block_forward.57} parent=0 // pred_fallthru
    _
  // Predicated region
  $region18: #{basic_block_forward.57} parent=0 // pred_check
    _
  $region19: #{basic_block_forward.57} parent=0 // pred_check_branch
    %369 = sbr.rel (0) target = $region21
  $region20: #{basic_block_forward.57} parent=0 // pred_region
    _
  $region21: #{basic_block_forward.57} parent=0 // pred_fallthru
    _

// kernel: basic_block_forward.59
$region0: #{basic_block_forward.59}
  #allocation0 [shape = 'u32[]', space=smem, size = 0x4, offset = 0x4, fixed_abs, tag = 'smem constant byte address 0x4 - core index']
  #allocation1 [shape = 'u32[144,128]{1,0:T(1,128)}', space=vmem, size = 0x12000, scoped, tag = 'internal scratch']
  %s0 = inlined_call_operand.vmem [shape: f32[32,2304], index: 0, kind: input, shape index: {}]
  %s1 = inlined_call_operand.vmem [shape: f32[2304,256], index: 1, kind: input, shape index: {}]
  %s2 = inlined_call_operand.vmem [shape: f32[1,256], index: 2, kind: input, shape index: {}]
  %s3 = inlined_call_operand.vmem [shape: f32[32,256], index: 3, kind: output, shape index: {}]
  %s4 = sld [smem:[#allocation0]]
  $region22: #{basic_block_forward.59} parent=0
    _
  %s6 = ssub.s32 1, %s4
  %s7 = scalar_select 0, %s6, %s4
  // Predicated region
  $region2: #{basic_block_forward.59} parent=0 // pred_check
    _
  $region3: #{basic_block_forward.59} parent=0 // pred_check_branch
    %9 = sbr.rel (0) target = $region5
  $region4: #{basic_block_forward.59} parent=0 // pred_region
    _
  $region5: #{basic_block_forward.59} parent=0 // pred_fallthru
    _
  // Predicated region
  $region6: #{basic_block_forward.59} parent=0 // pred_check
    _
  $region7: #{basic_block_forward.59} parent=0 // pred_check_branch
    %11 = sbr.rel (0) target = $region9
  $region8: #{basic_block_forward.59} parent=0 // pred_region
    _
  $region9: #{basic_block_forward.59} parent=0 // pred_fallthru
    _
  // Predicated region
  $region10: #{basic_block_forward.59} parent=0 // pred_check
    _
  $region11: #{basic_block_forward.59} parent=0 // pred_check_branch
    %13 = sbr.rel (0) target = $region13
  $region12: #{basic_block_forward.59} parent=0 // pred_region
    _
  $region13: #{basic_block_forward.59} parent=0 // pred_fallthru
    _
  %v14 = vld [vmem:[%s0] sm:$0xff]
  %v15 = vld [vmem:[%s0 + $0x8] sm:$0xff]
  %v16 = vld [vmem:[%s0 + $0x10] sm:$0xff]
  %v17 = vld [vmem:[%s0 + $0x18] sm:$0xff]
  %v18 = vld [vmem:[%s0 + $0x20] sm:$0xff]
  %v19 = vld [vmem:[%s0 + $0x28] sm:$0xff]
  %v20 = vld [vmem:[%s0 + $0x30] sm:$0xff]
  %v21 = vld [vmem:[%s0 + $0x38] sm:$0xff]
  %v22 = vld [vmem:[%s0 + $0x40] sm:$0xff]
  %v23 = vld [vmem:[%s0 + $0x48] sm:$0xff]
  %v24 = vld [vmem:[%s0 + $0x50] sm:$0xff]
  %v25 = vld [vmem:[%s0 + $0x58] sm:$0xff]
  %v26 = vld [vmem:[%s0 + $0x60] sm:$0xff]
  %v27 = vld [vmem:[%s0 + $0x68] sm:$0xff]
  %v28 = vld [vmem:[%s0 + $0x70] sm:$0xff]
  %v29 = vld [vmem:[%s0 + $0x78] sm:$0xff]
  %v30 = vld [vmem:[%s0 + $0x80] sm:$0xff]
  %v31 = vld [vmem:[%s0 + $0x88] sm:$0xff]
  %v32 = vld [vmem:[%s0 + $0x90] sm:$0xff]
  %v33 = vld [vmem:[%s0 + $0x98] sm:$0xff]
  %v34 = vld [vmem:[%s0 + $0xa0] sm:$0xff]
  %v35 = vld [vmem:[%s0 + $0xa8] sm:$0xff]
  %v36 = vld [vmem:[%s0 + $0xb0] sm:$0xff]
  %v37 = vld [vmem:[%s0 + $0xb8] sm:$0xff]
  %v38 = vld [vmem:[%s0 + $0xc0] sm:$0xff]
  %v39 = vld [vmem:[%s0 + $0xc8] sm:$0xff]
  %v40 = vld [vmem:[%s0 + $0xd0] sm:$0xff]
  %v41 = vld [vmem:[%s0 + $0xd8] sm:$0xff]
  %v42 = vld [vmem:[%s0 + $0xe0] sm:$0xff]
  %v43 = vld [vmem:[%s0 + $0xe8] sm:$0xff]
  %v44 = vld [vmem:[%s0 + $0xf0] sm:$0xff]
  %v45 = vld [vmem:[%s0 + $0xf8] sm:$0xff]
  %v46 = vld [vmem:[%s0 + $0x100] sm:$0xff]
  %v47 = vld [vmem:[%s0 + $0x108] sm:$0xff]
  %v48 = vld [vmem:[%s0 + $0x110] sm:$0xff]
  %v49 = vld [vmem:[%s0 + $0x118] sm:$0xff]
  %v50 = vld [vmem:[%s0 + $0x120] sm:$0xff]
  %v51 = vld [vmem:[%s0 + $0x128] sm:$0xff]
  %v52 = vld [vmem:[%s0 + $0x130] sm:$0xff]
  %v53 = vld [vmem:[%s0 + $0x138] sm:$0xff]
  %v54 = vld [vmem:[%s0 + $0x140] sm:$0xff]
  %v55 = vld [vmem:[%s0 + $0x148] sm:$0xff]
  %v56 = vld [vmem:[%s0 + $0x150] sm:$0xff]
  %v57 = vld [vmem:[%s0 + $0x158] sm:$0xff]
  %v58 = vld [vmem:[%s0 + $0x160] sm:$0xff]
  %v59 = vld [vmem:[%s0 + $0x168] sm:$0xff]
  %v60 = vld [vmem:[%s0 + $0x170] sm:$0xff]
  %v61 = vld [vmem:[%s0 + $0x178] sm:$0xff]
  %v62 = vld [vmem:[%s0 + $0x180] sm:$0xff]
  %v63 = vld [vmem:[%s0 + $0x188] sm:$0xff]
  %v64 = vld [vmem:[%s0 + $0x190] sm:$0xff]
  %v65 = vld [vmem:[%s0 + $0x198] sm:$0xff]
  %v66 = vld [vmem:[%s0 + $0x1a0] sm:$0xff]
  %v67 = vld [vmem:[%s0 + $0x1a8] sm:$0xff]
  %v68 = vld [vmem:[%s0 + $0x1b0] sm:$0xff]
  %v69 = vld [vmem:[%s0 + $0x1b8] sm:$0xff]
  %v70 = vld [vmem:[%s0 + $0x1c0] sm:$0xff]
  %v71 = vld [vmem:[%s0 + $0x1c8] sm:$0xff]
  %v72 = vld [vmem:[%s0 + $0x1d0] sm:$0xff]
  %v73 = vld [vmem:[%s0 + $0x1d8] sm:$0xff]
  %v74 = vld [vmem:[%s0 + $0x1e0] sm:$0xff]
  %v75 = vld [vmem:[%s0 + $0x1e8] sm:$0xff]
  %v76 = vld [vmem:[%s0 + $0x1f0] sm:$0xff]
  %v77 = vld [vmem:[%s0 + $0x1f8] sm:$0xff]
  %v78 = vld [vmem:[%s0 + $0x200] sm:$0xff]
  %v79 = vld [vmem:[%s0 + $0x208] sm:$0xff]
  %v80 = vld [vmem:[%s0 + $0x210] sm:$0xff]
  %v81 = vld [vmem:[%s0 + $0x218] sm:$0xff]
  %v82 = vld [vmem:[%s0 + $0x220] sm:$0xff]
  %v83 = vld [vmem:[%s0 + $0x228] sm:$0xff]
  %v84 = vld [vmem:[%s0 + $0x230] sm:$0xff]
  %v85 = vld [vmem:[%s0 + $0x238] sm:$0xff]
  %v86 = vld [vmem:[%s1] sm:$0xff]
  %v87 = vld [vmem:[%s1 + $0x8] sm:$0xff]
  %v88 = vld [vmem:[%s1 + $0x10] sm:$0xff]
  %v89 = vld [vmem:[%s1 + $0x18] sm:$0xff]
  %v90 = vld [vmem:[%s1 + $0x20] sm:$0xff]
  %v91 = vld [vmem:[%s1 + $0x28] sm:$0xff]
  %v92 = vld [vmem:[%s1 + $0x30] sm:$0xff]
  %v93 = vld [vmem:[%s1 + $0x38] sm:$0xff]
  %v94 = vld [vmem:[%s1 + $0x40] sm:$0xff]
  %v95 = vld [vmem:[%s1 + $0x48] sm:$0xff]
  %v96 = vld [vmem:[%s1 + $0x50] sm:$0xff]
  %v97 = vld [vmem:[%s1 + $0x58] sm:$0xff]
  %v98 = vld [vmem:[%s1 + $0x60] sm:$0xff]
  %v99 = vld [vmem:[%s1 + $0x68] sm:$0xff]
  %v100 = vld [vmem:[%s1 + $0x70] sm:$0xff]
  %v101 = vld [vmem:[%s1 + $0x78] sm:$0xff]
  %v102 = vld [vmem:[%s1 + $0x80] sm:$0xff]
  %v103 = vld [vmem:[%s1 + $0x88] sm:$0xff]
  %v104 = vld [vmem:[%s1 + $0x90] sm:$0xff]
  %v105 = vld [vmem:[%s1 + $0x98] sm:$0xff]
  %v106 = vld [vmem:[%s1 + $0xa0] sm:$0xff]
  %v107 = vld [vmem:[%s1 + $0xa8] sm:$0xff]
  %v108 = vld [vmem:[%s1 + $0xb0] sm:$0xff]
  %v109 = vld [vmem:[%s1 + $0xb8] sm:$0xff]
  %v110 = vld [vmem:[%s1 + $0xc0] sm:$0xff]
  %v111 = vld [vmem:[%s1 + $0xc8] sm:$0xff]
  %v112 = vld [vmem:[%s1 + $0xd0] sm:$0xff]
  %v113 = vld [vmem:[%s1 + $0xd8] sm:$0xff]
  %v114 = vld [vmem:[%s1 + $0xe0] sm:$0xff]
  %v115 = vld [vmem:[%s1 + $0xe8] sm:$0xff]
  %v116 = vld [vmem:[%s1 + $0xf0] sm:$0xff]
  %v117 = vld [vmem:[%s1 + $0xf8] sm:$0xff]
  %v118 = vld [vmem:[%s1 + $0x100] sm:$0xff]
  %v119 = vld [vmem:[%s1 + $0x108] sm:$0xff]
  %v120 = vld [vmem:[%s1 + $0x110] sm:$0xff]
  %v121 = vld [vmem:[%s1 + $0x118] sm:$0xff]
  %v122 = vld [vmem:[%s1 + $0x120] sm:$0xff]
  %v123 = vld [vmem:[%s1 + $0x128] sm:$0xff]
  %v124 = vld [vmem:[%s1 + $0x130] sm:$0xff]
  %v125 = vld [vmem:[%s1 + $0x138] sm:$0xff]
  %v126 = vld [vmem:[%s1 + $0x140] sm:$0xff]
  %v127 = vld [vmem:[%s1 + $0x148] sm:$0xff]
  %v128 = vld [vmem:[%s1 + $0x150] sm:$0xff]
  %v129 = vld [vmem:[%s1 + $0x158] sm:$0xff]
  %v130 = vld [vmem:[%s1 + $0x160] sm:$0xff]
  %v131 = vld [vmem:[%s1 + $0x168] sm:$0xff]
  %v132 = vld [vmem:[%s1 + $0x170] sm:$0xff]
  %v133 = vld [vmem:[%s1 + $0x178] sm:$0xff]
  %v134 = vld [vmem:[%s1 + $0x180] sm:$0xff]
  %v135 = vld [vmem:[%s1 + $0x188] sm:$0xff]
  %v136 = vld [vmem:[%s1 + $0x190] sm:$0xff]
  %v137 = vld [vmem:[%s1 + $0x198] sm:$0xff]
  %v138 = vld [vmem:[%s1 + $0x1a0] sm:$0xff]
  %v139 = vld [vmem:[%s1 + $0x1a8] sm:$0xff]
  %v140 = vld [vmem:[%s1 + $0x1b0] sm:$0xff]
  %v141 = vld [vmem:[%s1 + $0x1b8] sm:$0xff]
  %v142 = vld [vmem:[%s1 + $0x1c0] sm:$0xff]
  %v143 = vld [vmem:[%s1 + $0x1c8] sm:$0xff]
  %v144 = vld [vmem:[%s1 + $0x1d0] sm:$0xff]
  %v145 = vld [vmem:[%s1 + $0x1d8] sm:$0xff]
  %v146 = vld [vmem:[%s1 + $0x1e0] sm:$0xff]
  %v147 = vld [vmem:[%s1 + $0x1e8] sm:$0xff]
  %v148 = vld [vmem:[%s1 + $0x1f0] sm:$0xff]
  %v149 = vld [vmem:[%s1 + $0x1f8] sm:$0xff]
  %v150 = vld [vmem:[%s1 + $0x200] sm:$0xff]
  %v151 = vld [vmem:[%s1 + $0x208] sm:$0xff]
  %v152 = vld [vmem:[%s1 + $0x210] sm:$0xff]
  %v153 = vld [vmem:[%s1 + $0x218] sm:$0xff]
  %v154 = vld [vmem:[%s1 + $0x220] sm:$0xff]
  %v155 = vld [vmem:[%s1 + $0x228] sm:$0xff]
  %v156 = vld [vmem:[%s1 + $0x230] sm:$0xff]
  %v157 = vld [vmem:[%s1 + $0x238] sm:$0xff]
  %v158 = vld [vmem:[%s1 + $0x240] sm:$0xff]
  %v159 = vld [vmem:[%s1 + $0x248] sm:$0xff]
  %v160 = vld [vmem:[%s1 + $0x250] sm:$0xff]
  %v161 = vld [vmem:[%s1 + $0x258] sm:$0xff]
  %v162 = vld [vmem:[%s1 + $0x260] sm:$0xff]
  %v163 = vld [vmem:[%s1 + $0x268] sm:$0xff]
  %v164 = vld [vmem:[%s1 + $0x270] sm:$0xff]
  %v165 = vld [vmem:[%s1 + $0x278] sm:$0xff]
  %v166 = vld [vmem:[%s1 + $0x280] sm:$0xff]
  %v167 = vld [vmem:[%s1 + $0x288] sm:$0xff]
  %v168 = vld [vmem:[%s1 + $0x290] sm:$0xff]
  %v169 = vld [vmem:[%s1 + $0x298] sm:$0xff]
  %v170 = vld [vmem:[%s1 + $0x2a0] sm:$0xff]
  %v171 = vld [vmem:[%s1 + $0x2a8] sm:$0xff]
  %v172 = vld [vmem:[%s1 + $0x2b0] sm:$0xff]
  %v173 = vld [vmem:[%s1 + $0x2b8] sm:$0xff]
  %v174 = vld [vmem:[%s1 + $0x2c0] sm:$0xff]
  %v175 = vld [vmem:[%s1 + $0x2c8] sm:$0xff]
  %v176 = vld [vmem:[%s1 + $0x2d0] sm:$0xff]
  %v177 = vld [vmem:[%s1 + $0x2d8] sm:$0xff]
  %v178 = vld [vmem:[%s1 + $0x2e0] sm:$0xff]
  %v179 = vld [vmem:[%s1 + $0x2e8] sm:$0xff]
  %v180 = vld [vmem:[%s1 + $0x2f0] sm:$0xff]
  %v181 = vld [vmem:[%s1 + $0x2f8] sm:$0xff]
  %v182 = vld [vmem:[%s1 + $0x300] sm:$0xff]
  %v183 = vld [vmem:[%s1 + $0x308] sm:$0xff]
  %v184 = vld [vmem:[%s1 + $0x310] sm:$0xff]
  %v185 = vld [vmem:[%s1 + $0x318] sm:$0xff]
  %v186 = vld [vmem:[%s1 + $0x320] sm:$0xff]
  %v187 = vld [vmem:[%s1 + $0x328] sm:$0xff]
  %v188 = vld [vmem:[%s1 + $0x330] sm:$0xff]
  %v189 = vld [vmem:[%s1 + $0x338] sm:$0xff]
  %v190 = vld [vmem:[%s1 + $0x340] sm:$0xff]
  %v191 = vld [vmem:[%s1 + $0x348] sm:$0xff]
  %v192 = vld [vmem:[%s1 + $0x350] sm:$0xff]
  %v193 = vld [vmem:[%s1 + $0x358] sm:$0xff]
  %v194 = vld [vmem:[%s1 + $0x360] sm:$0xff]
  %v195 = vld [vmem:[%s1 + $0x368] sm:$0xff]
  %v196 = vld [vmem:[%s1 + $0x370] sm:$0xff]
  %v197 = vld [vmem:[%s1 + $0x378] sm:$0xff]
  %v198 = vld [vmem:[%s1 + $0x380] sm:$0xff]
  %v199 = vld [vmem:[%s1 + $0x388] sm:$0xff]
  %v200 = vld [vmem:[%s1 + $0x390] sm:$0xff]
  %v201 = vld [vmem:[%s1 + $0x398] sm:$0xff]
  %v202 = vld [vmem:[%s1 + $0x3a0] sm:$0xff]
  %v203 = vld [vmem:[%s1 + $0x3a8] sm:$0xff]
  %v204 = vld [vmem:[%s1 + $0x3b0] sm:$0xff]
  %v205 = vld [vmem:[%s1 + $0x3b8] sm:$0xff]
  %v206 = vld [vmem:[%s1 + $0x3c0] sm:$0xff]
  %v207 = vld [vmem:[%s1 + $0x3c8] sm:$0xff]
  %v208 = vld [vmem:[%s1 + $0x3d0] sm:$0xff]
  %v209 = vld [vmem:[%s1 + $0x3d8] sm:$0xff]
  %v210 = vld [vmem:[%s1 + $0x3e0] sm:$0xff]
  %v211 = vld [vmem:[%s1 + $0x3e8] sm:$0xff]
  %v212 = vld [vmem:[%s1 + $0x3f0] sm:$0xff]
  %v213 = vld [vmem:[%s1 + $0x3f8] sm:$0xff]
  %v214 = vld [vmem:[%s1 + $0x400] sm:$0xff]
  %v215 = vld [vmem:[%s1 + $0x408] sm:$0xff]
  %v216 = vld [vmem:[%s1 + $0x410] sm:$0xff]
  %v217 = vld [vmem:[%s1 + $0x418] sm:$0xff]
  %v218 = vld [vmem:[%s1 + $0x420] sm:$0xff]
  %v219 = vld [vmem:[%s1 + $0x428] sm:$0xff]
  %v220 = vld [vmem:[%s1 + $0x430] sm:$0xff]
  %v221 = vld [vmem:[%s1 + $0x438] sm:$0xff]
  %v222 = vld [vmem:[%s1 + $0x440] sm:$0xff]
  %v223 = vld [vmem:[%s1 + $0x448] sm:$0xff]
  %v224 = vld [vmem:[%s1 + $0x450] sm:$0xff]
  %v225 = vld [vmem:[%s1 + $0x458] sm:$0xff]
  %v226 = vld [vmem:[%s1 + $0x460] sm:$0xff]
  %v227 = vld [vmem:[%s1 + $0x468] sm:$0xff]
  %v228 = vld [vmem:[%s1 + $0x470] sm:$0xff]
  %v229 = vld [vmem:[%s1 + $0x478] sm:$0xff]
  %v230 = vld [vmem:[%s1 + $0x480] sm:$0xff]
  %v231 = vld [vmem:[%s1 + $0x488] sm:$0xff]
  %v232 = vld [vmem:[%s1 + $0x490] sm:$0xff]
  %v233 = vld [vmem:[%s1 + $0x498] sm:$0xff]
  %v234 = vld [vmem:[%s1 + $0x4a0] sm:$0xff]
  %v235 = vld [vmem:[%s1 + $0x4a8] sm:$0xff]
  %v236 = vld [vmem:[%s1 + $0x4b0] sm:$0xff]
  %v237 = vld [vmem:[%s1 + $0x4b8] sm:$0xff]
  %v238 = vld [vmem:[%s1 + $0x4c0] sm:$0xff]
  %v239 = vld [vmem:[%s1 + $0x4c8] sm:$0xff]
  %v240 = vld [vmem:[%s1 + $0x4d0] sm:$0xff]
  %v241 = vld [vmem:[%s1 + $0x4d8] sm:$0xff]
  %v242 = vld [vmem:[%s1 + $0x4e0] sm:$0xff]
  %v243 = vld [vmem:[%s1 + $0x4e8] sm:$0xff]
  %v244 = vld [vmem:[%s1 + $0x4f0] sm:$0xff]
  %v245 = vld [vmem:[%s1 + $0x4f8] sm:$0xff]
  %v246 = vld [vmem:[%s1 + $0x500] sm:$0xff]
  %v247 = vld [vmem:[%s1 + $0x508] sm:$0xff]
  %v248 = vld [vmem:[%s1 + $0x510] sm:$0xff]
  %v249 = vld [vmem:[%s1 + $0x518] sm:$0xff]
  %v250 = vld [vmem:[%s1 + $0x520] sm:$0xff]
  %v251 = vld [vmem:[%s1 + $0x528] sm:$0xff]
  %v252 = vld [vmem:[%s1 + $0x530] sm:$0xff]
  %v253 = vld [vmem:[%s1 + $0x538] sm:$0xff]
  %v254 = vld [vmem:[%s1 + $0x540] sm:$0xff]
  %v255 = vld [vmem:[%s1 + $0x548] sm:$0xff]
  %v256 = vld [vmem:[%s1 + $0x550] sm:$0xff]
  %v257 = vld [vmem:[%s1 + $0x558] sm:$0xff]
  %v258 = vld [vmem:[%s1 + $0x560] sm:$0xff]
  %v259 = vld [vmem:[%s1 + $0x568] sm:$0xff]
  %v260 = vld [vmem:[%s1 + $0x570] sm:$0xff]
  %v261 = vld [vmem:[%s1 + $0x578] sm:$0xff]
  %v262 = vld [vmem:[%s1 + $0x580] sm:$0xff]
  %v263 = vld [vmem:[%s1 + $0x588] sm:$0xff]
  %v264 = vld [vmem:[%s1 + $0x590] sm:$0xff]
  %v265 = vld [vmem:[%s1 + $0x598] sm:$0xff]
  %v266 = vld [vmem:[%s1 + $0x5a0] sm:$0xff]
  %v267 = vld [vmem:[%s1 + $0x5a8] sm:$0xff]
  %v268 = vld [vmem:[%s1 + $0x5b0] sm:$0xff]
  %v269 = vld [vmem:[%s1 + $0x5b8] sm:$0xff]
  %v270 = vld [vmem:[%s1 + $0x5c0] sm:$0xff]
  %v271 = vld [vmem:[%s1 + $0x5c8] sm:$0xff]
  %v272 = vld [vmem:[%s1 + $0x5d0] sm:$0xff]
  %v273 = vld [vmem:[%s1 + $0x5d8] sm:$0xff]
  %v274 = vld [vmem:[%s1 + $0x5e0] sm:$0xff]
  %v275 = vld [vmem:[%s1 + $0x5e8] sm:$0xff]
  %v276 = vld [vmem:[%s1 + $0x5f0] sm:$0xff]
  %v277 = vld [vmem:[%s1 + $0x5f8] sm:$0xff]
  %v278 = vld [vmem:[%s1 + $0x600] sm:$0xff]
  %v279 = vld [vmem:[%s1 + $0x608] sm:$0xff]
  %v280 = vld [vmem:[%s1 + $0x610] sm:$0xff]
  %v281 = vld [vmem:[%s1 + $0x618] sm:$0xff]
  %v282 = vld [vmem:[%s1 + $0x620] sm:$0xff]
  %v283 = vld [vmem:[%s1 + $0x628] sm:$0xff]
  %v284 = vld [vmem:[%s1 + $0x630] sm:$0xff]
  %v285 = vld [vmem:[%s1 + $0x638] sm:$0xff]
  %v286 = vld [vmem:[%s1 + $0x640] sm:$0xff]
  %v287 = vld [vmem:[%s1 + $0x648] sm:$0xff]
  %v288 = vld [vmem:[%s1 + $0x650] sm:$0xff]
  %v289 = vld [vmem:[%s1 + $0x658] sm:$0xff]
  %v290 = vld [vmem:[%s1 + $0x660] sm:$0xff]
  %v291 = vld [vmem:[%s1 + $0x668] sm:$0xff]
  %v292 = vld [vmem:[%s1 + $0x670] sm:$0xff]
  %v293 = vld [vmem:[%s1 + $0x678] sm:$0xff]
  %v294 = vld [vmem:[%s1 + $0x680] sm:$0xff]
  %v295 = vld [vmem:[%s1 + $0x688] sm:$0xff]
  %v296 = vld [vmem:[%s1 + $0x690] sm:$0xff]
  %v297 = vld [vmem:[%s1 + $0x698] sm:$0xff]
  %v298 = vld [vmem:[%s1 + $0x6a0] sm:$0xff]
  %v299 = vld [vmem:[%s1 + $0x6a8] sm:$0xff]
  %v300 = vld [vmem:[%s1 + $0x6b0] sm:$0xff]
  %v301 = vld [vmem:[%s1 + $0x6b8] sm:$0xff]
  %v302 = vld [vmem:[%s1 + $0x6c0] sm:$0xff]
  %v303 = vld [vmem:[%s1 + $0x6c8] sm:$0xff]
  %v304 = vld [vmem:[%s1 + $0x6d0] sm:$0xff]
  %v305 = vld [vmem:[%s1 + $0x6d8] sm:$0xff]
  %v306 = vld [vmem:[%s1 + $0x6e0] sm:$0xff]
  %v307 = vld [vmem:[%s1 + $0x6e8] sm:$0xff]
  %v308 = vld [vmem:[%s1 + $0x6f0] sm:$0xff]
  %v309 = vld [vmem:[%s1 + $0x6f8] sm:$0xff]
  %v310 = vld [vmem:[%s1 + $0x700] sm:$0xff]
  %v311 = vld [vmem:[%s1 + $0x708] sm:$0xff]
  %v312 = vld [vmem:[%s1 + $0x710] sm:$0xff]
  %v313 = vld [vmem:[%s1 + $0x718] sm:$0xff]
  %v314 = vld [vmem:[%s1 + $0x720] sm:$0xff]
  %v315 = vld [vmem:[%s1 + $0x728] sm:$0xff]
  %v316 = vld [vmem:[%s1 + $0x730] sm:$0xff]
  %v317 = vld [vmem:[%s1 + $0x738] sm:$0xff]
  %v318 = vld [vmem:[%s1 + $0x740] sm:$0xff]
  %v319 = vld [vmem:[%s1 + $0x748] sm:$0xff]
  %v320 = vld [vmem:[%s1 + $0x750] sm:$0xff]
  %v321 = vld [vmem:[%s1 + $0x758] sm:$0xff]
  %v322 = vld [vmem:[%s1 + $0x760] sm:$0xff]
  %v323 = vld [vmem:[%s1 + $0x768] sm:$0xff]
  %v324 = vld [vmem:[%s1 + $0x770] sm:$0xff]
  %v325 = vld [vmem:[%s1 + $0x778] sm:$0xff]
  %v326 = vld [vmem:[%s1 + $0x780] sm:$0xff]
  %v327 = vld [vmem:[%s1 + $0x788] sm:$0xff]
  %v328 = vld [vmem:[%s1 + $0x790] sm:$0xff]
  %v329 = vld [vmem:[%s1 + $0x798] sm:$0xff]
  %v330 = vld [vmem:[%s1 + $0x7a0] sm:$0xff]
  %v331 = vld [vmem:[%s1 + $0x7a8] sm:$0xff]
  %v332 = vld [vmem:[%s1 + $0x7b0] sm:$0xff]
  %v333 = vld [vmem:[%s1 + $0x7b8] sm:$0xff]
  %v334 = vld [vmem:[%s1 + $0x7c0] sm:$0xff]
  %v335 = vld [vmem:[%s1 + $0x7c8] sm:$0xff]
  %v336 = vld [vmem:[%s1 + $0x7d0] sm:$0xff]
  %v337 = vld [vmem:[%s1 + $0x7d8] sm:$0xff]
  %v338 = vld [vmem:[%s1 + $0x7e0] sm:$0xff]
  %v339 = vld [vmem:[%s1 + $0x7e8] sm:$0xff]
  %v340 = vld [vmem:[%s1 + $0x7f0] sm:$0xff]
  %v341 = vld [vmem:[%s1 + $0x7f8] sm:$0xff]
  %v342 = vld [vmem:[%s1 + $0x800] sm:$0xff]
  %v343 = vld [vmem:[%s1 + $0x808] sm:$0xff]
  %v344 = vld [vmem:[%s1 + $0x810] sm:$0xff]
  %v345 = vld [vmem:[%s1 + $0x818] sm:$0xff]
  %v346 = vld [vmem:[%s1 + $0x820] sm:$0xff]
  %v347 = vld [vmem:[%s1 + $0x828] sm:$0xff]
  %v348 = vld [vmem:[%s1 + $0x830] sm:$0xff]
  %v349 = vld [vmem:[%s1 + $0x838] sm:$0xff]
  %v350 = vld [vmem:[%s1 + $0x840] sm:$0xff]
  %v351 = vld [vmem:[%s1 + $0x848] sm:$0xff]
  %v352 = vld [vmem:[%s1 + $0x850] sm:$0xff]
  %v353 = vld [vmem:[%s1 + $0x858] sm:$0xff]
  %v354 = vld [vmem:[%s1 + $0x860] sm:$0xff]
  %v355 = vld [vmem:[%s1 + $0x868] sm:$0xff]
  %v356 = vld [vmem:[%s1 + $0x870] sm:$0xff]
  %v357 = vld [vmem:[%s1 + $0x878] sm:$0xff]
  %v358 = vld [vmem:[%s1 + $0x880] sm:$0xff]
  %v359 = vld [vmem:[%s1 + $0x888] sm:$0xff]
  %v360 = vld [vmem:[%s1 + $0x890] sm:$0xff]
  %v361 = vld [vmem:[%s1 + $0x898] sm:$0xff]
  %v362 = vld [vmem:[%s1 + $0x8a0] sm:$0xff]
  %v363 = vld [vmem:[%s1 + $0x8a8] sm:$0xff]
  %v364 = vld [vmem:[%s1 + $0x8b0] sm:$0xff]
  %v365 = vld [vmem:[%s1 + $0x8b8] sm:$0xff]
  %v366 = vld [vmem:[%s1 + $0x8c0] sm:$0xff]
  %v367 = vld [vmem:[%s1 + $0x8c8] sm:$0xff]
  %v368 = vld [vmem:[%s1 + $0x8d0] sm:$0xff]
  %v369 = vld [vmem:[%s1 + $0x8d8] sm:$0xff]
  %v370 = vld [vmem:[%s1 + $0x8e0] sm:$0xff]
  %v371 = vld [vmem:[%s1 + $0x8e8] sm:$0xff]
  %v372 = vld [vmem:[%s1 + $0x8f0] sm:$0xff]
  %v373 = vld [vmem:[%s1 + $0x8f8] sm:$0xff]
  %v374 = vld [vmem:[%s1 + $0x900] sm:$0xff]
  %v375 = vld [vmem:[%s1 + $0x908] sm:$0xff]
  %v376 = vld [vmem:[%s1 + $0x910] sm:$0xff]
  %v377 = vld [vmem:[%s1 + $0x918] sm:$0xff]
  %v378 = vld [vmem:[%s1 + $0x920] sm:$0xff]
  %v379 = vld [vmem:[%s1 + $0x928] sm:$0xff]
  %v380 = vld [vmem:[%s1 + $0x930] sm:$0xff]
  %v381 = vld [vmem:[%s1 + $0x938] sm:$0xff]
  %v382 = vld [vmem:[%s1 + $0x940] sm:$0xff]
  %v383 = vld [vmem:[%s1 + $0x948] sm:$0xff]
  %v384 = vld [vmem:[%s1 + $0x950] sm:$0xff]
  %v385 = vld [vmem:[%s1 + $0x958] sm:$0xff]
  %v386 = vld [vmem:[%s1 + $0x960] sm:$0xff]
  %v387 = vld [vmem:[%s1 + $0x968] sm:$0xff]
  %v388 = vld [vmem:[%s1 + $0x970] sm:$0xff]
  %v389 = vld [vmem:[%s1 + $0x978] sm:$0xff]
  %v390 = vld [vmem:[%s1 + $0x980] sm:$0xff]
  %v391 = vld [vmem:[%s1 + $0x988] sm:$0xff]
  %v392 = vld [vmem:[%s1 + $0x990] sm:$0xff]
  %v393 = vld [vmem:[%s1 + $0x998] sm:$0xff]
  %v394 = vld [vmem:[%s1 + $0x9a0] sm:$0xff]
  %v395 = vld [vmem:[%s1 + $0x9a8] sm:$0xff]
  %v396 = vld [vmem:[%s1 + $0x9b0] sm:$0xff]
  %v397 = vld [vmem:[%s1 + $0x9b8] sm:$0xff]
  %v398 = vld [vmem:[%s1 + $0x9c0] sm:$0xff]
  %v399 = vld [vmem:[%s1 + $0x9c8] sm:$0xff]
  %v400 = vld [vmem:[%s1 + $0x9d0] sm:$0xff]
  %v401 = vld [vmem:[%s1 + $0x9d8] sm:$0xff]
  %v402 = vld [vmem:[%s1 + $0x9e0] sm:$0xff]
  %v403 = vld [vmem:[%s1 + $0x9e8] sm:$0xff]
  %v404 = vld [vmem:[%s1 + $0x9f0] sm:$0xff]
  %v405 = vld [vmem:[%s1 + $0x9f8] sm:$0xff]
  %v406 = vld [vmem:[%s1 + $0xa00] sm:$0xff]
  %v407 = vld [vmem:[%s1 + $0xa08] sm:$0xff]
  %v408 = vld [vmem:[%s1 + $0xa10] sm:$0xff]
  %v409 = vld [vmem:[%s1 + $0xa18] sm:$0xff]
  %v410 = vld [vmem:[%s1 + $0xa20] sm:$0xff]
  %v411 = vld [vmem:[%s1 + $0xa28] sm:$0xff]
  %v412 = vld [vmem:[%s1 + $0xa30] sm:$0xff]
  %v413 = vld [vmem:[%s1 + $0xa38] sm:$0xff]
  %v414 = vld [vmem:[%s1 + $0xa40] sm:$0xff]
  %v415 = vld [vmem:[%s1 + $0xa48] sm:$0xff]
  %v416 = vld [vmem:[%s1 + $0xa50] sm:$0xff]
  %v417 = vld [vmem:[%s1 + $0xa58] sm:$0xff]
  %v418 = vld [vmem:[%s1 + $0xa60] sm:$0xff]
  %v419 = vld [vmem:[%s1 + $0xa68] sm:$0xff]
  %v420 = vld [vmem:[%s1 + $0xa70] sm:$0xff]
  %v421 = vld [vmem:[%s1 + $0xa78] sm:$0xff]
  %v422 = vld [vmem:[%s1 + $0xa80] sm:$0xff]
  %v423 = vld [vmem:[%s1 + $0xa88] sm:$0xff]
  %v424 = vld [vmem:[%s1 + $0xa90] sm:$0xff]
  %v425 = vld [vmem:[%s1 + $0xa98] sm:$0xff]
  %v426 = vld [vmem:[%s1 + $0xaa0] sm:$0xff]
  %v427 = vld [vmem:[%s1 + $0xaa8] sm:$0xff]
  %v428 = vld [vmem:[%s1 + $0xab0] sm:$0xff]
  %v429 = vld [vmem:[%s1 + $0xab8] sm:$0xff]
  %v430 = vld [vmem:[%s1 + $0xac0] sm:$0xff]
  %v431 = vld [vmem:[%s1 + $0xac8] sm:$0xff]
  %v432 = vld [vmem:[%s1 + $0xad0] sm:$0xff]
  %v433 = vld [vmem:[%s1 + $0xad8] sm:$0xff]
  %v434 = vld [vmem:[%s1 + $0xae0] sm:$0xff]
  %v435 = vld [vmem:[%s1 + $0xae8] sm:$0xff]
  %v436 = vld [vmem:[%s1 + $0xaf0] sm:$0xff]
  %v437 = vld [vmem:[%s1 + $0xaf8] sm:$0xff]
  %v438 = vld [vmem:[%s1 + $0xb00] sm:$0xff]
  %v439 = vld [vmem:[%s1 + $0xb08] sm:$0xff]
  %v440 = vld [vmem:[%s1 + $0xb10] sm:$0xff]
  %v441 = vld [vmem:[%s1 + $0xb18] sm:$0xff]
  %v442 = vld [vmem:[%s1 + $0xb20] sm:$0xff]
  %v443 = vld [vmem:[%s1 + $0xb28] sm:$0xff]
  %v444 = vld [vmem:[%s1 + $0xb30] sm:$0xff]
  %v445 = vld [vmem:[%s1 + $0xb38] sm:$0xff]
  %v446 = vld [vmem:[%s1 + $0xb40] sm:$0xff]
  %v447 = vld [vmem:[%s1 + $0xb48] sm:$0xff]
  %v448 = vld [vmem:[%s1 + $0xb50] sm:$0xff]
  %v449 = vld [vmem:[%s1 + $0xb58] sm:$0xff]
  %v450 = vld [vmem:[%s1 + $0xb60] sm:$0xff]
  %v451 = vld [vmem:[%s1 + $0xb68] sm:$0xff]
  %v452 = vld [vmem:[%s1 + $0xb70] sm:$0xff]
  %v453 = vld [vmem:[%s1 + $0xb78] sm:$0xff]
  %v454 = vld [vmem:[%s1 + $0xb80] sm:$0xff]
  %v455 = vld [vmem:[%s1 + $0xb88] sm:$0xff]
  %v456 = vld [vmem:[%s1 + $0xb90] sm:$0xff]
  %v457 = vld [vmem:[%s1 + $0xb98] sm:$0xff]
  %v458 = vld [vmem:[%s1 + $0xba0] sm:$0xff]
  %v459 = vld [vmem:[%s1 + $0xba8] sm:$0xff]
  %v460 = vld [vmem:[%s1 + $0xbb0] sm:$0xff]
  %v461 = vld [vmem:[%s1 + $0xbb8] sm:$0xff]
  %v462 = vld [vmem:[%s1 + $0xbc0] sm:$0xff]
  %v463 = vld [vmem:[%s1 + $0xbc8] sm:$0xff]
  %v464 = vld [vmem:[%s1 + $0xbd0] sm:$0xff]
  %v465 = vld [vmem:[%s1 + $0xbd8] sm:$0xff]
  %v466 = vld [vmem:[%s1 + $0xbe0] sm:$0xff]
  %v467 = vld [vmem:[%s1 + $0xbe8] sm:$0xff]
  %v468 = vld [vmem:[%s1 + $0xbf0] sm:$0xff]
  %v469 = vld [vmem:[%s1 + $0xbf8] sm:$0xff]
  %v470 = vld [vmem:[%s1 + $0xc00] sm:$0xff]
  %v471 = vld [vmem:[%s1 + $0xc08] sm:$0xff]
  %v472 = vld [vmem:[%s1 + $0xc10] sm:$0xff]
  %v473 = vld [vmem:[%s1 + $0xc18] sm:$0xff]
  %v474 = vld [vmem:[%s1 + $0xc20] sm:$0xff]
  %v475 = vld [vmem:[%s1 + $0xc28] sm:$0xff]
  %v476 = vld [vmem:[%s1 + $0xc30] sm:$0xff]
  %v477 = vld [vmem:[%s1 + $0xc38] sm:$0xff]
  %v478 = vld [vmem:[%s1 + $0xc40] sm:$0xff]
  %v479 = vld [vmem:[%s1 + $0xc48] sm:$0xff]
  %v480 = vld [vmem:[%s1 + $0xc50] sm:$0xff]
  %v481 = vld [vmem:[%s1 + $0xc58] sm:$0xff]
  %v482 = vld [vmem:[%s1 + $0xc60] sm:$0xff]
  %v483 = vld [vmem:[%s1 + $0xc68] sm:$0xff]
  %v484 = vld [vmem:[%s1 + $0xc70] sm:$0xff]
  %v485 = vld [vmem:[%s1 + $0xc78] sm:$0xff]
  %v486 = vld [vmem:[%s1 + $0xc80] sm:$0xff]
  %v487 = vld [vmem:[%s1 + $0xc88] sm:$0xff]
  %v488 = vld [vmem:[%s1 + $0xc90] sm:$0xff]
  %v489 = vld [vmem:[%s1 + $0xc98] sm:$0xff]
  %v490 = vld [vmem:[%s1 + $0xca0] sm:$0xff]
  %v491 = vld [vmem:[%s1 + $0xca8] sm:$0xff]
  %v492 = vld [vmem:[%s1 + $0xcb0] sm:$0xff]
  %v493 = vld [vmem:[%s1 + $0xcb8] sm:$0xff]
  %v494 = vld [vmem:[%s1 + $0xcc0] sm:$0xff]
  %v495 = vld [vmem:[%s1 + $0xcc8] sm:$0xff]
  %v496 = vld [vmem:[%s1 + $0xcd0] sm:$0xff]
  %v497 = vld [vmem:[%s1 + $0xcd8] sm:$0xff]
  %v498 = vld [vmem:[%s1 + $0xce0] sm:$0xff]
  %v499 = vld [vmem:[%s1 + $0xce8] sm:$0xff]
  %v500 = vld [vmem:[%s1 + $0xcf0] sm:$0xff]
  %v501 = vld [vmem:[%s1 + $0xcf8] sm:$0xff]
  %v502 = vld [vmem:[%s1 + $0xd00] sm:$0xff]
  %v503 = vld [vmem:[%s1 + $0xd08] sm:$0xff]
  %v504 = vld [vmem:[%s1 + $0xd10] sm:$0xff]
  %v505 = vld [vmem:[%s1 + $0xd18] sm:$0xff]
  %v506 = vld [vmem:[%s1 + $0xd20] sm:$0xff]
  %v507 = vld [vmem:[%s1 + $0xd28] sm:$0xff]
  %v508 = vld [vmem:[%s1 + $0xd30] sm:$0xff]
  %v509 = vld [vmem:[%s1 + $0xd38] sm:$0xff]
  %v510 = vld [vmem:[%s1 + $0xd40] sm:$0xff]
  %v511 = vld [vmem:[%s1 + $0xd48] sm:$0xff]
  %v512 = vld [vmem:[%s1 + $0xd50] sm:$0xff]
  %v513 = vld [vmem:[%s1 + $0xd58] sm:$0xff]
  %v514 = vld [vmem:[%s1 + $0xd60] sm:$0xff]
  %v515 = vld [vmem:[%s1 + $0xd68] sm:$0xff]
  %v516 = vld [vmem:[%s1 + $0xd70] sm:$0xff]
  %v517 = vld [vmem:[%s1 + $0xd78] sm:$0xff]
  %v518 = vld [vmem:[%s1 + $0xd80] sm:$0xff]
  %v519 = vld [vmem:[%s1 + $0xd88] sm:$0xff]
  %v520 = vld [vmem:[%s1 + $0xd90] sm:$0xff]
  %v521 = vld [vmem:[%s1 + $0xd98] sm:$0xff]
  %v522 = vld [vmem:[%s1 + $0xda0] sm:$0xff]
  %v523 = vld [vmem:[%s1 + $0xda8] sm:$0xff]
  %v524 = vld [vmem:[%s1 + $0xdb0] sm:$0xff]
  %v525 = vld [vmem:[%s1 + $0xdb8] sm:$0xff]
  %v526 = vld [vmem:[%s1 + $0xdc0] sm:$0xff]
  %v527 = vld [vmem:[%s1 + $0xdc8] sm:$0xff]
  %v528 = vld [vmem:[%s1 + $0xdd0] sm:$0xff]
  %v529 = vld [vmem:[%s1 + $0xdd8] sm:$0xff]
  %v530 = vld [vmem:[%s1 + $0xde0] sm:$0xff]
  %v531 = vld [vmem:[%s1 + $0xde8] sm:$0xff]
  %v532 = vld [vmem:[%s1 + $0xdf0] sm:$0xff]
  %v533 = vld [vmem:[%s1 + $0xdf8] sm:$0xff]
  %v534 = vld [vmem:[%s1 + $0xe00] sm:$0xff]
  %v535 = vld [vmem:[%s1 + $0xe08] sm:$0xff]
  %v536 = vld [vmem:[%s1 + $0xe10] sm:$0xff]
  %v537 = vld [vmem:[%s1 + $0xe18] sm:$0xff]
  %v538 = vld [vmem:[%s1 + $0xe20] sm:$0xff]
  %v539 = vld [vmem:[%s1 + $0xe28] sm:$0xff]
  %v540 = vld [vmem:[%s1 + $0xe30] sm:$0xff]
  %v541 = vld [vmem:[%s1 + $0xe38] sm:$0xff]
  %v542 = vld [vmem:[%s1 + $0xe40] sm:$0xff]
  %v543 = vld [vmem:[%s1 + $0xe48] sm:$0xff]
  %v544 = vld [vmem:[%s1 + $0xe50] sm:$0xff]
  %v545 = vld [vmem:[%s1 + $0xe58] sm:$0xff]
  %v546 = vld [vmem:[%s1 + $0xe60] sm:$0xff]
  %v547 = vld [vmem:[%s1 + $0xe68] sm:$0xff]
  %v548 = vld [vmem:[%s1 + $0xe70] sm:$0xff]
  %v549 = vld [vmem:[%s1 + $0xe78] sm:$0xff]
  %v550 = vld [vmem:[%s1 + $0xe80] sm:$0xff]
  %v551 = vld [vmem:[%s1 + $0xe88] sm:$0xff]
  %v552 = vld [vmem:[%s1 + $0xe90] sm:$0xff]
  %v553 = vld [vmem:[%s1 + $0xe98] sm:$0xff]
  %v554 = vld [vmem:[%s1 + $0xea0] sm:$0xff]
  %v555 = vld [vmem:[%s1 + $0xea8] sm:$0xff]
  %v556 = vld [vmem:[%s1 + $0xeb0] sm:$0xff]
  %v557 = vld [vmem:[%s1 + $0xeb8] sm:$0xff]
  %v558 = vld [vmem:[%s1 + $0xec0] sm:$0xff]
  %v559 = vld [vmem:[%s1 + $0xec8] sm:$0xff]
  %v560 = vld [vmem:[%s1 + $0xed0] sm:$0xff]
  %v561 = vld [vmem:[%s1 + $0xed8] sm:$0xff]
  %v562 = vld [vmem:[%s1 + $0xee0] sm:$0xff]
  %v563 = vld [vmem:[%s1 + $0xee8] sm:$0xff]
  %v564 = vld [vmem:[%s1 + $0xef0] sm:$0xff]
  %v565 = vld [vmem:[%s1 + $0xef8] sm:$0xff]
  %v566 = vld [vmem:[%s1 + $0xf00] sm:$0xff]
  %v567 = vld [vmem:[%s1 + $0xf08] sm:$0xff]
  %v568 = vld [vmem:[%s1 + $0xf10] sm:$0xff]
  %v569 = vld [vmem:[%s1 + $0xf18] sm:$0xff]
  %v570 = vld [vmem:[%s1 + $0xf20] sm:$0xff]
  %v571 = vld [vmem:[%s1 + $0xf28] sm:$0xff]
  %v572 = vld [vmem:[%s1 + $0xf30] sm:$0xff]
  %v573 = vld [vmem:[%s1 + $0xf38] sm:$0xff]
  %v574 = vld [vmem:[%s1 + $0xf40] sm:$0xff]
  %v575 = vld [vmem:[%s1 + $0xf48] sm:$0xff]
  %v576 = vld [vmem:[%s1 + $0xf50] sm:$0xff]
  %v577 = vld [vmem:[%s1 + $0xf58] sm:$0xff]
  %v578 = vld [vmem:[%s1 + $0xf60] sm:$0xff]
  %v579 = vld [vmem:[%s1 + $0xf68] sm:$0xff]
  %v580 = vld [vmem:[%s1 + $0xf70] sm:$0xff]
  %v581 = vld [vmem:[%s1 + $0xf78] sm:$0xff]
  %v582 = vld [vmem:[%s1 + $0xf80] sm:$0xff]
  %v583 = vld [vmem:[%s1 + $0xf88] sm:$0xff]
  %v584 = vld [vmem:[%s1 + $0xf90] sm:$0xff]
  %v585 = vld [vmem:[%s1 + $0xf98] sm:$0xff]
  %v586 = vld [vmem:[%s1 + $0xfa0] sm:$0xff]
  %v587 = vld [vmem:[%s1 + $0xfa8] sm:$0xff]
  %v588 = vld [vmem:[%s1 + $0xfb0] sm:$0xff]
  %v589 = vld [vmem:[%s1 + $0xfb8] sm:$0xff]
  %v590 = vld [vmem:[%s1 + $0xfc0] sm:$0xff]
  %v591 = vld [vmem:[%s1 + $0xfc8] sm:$0xff]
  %v592 = vld [vmem:[%s1 + $0xfd0] sm:$0xff]
  %v593 = vld [vmem:[%s1 + $0xfd8] sm:$0xff]
  %v594 = vld [vmem:[%s1 + $0xfe0] sm:$0xff]
  %v595 = vld [vmem:[%s1 + $0xfe8] sm:$0xff]
  %v596 = vld [vmem:[%s1 + $0xff0] sm:$0xff]
  %v597 = vld [vmem:[%s1 + $0xff8] sm:$0xff]
  %v598 = vld [vmem:[%s1 + $0x1000] sm:$0xff]
  %v599 = vld [vmem:[%s1 + $0x1008] sm:$0xff]
  %v600 = vld [vmem:[%s1 + $0x1010] sm:$0xff]
  %v601 = vld [vmem:[%s1 + $0x1018] sm:$0xff]
  %v602 = vld [vmem:[%s1 + $0x1020] sm:$0xff]
  %v603 = vld [vmem:[%s1 + $0x1028] sm:$0xff]
  %v604 = vld [vmem:[%s1 + $0x1030] sm:$0xff]
  %v605 = vld [vmem:[%s1 + $0x1038] sm:$0xff]
  %v606 = vld [vmem:[%s1 + $0x1040] sm:$0xff]
  %v607 = vld [vmem:[%s1 + $0x1048] sm:$0xff]
  %v608 = vld [vmem:[%s1 + $0x1050] sm:$0xff]
  %v609 = vld [vmem:[%s1 + $0x1058] sm:$0xff]
  %v610 = vld [vmem:[%s1 + $0x1060] sm:$0xff]
  %v611 = vld [vmem:[%s1 + $0x1068] sm:$0xff]
  %v612 = vld [vmem:[%s1 + $0x1070] sm:$0xff]
  %v613 = vld [vmem:[%s1 + $0x1078] sm:$0xff]
  %v614 = vld [vmem:[%s1 + $0x1080] sm:$0xff]
  %v615 = vld [vmem:[%s1 + $0x1088] sm:$0xff]
  %v616 = vld [vmem:[%s1 + $0x1090] sm:$0xff]
  %v617 = vld [vmem:[%s1 + $0x1098] sm:$0xff]
  %v618 = vld [vmem:[%s1 + $0x10a0] sm:$0xff]
  %v619 = vld [vmem:[%s1 + $0x10a8] sm:$0xff]
  %v620 = vld [vmem:[%s1 + $0x10b0] sm:$0xff]
  %v621 = vld [vmem:[%s1 + $0x10b8] sm:$0xff]
  %v622 = vld [vmem:[%s1 + $0x10c0] sm:$0xff]
  %v623 = vld [vmem:[%s1 + $0x10c8] sm:$0xff]
  %v624 = vld [vmem:[%s1 + $0x10d0] sm:$0xff]
  %v625 = vld [vmem:[%s1 + $0x10d8] sm:$0xff]
  %v626 = vld [vmem:[%s1 + $0x10e0] sm:$0xff]
  %v627 = vld [vmem:[%s1 + $0x10e8] sm:$0xff]
  %v628 = vld [vmem:[%s1 + $0x10f0] sm:$0xff]
  %v629 = vld [vmem:[%s1 + $0x10f8] sm:$0xff]
  %v630 = vld [vmem:[%s1 + $0x1100] sm:$0xff]
  %v631 = vld [vmem:[%s1 + $0x1108] sm:$0xff]
  %v632 = vld [vmem:[%s1 + $0x1110] sm:$0xff]
  %v633 = vld [vmem:[%s1 + $0x1118] sm:$0xff]
  %v634 = vld [vmem:[%s1 + $0x1120] sm:$0xff]
  %v635 = vld [vmem:[%s1 + $0x1128] sm:$0xff]
  %v636 = vld [vmem:[%s1 + $0x1130] sm:$0xff]
  %v637 = vld [vmem:[%s1 + $0x1138] sm:$0xff]
  %v638 = vld [vmem:[%s1 + $0x1140] sm:$0xff]
  %v639 = vld [vmem:[%s1 + $0x1148] sm:$0xff]
  %v640 = vld [vmem:[%s1 + $0x1150] sm:$0xff]
  %v641 = vld [vmem:[%s1 + $0x1158] sm:$0xff]
  %v642 = vld [vmem:[%s1 + $0x1160] sm:$0xff]
  %v643 = vld [vmem:[%s1 + $0x1168] sm:$0xff]
  %v644 = vld [vmem:[%s1 + $0x1170] sm:$0xff]
  %v645 = vld [vmem:[%s1 + $0x1178] sm:$0xff]
  %v646 = vld [vmem:[%s1 + $0x1180] sm:$0xff]
  %v647 = vld [vmem:[%s1 + $0x1188] sm:$0xff]
  %v648 = vld [vmem:[%s1 + $0x1190] sm:$0xff]
  %v649 = vld [vmem:[%s1 + $0x1198] sm:$0xff]
  %v650 = vld [vmem:[%s1 + $0x11a0] sm:$0xff]
  %v651 = vld [vmem:[%s1 + $0x11a8] sm:$0xff]
  %v652 = vld [vmem:[%s1 + $0x11b0] sm:$0xff]
  %v653 = vld [vmem:[%s1 + $0x11b8] sm:$0xff]
  %v654 = vld [vmem:[%s1 + $0x11c0] sm:$0xff]
  %v655 = vld [vmem:[%s1 + $0x11c8] sm:$0xff]
  %v656 = vld [vmem:[%s1 + $0x11d0] sm:$0xff]
  %v657 = vld [vmem:[%s1 + $0x11d8] sm:$0xff]
  %v658 = vld [vmem:[%s1 + $0x11e0] sm:$0xff]
  %v659 = vld [vmem:[%s1 + $0x11e8] sm:$0xff]
  %v660 = vld [vmem:[%s1 + $0x11f0] sm:$0xff]
  %v661 = vld [vmem:[%s1 + $0x11f8] sm:$0xff]
  %v662 = vld [vmem:[%s2] sm:$0x3]
  %v664 = vlaneseq
  %v665 = vshrl.u32 %v664, 7
  %v666 = vsub.s32 0, %v665
  %v667 = vrot.slane %v662, %v666
  %v668 = vlaneseq
  %v669 = vshrl.u32 %v668, 7
  %v670 = vsub.s32 1, %v669
  %v671 = vrot.slane %v662, %v670
  %674 = vmatprep.subr.mxu0 %v87
  %675 = vmatpush1.msra.mxu0 %v86
  %676 = vmatprep.subr.mxu0 %v89
  %677 = vmatpush1.msra.mxu0 %v88
  %678 = vmatprep.subr.mxu0 %v91
  %679 = vmatpush1.msra.mxu0 %v90
  %680 = vmatprep.subr.mxu0 %v93
  %681 = vmatpush1.msra.mxu0 %v92
  %682 = vmatprep.subr.mxu0 %v95
  %683 = vmatpush1.msra.mxu0 %v94
  %684 = vmatprep.subr.mxu0 %v97
  %685 = vmatpush1.msra.mxu0 %v96
  %686 = vmatprep.subr.mxu0 %v99
  %687 = vmatpush1.msra.mxu0 %v98
  %688 = vmatprep.subr.mxu0 %v101
  %689 = vmatpush1.msra.mxu0 %v100
  %690 = vmatprep.subr.mxu0 %v103
  %691 = vmatpush1.msra.mxu0 %v102
  %692 = vmatprep.subr.mxu0 %v105
  %693 = vmatpush1.msra.mxu0 %v104
  %694 = vmatprep.subr.mxu0 %v107
  %695 = vmatpush1.msra.mxu0 %v106
  %696 = vmatprep.subr.mxu0 %v109
  %697 = vmatpush1.msra.mxu0 %v108
  %698 = vmatprep.subr.mxu0 %v111
  %699 = vmatpush1.msra.mxu0 %v110
  %700 = vmatprep.subr.mxu0 %v113
  %701 = vmatpush1.msra.mxu0 %v112
  %702 = vmatprep.subr.mxu0 %v115
  %703 = vmatpush1.msra.mxu0 %v114
  %704 = vmatprep.subr.mxu0 %v117
  %705 = vmatpush1.msra.mxu0 %v116
  %706 = vmatprep.subr.mxu0 %v119
  %707 = vmatpush1.msra.mxu0 %v118
  %708 = vmatprep.subr.mxu0 %v121
  %709 = vmatpush1.msra.mxu0 %v120
  %710 = vmatprep.subr.mxu0 %v123
  %711 = vmatpush1.msra.mxu0 %v122
  %712 = vmatprep.subr.mxu0 %v125
  %713 = vmatpush1.msra.mxu0 %v124
  %714 = vmatprep.subr.mxu0 %v127
  %715 = vmatpush1.msra.mxu0 %v126
  %716 = vmatprep.subr.mxu0 %v129
  %717 = vmatpush1.msra.mxu0 %v128
  %718 = vmatprep.subr.mxu0 %v131
  %719 = vmatpush1.msra.mxu0 %v130
  %720 = vmatprep.subr.mxu0 %v133
  %721 = vmatpush1.msra.mxu0 %v132
  %722 = vmatprep.subr.mxu0 %v135
  %723 = vmatpush1.msra.mxu0 %v134
  %724 = vmatprep.subr.mxu0 %v137
  %725 = vmatpush1.msra.mxu0 %v136
  %726 = vmatprep.subr.mxu0 %v139
  %727 = vmatpush1.msra.mxu0 %v138
  %728 = vmatprep.subr.mxu0 %v141
  %729 = vmatpush1.msra.mxu0 %v140
  %730 = vmatprep.subr.mxu0 %v143
  %731 = vmatpush1.msra.mxu0 %v142
  %732 = vmatprep.subr.mxu0 %v145
  %733 = vmatpush1.msra.mxu0 %v144
  %734 = vmatprep.subr.mxu0 %v147
  %735 = vmatpush1.msra.mxu0 %v146
  %736 = vmatprep.subr.mxu0 %v149
  %737 = vmatpush1.msra.mxu0 %v148
  %738 = vmatprep.mubr.f32.mxu0 %v15
  %739 = vmatmul.mubr.f32.gmra.mrb[0].mxu0 %v14
  %v740 = vpop.f32.mrb[0].mxu0
  %v741 = vadd.f32 %v667, %v740
  %v742 = vpop.f32.mrb[0].mxu0
  %v743 = vadd.f32 %v671, %v742
  %744 = vmatprep.mubr.f32.mxu0 %v33
  %745 = vmatmul.mubr.f32.gmra.mrb[0].mxu0 %v32
  %v746 = vpop.f32.mrb[0].mxu0
  %v747 = vadd.f32 %v667, %v746
  %v748 = vpop.f32.mrb[0].mxu0
  %v749 = vadd.f32 %v671, %v748
  %750 = vmatprep.mubr.f32.mxu0 %v51
  %751 = vmatmul.mubr.f32.gmra.mrb[0].mxu0 %v50
  %v752 = vpop.f32.mrb[0].mxu0
  %v753 = vadd.f32 %v667, %v752
  %v754 = vpop.f32.mrb[0].mxu0
  %v755 = vadd.f32 %v671, %v754
  %756 = vmatprep.mubr.f32.mxu0 %v69
  %757 = vmatmul.mubr.f32.gmra.mrb[0].mxu0 %v68
  %v758 = vpop.f32.mrb[0].mxu0
  %v759 = vadd.f32 %v667, %v758
  %v760 = vpop.f32.mrb[0].mxu0
  %v761 = vadd.f32 %v671, %v760
  %762 = vdwg.mxu0
  %763 = vmatprep.subr.mxu0 %v151
  %764 = vmatpush1.msra.mxu0 %v150
  %765 = vmatprep.subr.mxu0 %v153
  %766 = vmatpush1.msra.mxu0 %v152
  %767 = vmatprep.subr.mxu0 %v155
  %768 = vmatpush1.msra.mxu0 %v154
  %769 = vmatprep.subr.mxu0 %v157
  %770 = vmatpush1.msra.mxu0 %v156
  %771 = vmatprep.subr.mxu0 %v159
  %772 = vmatpush1.msra.mxu0 %v158
  %773 = vmatprep.subr.mxu0 %v161
  %774 = vmatpush1.msra.mxu0 %v160
  %775 = vmatprep.subr.mxu0 %v163
  %776 = vmatpush1.msra.mxu0 %v162
  %777 = vmatprep.subr.mxu0 %v165
  %778 = vmatpush1.msra.mxu0 %v164
  %779 = vmatprep.subr.mxu0 %v167
  %780 = vmatpush1.msra.mxu0 %v166
  %781 = vmatprep.subr.mxu0 %v169
  %782 = vmatpush1.msra.mxu0 %v168
  %783 = vmatprep.subr.mxu0 %v171
  %784 = vmatpush1.msra.mxu0 %v170
  %785 = vmatprep.subr.mxu0 %v173
  %786 = vmatpush1.msra.mxu0 %v172
  %787 = vmatprep.subr.mxu0 %v175
  %788 = vmatpush1.msra.mxu0 %v174
  %789 = vmatprep.subr.mxu0 %v177
  %790 = vmatpush1.msra.mxu0 %v176
  %791 = vmatprep.subr.mxu0 %v179
  %792 = vmatpush1.msra.mxu0 %v178
  %793 = vmatprep.subr.mxu0 %v181
  %794 = vmatpush1.msra.mxu0 %v180
  %795 = vmatprep.subr.mxu0 %v183
  %796 = vmatpush1.msra.mxu0 %v182
  %797 = vmatprep.subr.mxu0 %v185
  %798 = vmatpush1.msra.mxu0 %v184
  %799 = vmatprep.subr.mxu0 %v187
  %800 = vmatpush1.msra.mxu0 %v186
  %801 = vmatprep.subr.mxu0 %v189
  %802 = vmatpush1.msra.mxu0 %v188
  %803 = vmatprep.subr.mxu0 %v191
  %804 = vmatpush1.msra.mxu0 %v190
  %805 = vmatprep.subr.mxu0 %v193
  %806 = vmatpush1.msra.mxu0 %v192
  %807 = vmatprep.subr.mxu0 %v195
  %808 = vmatpush1.msra.mxu0 %v194
  %809 = vmatprep.subr.mxu0 %v197
  %810 = vmatpush1.msra.mxu0 %v196
  %811 = vmatprep.subr.mxu0 %v199
  %812 = vmatpush1.msra.mxu0 %v198
  %813 = vmatprep.subr.mxu0 %v201
  %814 = vmatpush1.msra.mxu0 %v200
  %815 = vmatprep.subr.mxu0 %v203
  %816 = vmatpush1.msra.mxu0 %v202
  %817 = vmatprep.subr.mxu0 %v205
  %818 = vmatpush1.msra.mxu0 %v204
  %819 = vmatprep.subr.mxu0 %v207
  %820 = vmatpush1.msra.mxu0 %v206
  %821 = vmatprep.subr.mxu0 %v209
  %822 = vmatpush1.msra.mxu0 %v208
  %823 = vmatprep.subr.mxu0 %v211
  %824 = vmatpush1.msra.mxu0 %v210
  %825 = vmatprep.subr.mxu0 %v213
  %826 = vmatpush1.msra.mxu0 %v212
  %827 = vmatprep.mubr.f32.mxu0 %v17
  %828 = vmatmul.mubr.f32.gmra.mrb[0].mxu0 %v16
  %v829 = vpop.f32.mrb[0].mxu0
  %v830 = vadd.f32 %v741, %v829
  %v831 = vpop.f32.mrb[0].mxu0
  %v832 = vadd.f32 %v743, %v831
  %833 = vmatprep.mubr.f32.mxu0 %v35
  %834 = vmatmul.mubr.f32.gmra.mrb[0].mxu0 %v34
  %v835 = vpop.f32.mrb[0].mxu0
  %v836 = vadd.f32 %v747, %v835
  %v837 = vpop.f32.mrb[0].mxu0
  %v838 = vadd.f32 %v749, %v837
  %839 = vmatprep.mubr.f32.mxu0 %v53
  %840 = vmatmul.mubr.f32.gmra.mrb[0].mxu0 %v52
  %v841 = vpop.f32.mrb[0].mxu0
  %v842 = vadd.f32 %v753, %v841
  %v843 = vpop.f32.mrb[0].mxu0
  %v844 = vadd.f32 %v755, %v843
  %845 = vmatprep.mubr.f32.mxu0 %v71
  %846 = vmatmul.mubr.f32.gmra.mrb[0].mxu0 %v70
  %v847 = vpop.f32.mrb[0].mxu0
  %v848 = vadd.f32 %v759, %v847
  %v849 = vpop.f32.mrb[0].mxu0
  %v850 = vadd.f32 %v761, %v849
  %851 = vdwg.mxu0
  %852 = vmatprep.subr.mxu0 %v215
  %853 = vmatpush1.msra.mxu0 %v214
  %854 = vmatprep.subr.mxu0 %v217
  %855 = vmatpush1.msra.mxu0 %v216
  %856 = vmatprep.subr.mxu0 %v219
  %857 = vmatpush1.msra.mxu0 %v218
  %858 = vmatprep.subr.mxu0 %v221
  %859 = vmatpush1.msra.mxu0 %v220
  %860 = vmatprep.subr.mxu0 %v223
  %861 = vmatpush1.msra.mxu0 %v222
  %862 = vmatprep.subr.mxu0 %v225
  %863 = vmatpush1.msra.mxu0 %v224
  %864 = vmatprep.subr.mxu0 %v227
  %865 = vmatpush1.msra.mxu0 %v226
  %866 = vmatprep.subr.mxu0 %v229
  %867 = vmatpush1.msra.mxu0 %v228
  %868 = vmatprep.subr.mxu0 %v231
  %869 = vmatpush1.msra.mxu0 %v230
  %870 = vmatprep.subr.mxu0 %v233
  %871 = vmatpush1.msra.mxu0 %v232
  %872 = vmatprep.subr.mxu0 %v235
  %873 = vmatpush1.msra.mxu0 %v234
  %874 = vmatprep.subr.mxu0 %v237
  %875 = vmatpush1.msra.mxu0 %v236
  %876 = vmatprep.subr.mxu0 %v239
  %877 = vmatpush1.msra.mxu0 %v238
  %878 = vmatprep.subr.mxu0 %v241
  %879 = vmatpush1.msra.mxu0 %v240
  %880 = vmatprep.subr.mxu0 %v243
  %881 = vmatpush1.msra.mxu0 %v242
  %882 = vmatprep.subr.mxu0 %v245
  %883 = vmatpush1.msra.mxu0 %v244
  %884 = vmatprep.subr.mxu0 %v247
  %885 = vmatpush1.msra.mxu0 %v246
  %886 = vmatprep.subr.mxu0 %v249
  %887 = vmatpush1.msra.mxu0 %v248
  %888 = vmatprep.subr.mxu0 %v251
  %889 = vmatpush1.msra.mxu0 %v250
  %890 = vmatprep.subr.mxu0 %v253
  %891 = vmatpush1.msra.mxu0 %v252
  %892 = vmatprep.subr.mxu0 %v255
  %893 = vmatpush1.msra.mxu0 %v254
  %894 = vmatprep.subr.mxu0 %v257
  %895 = vmatpush1.msra.mxu0 %v256
  %896 = vmatprep.subr.mxu0 %v259
  %897 = vmatpush1.msra.mxu0 %v258
  %898 = vmatprep.subr.mxu0 %v261
  %899 = vmatpush1.msra.mxu0 %v260
  %900 = vmatprep.subr.mxu0 %v263
  %901 = vmatpush1.msra.mxu0 %v262
  %902 = vmatprep.subr.mxu0 %v265
  %903 = vmatpush1.msra.mxu0 %v264
  %904 = vmatprep.subr.mxu0 %v267
  %905 = vmatpush1.msra.mxu0 %v266
  %906 = vmatprep.subr.mxu0 %v269
  %907 = vmatpush1.msra.mxu0 %v268
  %908 = vmatprep.subr.mxu0 %v271
  %909 = vmatpush1.msra.mxu0 %v270
  %910 = vmatprep.subr.mxu0 %v273
  %911 = vmatpush1.msra.mxu0 %v272
  %912 = vmatprep.subr.mxu0 %v275
  %913 = vmatpush1.msra.mxu0 %v274
  %914 = vmatprep.subr.mxu0 %v277
  %915 = vmatpush1.msra.mxu0 %v276
  %916 = vmatprep.mubr.f32.mxu0 %v19
  %917 = vmatmul.mubr.f32.gmra.mrb[0].mxu0 %v18
  %v918 = vpop.f32.mrb[0].mxu0
  %v919 = vadd.f32 %v830, %v918
  %v920 = vpop.f32.mrb[0].mxu0
  %v921 = vadd.f32 %v832, %v920
  %922 = vmatprep.mubr.f32.mxu0 %v37
  %923 = vmatmul.mubr.f32.gmra.mrb[0].mxu0 %v36
  %v924 = vpop.f32.mrb[0].mxu0
  %v925 = vadd.f32 %v836, %v924
  %v926 = vpop.f32.mrb[0].mxu0
  %v927 = vadd.f32 %v838, %v926
  %928 = vmatprep.mubr.f32.mxu0 %v55
  %929 = vmatmul.mubr.f32.gmra.mrb[0].mxu0 %v54
  %v930 = vpop.f32.mrb[0].mxu0
  %v931 = vadd.f32 %v842, %v930
  %v932 = vpop.f32.mrb[0].mxu0
  %v933 = vadd.f32 %v844, %v932
  %934 = vmatprep.mubr.f32.mxu0 %v73
  %935 = vmatmul.mubr.f32.gmra.mrb[0].mxu0 %v72
  %v936 = vpop.f32.mrb[0].mxu0
  %v937 = vadd.f32 %v848, %v936
  %v938 = vpop.f32.mrb[0].mxu0
  %v939 = vadd.f32 %v850, %v938
  %940 = vdwg.mxu0
  %941 = vmatprep.subr.mxu0 %v279
  %942 = vmatpush1.msra.mxu0 %v278
  %943 = vmatprep.subr.mxu0 %v281
  %944 = vmatpush1.msra.mxu0 %v280
  %945 = vmatprep.subr.mxu0 %v283
  %946 = vmatpush1.msra.mxu0 %v282
  %947 = vmatprep.subr.mxu0 %v285
  %948 = vmatpush1.msra.mxu0 %v284
  %949 = vmatprep.subr.mxu0 %v287
  %950 = vmatpush1.msra.mxu0 %v286
  %951 = vmatprep.subr.mxu0 %v289
  %952 = vmatpush1.msra.mxu0 %v288
  %953 = vmatprep.subr.mxu0 %v291
  %954 = vmatpush1.msra.mxu0 %v290
  %955 = vmatprep.subr.mxu0 %v293
  %956 = vmatpush1.msra.mxu0 %v292
  %957 = vmatprep.subr.mxu0 %v295
  %958 = vmatpush1.msra.mxu0 %v294
  %959 = vmatprep.subr.mxu0 %v297
  %960 = vmatpush1.msra.mxu0 %v296
  %961 = vmatprep.subr.mxu0 %v299
  %962 = vmatpush1.msra.mxu0 %v298
  %963 = vmatprep.subr.mxu0 %v301
  %964 = vmatpush1.msra.mxu0 %v300
  %965 = vmatprep.subr.mxu0 %v303
  %966 = vmatpush1.msra.mxu0 %v302
  %967 = vmatprep.subr.mxu0 %v305
  %968 = vmatpush1.msra.mxu0 %v304
  %969 = vmatprep.subr.mxu0 %v307
  %970 = vmatpush1.msra.mxu0 %v306
  %971 = vmatprep.subr.mxu0 %v309
  %972 = vmatpush1.msra.mxu0 %v308
  %973 = vmatprep.subr.mxu0 %v311
  %974 = vmatpush1.msra.mxu0 %v310
  %975 = vmatprep.subr.mxu0 %v313
  %976 = vmatpush1.msra.mxu0 %v312
  %977 = vmatprep.subr.mxu0 %v315
  %978 = vmatpush1.msra.mxu0 %v314
  %979 = vmatprep.subr.mxu0 %v317
  %980 = vmatpush1.msra.mxu0 %v316
  %981 = vmatprep.subr.mxu0 %v319
  %982 = vmatpush1.msra.mxu0 %v318
  %983 = vmatprep.subr.mxu0 %v321
  %984 = vmatpush1.msra.mxu0 %v320
  %985 = vmatprep.subr.mxu0 %v323
  %986 = vmatpush1.msra.mxu0 %v322
  %987 = vmatprep.subr.mxu0 %v325
  %988 = vmatpush1.msra.mxu0 %v324
  %989 = vmatprep.subr.mxu0 %v327
  %990 = vmatpush1.msra.mxu0 %v326
  %991 = vmatprep.subr.mxu0 %v329
  %992 = vmatpush1.msra.mxu0 %v328
  %993 = vmatprep.subr.mxu0 %v331
  %994 = vmatpush1.msra.mxu0 %v330
  %995 = vmatprep.subr.mxu0 %v333
  %996 = vmatpush1.msra.mxu0 %v332
  %997 = vmatprep.subr.mxu0 %v335
  %998 = vmatpush1.msra.mxu0 %v334
  %999 = vmatprep.subr.mxu0 %v337
  %1000 = vmatpush1.msra.mxu0 %v336
  %1001 = vmatprep.subr.mxu0 %v339
  %1002 = vmatpush1.msra.mxu0 %v338
  %1003 = vmatprep.subr.mxu0 %v341
  %1004 = vmatpush1.msra.mxu0 %v340
  %1005 = vmatprep.mubr.f32.mxu0 %v21
  %1006 = vmatmul.mubr.f32.gmra.mrb[0].mxu0 %v20
  %v1007 = vpop.f32.mrb[0].mxu0
  %v1008 = vadd.f32 %v919, %v1007
  %v1009 = vpop.f32.mrb[0].mxu0
  %v1010 = vadd.f32 %v921, %v1009
  %1011 = vmatprep.mubr.f32.mxu0 %v39
  %1012 = vmatmul.mubr.f32.gmra.mrb[0].mxu0 %v38
  %v1013 = vpop.f32.mrb[0].mxu0
  %v1014 = vadd.f32 %v925, %v1013
  %v1015 = vpop.f32.mrb[0].mxu0
  %v1016 = vadd.f32 %v927, %v1015
  %1017 = vmatprep.mubr.f32.mxu0 %v57
  %1018 = vmatmul.mubr.f32.gmra.mrb[0].mxu0 %v56
  %v1019 = vpop.f32.mrb[0].mxu0
  %v1020 = vadd.f32 %v931, %v1019
  %v1021 = vpop.f32.mrb[0].mxu0
  %v1022 = vadd.f32 %v933, %v1021
  %1023 = vmatprep.mubr.f32.mxu0 %v75
  %1024 = vmatmul.mubr.f32.gmra.mrb[0].mxu0 %v74
  %v1025 = vpop.f32.mrb[0].mxu0
  %v1026 = vadd.f32 %v937, %v1025
  %v1027 = vpop.f32.mrb[0].mxu0
  %v1028 = vadd.f32 %v939, %v1027
  %1029 = vdwg.mxu0
  %1030 = vmatprep.subr.mxu0 %v343
  %1031 = vmatpush1.msra.mxu0 %v342
  %1032 = vmatprep.subr.mxu0 %v345
  %1033 = vmatpush1.msra.mxu0 %v344
  %1034 = vmatprep.subr.mxu0 %v347
  %1035 = vmatpush1.msra.mxu0 %v346
  %1036 = vmatprep.subr.mxu0 %v349
  %1037 = vmatpush1.msra.mxu0 %v348
  %1038 = vmatprep.subr.mxu0 %v351
  %1039 = vmatpush1.msra.mxu0 %v350
  %1040 = vmatprep.subr.mxu0 %v353
  %1041 = vmatpush1.msra.mxu0 %v352
  %1042 = vmatprep.subr.mxu0 %v355
  %1043 = vmatpush1.msra.mxu0 %v354
  %1044 = vmatprep.subr.mxu0 %v357
  %1045 = vmatpush1.msra.mxu0 %v356
  %1046 = vmatprep.subr.mxu0 %v359
  %1047 = vmatpush1.msra.mxu0 %v358
  %1048 = vmatprep.subr.mxu0 %v361
  %1049 = vmatpush1.msra.mxu0 %v360
  %1050 = vmatprep.subr.mxu0 %v363
  %1051 = vmatpush1.msra.mxu0 %v362
  %1052 = vmatprep.subr.mxu0 %v365
  %1053 = vmatpush1.msra.mxu0 %v364
  %1054 = vmatprep.subr.mxu0 %v367
  %1055 = vmatpush1.msra.mxu0 %v366
  %1056 = vmatprep.subr.mxu0 %v369
  %1057 = vmatpush1.msra.mxu0 %v368
  %1058 = vmatprep.subr.mxu0 %v371
  %1059 = vmatpush1.msra.mxu0 %v370
  %1060 = vmatprep.subr.mxu0 %v373
  %1061 = vmatpush1.msra.mxu0 %v372
  %1062 = vmatprep.subr.mxu0 %v375
  %1063 = vmatpush1.msra.mxu0 %v374
  %1064 = vmatprep.subr.mxu0 %v377
  %1065 = vmatpush1.msra.mxu0 %v376
  %1066 = vmatprep.subr.mxu0 %v379
  %1067 = vmatpush1.msra.mxu0 %v378
  %1068 = vmatprep.subr.mxu0 %v381
  %1069 = vmatpush1.msra.mxu0 %v380
  %1070 = vmatprep.subr.mxu0 %v383
  %1071 = vmatpush1.msra.mxu0 %v382
  %1072 = vmatprep.subr.mxu0 %v385
  %1073 = vmatpush1.msra.mxu0 %v384
  %1074 = vmatprep.subr.mxu0 %v387
  %1075 = vmatpush1.msra.mxu0 %v386
  %1076 = vmatprep.subr.mxu0 %v389
  %1077 = vmatpush1.msra.mxu0 %v388
  %1078 = vmatprep.subr.mxu0 %v391
  %1079 = vmatpush1.msra.mxu0 %v390
  %1080 = vmatprep.subr.mxu0 %v393
  %1081 = vmatpush1.msra.mxu0 %v392
  %1082 = vmatprep.subr.mxu0 %v395
  %1083 = vmatpush1.msra.mxu0 %v394
  %1084 = vmatprep.subr.mxu0 %v397
  %1085 = vmatpush1.msra.mxu0 %v396
  %1086 = vmatprep.subr.mxu0 %v399
  %1087 = vmatpush1.msra.mxu0 %v398
  %1088 = vmatprep.subr.mxu0 %v401
  %1089 = vmatpush1.msra.mxu0 %v400
  %1090 = vmatprep.subr.mxu0 %v403
  %1091 = vmatpush1.msra.mxu0 %v402
  %1092 = vmatprep.subr.mxu0 %v405
  %1093 = vmatpush1.msra.mxu0 %v404
  %1094 = vmatprep.mubr.f32.mxu0 %v23
  %1095 = vmatmul.mubr.f32.gmra.mrb[0].mxu0 %v22
  %v1096 = vpop.f32.mrb[0].mxu0
  %v1097 = vadd.f32 %v1008, %v1096
  %v1098 = vpop.f32.mrb[0].mxu0
  %v1099 = vadd.f32 %v1010, %v1098
  %1100 = vmatprep.mubr.f32.mxu0 %v41
  %1101 = vmatmul.mubr.f32.gmra.mrb[0].mxu0 %v40
  %v1102 = vpop.f32.mrb[0].mxu0
  %v1103 = vadd.f32 %v1014, %v1102
  %v1104 = vpop.f32.mrb[0].mxu0
  %v1105 = vadd.f32 %v1016, %v1104
  %1106 = vmatprep.mubr.f32.mxu0 %v59
  %1107 = vmatmul.mubr.f32.gmra.mrb[0].mxu0 %v58
  %v1108 = vpop.f32.mrb[0].mxu0
  %v1109 = vadd.f32 %v1020, %v1108
  %v1110 = vpop.f32.mrb[0].mxu0
  %v1111 = vadd.f32 %v1022, %v1110
  %1112 = vmatprep.mubr.f32.mxu0 %v77
  %1113 = vmatmul.mubr.f32.gmra.mrb[0].mxu0 %v76
  %v1114 = vpop.f32.mrb[0].mxu0
  %v1115 = vadd.f32 %v1026, %v1114
  %v1116 = vpop.f32.mrb[0].mxu0
  %v1117 = vadd.f32 %v1028, %v1116
  %1118 = vdwg.mxu0
  %1119 = vmatprep.subr.mxu0 %v407
  %1120 = vmatpush1.msra.mxu0 %v406
  %1121 = vmatprep.subr.mxu0 %v409
  %1122 = vmatpush1.msra.mxu0 %v408
  %1123 = vmatprep.subr.mxu0 %v411
  %1124 = vmatpush1.msra.mxu0 %v410
  %1125 = vmatprep.subr.mxu0 %v413
  %1126 = vmatpush1.msra.mxu0 %v412
  %1127 = vmatprep.subr.mxu0 %v415
  %1128 = vmatpush1.msra.mxu0 %v414
  %1129 = vmatprep.subr.mxu0 %v417
  %1130 = vmatpush1.msra.mxu0 %v416
  %1131 = vmatprep.subr.mxu0 %v419
  %1132 = vmatpush1.msra.mxu0 %v418
  %1133 = vmatprep.subr.mxu0 %v421
  %1134 = vmatpush1.msra.mxu0 %v420
  %1135 = vmatprep.subr.mxu0 %v423
  %1136 = vmatpush1.msra.mxu0 %v422
  %1137 = vmatprep.subr.mxu0 %v425
  %1138 = vmatpush1.msra.mxu0 %v424
  %1139 = vmatprep.subr.mxu0 %v427
  %1140 = vmatpush1.msra.mxu0 %v426
  %1141 = vmatprep.subr.mxu0 %v429
  %1142 = vmatpush1.msra.mxu0 %v428
  %1143 = vmatprep.subr.mxu0 %v431
  %1144 = vmatpush1.msra.mxu0 %v430
  %1145 = vmatprep.subr.mxu0 %v433
  %1146 = vmatpush1.msra.mxu0 %v432
  %1147 = vmatprep.subr.mxu0 %v435
  %1148 = vmatpush1.msra.mxu0 %v434
  %1149 = vmatprep.subr.mxu0 %v437
  %1150 = vmatpush1.msra.mxu0 %v436
  %1151 = vmatprep.subr.mxu0 %v439
  %1152 = vmatpush1.msra.mxu0 %v438
  %1153 = vmatprep.subr.mxu0 %v441
  %1154 = vmatpush1.msra.mxu0 %v440
  %1155 = vmatprep.subr.mxu0 %v443
  %1156 = vmatpush1.msra.mxu0 %v442
  %1157 = vmatprep.subr.mxu0 %v445
  %1158 = vmatpush1.msra.mxu0 %v444
  %1159 = vmatprep.subr.mxu0 %v447
  %1160 = vmatpush1.msra.mxu0 %v446
  %1161 = vmatprep.subr.mxu0 %v449
  %1162 = vmatpush1.msra.mxu0 %v448
  %1163 = vmatprep.subr.mxu0 %v451
  %1164 = vmatpush1.msra.mxu0 %v450
  %1165 = vmatprep.subr.mxu0 %v453
  %1166 = vmatpush1.msra.mxu0 %v452
  %1167 = vmatprep.subr.mxu0 %v455
  %1168 = vmatpush1.msra.mxu0 %v454
  %1169 = vmatprep.subr.mxu0 %v457
  %1170 = vmatpush1.msra.mxu0 %v456
  %1171 = vmatprep.subr.mxu0 %v459
  %1172 = vmatpush1.msra.mxu0 %v458
  %1173 = vmatprep.subr.mxu0 %v461
  %1174 = vmatpush1.msra.mxu0 %v460
  %1175 = vmatprep.subr.mxu0 %v463
  %1176 = vmatpush1.msra.mxu0 %v462
  %1177 = vmatprep.subr.mxu0 %v465
  %1178 = vmatpush1.msra.mxu0 %v464
  %1179 = vmatprep.subr.mxu0 %v467
  %1180 = vmatpush1.msra.mxu0 %v466
  %1181 = vmatprep.subr.mxu0 %v469
  %1182 = vmatpush1.msra.mxu0 %v468
  %1183 = vmatprep.mubr.f32.mxu0 %v25
  %1184 = vmatmul.mubr.f32.gmra.mrb[0].mxu0 %v24
  %v1185 = vpop.f32.mrb[0].mxu0
  %v1186 = vadd.f32 %v1097, %v1185
  %v1187 = vpop.f32.mrb[0].mxu0
  %v1188 = vadd.f32 %v1099, %v1187
  %1189 = vmatprep.mubr.f32.mxu0 %v43
  %1190 = vmatmul.mubr.f32.gmra.mrb[0].mxu0 %v42
  %v1191 = vpop.f32.mrb[0].mxu0
  %v1192 = vadd.f32 %v1103, %v1191
  %v1193 = vpop.f32.mrb[0].mxu0
  %v1194 = vadd.f32 %v1105, %v1193
  %1195 = vmatprep.mubr.f32.mxu0 %v61
  %1196 = vmatmul.mubr.f32.gmra.mrb[0].mxu0 %v60
  %v1197 = vpop.f32.mrb[0].mxu0
  %v1198 = vadd.f32 %v1109, %v1197
  %v1199 = vpop.f32.mrb[0].mxu0
  %v1200 = vadd.f32 %v1111, %v1199
  %1201 = vmatprep.mubr.f32.mxu0 %v79
  %1202 = vmatmul.mubr.f32.gmra.mrb[0].mxu0 %v78
  %v1203 = vpop.f32.mrb[0].mxu0
  %v1204 = vadd.f32 %v1115, %v1203
  %v1205 = vpop.f32.mrb[0].mxu0
  %v1206 = vadd.f32 %v1117, %v1205
  %1207 = vdwg.mxu0
  %1208 = vmatprep.subr.mxu0 %v471
  %1209 = vmatpush1.msra.mxu0 %v470
  %1210 = vmatprep.subr.mxu0 %v473
  %1211 = vmatpush1.msra.mxu0 %v472
  %1212 = vmatprep.subr.mxu0 %v475
  %1213 = vmatpush1.msra.mxu0 %v474
  %1214 = vmatprep.subr.mxu0 %v477
  %1215 = vmatpush1.msra.mxu0 %v476
  %1216 = vmatprep.subr.mxu0 %v479
  %1217 = vmatpush1.msra.mxu0 %v478
  %1218 = vmatprep.subr.mxu0 %v481
  %1219 = vmatpush1.msra.mxu0 %v480
  %1220 = vmatprep.subr.mxu0 %v483
  %1221 = vmatpush1.msra.mxu0 %v482
  %1222 = vmatprep.subr.mxu0 %v485
  %1223 = vmatpush1.msra.mxu0 %v484
  %1224 = vmatprep.subr.mxu0 %v487
  %1225 = vmatpush1.msra.mxu0 %v486
  %1226 = vmatprep.subr.mxu0 %v489
  %1227 = vmatpush1.msra.mxu0 %v488
  %1228 = vmatprep.subr.mxu0 %v491
  %1229 = vmatpush1.msra.mxu0 %v490
  %1230 = vmatprep.subr.mxu0 %v493
  %1231 = vmatpush1.msra.mxu0 %v492
  %1232 = vmatprep.subr.mxu0 %v495
  %1233 = vmatpush1.msra.mxu0 %v494
  %1234 = vmatprep.subr.mxu0 %v497
  %1235 = vmatpush1.msra.mxu0 %v496
  %1236 = vmatprep.subr.mxu0 %v499
  %1237 = vmatpush1.msra.mxu0 %v498
  %1238 = vmatprep.subr.mxu0 %v501
  %1239 = vmatpush1.msra.mxu0 %v500
  %1240 = vmatprep.subr.mxu0 %v503
  %1241 = vmatpush1.msra.mxu0 %v502
  %1242 = vmatprep.subr.mxu0 %v505
  %1243 = vmatpush1.msra.mxu0 %v504
  %1244 = vmatprep.subr.mxu0 %v507
  %1245 = vmatpush1.msra.mxu0 %v506
  %1246 = vmatprep.subr.mxu0 %v509
  %1247 = vmatpush1.msra.mxu0 %v508
  %1248 = vmatprep.subr.mxu0 %v511
  %1249 = vmatpush1.msra.mxu0 %v510
  %1250 = vmatprep.subr.mxu0 %v513
  %1251 = vmatpush1.msra.mxu0 %v512
  %1252 = vmatprep.subr.mxu0 %v515
  %1253 = vmatpush1.msra.mxu0 %v514
  %1254 = vmatprep.subr.mxu0 %v517
  %1255 = vmatpush1.msra.mxu0 %v516
  %1256 = vmatprep.subr.mxu0 %v519
  %1257 = vmatpush1.msra.mxu0 %v518
  %1258 = vmatprep.subr.mxu0 %v521
  %1259 = vmatpush1.msra.mxu0 %v520
  %1260 = vmatprep.subr.mxu0 %v523
  %1261 = vmatpush1.msra.mxu0 %v522
  %1262 = vmatprep.subr.mxu0 %v525
  %1263 = vmatpush1.msra.mxu0 %v524
  %1264 = vmatprep.subr.mxu0 %v527
  %1265 = vmatpush1.msra.mxu0 %v526
  %1266 = vmatprep.subr.mxu0 %v529
  %1267 = vmatpush1.msra.mxu0 %v528
  %1268 = vmatprep.subr.mxu0 %v531
  %1269 = vmatpush1.msra.mxu0 %v530
  %1270 = vmatprep.subr.mxu0 %v533
  %1271 = vmatpush1.msra.mxu0 %v532
  %1272 = vmatprep.mubr.f32.mxu0 %v27
  %1273 = vmatmul.mubr.f32.gmra.mrb[0].mxu0 %v26
  %v1274 = vpop.f32.mrb[0].mxu0
  %v1275 = vadd.f32 %v1186, %v1274
  %v1276 = vpop.f32.mrb[0].mxu0
  %v1277 = vadd.f32 %v1188, %v1276
  %1278 = vmatprep.mubr.f32.mxu0 %v45
  %1279 = vmatmul.mubr.f32.gmra.mrb[0].mxu0 %v44
  %v1280 = vpop.f32.mrb[0].mxu0
  %v1281 = vadd.f32 %v1192, %v1280
  %v1282 = vpop.f32.mrb[0].mxu0
  %v1283 = vadd.f32 %v1194, %v1282
  %1284 = vmatprep.mubr.f32.mxu0 %v63
  %1285 = vmatmul.mubr.f32.gmra.mrb[0].mxu0 %v62
  %v1286 = vpop.f32.mrb[0].mxu0
  %v1287 = vadd.f32 %v1198, %v1286
  %v1288 = vpop.f32.mrb[0].mxu0
  %v1289 = vadd.f32 %v1200, %v1288
  %1290 = vmatprep.mubr.f32.mxu0 %v81
  %1291 = vmatmul.mubr.f32.gmra.mrb[0].mxu0 %v80
  %v1292 = vpop.f32.mrb[0].mxu0
  %v1293 = vadd.f32 %v1204, %v1292
  %v1294 = vpop.f32.mrb[0].mxu0
  %v1295 = vadd.f32 %v1206, %v1294
  %1296 = vdwg.mxu0
  %1297 = vmatprep.subr.mxu0 %v535
  %1298 = vmatpush1.msra.mxu0 %v534
  %1299 = vmatprep.subr.mxu0 %v537
  %1300 = vmatpush1.msra.mxu0 %v536
  %1301 = vmatprep.subr.mxu0 %v539
  %1302 = vmatpush1.msra.mxu0 %v538
  %1303 = vmatprep.subr.mxu0 %v541
  %1304 = vmatpush1.msra.mxu0 %v540
  %1305 = vmatprep.subr.mxu0 %v543
  %1306 = vmatpush1.msra.mxu0 %v542
  %1307 = vmatprep.subr.mxu0 %v545
  %1308 = vmatpush1.msra.mxu0 %v544
  %1309 = vmatprep.subr.mxu0 %v547
  %1310 = vmatpush1.msra.mxu0 %v546
  %1311 = vmatprep.subr.mxu0 %v549
  %1312 = vmatpush1.msra.mxu0 %v548
  %1313 = vmatprep.subr.mxu0 %v551
  %1314 = vmatpush1.msra.mxu0 %v550
  %1315 = vmatprep.subr.mxu0 %v553
  %1316 = vmatpush1.msra.mxu0 %v552
  %1317 = vmatprep.subr.mxu0 %v555
  %1318 = vmatpush1.msra.mxu0 %v554
  %1319 = vmatprep.subr.mxu0 %v557
  %1320 = vmatpush1.msra.mxu0 %v556
  %1321 = vmatprep.subr.mxu0 %v559
  %1322 = vmatpush1.msra.mxu0 %v558
  %1323 = vmatprep.subr.mxu0 %v561
  %1324 = vmatpush1.msra.mxu0 %v560
  %1325 = vmatprep.subr.mxu0 %v563
  %1326 = vmatpush1.msra.mxu0 %v562
  %1327 = vmatprep.subr.mxu0 %v565
  %1328 = vmatpush1.msra.mxu0 %v564
  %1329 = vmatprep.subr.mxu0 %v567
  %1330 = vmatpush1.msra.mxu0 %v566
  %1331 = vmatprep.subr.mxu0 %v569
  %1332 = vmatpush1.msra.mxu0 %v568
  %1333 = vmatprep.subr.mxu0 %v571
  %1334 = vmatpush1.msra.mxu0 %v570
  %1335 = vmatprep.subr.mxu0 %v573
  %1336 = vmatpush1.msra.mxu0 %v572
  %1337 = vmatprep.subr.mxu0 %v575
  %1338 = vmatpush1.msra.mxu0 %v574
  %1339 = vmatprep.subr.mxu0 %v577
  %1340 = vmatpush1.msra.mxu0 %v576
  %1341 = vmatprep.subr.mxu0 %v579
  %1342 = vmatpush1.msra.mxu0 %v578
  %1343 = vmatprep.subr.mxu0 %v581
  %1344 = vmatpush1.msra.mxu0 %v580
  %1345 = vmatprep.subr.mxu0 %v583
  %1346 = vmatpush1.msra.mxu0 %v582
  %1347 = vmatprep.subr.mxu0 %v585
  %1348 = vmatpush1.msra.mxu0 %v584
  %1349 = vmatprep.subr.mxu0 %v587
  %1350 = vmatpush1.msra.mxu0 %v586
  %1351 = vmatprep.subr.mxu0 %v589
  %1352 = vmatpush1.msra.mxu0 %v588
  %1353 = vmatprep.subr.mxu0 %v591
  %1354 = vmatpush1.msra.mxu0 %v590
  %1355 = vmatprep.subr.mxu0 %v593
  %1356 = vmatpush1.msra.mxu0 %v592
  %1357 = vmatprep.subr.mxu0 %v595
  %1358 = vmatpush1.msra.mxu0 %v594
  %1359 = vmatprep.subr.mxu0 %v597
  %1360 = vmatpush1.msra.mxu0 %v596
  %1361 = vmatprep.mubr.f32.mxu0 %v29
  %1362 = vmatmul.mubr.f32.gmra.mrb[0].mxu0 %v28
  %v1363 = vpop.f32.mrb[0].mxu0
  %v1364 = vadd.f32 %v1275, %v1363
  %v1365 = vpop.f32.mrb[0].mxu0
  %v1366 = vadd.f32 %v1277, %v1365
  %1367 = vmatprep.mubr.f32.mxu0 %v47
  %1368 = vmatmul.mubr.f32.gmra.mrb[0].mxu0 %v46
  %v1369 = vpop.f32.mrb[0].mxu0
  %v1370 = vadd.f32 %v1281, %v1369
  %v1371 = vpop.f32.mrb[0].mxu0
  %v1372 = vadd.f32 %v1283, %v1371
  %1373 = vmatprep.mubr.f32.mxu0 %v65
  %1374 = vmatmul.mubr.f32.gmra.mrb[0].mxu0 %v64
  %v1375 = vpop.f32.mrb[0].mxu0
  %v1376 = vadd.f32 %v1287, %v1375
  %v1377 = vpop.f32.mrb[0].mxu0
  %v1378 = vadd.f32 %v1289, %v1377
  %1379 = vmatprep.mubr.f32.mxu0 %v83
  %1380 = vmatmul.mubr.f32.gmra.mrb[0].mxu0 %v82
  %v1381 = vpop.f32.mrb[0].mxu0
  %v1382 = vadd.f32 %v1293, %v1381
  %v1383 = vpop.f32.mrb[0].mxu0
  %v1384 = vadd.f32 %v1295, %v1383
  %1385 = vdwg.mxu0
  %1386 = vmatprep.subr.mxu0 %v599
  %1387 = vmatpush1.msra.mxu0 %v598
  %1388 = vmatprep.subr.mxu0 %v601
  %1389 = vmatpush1.msra.mxu0 %v600
  %1390 = vmatprep.subr.mxu0 %v603
  %1391 = vmatpush1.msra.mxu0 %v602
  %1392 = vmatprep.subr.mxu0 %v605
  %1393 = vmatpush1.msra.mxu0 %v604
  %1394 = vmatprep.subr.mxu0 %v607
  %1395 = vmatpush1.msra.mxu0 %v606
  %1396 = vmatprep.subr.mxu0 %v609
  %1397 = vmatpush1.msra.mxu0 %v608
  %1398 = vmatprep.subr.mxu0 %v611
  %1399 = vmatpush1.msra.mxu0 %v610
  %1400 = vmatprep.subr.mxu0 %v613
  %1401 = vmatpush1.msra.mxu0 %v612
  %1402 = vmatprep.subr.mxu0 %v615
  %1403 = vmatpush1.msra.mxu0 %v614
  %1404 = vmatprep.subr.mxu0 %v617
  %1405 = vmatpush1.msra.mxu0 %v616
  %1406 = vmatprep.subr.mxu0 %v619
  %1407 = vmatpush1.msra.mxu0 %v618
  %1408 = vmatprep.subr.mxu0 %v621
  %1409 = vmatpush1.msra.mxu0 %v620
  %1410 = vmatprep.subr.mxu0 %v623
  %1411 = vmatpush1.msra.mxu0 %v622
  %1412 = vmatprep.subr.mxu0 %v625
  %1413 = vmatpush1.msra.mxu0 %v624
  %1414 = vmatprep.subr.mxu0 %v627
  %1415 = vmatpush1.msra.mxu0 %v626
  %1416 = vmatprep.subr.mxu0 %v629
  %1417 = vmatpush1.msra.mxu0 %v628
  %1418 = vmatprep.subr.mxu0 %v631
  %1419 = vmatpush1.msra.mxu0 %v630
  %1420 = vmatprep.subr.mxu0 %v633
  %1421 = vmatpush1.msra.mxu0 %v632
  %1422 = vmatprep.subr.mxu0 %v635
  %1423 = vmatpush1.msra.mxu0 %v634
  %1424 = vmatprep.subr.mxu0 %v637
  %1425 = vmatpush1.msra.mxu0 %v636
  %1426 = vmatprep.subr.mxu0 %v639
  %1427 = vmatpush1.msra.mxu0 %v638
  %1428 = vmatprep.subr.mxu0 %v641
  %1429 = vmatpush1.msra.mxu0 %v640
  %1430 = vmatprep.subr.mxu0 %v643
  %1431 = vmatpush1.msra.mxu0 %v642
  %1432 = vmatprep.subr.mxu0 %v645
  %1433 = vmatpush1.msra.mxu0 %v644
  %1434 = vmatprep.subr.mxu0 %v647
  %1435 = vmatpush1.msra.mxu0 %v646
  %1436 = vmatprep.subr.mxu0 %v649
  %1437 = vmatpush1.msra.mxu0 %v648
  %1438 = vmatprep.subr.mxu0 %v651
  %1439 = vmatpush1.msra.mxu0 %v650
  %1440 = vmatprep.subr.mxu0 %v653
  %1441 = vmatpush1.msra.mxu0 %v652
  %1442 = vmatprep.subr.mxu0 %v655
  %1443 = vmatpush1.msra.mxu0 %v654
  %1444 = vmatprep.subr.mxu0 %v657
  %1445 = vmatpush1.msra.mxu0 %v656
  %1446 = vmatprep.subr.mxu0 %v659
  %1447 = vmatpush1.msra.mxu0 %v658
  %1448 = vmatprep.subr.mxu0 %v661
  %1449 = vmatpush1.msra.mxu0 %v660
  %1450 = vmatprep.mubr.f32.mxu0 %v31
  %1451 = vmatmul.mubr.f32.gmra.mrb[0].mxu0 %v30
  %v1452 = vpop.f32.mrb[0].mxu0
  %v1453 = vadd.f32 %v1364, %v1452
  %v1454 = vpop.f32.mrb[0].mxu0
  %v1455 = vadd.f32 %v1366, %v1454
  %1456 = vmatprep.mubr.f32.mxu0 %v49
  %1457 = vmatmul.mubr.f32.gmra.mrb[0].mxu0 %v48
  %v1458 = vpop.f32.mrb[0].mxu0
  %v1459 = vadd.f32 %v1370, %v1458
  %v1460 = vpop.f32.mrb[0].mxu0
  %v1461 = vadd.f32 %v1372, %v1460
  %1462 = vmatprep.mubr.f32.mxu0 %v67
  %1463 = vmatmul.mubr.f32.gmra.mrb[0].mxu0 %v66
  %v1464 = vpop.f32.mrb[0].mxu0
  %v1465 = vadd.f32 %v1376, %v1464
  %v1466 = vpop.f32.mrb[0].mxu0
  %v1467 = vadd.f32 %v1378, %v1466
  %1468 = vmatprep.mubr.f32.mxu0 %v85
  %1469 = vmatmul.mubr.f32.gmra.mrb[0].mxu0 %v84
  %v1470 = vpop.f32.mrb[0].mxu0
  %v1471 = vadd.f32 %v1382, %v1470
  %v1472 = vpop.f32.mrb[0].mxu0
  %v1473 = vadd.f32 %v1384, %v1472
  %1474 = vdwg.mxu0
  %1475 = vst [vmem:[%s3] sm:$0xff] %v1453
  %1476 = vst [vmem:[%s3 + $0x8] sm:$0xff] %v1455
  %1477 = vst [vmem:[%s3 + $0x10] sm:$0xff] %v1459
  %1478 = vst [vmem:[%s3 + $0x18] sm:$0xff] %v1461
  %1479 = vst [vmem:[%s3 + $0x20] sm:$0xff] %v1465
  %1480 = vst [vmem:[%s3 + $0x28] sm:$0xff] %v1467
  %1481 = vst [vmem:[%s3 + $0x30] sm:$0xff] %v1471
  %1482 = vst [vmem:[%s3 + $0x38] sm:$0xff] %v1473
  // Predicated region
  $region14: #{basic_block_forward.59} parent=0 // pred_check
    _
  $region15: #{basic_block_forward.59} parent=0 // pred_check_branch
    %1484 = sbr.rel (0) target = $region17
  $region16: #{basic_block_forward.59} parent=0 // pred_region
    _
  $region17: #{basic_block_forward.59} parent=0 // pred_fallthru
    _
  // Predicated region
  $region18: #{basic_block_forward.59} parent=0 // pred_check
    _
  $region19: #{basic_block_forward.59} parent=0 // pred_check_branch
    %1486 = sbr.rel (0) target = $region21
  $region20: #{basic_block_forward.59} parent=0 // pred_region
    _
  $region21: #{basic_block_forward.59} parent=0 // pred_fallthru
    _

// kernel: basic_block_forward.60
$region0: #{basic_block_forward.60}
  #allocation0 [shape = 'u32[]', space=smem, size = 0x4, offset = 0x4, fixed_abs, tag = 'smem constant byte address 0x4 - core index']
  #allocation1 [shape = 'u32[144,128]{1,0:T(1,128)}', space=vmem, size = 0x12000, scoped, tag = 'internal scratch']
  %s0 = inlined_call_operand.vmem [shape: f32[32,256], index: 0, kind: input, shape index: {}]
  %s1 = inlined_call_operand.vmem [shape: f32[32,256], index: 1, kind: input, shape index: {}]
  %s2 = inlined_call_operand.vmem [shape: f32[32,256], index: 2, kind: input, shape index: {}]
  %s3 = inlined_call_operand.vmem [shape: f32[32,256], index: 3, kind: output, shape index: {}]
  %s4 = sld [smem:[#allocation0]]
  $region22: #{basic_block_forward.60} parent=0
    _
  %s6 = ssub.s32 1, %s4
  %s7 = scalar_select 0, %s6, %s4
  // Predicated region
  $region2: #{basic_block_forward.60} parent=0 // pred_check
    _
  $region3: #{basic_block_forward.60} parent=0 // pred_check_branch
    %9 = sbr.rel (0) target = $region5
  $region4: #{basic_block_forward.60} parent=0 // pred_region
    _
  $region5: #{basic_block_forward.60} parent=0 // pred_fallthru
    _
  // Predicated region
  $region6: #{basic_block_forward.60} parent=0 // pred_check
    _
  $region7: #{basic_block_forward.60} parent=0 // pred_check_branch
    %11 = sbr.rel (0) target = $region9
  $region8: #{basic_block_forward.60} parent=0 // pred_region
    _
  $region9: #{basic_block_forward.60} parent=0 // pred_fallthru
    _
  // Predicated region
  $region10: #{basic_block_forward.60} parent=0 // pred_check
    _
  $region11: #{basic_block_forward.60} parent=0 // pred_check_branch
    %13 = sbr.rel (0) target = $region13
  $region12: #{basic_block_forward.60} parent=0 // pred_region
    _
  $region13: #{basic_block_forward.60} parent=0 // pred_fallthru
    _
  %v14 = vld [vmem:[%s0] sm:$0xff]
  %v15 = vld [vmem:[%s0 + $0x8] sm:$0xff]
  %v16 = vld [vmem:[%s0 + $0x10] sm:$0xff]
  %v17 = vld [vmem:[%s0 + $0x18] sm:$0xff]
  %v18 = vld [vmem:[%s0 + $0x20] sm:$0xff]
  %v19 = vld [vmem:[%s0 + $0x28] sm:$0xff]
  %v20 = vld [vmem:[%s0 + $0x30] sm:$0xff]
  %v21 = vld [vmem:[%s0 + $0x38] sm:$0xff]
  %v22 = vld [vmem:[%s1] sm:$0xff]
  %v23 = vld [vmem:[%s1 + $0x8] sm:$0xff]
  %v24 = vld [vmem:[%s1 + $0x10] sm:$0xff]
  %v25 = vld [vmem:[%s1 + $0x18] sm:$0xff]
  %v26 = vld [vmem:[%s1 + $0x20] sm:$0xff]
  %v27 = vld [vmem:[%s1 + $0x28] sm:$0xff]
  %v28 = vld [vmem:[%s1 + $0x30] sm:$0xff]
  %v29 = vld [vmem:[%s1 + $0x38] sm:$0xff]
  %v30 = vadd.f32 %v14, %v22
  %v31 = vadd.f32 %v15, %v23
  %v32 = vadd.f32 %v16, %v24
  %v33 = vadd.f32 %v17, %v25
  %v34 = vadd.f32 %v18, %v26
  %v35 = vadd.f32 %v19, %v27
  %v36 = vadd.f32 %v20, %v28
  %v37 = vadd.f32 %v21, %v29
  %v38 = vld [vmem:[%s2] sm:$0xff]
  %v39 = vld [vmem:[%s2 + $0x8] sm:$0xff]
  %v40 = vld [vmem:[%s2 + $0x10] sm:$0xff]
  %v41 = vld [vmem:[%s2 + $0x18] sm:$0xff]
  %v42 = vld [vmem:[%s2 + $0x20] sm:$0xff]
  %v43 = vld [vmem:[%s2 + $0x28] sm:$0xff]
  %v44 = vld [vmem:[%s2 + $0x30] sm:$0xff]
  %v45 = vld [vmem:[%s2 + $0x38] sm:$0xff]
  %v46 = vadd.f32 %v30, %v38
  %v47 = vadd.f32 %v31, %v39
  %v48 = vadd.f32 %v32, %v40
  %v49 = vadd.f32 %v33, %v41
  %v50 = vadd.f32 %v34, %v42
  %v51 = vadd.f32 %v35, %v43
  %v52 = vadd.f32 %v36, %v44
  %v53 = vadd.f32 %v37, %v45
  %54 = vst [vmem:[%s3] sm:$0xff] %v46
  %55 = vst [vmem:[%s3 + $0x8] sm:$0xff] %v47
  %56 = vst [vmem:[%s3 + $0x10] sm:$0xff] %v48
  %57 = vst [vmem:[%s3 + $0x18] sm:$0xff] %v49
  %58 = vst [vmem:[%s3 + $0x20] sm:$0xff] %v50
  %59 = vst [vmem:[%s3 + $0x28] sm:$0xff] %v51
  %60 = vst [vmem:[%s3 + $0x30] sm:$0xff] %v52
  %61 = vst [vmem:[%s3 + $0x38] sm:$0xff] %v53
  // Predicated region
  $region14: #{basic_block_forward.60} parent=0 // pred_check
    _
  $region15: #{basic_block_forward.60} parent=0 // pred_check_branch
    %63 = sbr.rel (0) target = $region17
  $region16: #{basic_block_forward.60} parent=0 // pred_region
    _
  $region17: #{basic_block_forward.60} parent=0 // pred_fallthru
    _
  // Predicated region
  $region18: #{basic_block_forward.60} parent=0 // pred_check
    _
  $region19: #{basic_block_forward.60} parent=0 // pred_check_branch
    %65 = sbr.rel (0) target = $region21
  $region20: #{basic_block_forward.60} parent=0 // pred_region
    _
  $region21: #{basic_block_forward.60} parent=0 // pred_fallthru
    _

// kernel: basic_block_forward.58
$region0: #{basic_block_forward.58}
  #allocation0 [shape = 'u32[]', space=smem, size = 0x4, offset = 0x4, fixed_abs, tag = 'smem constant byte address 0x4 - core index']
  #allocation1 [shape = 'u32[144,128]{1,0:T(1,128)}', space=vmem, size = 0x12000, scoped, tag = 'internal scratch']
  %s0 = inlined_call_operand.vmem [shape: f32[32,4608], index: 0, kind: input, shape index: {}]
  %s1 = inlined_call_operand.vmem [shape: f32[4608,256], index: 1, kind: input, shape index: {}]
  %s2 = inlined_call_operand.vmem [shape: f32[1,256], index: 2, kind: input, shape index: {}]
  %s3 = inlined_call_operand.vmem [shape: f32[32,256], index: 3, kind: output, shape index: {}]
  %s4 = sld [smem:[#allocation0]]
  $region22: #{basic_block_forward.58} parent=0
    _
  %s6 = ssub.s32 1, %s4
  %s7 = scalar_select 0, %s6, %s4
  // Predicated region
  $region2: #{basic_block_forward.58} parent=0 // pred_check
    _
  $region3: #{basic_block_forward.58} parent=0 // pred_check_branch
    %9 = sbr.rel (0) target = $region5
  $region4: #{basic_block_forward.58} parent=0 // pred_region
    _
  $region5: #{basic_block_forward.58} parent=0 // pred_fallthru
    _
  // Predicated region
  $region6: #{basic_block_forward.58} parent=0 // pred_check
    _
  $region7: #{basic_block_forward.58} parent=0 // pred_check_branch
    %11 = sbr.rel (0) target = $region9
  $region8: #{basic_block_forward.58} parent=0 // pred_region
    _
  $region9: #{basic_block_forward.58} parent=0 // pred_fallthru
    _
  // Predicated region
  $region10: #{basic_block_forward.58} parent=0 // pred_check
    _
  $region11: #{basic_block_forward.58} parent=0 // pred_check_branch
    %13 = sbr.rel (0) target = $region13
  $region12: #{basic_block_forward.58} parent=0 // pred_region
    _
  $region13: #{basic_block_forward.58} parent=0 // pred_fallthru
    _
  %v14 = vld [vmem:[%s0] sm:$0xff]
  %v15 = vld [vmem:[%s0 + $0x8] sm:$0xff]
  %v16 = vld [vmem:[%s0 + $0x10] sm:$0xff]
  %v17 = vld [vmem:[%s0 + $0x18] sm:$0xff]
  %v18 = vld [vmem:[%s0 + $0x20] sm:$0xff]
  %v19 = vld [vmem:[%s0 + $0x28] sm:$0xff]
  %v20 = vld [vmem:[%s0 + $0x30] sm:$0xff]
  %v21 = vld [vmem:[%s0 + $0x38] sm:$0xff]
  %v22 = vld [vmem:[%s0 + $0x40] sm:$0xff]
  %v23 = vld [vmem:[%s0 + $0x48] sm:$0xff]
  %v24 = vld [vmem:[%s0 + $0x50] sm:$0xff]
  %v25 = vld [vmem:[%s0 + $0x58] sm:$0xff]
  %v26 = vld [vmem:[%s0 + $0x60] sm:$0xff]
  %v27 = vld [vmem:[%s0 + $0x68] sm:$0xff]
  %v28 = vld [vmem:[%s0 + $0x70] sm:$0xff]
  %v29 = vld [vmem:[%s0 + $0x78] sm:$0xff]
  %v30 = vld [vmem:[%s0 + $0x80] sm:$0xff]
  %v31 = vld [vmem:[%s0 + $0x88] sm:$0xff]
  %v32 = vld [vmem:[%s0 + $0x90] sm:$0xff]
  %v33 = vld [vmem:[%s0 + $0x98] sm:$0xff]
  %v34 = vld [vmem:[%s0 + $0xa0] sm:$0xff]
  %v35 = vld [vmem:[%s0 + $0xa8] sm:$0xff]
  %v36 = vld [vmem:[%s0 + $0xb0] sm:$0xff]
  %v37 = vld [vmem:[%s0 + $0xb8] sm:$0xff]
  %v38 = vld [vmem:[%s0 + $0xc0] sm:$0xff]
  %v39 = vld [vmem:[%s0 + $0xc8] sm:$0xff]
  %v40 = vld [vmem:[%s0 + $0xd0] sm:$0xff]
  %v41 = vld [vmem:[%s0 + $0xd8] sm:$0xff]
  %v42 = vld [vmem:[%s0 + $0xe0] sm:$0xff]
  %v43 = vld [vmem:[%s0 + $0xe8] sm:$0xff]
  %v44 = vld [vmem:[%s0 + $0xf0] sm:$0xff]
  %v45 = vld [vmem:[%s0 + $0xf8] sm:$0xff]
  %v46 = vld [vmem:[%s0 + $0x100] sm:$0xff]
  %v47 = vld [vmem:[%s0 + $0x108] sm:$0xff]
  %v48 = vld [vmem:[%s0 + $0x110] sm:$0xff]
  %v49 = vld [vmem:[%s0 + $0x118] sm:$0xff]
  %v50 = vld [vmem:[%s0 + $0x120] sm:$0xff]
  %v51 = vld [vmem:[%s0 + $0x128] sm:$0xff]
  %v52 = vld [vmem:[%s0 + $0x130] sm:$0xff]
  %v53 = vld [vmem:[%s0 + $0x138] sm:$0xff]
  %v54 = vld [vmem:[%s0 + $0x140] sm:$0xff]
  %v55 = vld [vmem:[%s0 + $0x148] sm:$0xff]
  %v56 = vld [vmem:[%s0 + $0x150] sm:$0xff]
  %v57 = vld [vmem:[%s0 + $0x158] sm:$0xff]
  %v58 = vld [vmem:[%s0 + $0x160] sm:$0xff]
  %v59 = vld [vmem:[%s0 + $0x168] sm:$0xff]
  %v60 = vld [vmem:[%s0 + $0x170] sm:$0xff]
  %v61 = vld [vmem:[%s0 + $0x178] sm:$0xff]
  %v62 = vld [vmem:[%s0 + $0x180] sm:$0xff]
  %v63 = vld [vmem:[%s0 + $0x188] sm:$0xff]
  %v64 = vld [vmem:[%s0 + $0x190] sm:$0xff]
  %v65 = vld [vmem:[%s0 + $0x198] sm:$0xff]
  %v66 = vld [vmem:[%s0 + $0x1a0] sm:$0xff]
  %v67 = vld [vmem:[%s0 + $0x1a8] sm:$0xff]
  %v68 = vld [vmem:[%s0 + $0x1b0] sm:$0xff]
  %v69 = vld [vmem:[%s0 + $0x1b8] sm:$0xff]
  %v70 = vld [vmem:[%s0 + $0x1c0] sm:$0xff]
  %v71 = vld [vmem:[%s0 + $0x1c8] sm:$0xff]
  %v72 = vld [vmem:[%s0 + $0x1d0] sm:$0xff]
  %v73 = vld [vmem:[%s0 + $0x1d8] sm:$0xff]
  %v74 = vld [vmem:[%s0 + $0x1e0] sm:$0xff]
  %v75 = vld [vmem:[%s0 + $0x1e8] sm:$0xff]
  %v76 = vld [vmem:[%s0 + $0x1f0] sm:$0xff]
  %v77 = vld [vmem:[%s0 + $0x1f8] sm:$0xff]
  %v78 = vld [vmem:[%s0 + $0x200] sm:$0xff]
  %v79 = vld [vmem:[%s0 + $0x208] sm:$0xff]
  %v80 = vld [vmem:[%s0 + $0x210] sm:$0xff]
  %v81 = vld [vmem:[%s0 + $0x218] sm:$0xff]
  %v82 = vld [vmem:[%s0 + $0x220] sm:$0xff]
  %v83 = vld [vmem:[%s0 + $0x228] sm:$0xff]
  %v84 = vld [vmem:[%s0 + $0x230] sm:$0xff]
  %v85 = vld [vmem:[%s0 + $0x238] sm:$0xff]
  %v86 = vld [vmem:[%s0 + $0x240] sm:$0xff]
  %v87 = vld [vmem:[%s0 + $0x248] sm:$0xff]
  %v88 = vld [vmem:[%s0 + $0x250] sm:$0xff]
  %v89 = vld [vmem:[%s0 + $0x258] sm:$0xff]
  %v90 = vld [vmem:[%s0 + $0x260] sm:$0xff]
  %v91 = vld [vmem:[%s0 + $0x268] sm:$0xff]
  %v92 = vld [vmem:[%s0 + $0x270] sm:$0xff]
  %v93 = vld [vmem:[%s0 + $0x278] sm:$0xff]
  %v94 = vld [vmem:[%s0 + $0x280] sm:$0xff]
  %v95 = vld [vmem:[%s0 + $0x288] sm:$0xff]
  %v96 = vld [vmem:[%s0 + $0x290] sm:$0xff]
  %v97 = vld [vmem:[%s0 + $0x298] sm:$0xff]
  %v98 = vld [vmem:[%s0 + $0x2a0] sm:$0xff]
  %v99 = vld [vmem:[%s0 + $0x2a8] sm:$0xff]
  %v100 = vld [vmem:[%s0 + $0x2b0] sm:$0xff]
  %v101 = vld [vmem:[%s0 + $0x2b8] sm:$0xff]
  %v102 = vld [vmem:[%s0 + $0x2c0] sm:$0xff]
  %v103 = vld [vmem:[%s0 + $0x2c8] sm:$0xff]
  %v104 = vld [vmem:[%s0 + $0x2d0] sm:$0xff]
  %v105 = vld [vmem:[%s0 + $0x2d8] sm:$0xff]
  %v106 = vld [vmem:[%s0 + $0x2e0] sm:$0xff]
  %v107 = vld [vmem:[%s0 + $0x2e8] sm:$0xff]
  %v108 = vld [vmem:[%s0 + $0x2f0] sm:$0xff]
  %v109 = vld [vmem:[%s0 + $0x2f8] sm:$0xff]
  %v110 = vld [vmem:[%s0 + $0x300] sm:$0xff]
  %v111 = vld [vmem:[%s0 + $0x308] sm:$0xff]
  %v112 = vld [vmem:[%s0 + $0x310] sm:$0xff]
  %v113 = vld [vmem:[%s0 + $0x318] sm:$0xff]
  %v114 = vld [vmem:[%s0 + $0x320] sm:$0xff]
  %v115 = vld [vmem:[%s0 + $0x328] sm:$0xff]
  %v116 = vld [vmem:[%s0 + $0x330] sm:$0xff]
  %v117 = vld [vmem:[%s0 + $0x338] sm:$0xff]
  %v118 = vld [vmem:[%s0 + $0x340] sm:$0xff]
  %v119 = vld [vmem:[%s0 + $0x348] sm:$0xff]
  %v120 = vld [vmem:[%s0 + $0x350] sm:$0xff]
  %v121 = vld [vmem:[%s0 + $0x358] sm:$0xff]
  %v122 = vld [vmem:[%s0 + $0x360] sm:$0xff]
  %v123 = vld [vmem:[%s0 + $0x368] sm:$0xff]
  %v124 = vld [vmem:[%s0 + $0x370] sm:$0xff]
  %v125 = vld [vmem:[%s0 + $0x378] sm:$0xff]
  %v126 = vld [vmem:[%s0 + $0x380] sm:$0xff]
  %v127 = vld [vmem:[%s0 + $0x388] sm:$0xff]
  %v128 = vld [vmem:[%s0 + $0x390] sm:$0xff]
  %v129 = vld [vmem:[%s0 + $0x398] sm:$0xff]
  %v130 = vld [vmem:[%s0 + $0x3a0] sm:$0xff]
  %v131 = vld [vmem:[%s0 + $0x3a8] sm:$0xff]
  %v132 = vld [vmem:[%s0 + $0x3b0] sm:$0xff]
  %v133 = vld [vmem:[%s0 + $0x3b8] sm:$0xff]
  %v134 = vld [vmem:[%s0 + $0x3c0] sm:$0xff]
  %v135 = vld [vmem:[%s0 + $0x3c8] sm:$0xff]
  %v136 = vld [vmem:[%s0 + $0x3d0] sm:$0xff]
  %v137 = vld [vmem:[%s0 + $0x3d8] sm:$0xff]
  %v138 = vld [vmem:[%s0 + $0x3e0] sm:$0xff]
  %v139 = vld [vmem:[%s0 + $0x3e8] sm:$0xff]
  %v140 = vld [vmem:[%s0 + $0x3f0] sm:$0xff]
  %v141 = vld [vmem:[%s0 + $0x3f8] sm:$0xff]
  %v142 = vld [vmem:[%s0 + $0x400] sm:$0xff]
  %v143 = vld [vmem:[%s0 + $0x408] sm:$0xff]
  %v144 = vld [vmem:[%s0 + $0x410] sm:$0xff]
  %v145 = vld [vmem:[%s0 + $0x418] sm:$0xff]
  %v146 = vld [vmem:[%s0 + $0x420] sm:$0xff]
  %v147 = vld [vmem:[%s0 + $0x428] sm:$0xff]
  %v148 = vld [vmem:[%s0 + $0x430] sm:$0xff]
  %v149 = vld [vmem:[%s0 + $0x438] sm:$0xff]
  %v150 = vld [vmem:[%s0 + $0x440] sm:$0xff]
  %v151 = vld [vmem:[%s0 + $0x448] sm:$0xff]
  %v152 = vld [vmem:[%s0 + $0x450] sm:$0xff]
  %v153 = vld [vmem:[%s0 + $0x458] sm:$0xff]
  %v154 = vld [vmem:[%s0 + $0x460] sm:$0xff]
  %v155 = vld [vmem:[%s0 + $0x468] sm:$0xff]
  %v156 = vld [vmem:[%s0 + $0x470] sm:$0xff]
  %v157 = vld [vmem:[%s0 + $0x478] sm:$0xff]
  %v158 = vld [vmem:[%s1] sm:$0xff]
  %v159 = vld [vmem:[%s1 + $0x8] sm:$0xff]
  %v160 = vld [vmem:[%s1 + $0x10] sm:$0xff]
  %v161 = vld [vmem:[%s1 + $0x18] sm:$0xff]
  %v162 = vld [vmem:[%s1 + $0x20] sm:$0xff]
  %v163 = vld [vmem:[%s1 + $0x28] sm:$0xff]
  %v164 = vld [vmem:[%s1 + $0x30] sm:$0xff]
  %v165 = vld [vmem:[%s1 + $0x38] sm:$0xff]
  %v166 = vld [vmem:[%s1 + $0x40] sm:$0xff]
  %v167 = vld [vmem:[%s1 + $0x48] sm:$0xff]
  %v168 = vld [vmem:[%s1 + $0x50] sm:$0xff]
  %v169 = vld [vmem:[%s1 + $0x58] sm:$0xff]
  %v170 = vld [vmem:[%s1 + $0x60] sm:$0xff]
  %v171 = vld [vmem:[%s1 + $0x68] sm:$0xff]
  %v172 = vld [vmem:[%s1 + $0x70] sm:$0xff]
  %v173 = vld [vmem:[%s1 + $0x78] sm:$0xff]
  %v174 = vld [vmem:[%s1 + $0x80] sm:$0xff]
  %v175 = vld [vmem:[%s1 + $0x88] sm:$0xff]
  %v176 = vld [vmem:[%s1 + $0x90] sm:$0xff]
  %v177 = vld [vmem:[%s1 + $0x98] sm:$0xff]
  %v178 = vld [vmem:[%s1 + $0xa0] sm:$0xff]
  %v179 = vld [vmem:[%s1 + $0xa8] sm:$0xff]
  %v180 = vld [vmem:[%s1 + $0xb0] sm:$0xff]
  %v181 = vld [vmem:[%s1 + $0xb8] sm:$0xff]
  %v182 = vld [vmem:[%s1 + $0xc0] sm:$0xff]
  %v183 = vld [vmem:[%s1 + $0xc8] sm:$0xff]
  %v184 = vld [vmem:[%s1 + $0xd0] sm:$0xff]
  %v185 = vld [vmem:[%s1 + $0xd8] sm:$0xff]
  %v186 = vld [vmem:[%s1 + $0xe0] sm:$0xff]
  %v187 = vld [vmem:[%s1 + $0xe8] sm:$0xff]
  %v188 = vld [vmem:[%s1 + $0xf0] sm:$0xff]
  %v189 = vld [vmem:[%s1 + $0xf8] sm:$0xff]
  %v190 = vld [vmem:[%s1 + $0x100] sm:$0xff]
  %v191 = vld [vmem:[%s1 + $0x108] sm:$0xff]
  %v192 = vld [vmem:[%s1 + $0x110] sm:$0xff]
  %v193 = vld [vmem:[%s1 + $0x118] sm:$0xff]
  %v194 = vld [vmem:[%s1 + $0x120] sm:$0xff]
  %v195 = vld [vmem:[%s1 + $0x128] sm:$0xff]
  %v196 = vld [vmem:[%s1 + $0x130] sm:$0xff]
  %v197 = vld [vmem:[%s1 + $0x138] sm:$0xff]
  %v198 = vld [vmem:[%s1 + $0x140] sm:$0xff]
  %v199 = vld [vmem:[%s1 + $0x148] sm:$0xff]
  %v200 = vld [vmem:[%s1 + $0x150] sm:$0xff]
  %v201 = vld [vmem:[%s1 + $0x158] sm:$0xff]
  %v202 = vld [vmem:[%s1 + $0x160] sm:$0xff]
  %v203 = vld [vmem:[%s1 + $0x168] sm:$0xff]
  %v204 = vld [vmem:[%s1 + $0x170] sm:$0xff]
  %v205 = vld [vmem:[%s1 + $0x178] sm:$0xff]
  %v206 = vld [vmem:[%s1 + $0x180] sm:$0xff]
  %v207 = vld [vmem:[%s1 + $0x188] sm:$0xff]
  %v208 = vld [vmem:[%s1 + $0x190] sm:$0xff]
  %v209 = vld [vmem:[%s1 + $0x198] sm:$0xff]
  %v210 = vld [vmem:[%s1 + $0x1a0] sm:$0xff]
  %v211 = vld [vmem:[%s1 + $0x1a8] sm:$0xff]
  %v212 = vld [vmem:[%s1 + $0x1b0] sm:$0xff]
  %v213 = vld [vmem:[%s1 + $0x1b8] sm:$0xff]
  %v214 = vld [vmem:[%s1 + $0x1c0] sm:$0xff]
  %v215 = vld [vmem:[%s1 + $0x1c8] sm:$0xff]
  %v216 = vld [vmem:[%s1 + $0x1d0] sm:$0xff]
  %v217 = vld [vmem:[%s1 + $0x1d8] sm:$0xff]
  %v218 = vld [vmem:[%s1 + $0x1e0] sm:$0xff]
  %v219 = vld [vmem:[%s1 + $0x1e8] sm:$0xff]
  %v220 = vld [vmem:[%s1 + $0x1f0] sm:$0xff]
  %v221 = vld [vmem:[%s1 + $0x1f8] sm:$0xff]
  %v222 = vld [vmem:[%s1 + $0x200] sm:$0xff]
  %v223 = vld [vmem:[%s1 + $0x208] sm:$0xff]
  %v224 = vld [vmem:[%s1 + $0x210] sm:$0xff]
  %v225 = vld [vmem:[%s1 + $0x218] sm:$0xff]
  %v226 = vld [vmem:[%s1 + $0x220] sm:$0xff]
  %v227 = vld [vmem:[%s1 + $0x228] sm:$0xff]
  %v228 = vld [vmem:[%s1 + $0x230] sm:$0xff]
  %v229 = vld [vmem:[%s1 + $0x238] sm:$0xff]
  %v230 = vld [vmem:[%s1 + $0x240] sm:$0xff]
  %v231 = vld [vmem:[%s1 + $0x248] sm:$0xff]
  %v232 = vld [vmem:[%s1 + $0x250] sm:$0xff]
  %v233 = vld [vmem:[%s1 + $0x258] sm:$0xff]
  %v234 = vld [vmem:[%s1 + $0x260] sm:$0xff]
  %v235 = vld [vmem:[%s1 + $0x268] sm:$0xff]
  %v236 = vld [vmem:[%s1 + $0x270] sm:$0xff]
  %v237 = vld [vmem:[%s1 + $0x278] sm:$0xff]
  %v238 = vld [vmem:[%s1 + $0x280] sm:$0xff]
  %v239 = vld [vmem:[%s1 + $0x288] sm:$0xff]
  %v240 = vld [vmem:[%s1 + $0x290] sm:$0xff]
  %v241 = vld [vmem:[%s1 + $0x298] sm:$0xff]
  %v242 = vld [vmem:[%s1 + $0x2a0] sm:$0xff]
  %v243 = vld [vmem:[%s1 + $0x2a8] sm:$0xff]
  %v244 = vld [vmem:[%s1 + $0x2b0] sm:$0xff]
  %v245 = vld [vmem:[%s1 + $0x2b8] sm:$0xff]
  %v246 = vld [vmem:[%s1 + $0x2c0] sm:$0xff]
  %v247 = vld [vmem:[%s1 + $0x2c8] sm:$0xff]
  %v248 = vld [vmem:[%s1 + $0x2d0] sm:$0xff]
  %v249 = vld [vmem:[%s1 + $0x2d8] sm:$0xff]
  %v250 = vld [vmem:[%s1 + $0x2e0] sm:$0xff]
  %v251 = vld [vmem:[%s1 + $0x2e8] sm:$0xff]
  %v252 = vld [vmem:[%s1 + $0x2f0] sm:$0xff]
  %v253 = vld [vmem:[%s1 + $0x2f8] sm:$0xff]
  %v254 = vld [vmem:[%s1 + $0x300] sm:$0xff]
  %v255 = vld [vmem:[%s1 + $0x308] sm:$0xff]
  %v256 = vld [vmem:[%s1 + $0x310] sm:$0xff]
  %v257 = vld [vmem:[%s1 + $0x318] sm:$0xff]
  %v258 = vld [vmem:[%s1 + $0x320] sm:$0xff]
  %v259 = vld [vmem:[%s1 + $0x328] sm:$0xff]
  %v260 = vld [vmem:[%s1 + $0x330] sm:$0xff]
  %v261 = vld [vmem:[%s1 + $0x338] sm:$0xff]
  %v262 = vld [vmem:[%s1 + $0x340] sm:$0xff]
  %v263 = vld [vmem:[%s1 + $0x348] sm:$0xff]
  %v264 = vld [vmem:[%s1 + $0x350] sm:$0xff]
  %v265 = vld [vmem:[%s1 + $0x358] sm:$0xff]
  %v266 = vld [vmem:[%s1 + $0x360] sm:$0xff]
  %v267 = vld [vmem:[%s1 + $0x368] sm:$0xff]
  %v268 = vld [vmem:[%s1 + $0x370] sm:$0xff]
  %v269 = vld [vmem:[%s1 + $0x378] sm:$0xff]
  %v270 = vld [vmem:[%s1 + $0x380] sm:$0xff]
  %v271 = vld [vmem:[%s1 + $0x388] sm:$0xff]
  %v272 = vld [vmem:[%s1 + $0x390] sm:$0xff]
  %v273 = vld [vmem:[%s1 + $0x398] sm:$0xff]
  %v274 = vld [vmem:[%s1 + $0x3a0] sm:$0xff]
  %v275 = vld [vmem:[%s1 + $0x3a8] sm:$0xff]
  %v276 = vld [vmem:[%s1 + $0x3b0] sm:$0xff]
  %v277 = vld [vmem:[%s1 + $0x3b8] sm:$0xff]
  %v278 = vld [vmem:[%s1 + $0x3c0] sm:$0xff]
  %v279 = vld [vmem:[%s1 + $0x3c8] sm:$0xff]
  %v280 = vld [vmem:[%s1 + $0x3d0] sm:$0xff]
  %v281 = vld [vmem:[%s1 + $0x3d8] sm:$0xff]
  %v282 = vld [vmem:[%s1 + $0x3e0] sm:$0xff]
  %v283 = vld [vmem:[%s1 + $0x3e8] sm:$0xff]
  %v284 = vld [vmem:[%s1 + $0x3f0] sm:$0xff]
  %v285 = vld [vmem:[%s1 + $0x3f8] sm:$0xff]
  %v286 = vld [vmem:[%s1 + $0x400] sm:$0xff]
  %v287 = vld [vmem:[%s1 + $0x408] sm:$0xff]
  %v288 = vld [vmem:[%s1 + $0x410] sm:$0xff]
  %v289 = vld [vmem:[%s1 + $0x418] sm:$0xff]
  %v290 = vld [vmem:[%s1 + $0x420] sm:$0xff]
  %v291 = vld [vmem:[%s1 + $0x428] sm:$0xff]
  %v292 = vld [vmem:[%s1 + $0x430] sm:$0xff]
  %v293 = vld [vmem:[%s1 + $0x438] sm:$0xff]
  %v294 = vld [vmem:[%s1 + $0x440] sm:$0xff]
  %v295 = vld [vmem:[%s1 + $0x448] sm:$0xff]
  %v296 = vld [vmem:[%s1 + $0x450] sm:$0xff]
  %v297 = vld [vmem:[%s1 + $0x458] sm:$0xff]
  %v298 = vld [vmem:[%s1 + $0x460] sm:$0xff]
  %v299 = vld [vmem:[%s1 + $0x468] sm:$0xff]
  %v300 = vld [vmem:[%s1 + $0x470] sm:$0xff]
  %v301 = vld [vmem:[%s1 + $0x478] sm:$0xff]
  %v302 = vld [vmem:[%s1 + $0x480] sm:$0xff]
  %v303 = vld [vmem:[%s1 + $0x488] sm:$0xff]
  %v304 = vld [vmem:[%s1 + $0x490] sm:$0xff]
  %v305 = vld [vmem:[%s1 + $0x498] sm:$0xff]
  %v306 = vld [vmem:[%s1 + $0x4a0] sm:$0xff]
  %v307 = vld [vmem:[%s1 + $0x4a8] sm:$0xff]
  %v308 = vld [vmem:[%s1 + $0x4b0] sm:$0xff]
  %v309 = vld [vmem:[%s1 + $0x4b8] sm:$0xff]
  %v310 = vld [vmem:[%s1 + $0x4c0] sm:$0xff]
  %v311 = vld [vmem:[%s1 + $0x4c8] sm:$0xff]
  %v312 = vld [vmem:[%s1 + $0x4d0] sm:$0xff]
  %v313 = vld [vmem:[%s1 + $0x4d8] sm:$0xff]
  %v314 = vld [vmem:[%s1 + $0x4e0] sm:$0xff]
  %v315 = vld [vmem:[%s1 + $0x4e8] sm:$0xff]
  %v316 = vld [vmem:[%s1 + $0x4f0] sm:$0xff]
  %v317 = vld [vmem:[%s1 + $0x4f8] sm:$0xff]
  %v318 = vld [vmem:[%s1 + $0x500] sm:$0xff]
  %v319 = vld [vmem:[%s1 + $0x508] sm:$0xff]
  %v320 = vld [vmem:[%s1 + $0x510] sm:$0xff]
  %v321 = vld [vmem:[%s1 + $0x518] sm:$0xff]
  %v322 = vld [vmem:[%s1 + $0x520] sm:$0xff]
  %v323 = vld [vmem:[%s1 + $0x528] sm:$0xff]
  %v324 = vld [vmem:[%s1 + $0x530] sm:$0xff]
  %v325 = vld [vmem:[%s1 + $0x538] sm:$0xff]
  %v326 = vld [vmem:[%s1 + $0x540] sm:$0xff]
  %v327 = vld [vmem:[%s1 + $0x548] sm:$0xff]
  %v328 = vld [vmem:[%s1 + $0x550] sm:$0xff]
  %v329 = vld [vmem:[%s1 + $0x558] sm:$0xff]
  %v330 = vld [vmem:[%s1 + $0x560] sm:$0xff]
  %v331 = vld [vmem:[%s1 + $0x568] sm:$0xff]
  %v332 = vld [vmem:[%s1 + $0x570] sm:$0xff]
  %v333 = vld [vmem:[%s1 + $0x578] sm:$0xff]
  %v334 = vld [vmem:[%s1 + $0x580] sm:$0xff]
  %v335 = vld [vmem:[%s1 + $0x588] sm:$0xff]
  %v336 = vld [vmem:[%s1 + $0x590] sm:$0xff]
  %v337 = vld [vmem:[%s1 + $0x598] sm:$0xff]
  %v338 = vld [vmem:[%s1 + $0x5a0] sm:$0xff]
  %v339 = vld [vmem:[%s1 + $0x5a8] sm:$0xff]
  %v340 = vld [vmem:[%s1 + $0x5b0] sm:$0xff]
  %v341 = vld [vmem:[%s1 + $0x5b8] sm:$0xff]
  %v342 = vld [vmem:[%s1 + $0x5c0] sm:$0xff]
  %v343 = vld [vmem:[%s1 + $0x5c8] sm:$0xff]
  %v344 = vld [vmem:[%s1 + $0x5d0] sm:$0xff]
  %v345 = vld [vmem:[%s1 + $0x5d8] sm:$0xff]
  %v346 = vld [vmem:[%s1 + $0x5e0] sm:$0xff]
  %v347 = vld [vmem:[%s1 + $0x5e8] sm:$0xff]
  %v348 = vld [vmem:[%s1 + $0x5f0] sm:$0xff]
  %v349 = vld [vmem:[%s1 + $0x5f8] sm:$0xff]
  %v350 = vld [vmem:[%s1 + $0x600] sm:$0xff]
  %v351 = vld [vmem:[%s1 + $0x608] sm:$0xff]
  %v352 = vld [vmem:[%s1 + $0x610] sm:$0xff]
  %v353 = vld [vmem:[%s1 + $0x618] sm:$0xff]
  %v354 = vld [vmem:[%s1 + $0x620] sm:$0xff]
  %v355 = vld [vmem:[%s1 + $0x628] sm:$0xff]
  %v356 = vld [vmem:[%s1 + $0x630] sm:$0xff]
  %v357 = vld [vmem:[%s1 + $0x638] sm:$0xff]
  %v358 = vld [vmem:[%s1 + $0x640] sm:$0xff]
  %v359 = vld [vmem:[%s1 + $0x648] sm:$0xff]
  %v360 = vld [vmem:[%s1 + $0x650] sm:$0xff]
  %v361 = vld [vmem:[%s1 + $0x658] sm:$0xff]
  %v362 = vld [vmem:[%s1 + $0x660] sm:$0xff]
  %v363 = vld [vmem:[%s1 + $0x668] sm:$0xff]
  %v364 = vld [vmem:[%s1 + $0x670] sm:$0xff]
  %v365 = vld [vmem:[%s1 + $0x678] sm:$0xff]
  %v366 = vld [vmem:[%s1 + $0x680] sm:$0xff]
  %v367 = vld [vmem:[%s1 + $0x688] sm:$0xff]
  %v368 = vld [vmem:[%s1 + $0x690] sm:$0xff]
  %v369 = vld [vmem:[%s1 + $0x698] sm:$0xff]
  %v370 = vld [vmem:[%s1 + $0x6a0] sm:$0xff]
  %v371 = vld [vmem:[%s1 + $0x6a8] sm:$0xff]
  %v372 = vld [vmem:[%s1 + $0x6b0] sm:$0xff]
  %v373 = vld [vmem:[%s1 + $0x6b8] sm:$0xff]
  %v374 = vld [vmem:[%s1 + $0x6c0] sm:$0xff]
  %v375 = vld [vmem:[%s1 + $0x6c8] sm:$0xff]
  %v376 = vld [vmem:[%s1 + $0x6d0] sm:$0xff]
  %v377 = vld [vmem:[%s1 + $0x6d8] sm:$0xff]
  %v378 = vld [vmem:[%s1 + $0x6e0] sm:$0xff]
  %v379 = vld [vmem:[%s1 + $0x6e8] sm:$0xff]
  %v380 = vld [vmem:[%s1 + $0x6f0] sm:$0xff]
  %v381 = vld [vmem:[%s1 + $0x6f8] sm:$0xff]
  %v382 = vld [vmem:[%s1 + $0x700] sm:$0xff]
  %v383 = vld [vmem:[%s1 + $0x708] sm:$0xff]
  %v384 = vld [vmem:[%s1 + $0x710] sm:$0xff]
  %v385 = vld [vmem:[%s1 + $0x718] sm:$0xff]
  %v386 = vld [vmem:[%s1 + $0x720] sm:$0xff]
  %v387 = vld [vmem:[%s1 + $0x728] sm:$0xff]
  %v388 = vld [vmem:[%s1 + $0x730] sm:$0xff]
  %v389 = vld [vmem:[%s1 + $0x738] sm:$0xff]
  %v390 = vld [vmem:[%s1 + $0x740] sm:$0xff]
  %v391 = vld [vmem:[%s1 + $0x748] sm:$0xff]
  %v392 = vld [vmem:[%s1 + $0x750] sm:$0xff]
  %v393 = vld [vmem:[%s1 + $0x758] sm:$0xff]
  %v394 = vld [vmem:[%s1 + $0x760] sm:$0xff]
  %v395 = vld [vmem:[%s1 + $0x768] sm:$0xff]
  %v396 = vld [vmem:[%s1 + $0x770] sm:$0xff]
  %v397 = vld [vmem:[%s1 + $0x778] sm:$0xff]
  %v398 = vld [vmem:[%s1 + $0x780] sm:$0xff]
  %v399 = vld [vmem:[%s1 + $0x788] sm:$0xff]
  %v400 = vld [vmem:[%s1 + $0x790] sm:$0xff]
  %v401 = vld [vmem:[%s1 + $0x798] sm:$0xff]
  %v402 = vld [vmem:[%s1 + $0x7a0] sm:$0xff]
  %v403 = vld [vmem:[%s1 + $0x7a8] sm:$0xff]
  %v404 = vld [vmem:[%s1 + $0x7b0] sm:$0xff]
  %v405 = vld [vmem:[%s1 + $0x7b8] sm:$0xff]
  %v406 = vld [vmem:[%s1 + $0x7c0] sm:$0xff]
  %v407 = vld [vmem:[%s1 + $0x7c8] sm:$0xff]
  %v408 = vld [vmem:[%s1 + $0x7d0] sm:$0xff]
  %v409 = vld [vmem:[%s1 + $0x7d8] sm:$0xff]
  %v410 = vld [vmem:[%s1 + $0x7e0] sm:$0xff]
  %v411 = vld [vmem:[%s1 + $0x7e8] sm:$0xff]
  %v412 = vld [vmem:[%s1 + $0x7f0] sm:$0xff]
  %v413 = vld [vmem:[%s1 + $0x7f8] sm:$0xff]
  %v414 = vld [vmem:[%s1 + $0x800] sm:$0xff]
  %v415 = vld [vmem:[%s1 + $0x808] sm:$0xff]
  %v416 = vld [vmem:[%s1 + $0x810] sm:$0xff]
  %v417 = vld [vmem:[%s1 + $0x818] sm:$0xff]
  %v418 = vld [vmem:[%s1 + $0x820] sm:$0xff]
  %v419 = vld [vmem:[%s1 + $0x828] sm:$0xff]
  %v420 = vld [vmem:[%s1 + $0x830] sm:$0xff]
  %v421 = vld [vmem:[%s1 + $0x838] sm:$0xff]
  %v422 = vld [vmem:[%s1 + $0x840] sm:$0xff]
  %v423 = vld [vmem:[%s1 + $0x848] sm:$0xff]
  %v424 = vld [vmem:[%s1 + $0x850] sm:$0xff]
  %v425 = vld [vmem:[%s1 + $0x858] sm:$0xff]
  %v426 = vld [vmem:[%s1 + $0x860] sm:$0xff]
  %v427 = vld [vmem:[%s1 + $0x868] sm:$0xff]
  %v428 = vld [vmem:[%s1 + $0x870] sm:$0xff]
  %v429 = vld [vmem:[%s1 + $0x878] sm:$0xff]
  %v430 = vld [vmem:[%s1 + $0x880] sm:$0xff]
  %v431 = vld [vmem:[%s1 + $0x888] sm:$0xff]
  %v432 = vld [vmem:[%s1 + $0x890] sm:$0xff]
  %v433 = vld [vmem:[%s1 + $0x898] sm:$0xff]
  %v434 = vld [vmem:[%s1 + $0x8a0] sm:$0xff]
  %v435 = vld [vmem:[%s1 + $0x8a8] sm:$0xff]
  %v436 = vld [vmem:[%s1 + $0x8b0] sm:$0xff]
  %v437 = vld [vmem:[%s1 + $0x8b8] sm:$0xff]
  %v438 = vld [vmem:[%s1 + $0x8c0] sm:$0xff]
  %v439 = vld [vmem:[%s1 + $0x8c8] sm:$0xff]
  %v440 = vld [vmem:[%s1 + $0x8d0] sm:$0xff]
  %v441 = vld [vmem:[%s1 + $0x8d8] sm:$0xff]
  %v442 = vld [vmem:[%s1 + $0x8e0] sm:$0xff]
  %v443 = vld [vmem:[%s1 + $0x8e8] sm:$0xff]
  %v444 = vld [vmem:[%s1 + $0x8f0] sm:$0xff]
  %v445 = vld [vmem:[%s1 + $0x8f8] sm:$0xff]
  %v446 = vld [vmem:[%s1 + $0x900] sm:$0xff]
  %v447 = vld [vmem:[%s1 + $0x908] sm:$0xff]
  %v448 = vld [vmem:[%s1 + $0x910] sm:$0xff]
  %v449 = vld [vmem:[%s1 + $0x918] sm:$0xff]
  %v450 = vld [vmem:[%s1 + $0x920] sm:$0xff]
  %v451 = vld [vmem:[%s1 + $0x928] sm:$0xff]
  %v452 = vld [vmem:[%s1 + $0x930] sm:$0xff]
  %v453 = vld [vmem:[%s1 + $0x938] sm:$0xff]
  %v454 = vld [vmem:[%s1 + $0x940] sm:$0xff]
  %v455 = vld [vmem:[%s1 + $0x948] sm:$0xff]
  %v456 = vld [vmem:[%s1 + $0x950] sm:$0xff]
  %v457 = vld [vmem:[%s1 + $0x958] sm:$0xff]
  %v458 = vld [vmem:[%s1 + $0x960] sm:$0xff]
  %v459 = vld [vmem:[%s1 + $0x968] sm:$0xff]
  %v460 = vld [vmem:[%s1 + $0x970] sm:$0xff]
  %v461 = vld [vmem:[%s1 + $0x978] sm:$0xff]
  %v462 = vld [vmem:[%s1 + $0x980] sm:$0xff]
  %v463 = vld [vmem:[%s1 + $0x988] sm:$0xff]
  %v464 = vld [vmem:[%s1 + $0x990] sm:$0xff]
  %v465 = vld [vmem:[%s1 + $0x998] sm:$0xff]
  %v466 = vld [vmem:[%s1 + $0x9a0] sm:$0xff]
  %v467 = vld [vmem:[%s1 + $0x9a8] sm:$0xff]
  %v468 = vld [vmem:[%s1 + $0x9b0] sm:$0xff]
  %v469 = vld [vmem:[%s1 + $0x9b8] sm:$0xff]
  %v470 = vld [vmem:[%s1 + $0x9c0] sm:$0xff]
  %v471 = vld [vmem:[%s1 + $0x9c8] sm:$0xff]
  %v472 = vld [vmem:[%s1 + $0x9d0] sm:$0xff]
  %v473 = vld [vmem:[%s1 + $0x9d8] sm:$0xff]
  %v474 = vld [vmem:[%s1 + $0x9e0] sm:$0xff]
  %v475 = vld [vmem:[%s1 + $0x9e8] sm:$0xff]
  %v476 = vld [vmem:[%s1 + $0x9f0] sm:$0xff]
  %v477 = vld [vmem:[%s1 + $0x9f8] sm:$0xff]
  %v478 = vld [vmem:[%s1 + $0xa00] sm:$0xff]
  %v479 = vld [vmem:[%s1 + $0xa08] sm:$0xff]
  %v480 = vld [vmem:[%s1 + $0xa10] sm:$0xff]
  %v481 = vld [vmem:[%s1 + $0xa18] sm:$0xff]
  %v482 = vld [vmem:[%s1 + $0xa20] sm:$0xff]
  %v483 = vld [vmem:[%s1 + $0xa28] sm:$0xff]
  %v484 = vld [vmem:[%s1 + $0xa30] sm:$0xff]
  %v485 = vld [vmem:[%s1 + $0xa38] sm:$0xff]
  %v486 = vld [vmem:[%s1 + $0xa40] sm:$0xff]
  %v487 = vld [vmem:[%s1 + $0xa48] sm:$0xff]
  %v488 = vld [vmem:[%s1 + $0xa50] sm:$0xff]
  %v489 = vld [vmem:[%s1 + $0xa58] sm:$0xff]
  %v490 = vld [vmem:[%s1 + $0xa60] sm:$0xff]
  %v491 = vld [vmem:[%s1 + $0xa68] sm:$0xff]
  %v492 = vld [vmem:[%s1 + $0xa70] sm:$0xff]
  %v493 = vld [vmem:[%s1 + $0xa78] sm:$0xff]
  %v494 = vld [vmem:[%s1 + $0xa80] sm:$0xff]
  %v495 = vld [vmem:[%s1 + $0xa88] sm:$0xff]
  %v496 = vld [vmem:[%s1 + $0xa90] sm:$0xff]
  %v497 = vld [vmem:[%s1 + $0xa98] sm:$0xff]
  %v498 = vld [vmem:[%s1 + $0xaa0] sm:$0xff]
  %v499 = vld [vmem:[%s1 + $0xaa8] sm:$0xff]
  %v500 = vld [vmem:[%s1 + $0xab0] sm:$0xff]
  %v501 = vld [vmem:[%s1 + $0xab8] sm:$0xff]
  %v502 = vld [vmem:[%s1 + $0xac0] sm:$0xff]
  %v503 = vld [vmem:[%s1 + $0xac8] sm:$0xff]
  %v504 = vld [vmem:[%s1 + $0xad0] sm:$0xff]
  %v505 = vld [vmem:[%s1 + $0xad8] sm:$0xff]
  %v506 = vld [vmem:[%s1 + $0xae0] sm:$0xff]
  %v507 = vld [vmem:[%s1 + $0xae8] sm:$0xff]
  %v508 = vld [vmem:[%s1 + $0xaf0] sm:$0xff]
  %v509 = vld [vmem:[%s1 + $0xaf8] sm:$0xff]
  %v510 = vld [vmem:[%s1 + $0xb00] sm:$0xff]
  %v511 = vld [vmem:[%s1 + $0xb08] sm:$0xff]
  %v512 = vld [vmem:[%s1 + $0xb10] sm:$0xff]
  %v513 = vld [vmem:[%s1 + $0xb18] sm:$0xff]
  %v514 = vld [vmem:[%s1 + $0xb20] sm:$0xff]
  %v515 = vld [vmem:[%s1 + $0xb28] sm:$0xff]
  %v516 = vld [vmem:[%s1 + $0xb30] sm:$0xff]
  %v517 = vld [vmem:[%s1 + $0xb38] sm:$0xff]
  %v518 = vld [vmem:[%s1 + $0xb40] sm:$0xff]
  %v519 = vld [vmem:[%s1 + $0xb48] sm:$0xff]
  %v520 = vld [vmem:[%s1 + $0xb50] sm:$0xff]
  %v521 = vld [vmem:[%s1 + $0xb58] sm:$0xff]
  %v522 = vld [vmem:[%s1 + $0xb60] sm:$0xff]
  %v523 = vld [vmem:[%s1 + $0xb68] sm:$0xff]
  %v524 = vld [vmem:[%s1 + $0xb70] sm:$0xff]
  %v525 = vld [vmem:[%s1 + $0xb78] sm:$0xff]
  %v526 = vld [vmem:[%s1 + $0xb80] sm:$0xff]
  %v527 = vld [vmem:[%s1 + $0xb88] sm:$0xff]
  %v528 = vld [vmem:[%s1 + $0xb90] sm:$0xff]
  %v529 = vld [vmem:[%s1 + $0xb98] sm:$0xff]
  %v530 = vld [vmem:[%s1 + $0xba0] sm:$0xff]
  %v531 = vld [vmem:[%s1 + $0xba8] sm:$0xff]
  %v532 = vld [vmem:[%s1 + $0xbb0] sm:$0xff]
  %v533 = vld [vmem:[%s1 + $0xbb8] sm:$0xff]
  %v534 = vld [vmem:[%s1 + $0xbc0] sm:$0xff]
  %v535 = vld [vmem:[%s1 + $0xbc8] sm:$0xff]
  %v536 = vld [vmem:[%s1 + $0xbd0] sm:$0xff]
  %v537 = vld [vmem:[%s1 + $0xbd8] sm:$0xff]
  %v538 = vld [vmem:[%s1 + $0xbe0] sm:$0xff]
  %v539 = vld [vmem:[%s1 + $0xbe8] sm:$0xff]
  %v540 = vld [vmem:[%s1 + $0xbf0] sm:$0xff]
  %v541 = vld [vmem:[%s1 + $0xbf8] sm:$0xff]
  %v542 = vld [vmem:[%s1 + $0xc00] sm:$0xff]
  %v543 = vld [vmem:[%s1 + $0xc08] sm:$0xff]
  %v544 = vld [vmem:[%s1 + $0xc10] sm:$0xff]
  %v545 = vld [vmem:[%s1 + $0xc18] sm:$0xff]
  %v546 = vld [vmem:[%s1 + $0xc20] sm:$0xff]
  %v547 = vld [vmem:[%s1 + $0xc28] sm:$0xff]
  %v548 = vld [vmem:[%s1 + $0xc30] sm:$0xff]
  %v549 = vld [vmem:[%s1 + $0xc38] sm:$0xff]
  %v550 = vld [vmem:[%s1 + $0xc40] sm:$0xff]
  %v551 = vld [vmem:[%s1 + $0xc48] sm:$0xff]
  %v552 = vld [vmem:[%s1 + $0xc50] sm:$0xff]
  %v553 = vld [vmem:[%s1 + $0xc58] sm:$0xff]
  %v554 = vld [vmem:[%s1 + $0xc60] sm:$0xff]
  %v555 = vld [vmem:[%s1 + $0xc68] sm:$0xff]
  %v556 = vld [vmem:[%s1 + $0xc70] sm:$0xff]
  %v557 = vld [vmem:[%s1 + $0xc78] sm:$0xff]
  %v558 = vld [vmem:[%s1 + $0xc80] sm:$0xff]
  %v559 = vld [vmem:[%s1 + $0xc88] sm:$0xff]
  %v560 = vld [vmem:[%s1 + $0xc90] sm:$0xff]
  %v561 = vld [vmem:[%s1 + $0xc98] sm:$0xff]
  %v562 = vld [vmem:[%s1 + $0xca0] sm:$0xff]
  %v563 = vld [vmem:[%s1 + $0xca8] sm:$0xff]
  %v564 = vld [vmem:[%s1 + $0xcb0] sm:$0xff]
  %v565 = vld [vmem:[%s1 + $0xcb8] sm:$0xff]
  %v566 = vld [vmem:[%s1 + $0xcc0] sm:$0xff]
  %v567 = vld [vmem:[%s1 + $0xcc8] sm:$0xff]
  %v568 = vld [vmem:[%s1 + $0xcd0] sm:$0xff]
  %v569 = vld [vmem:[%s1 + $0xcd8] sm:$0xff]
  %v570 = vld [vmem:[%s1 + $0xce0] sm:$0xff]
  %v571 = vld [vmem:[%s1 + $0xce8] sm:$0xff]
  %v572 = vld [vmem:[%s1 + $0xcf0] sm:$0xff]
  %v573 = vld [vmem:[%s1 + $0xcf8] sm:$0xff]
  %v574 = vld [vmem:[%s1 + $0xd00] sm:$0xff]
  %v575 = vld [vmem:[%s1 + $0xd08] sm:$0xff]
  %v576 = vld [vmem:[%s1 + $0xd10] sm:$0xff]
  %v577 = vld [vmem:[%s1 + $0xd18] sm:$0xff]
  %v578 = vld [vmem:[%s1 + $0xd20] sm:$0xff]
  %v579 = vld [vmem:[%s1 + $0xd28] sm:$0xff]
  %v580 = vld [vmem:[%s1 + $0xd30] sm:$0xff]
  %v581 = vld [vmem:[%s1 + $0xd38] sm:$0xff]
  %v582 = vld [vmem:[%s1 + $0xd40] sm:$0xff]
  %v583 = vld [vmem:[%s1 + $0xd48] sm:$0xff]
  %v584 = vld [vmem:[%s1 + $0xd50] sm:$0xff]
  %v585 = vld [vmem:[%s1 + $0xd58] sm:$0xff]
  %v586 = vld [vmem:[%s1 + $0xd60] sm:$0xff]
  %v587 = vld [vmem:[%s1 + $0xd68] sm:$0xff]
  %v588 = vld [vmem:[%s1 + $0xd70] sm:$0xff]
  %v589 = vld [vmem:[%s1 + $0xd78] sm:$0xff]
  %v590 = vld [vmem:[%s1 + $0xd80] sm:$0xff]
  %v591 = vld [vmem:[%s1 + $0xd88] sm:$0xff]
  %v592 = vld [vmem:[%s1 + $0xd90] sm:$0xff]
  %v593 = vld [vmem:[%s1 + $0xd98] sm:$0xff]
  %v594 = vld [vmem:[%s1 + $0xda0] sm:$0xff]
  %v595 = vld [vmem:[%s1 + $0xda8] sm:$0xff]
  %v596 = vld [vmem:[%s1 + $0xdb0] sm:$0xff]
  %v597 = vld [vmem:[%s1 + $0xdb8] sm:$0xff]
  %v598 = vld [vmem:[%s1 + $0xdc0] sm:$0xff]
  %v599 = vld [vmem:[%s1 + $0xdc8] sm:$0xff]
  %v600 = vld [vmem:[%s1 + $0xdd0] sm:$0xff]
  %v601 = vld [vmem:[%s1 + $0xdd8] sm:$0xff]
  %v602 = vld [vmem:[%s1 + $0xde0] sm:$0xff]
  %v603 = vld [vmem:[%s1 + $0xde8] sm:$0xff]
  %v604 = vld [vmem:[%s1 + $0xdf0] sm:$0xff]
  %v605 = vld [vmem:[%s1 + $0xdf8] sm:$0xff]
  %v606 = vld [vmem:[%s1 + $0xe00] sm:$0xff]
  %v607 = vld [vmem:[%s1 + $0xe08] sm:$0xff]
  %v608 = vld [vmem:[%s1 + $0xe10] sm:$0xff]
  %v609 = vld [vmem:[%s1 + $0xe18] sm:$0xff]
  %v610 = vld [vmem:[%s1 + $0xe20] sm:$0xff]
  %v611 = vld [vmem:[%s1 + $0xe28] sm:$0xff]
  %v612 = vld [vmem:[%s1 + $0xe30] sm:$0xff]
  %v613 = vld [vmem:[%s1 + $0xe38] sm:$0xff]
  %v614 = vld [vmem:[%s1 + $0xe40] sm:$0xff]
  %v615 = vld [vmem:[%s1 + $0xe48] sm:$0xff]
  %v616 = vld [vmem:[%s1 + $0xe50] sm:$0xff]
  %v617 = vld [vmem:[%s1 + $0xe58] sm:$0xff]
  %v618 = vld [vmem:[%s1 + $0xe60] sm:$0xff]
  %v619 = vld [vmem:[%s1 + $0xe68] sm:$0xff]
  %v620 = vld [vmem:[%s1 + $0xe70] sm:$0xff]
  %v621 = vld [vmem:[%s1 + $0xe78] sm:$0xff]
  %v622 = vld [vmem:[%s1 + $0xe80] sm:$0xff]
  %v623 = vld [vmem:[%s1 + $0xe88] sm:$0xff]
  %v624 = vld [vmem:[%s1 + $0xe90] sm:$0xff]
  %v625 = vld [vmem:[%s1 + $0xe98] sm:$0xff]
  %v626 = vld [vmem:[%s1 + $0xea0] sm:$0xff]
  %v627 = vld [vmem:[%s1 + $0xea8] sm:$0xff]
  %v628 = vld [vmem:[%s1 + $0xeb0] sm:$0xff]
  %v629 = vld [vmem:[%s1 + $0xeb8] sm:$0xff]
  %v630 = vld [vmem:[%s1 + $0xec0] sm:$0xff]
  %v631 = vld [vmem:[%s1 + $0xec8] sm:$0xff]
  %v632 = vld [vmem:[%s1 + $0xed0] sm:$0xff]
  %v633 = vld [vmem:[%s1 + $0xed8] sm:$0xff]
  %v634 = vld [vmem:[%s1 + $0xee0] sm:$0xff]
  %v635 = vld [vmem:[%s1 + $0xee8] sm:$0xff]
  %v636 = vld [vmem:[%s1 + $0xef0] sm:$0xff]
  %v637 = vld [vmem:[%s1 + $0xef8] sm:$0xff]
  %v638 = vld [vmem:[%s1 + $0xf00] sm:$0xff]
  %v639 = vld [vmem:[%s1 + $0xf08] sm:$0xff]
  %v640 = vld [vmem:[%s1 + $0xf10] sm:$0xff]
  %v641 = vld [vmem:[%s1 + $0xf18] sm:$0xff]
  %v642 = vld [vmem:[%s1 + $0xf20] sm:$0xff]
  %v643 = vld [vmem:[%s1 + $0xf28] sm:$0xff]
  %v644 = vld [vmem:[%s1 + $0xf30] sm:$0xff]
  %v645 = vld [vmem:[%s1 + $0xf38] sm:$0xff]
  %v646 = vld [vmem:[%s1 + $0xf40] sm:$0xff]
  %v647 = vld [vmem:[%s1 + $0xf48] sm:$0xff]
  %v648 = vld [vmem:[%s1 + $0xf50] sm:$0xff]
  %v649 = vld [vmem:[%s1 + $0xf58] sm:$0xff]
  %v650 = vld [vmem:[%s1 + $0xf60] sm:$0xff]
  %v651 = vld [vmem:[%s1 + $0xf68] sm:$0xff]
  %v652 = vld [vmem:[%s1 + $0xf70] sm:$0xff]
  %v653 = vld [vmem:[%s1 + $0xf78] sm:$0xff]
  %v654 = vld [vmem:[%s1 + $0xf80] sm:$0xff]
  %v655 = vld [vmem:[%s1 + $0xf88] sm:$0xff]
  %v656 = vld [vmem:[%s1 + $0xf90] sm:$0xff]
  %v657 = vld [vmem:[%s1 + $0xf98] sm:$0xff]
  %v658 = vld [vmem:[%s1 + $0xfa0] sm:$0xff]
  %v659 = vld [vmem:[%s1 + $0xfa8] sm:$0xff]
  %v660 = vld [vmem:[%s1 + $0xfb0] sm:$0xff]
  %v661 = vld [vmem:[%s1 + $0xfb8] sm:$0xff]
  %v662 = vld [vmem:[%s1 + $0xfc0] sm:$0xff]
  %v663 = vld [vmem:[%s1 + $0xfc8] sm:$0xff]
  %v664 = vld [vmem:[%s1 + $0xfd0] sm:$0xff]
  %v665 = vld [vmem:[%s1 + $0xfd8] sm:$0xff]
  %v666 = vld [vmem:[%s1 + $0xfe0] sm:$0xff]
  %v667 = vld [vmem:[%s1 + $0xfe8] sm:$0xff]
  %v668 = vld [vmem:[%s1 + $0xff0] sm:$0xff]
  %v669 = vld [vmem:[%s1 + $0xff8] sm:$0xff]
  %v670 = vld [vmem:[%s1 + $0x1000] sm:$0xff]
  %v671 = vld [vmem:[%s1 + $0x1008] sm:$0xff]
  %v672 = vld [vmem:[%s1 + $0x1010] sm:$0xff]
  %v673 = vld [vmem:[%s1 + $0x1018] sm:$0xff]
  %v674 = vld [vmem:[%s1 + $0x1020] sm:$0xff]
  %v675 = vld [vmem:[%s1 + $0x1028] sm:$0xff]
  %v676 = vld [vmem:[%s1 + $0x1030] sm:$0xff]
  %v677 = vld [vmem:[%s1 + $0x1038] sm:$0xff]
  %v678 = vld [vmem:[%s1 + $0x1040] sm:$0xff]
  %v679 = vld [vmem:[%s1 + $0x1048] sm:$0xff]
  %v680 = vld [vmem:[%s1 + $0x1050] sm:$0xff]
  %v681 = vld [vmem:[%s1 + $0x1058] sm:$0xff]
  %v682 = vld [vmem:[%s1 + $0x1060] sm:$0xff]
  %v683 = vld [vmem:[%s1 + $0x1068] sm:$0xff]
  %v684 = vld [vmem:[%s1 + $0x1070] sm:$0xff]
  %v685 = vld [vmem:[%s1 + $0x1078] sm:$0xff]
  %v686 = vld [vmem:[%s1 + $0x1080] sm:$0xff]
  %v687 = vld [vmem:[%s1 + $0x1088] sm:$0xff]
  %v688 = vld [vmem:[%s1 + $0x1090] sm:$0xff]
  %v689 = vld [vmem:[%s1 + $0x1098] sm:$0xff]
  %v690 = vld [vmem:[%s1 + $0x10a0] sm:$0xff]
  %v691 = vld [vmem:[%s1 + $0x10a8] sm:$0xff]
  %v692 = vld [vmem:[%s1 + $0x10b0] sm:$0xff]
  %v693 = vld [vmem:[%s1 + $0x10b8] sm:$0xff]
  %v694 = vld [vmem:[%s1 + $0x10c0] sm:$0xff]
  %v695 = vld [vmem:[%s1 + $0x10c8] sm:$0xff]
  %v696 = vld [vmem:[%s1 + $0x10d0] sm:$0xff]
  %v697 = vld [vmem:[%s1 + $0x10d8] sm:$0xff]
  %v698 = vld [vmem:[%s1 + $0x10e0] sm:$0xff]
  %v699 = vld [vmem:[%s1 + $0x10e8] sm:$0xff]
  %v700 = vld [vmem:[%s1 + $0x10f0] sm:$0xff]
  %v701 = vld [vmem:[%s1 + $0x10f8] sm:$0xff]
  %v702 = vld [vmem:[%s1 + $0x1100] sm:$0xff]
  %v703 = vld [vmem:[%s1 + $0x1108] sm:$0xff]
  %v704 = vld [vmem:[%s1 + $0x1110] sm:$0xff]
  %v705 = vld [vmem:[%s1 + $0x1118] sm:$0xff]
  %v706 = vld [vmem:[%s1 + $0x1120] sm:$0xff]
  %v707 = vld [vmem:[%s1 + $0x1128] sm:$0xff]
  %v708 = vld [vmem:[%s1 + $0x1130] sm:$0xff]
  %v709 = vld [vmem:[%s1 + $0x1138] sm:$0xff]
  %v710 = vld [vmem:[%s1 + $0x1140] sm:$0xff]
  %v711 = vld [vmem:[%s1 + $0x1148] sm:$0xff]
  %v712 = vld [vmem:[%s1 + $0x1150] sm:$0xff]
  %v713 = vld [vmem:[%s1 + $0x1158] sm:$0xff]
  %v714 = vld [vmem:[%s1 + $0x1160] sm:$0xff]
  %v715 = vld [vmem:[%s1 + $0x1168] sm:$0xff]
  %v716 = vld [vmem:[%s1 + $0x1170] sm:$0xff]
  %v717 = vld [vmem:[%s1 + $0x1178] sm:$0xff]
  %v718 = vld [vmem:[%s1 + $0x1180] sm:$0xff]
  %v719 = vld [vmem:[%s1 + $0x1188] sm:$0xff]
  %v720 = vld [vmem:[%s1 + $0x1190] sm:$0xff]
  %v721 = vld [vmem:[%s1 + $0x1198] sm:$0xff]
  %v722 = vld [vmem:[%s1 + $0x11a0] sm:$0xff]
  %v723 = vld [vmem:[%s1 + $0x11a8] sm:$0xff]
  %v724 = vld [vmem:[%s1 + $0x11b0] sm:$0xff]
  %v725 = vld [vmem:[%s1 + $0x11b8] sm:$0xff]
  %v726 = vld [vmem:[%s1 + $0x11c0] sm:$0xff]
  %v727 = vld [vmem:[%s1 + $0x11c8] sm:$0xff]
  %v728 = vld [vmem:[%s1 + $0x11d0] sm:$0xff]
  %v729 = vld [vmem:[%s1 + $0x11d8] sm:$0xff]
  %v730 = vld [vmem:[%s1 + $0x11e0] sm:$0xff]
  %v731 = vld [vmem:[%s1 + $0x11e8] sm:$0xff]
  %v732 = vld [vmem:[%s1 + $0x11f0] sm:$0xff]
  %v733 = vld [vmem:[%s1 + $0x11f8] sm:$0xff]
  %v734 = vld [vmem:[%s1 + $0x1200] sm:$0xff]
  %v735 = vld [vmem:[%s1 + $0x1208] sm:$0xff]
  %v736 = vld [vmem:[%s1 + $0x1210] sm:$0xff]
  %v737 = vld [vmem:[%s1 + $0x1218] sm:$0xff]
  %v738 = vld [vmem:[%s1 + $0x1220] sm:$0xff]
  %v739 = vld [vmem:[%s1 + $0x1228] sm:$0xff]
  %v740 = vld [vmem:[%s1 + $0x1230] sm:$0xff]
  %v741 = vld [vmem:[%s1 + $0x1238] sm:$0xff]
  %v742 = vld [vmem:[%s1 + $0x1240] sm:$0xff]
  %v743 = vld [vmem:[%s1 + $0x1248] sm:$0xff]
  %v744 = vld [vmem:[%s1 + $0x1250] sm:$0xff]
  %v745 = vld [vmem:[%s1 + $0x1258] sm:$0xff]
  %v746 = vld [vmem:[%s1 + $0x1260] sm:$0xff]
  %v747 = vld [vmem:[%s1 + $0x1268] sm:$0xff]
  %v748 = vld [vmem:[%s1 + $0x1270] sm:$0xff]
  %v749 = vld [vmem:[%s1 + $0x1278] sm:$0xff]
  %v750 = vld [vmem:[%s1 + $0x1280] sm:$0xff]
  %v751 = vld [vmem:[%s1 + $0x1288] sm:$0xff]
  %v752 = vld [vmem:[%s1 + $0x1290] sm:$0xff]
  %v753 = vld [vmem:[%s1 + $0x1298] sm:$0xff]
  %v754 = vld [vmem:[%s1 + $0x12a0] sm:$0xff]
  %v755 = vld [vmem:[%s1 + $0x12a8] sm:$0xff]
  %v756 = vld [vmem:[%s1 + $0x12b0] sm:$0xff]
  %v757 = vld [vmem:[%s1 + $0x12b8] sm:$0xff]
  %v758 = vld [vmem:[%s1 + $0x12c0] sm:$0xff]
  %v759 = vld [vmem:[%s1 + $0x12c8] sm:$0xff]
  %v760 = vld [vmem:[%s1 + $0x12d0] sm:$0xff]
  %v761 = vld [vmem:[%s1 + $0x12d8] sm:$0xff]
  %v762 = vld [vmem:[%s1 + $0x12e0] sm:$0xff]
  %v763 = vld [vmem:[%s1 + $0x12e8] sm:$0xff]
  %v764 = vld [vmem:[%s1 + $0x12f0] sm:$0xff]
  %v765 = vld [vmem:[%s1 + $0x12f8] sm:$0xff]
  %v766 = vld [vmem:[%s1 + $0x1300] sm:$0xff]
  %v767 = vld [vmem:[%s1 + $0x1308] sm:$0xff]
  %v768 = vld [vmem:[%s1 + $0x1310] sm:$0xff]
  %v769 = vld [vmem:[%s1 + $0x1318] sm:$0xff]
  %v770 = vld [vmem:[%s1 + $0x1320] sm:$0xff]
  %v771 = vld [vmem:[%s1 + $0x1328] sm:$0xff]
  %v772 = vld [vmem:[%s1 + $0x1330] sm:$0xff]
  %v773 = vld [vmem:[%s1 + $0x1338] sm:$0xff]
  %v774 = vld [vmem:[%s1 + $0x1340] sm:$0xff]
  %v775 = vld [vmem:[%s1 + $0x1348] sm:$0xff]
  %v776 = vld [vmem:[%s1 + $0x1350] sm:$0xff]
  %v777 = vld [vmem:[%s1 + $0x1358] sm:$0xff]
  %v778 = vld [vmem:[%s1 + $0x1360] sm:$0xff]
  %v779 = vld [vmem:[%s1 + $0x1368] sm:$0xff]
  %v780 = vld [vmem:[%s1 + $0x1370] sm:$0xff]
  %v781 = vld [vmem:[%s1 + $0x1378] sm:$0xff]
  %v782 = vld [vmem:[%s1 + $0x1380] sm:$0xff]
  %v783 = vld [vmem:[%s1 + $0x1388] sm:$0xff]
  %v784 = vld [vmem:[%s1 + $0x1390] sm:$0xff]
  %v785 = vld [vmem:[%s1 + $0x1398] sm:$0xff]
  %v786 = vld [vmem:[%s1 + $0x13a0] sm:$0xff]
  %v787 = vld [vmem:[%s1 + $0x13a8] sm:$0xff]
  %v788 = vld [vmem:[%s1 + $0x13b0] sm:$0xff]
  %v789 = vld [vmem:[%s1 + $0x13b8] sm:$0xff]
  %v790 = vld [vmem:[%s1 + $0x13c0] sm:$0xff]
  %v791 = vld [vmem:[%s1 + $0x13c8] sm:$0xff]
  %v792 = vld [vmem:[%s1 + $0x13d0] sm:$0xff]
  %v793 = vld [vmem:[%s1 + $0x13d8] sm:$0xff]
  %v794 = vld [vmem:[%s1 + $0x13e0] sm:$0xff]
  %v795 = vld [vmem:[%s1 + $0x13e8] sm:$0xff]
  %v796 = vld [vmem:[%s1 + $0x13f0] sm:$0xff]
  %v797 = vld [vmem:[%s1 + $0x13f8] sm:$0xff]
  %v798 = vld [vmem:[%s1 + $0x1400] sm:$0xff]
  %v799 = vld [vmem:[%s1 + $0x1408] sm:$0xff]
  %v800 = vld [vmem:[%s1 + $0x1410] sm:$0xff]
  %v801 = vld [vmem:[%s1 + $0x1418] sm:$0xff]
  %v802 = vld [vmem:[%s1 + $0x1420] sm:$0xff]
  %v803 = vld [vmem:[%s1 + $0x1428] sm:$0xff]
  %v804 = vld [vmem:[%s1 + $0x1430] sm:$0xff]
  %v805 = vld [vmem:[%s1 + $0x1438] sm:$0xff]
  %v806 = vld [vmem:[%s1 + $0x1440] sm:$0xff]
  %v807 = vld [vmem:[%s1 + $0x1448] sm:$0xff]
  %v808 = vld [vmem:[%s1 + $0x1450] sm:$0xff]
  %v809 = vld [vmem:[%s1 + $0x1458] sm:$0xff]
  %v810 = vld [vmem:[%s1 + $0x1460] sm:$0xff]
  %v811 = vld [vmem:[%s1 + $0x1468] sm:$0xff]
  %v812 = vld [vmem:[%s1 + $0x1470] sm:$0xff]
  %v813 = vld [vmem:[%s1 + $0x1478] sm:$0xff]
  %v814 = vld [vmem:[%s1 + $0x1480] sm:$0xff]
  %v815 = vld [vmem:[%s1 + $0x1488] sm:$0xff]
  %v816 = vld [vmem:[%s1 + $0x1490] sm:$0xff]
  %v817 = vld [vmem:[%s1 + $0x1498] sm:$0xff]
  %v818 = vld [vmem:[%s1 + $0x14a0] sm:$0xff]
  %v819 = vld [vmem:[%s1 + $0x14a8] sm:$0xff]
  %v820 = vld [vmem:[%s1 + $0x14b0] sm:$0xff]
  %v821 = vld [vmem:[%s1 + $0x14b8] sm:$0xff]
  %v822 = vld [vmem:[%s1 + $0x14c0] sm:$0xff]
  %v823 = vld [vmem:[%s1 + $0x14c8] sm:$0xff]
  %v824 = vld [vmem:[%s1 + $0x14d0] sm:$0xff]
  %v825 = vld [vmem:[%s1 + $0x14d8] sm:$0xff]
  %v826 = vld [vmem:[%s1 + $0x14e0] sm:$0xff]
  %v827 = vld [vmem:[%s1 + $0x14e8] sm:$0xff]
  %v828 = vld [vmem:[%s1 + $0x14f0] sm:$0xff]
  %v829 = vld [vmem:[%s1 + $0x14f8] sm:$0xff]
  %v830 = vld [vmem:[%s1 + $0x1500] sm:$0xff]
  %v831 = vld [vmem:[%s1 + $0x1508] sm:$0xff]
  %v832 = vld [vmem:[%s1 + $0x1510] sm:$0xff]
  %v833 = vld [vmem:[%s1 + $0x1518] sm:$0xff]
  %v834 = vld [vmem:[%s1 + $0x1520] sm:$0xff]
  %v835 = vld [vmem:[%s1 + $0x1528] sm:$0xff]
  %v836 = vld [vmem:[%s1 + $0x1530] sm:$0xff]
  %v837 = vld [vmem:[%s1 + $0x1538] sm:$0xff]
  %v838 = vld [vmem:[%s1 + $0x1540] sm:$0xff]
  %v839 = vld [vmem:[%s1 + $0x1548] sm:$0xff]
  %v840 = vld [vmem:[%s1 + $0x1550] sm:$0xff]
  %v841 = vld [vmem:[%s1 + $0x1558] sm:$0xff]
  %v842 = vld [vmem:[%s1 + $0x1560] sm:$0xff]
  %v843 = vld [vmem:[%s1 + $0x1568] sm:$0xff]
  %v844 = vld [vmem:[%s1 + $0x1570] sm:$0xff]
  %v845 = vld [vmem:[%s1 + $0x1578] sm:$0xff]
  %v846 = vld [vmem:[%s1 + $0x1580] sm:$0xff]
  %v847 = vld [vmem:[%s1 + $0x1588] sm:$0xff]
  %v848 = vld [vmem:[%s1 + $0x1590] sm:$0xff]
  %v849 = vld [vmem:[%s1 + $0x1598] sm:$0xff]
  %v850 = vld [vmem:[%s1 + $0x15a0] sm:$0xff]
  %v851 = vld [vmem:[%s1 + $0x15a8] sm:$0xff]
  %v852 = vld [vmem:[%s1 + $0x15b0] sm:$0xff]
  %v853 = vld [vmem:[%s1 + $0x15b8] sm:$0xff]
  %v854 = vld [vmem:[%s1 + $0x15c0] sm:$0xff]
  %v855 = vld [vmem:[%s1 + $0x15c8] sm:$0xff]
  %v856 = vld [vmem:[%s1 + $0x15d0] sm:$0xff]
  %v857 = vld [vmem:[%s1 + $0x15d8] sm:$0xff]
  %v858 = vld [vmem:[%s1 + $0x15e0] sm:$0xff]
  %v859 = vld [vmem:[%s1 + $0x15e8] sm:$0xff]
  %v860 = vld [vmem:[%s1 + $0x15f0] sm:$0xff]
  %v861 = vld [vmem:[%s1 + $0x15f8] sm:$0xff]
  %v862 = vld [vmem:[%s1 + $0x1600] sm:$0xff]
  %v863 = vld [vmem:[%s1 + $0x1608] sm:$0xff]
  %v864 = vld [vmem:[%s1 + $0x1610] sm:$0xff]
  %v865 = vld [vmem:[%s1 + $0x1618] sm:$0xff]
  %v866 = vld [vmem:[%s1 + $0x1620] sm:$0xff]
  %v867 = vld [vmem:[%s1 + $0x1628] sm:$0xff]
  %v868 = vld [vmem:[%s1 + $0x1630] sm:$0xff]
  %v869 = vld [vmem:[%s1 + $0x1638] sm:$0xff]
  %v870 = vld [vmem:[%s1 + $0x1640] sm:$0xff]
  %v871 = vld [vmem:[%s1 + $0x1648] sm:$0xff]
  %v872 = vld [vmem:[%s1 + $0x1650] sm:$0xff]
  %v873 = vld [vmem:[%s1 + $0x1658] sm:$0xff]
  %v874 = vld [vmem:[%s1 + $0x1660] sm:$0xff]
  %v875 = vld [vmem:[%s1 + $0x1668] sm:$0xff]
  %v876 = vld [vmem:[%s1 + $0x1670] sm:$0xff]
  %v877 = vld [vmem:[%s1 + $0x1678] sm:$0xff]
  %v878 = vld [vmem:[%s1 + $0x1680] sm:$0xff]
  %v879 = vld [vmem:[%s1 + $0x1688] sm:$0xff]
  %v880 = vld [vmem:[%s1 + $0x1690] sm:$0xff]
  %v881 = vld [vmem:[%s1 + $0x1698] sm:$0xff]
  %v882 = vld [vmem:[%s1 + $0x16a0] sm:$0xff]
  %v883 = vld [vmem:[%s1 + $0x16a8] sm:$0xff]
  %v884 = vld [vmem:[%s1 + $0x16b0] sm:$0xff]
  %v885 = vld [vmem:[%s1 + $0x16b8] sm:$0xff]
  %v886 = vld [vmem:[%s1 + $0x16c0] sm:$0xff]
  %v887 = vld [vmem:[%s1 + $0x16c8] sm:$0xff]
  %v888 = vld [vmem:[%s1 + $0x16d0] sm:$0xff]
  %v889 = vld [vmem:[%s1 + $0x16d8] sm:$0xff]
  %v890 = vld [vmem:[%s1 + $0x16e0] sm:$0xff]
  %v891 = vld [vmem:[%s1 + $0x16e8] sm:$0xff]
  %v892 = vld [vmem:[%s1 + $0x16f0] sm:$0xff]
  %v893 = vld [vmem:[%s1 + $0x16f8] sm:$0xff]
  %v894 = vld [vmem:[%s1 + $0x1700] sm:$0xff]
  %v895 = vld [vmem:[%s1 + $0x1708] sm:$0xff]
  %v896 = vld [vmem:[%s1 + $0x1710] sm:$0xff]
  %v897 = vld [vmem:[%s1 + $0x1718] sm:$0xff]
  %v898 = vld [vmem:[%s1 + $0x1720] sm:$0xff]
  %v899 = vld [vmem:[%s1 + $0x1728] sm:$0xff]
  %v900 = vld [vmem:[%s1 + $0x1730] sm:$0xff]
  %v901 = vld [vmem:[%s1 + $0x1738] sm:$0xff]
  %v902 = vld [vmem:[%s1 + $0x1740] sm:$0xff]
  %v903 = vld [vmem:[%s1 + $0x1748] sm:$0xff]
  %v904 = vld [vmem:[%s1 + $0x1750] sm:$0xff]
  %v905 = vld [vmem:[%s1 + $0x1758] sm:$0xff]
  %v906 = vld [vmem:[%s1 + $0x1760] sm:$0xff]
  %v907 = vld [vmem:[%s1 + $0x1768] sm:$0xff]
  %v908 = vld [vmem:[%s1 + $0x1770] sm:$0xff]
  %v909 = vld [vmem:[%s1 + $0x1778] sm:$0xff]
  %v910 = vld [vmem:[%s1 + $0x1780] sm:$0xff]
  %v911 = vld [vmem:[%s1 + $0x1788] sm:$0xff]
  %v912 = vld [vmem:[%s1 + $0x1790] sm:$0xff]
  %v913 = vld [vmem:[%s1 + $0x1798] sm:$0xff]
  %v914 = vld [vmem:[%s1 + $0x17a0] sm:$0xff]
  %v915 = vld [vmem:[%s1 + $0x17a8] sm:$0xff]
  %v916 = vld [vmem:[%s1 + $0x17b0] sm:$0xff]
  %v917 = vld [vmem:[%s1 + $0x17b8] sm:$0xff]
  %v918 = vld [vmem:[%s1 + $0x17c0] sm:$0xff]
  %v919 = vld [vmem:[%s1 + $0x17c8] sm:$0xff]
  %v920 = vld [vmem:[%s1 + $0x17d0] sm:$0xff]
  %v921 = vld [vmem:[%s1 + $0x17d8] sm:$0xff]
  %v922 = vld [vmem:[%s1 + $0x17e0] sm:$0xff]
  %v923 = vld [vmem:[%s1 + $0x17e8] sm:$0xff]
  %v924 = vld [vmem:[%s1 + $0x17f0] sm:$0xff]
  %v925 = vld [vmem:[%s1 + $0x17f8] sm:$0xff]
  %v926 = vld [vmem:[%s1 + $0x1800] sm:$0xff]
  %v927 = vld [vmem:[%s1 + $0x1808] sm:$0xff]
  %v928 = vld [vmem:[%s1 + $0x1810] sm:$0xff]
  %v929 = vld [vmem:[%s1 + $0x1818] sm:$0xff]
  %v930 = vld [vmem:[%s1 + $0x1820] sm:$0xff]
  %v931 = vld [vmem:[%s1 + $0x1828] sm:$0xff]
  %v932 = vld [vmem:[%s1 + $0x1830] sm:$0xff]
  %v933 = vld [vmem:[%s1 + $0x1838] sm:$0xff]
  %v934 = vld [vmem:[%s1 + $0x1840] sm:$0xff]
  %v935 = vld [vmem:[%s1 + $0x1848] sm:$0xff]
  %v936 = vld [vmem:[%s1 + $0x1850] sm:$0xff]
  %v937 = vld [vmem:[%s1 + $0x1858] sm:$0xff]
  %v938 = vld [vmem:[%s1 + $0x1860] sm:$0xff]
  %v939 = vld [vmem:[%s1 + $0x1868] sm:$0xff]
  %v940 = vld [vmem:[%s1 + $0x1870] sm:$0xff]
  %v941 = vld [vmem:[%s1 + $0x1878] sm:$0xff]
  %v942 = vld [vmem:[%s1 + $0x1880] sm:$0xff]
  %v943 = vld [vmem:[%s1 + $0x1888] sm:$0xff]
  %v944 = vld [vmem:[%s1 + $0x1890] sm:$0xff]
  %v945 = vld [vmem:[%s1 + $0x1898] sm:$0xff]
  %v946 = vld [vmem:[%s1 + $0x18a0] sm:$0xff]
  %v947 = vld [vmem:[%s1 + $0x18a8] sm:$0xff]
  %v948 = vld [vmem:[%s1 + $0x18b0] sm:$0xff]
  %v949 = vld [vmem:[%s1 + $0x18b8] sm:$0xff]
  %v950 = vld [vmem:[%s1 + $0x18c0] sm:$0xff]
  %v951 = vld [vmem:[%s1 + $0x18c8] sm:$0xff]
  %v952 = vld [vmem:[%s1 + $0x18d0] sm:$0xff]
  %v953 = vld [vmem:[%s1 + $0x18d8] sm:$0xff]
  %v954 = vld [vmem:[%s1 + $0x18e0] sm:$0xff]
  %v955 = vld [vmem:[%s1 + $0x18e8] sm:$0xff]
  %v956 = vld [vmem:[%s1 + $0x18f0] sm:$0xff]
  %v957 = vld [vmem:[%s1 + $0x18f8] sm:$0xff]
  %v958 = vld [vmem:[%s1 + $0x1900] sm:$0xff]
  %v959 = vld [vmem:[%s1 + $0x1908] sm:$0xff]
  %v960 = vld [vmem:[%s1 + $0x1910] sm:$0xff]
  %v961 = vld [vmem:[%s1 + $0x1918] sm:$0xff]
  %v962 = vld [vmem:[%s1 + $0x1920] sm:$0xff]
  %v963 = vld [vmem:[%s1 + $0x1928] sm:$0xff]
  %v964 = vld [vmem:[%s1 + $0x1930] sm:$0xff]
  %v965 = vld [vmem:[%s1 + $0x1938] sm:$0xff]
  %v966 = vld [vmem:[%s1 + $0x1940] sm:$0xff]
  %v967 = vld [vmem:[%s1 + $0x1948] sm:$0xff]
  %v968 = vld [vmem:[%s1 + $0x1950] sm:$0xff]
  %v969 = vld [vmem:[%s1 + $0x1958] sm:$0xff]
  %v970 = vld [vmem:[%s1 + $0x1960] sm:$0xff]
  %v971 = vld [vmem:[%s1 + $0x1968] sm:$0xff]
  %v972 = vld [vmem:[%s1 + $0x1970] sm:$0xff]
  %v973 = vld [vmem:[%s1 + $0x1978] sm:$0xff]
  %v974 = vld [vmem:[%s1 + $0x1980] sm:$0xff]
  %v975 = vld [vmem:[%s1 + $0x1988] sm:$0xff]
  %v976 = vld [vmem:[%s1 + $0x1990] sm:$0xff]
  %v977 = vld [vmem:[%s1 + $0x1998] sm:$0xff]
  %v978 = vld [vmem:[%s1 + $0x19a0] sm:$0xff]
  %v979 = vld [vmem:[%s1 + $0x19a8] sm:$0xff]
  %v980 = vld [vmem:[%s1 + $0x19b0] sm:$0xff]
  %v981 = vld [vmem:[%s1 + $0x19b8] sm:$0xff]
  %v982 = vld [vmem:[%s1 + $0x19c0] sm:$0xff]
  %v983 = vld [vmem:[%s1 + $0x19c8] sm:$0xff]
  %v984 = vld [vmem:[%s1 + $0x19d0] sm:$0xff]
  %v985 = vld [vmem:[%s1 + $0x19d8] sm:$0xff]
  %v986 = vld [vmem:[%s1 + $0x19e0] sm:$0xff]
  %v987 = vld [vmem:[%s1 + $0x19e8] sm:$0xff]
  %v988 = vld [vmem:[%s1 + $0x19f0] sm:$0xff]
  %v989 = vld [vmem:[%s1 + $0x19f8] sm:$0xff]
  %v990 = vld [vmem:[%s1 + $0x1a00] sm:$0xff]
  %v991 = vld [vmem:[%s1 + $0x1a08] sm:$0xff]
  %v992 = vld [vmem:[%s1 + $0x1a10] sm:$0xff]
  %v993 = vld [vmem:[%s1 + $0x1a18] sm:$0xff]
  %v994 = vld [vmem:[%s1 + $0x1a20] sm:$0xff]
  %v995 = vld [vmem:[%s1 + $0x1a28] sm:$0xff]
  %v996 = vld [vmem:[%s1 + $0x1a30] sm:$0xff]
  %v997 = vld [vmem:[%s1 + $0x1a38] sm:$0xff]
  %v998 = vld [vmem:[%s1 + $0x1a40] sm:$0xff]
  %v999 = vld [vmem:[%s1 + $0x1a48] sm:$0xff]
  %v1000 = vld [vmem:[%s1 + $0x1a50] sm:$0xff]
  %v1001 = vld [vmem:[%s1 + $0x1a58] sm:$0xff]
  %v1002 = vld [vmem:[%s1 + $0x1a60] sm:$0xff]
  %v1003 = vld [vmem:[%s1 + $0x1a68] sm:$0xff]
  %v1004 = vld [vmem:[%s1 + $0x1a70] sm:$0xff]
  %v1005 = vld [vmem:[%s1 + $0x1a78] sm:$0xff]
  %v1006 = vld [vmem:[%s1 + $0x1a80] sm:$0xff]
  %v1007 = vld [vmem:[%s1 + $0x1a88] sm:$0xff]
  %v1008 = vld [vmem:[%s1 + $0x1a90] sm:$0xff]
  %v1009 = vld [vmem:[%s1 + $0x1a98] sm:$0xff]
  %v1010 = vld [vmem:[%s1 + $0x1aa0] sm:$0xff]
  %v1011 = vld [vmem:[%s1 + $0x1aa8] sm:$0xff]
  %v1012 = vld [vmem:[%s1 + $0x1ab0] sm:$0xff]
  %v1013 = vld [vmem:[%s1 + $0x1ab8] sm:$0xff]
  %v1014 = vld [vmem:[%s1 + $0x1ac0] sm:$0xff]
  %v1015 = vld [vmem:[%s1 + $0x1ac8] sm:$0xff]
  %v1016 = vld [vmem:[%s1 + $0x1ad0] sm:$0xff]
  %v1017 = vld [vmem:[%s1 + $0x1ad8] sm:$0xff]
  %v1018 = vld [vmem:[%s1 + $0x1ae0] sm:$0xff]
  %v1019 = vld [vmem:[%s1 + $0x1ae8] sm:$0xff]
  %v1020 = vld [vmem:[%s1 + $0x1af0] sm:$0xff]
  %v1021 = vld [vmem:[%s1 + $0x1af8] sm:$0xff]
  %v1022 = vld [vmem:[%s1 + $0x1b00] sm:$0xff]
  %v1023 = vld [vmem:[%s1 + $0x1b08] sm:$0xff]
  %v1024 = vld [vmem:[%s1 + $0x1b10] sm:$0xff]
  %v1025 = vld [vmem:[%s1 + $0x1b18] sm:$0xff]
  %v1026 = vld [vmem:[%s1 + $0x1b20] sm:$0xff]
  %v1027 = vld [vmem:[%s1 + $0x1b28] sm:$0xff]
  %v1028 = vld [vmem:[%s1 + $0x1b30] sm:$0xff]
  %v1029 = vld [vmem:[%s1 + $0x1b38] sm:$0xff]
  %v1030 = vld [vmem:[%s1 + $0x1b40] sm:$0xff]
  %v1031 = vld [vmem:[%s1 + $0x1b48] sm:$0xff]
  %v1032 = vld [vmem:[%s1 + $0x1b50] sm:$0xff]
  %v1033 = vld [vmem:[%s1 + $0x1b58] sm:$0xff]
  %v1034 = vld [vmem:[%s1 + $0x1b60] sm:$0xff]
  %v1035 = vld [vmem:[%s1 + $0x1b68] sm:$0xff]
  %v1036 = vld [vmem:[%s1 + $0x1b70] sm:$0xff]
  %v1037 = vld [vmem:[%s1 + $0x1b78] sm:$0xff]
  %v1038 = vld [vmem:[%s1 + $0x1b80] sm:$0xff]
  %v1039 = vld [vmem:[%s1 + $0x1b88] sm:$0xff]
  %v1040 = vld [vmem:[%s1 + $0x1b90] sm:$0xff]
  %v1041 = vld [vmem:[%s1 + $0x1b98] sm:$0xff]
  %v1042 = vld [vmem:[%s1 + $0x1ba0] sm:$0xff]
  %v1043 = vld [vmem:[%s1 + $0x1ba8] sm:$0xff]
  %v1044 = vld [vmem:[%s1 + $0x1bb0] sm:$0xff]
  %v1045 = vld [vmem:[%s1 + $0x1bb8] sm:$0xff]
  %v1046 = vld [vmem:[%s1 + $0x1bc0] sm:$0xff]
  %v1047 = vld [vmem:[%s1 + $0x1bc8] sm:$0xff]
  %v1048 = vld [vmem:[%s1 + $0x1bd0] sm:$0xff]
  %v1049 = vld [vmem:[%s1 + $0x1bd8] sm:$0xff]
  %v1050 = vld [vmem:[%s1 + $0x1be0] sm:$0xff]
  %v1051 = vld [vmem:[%s1 + $0x1be8] sm:$0xff]
  %v1052 = vld [vmem:[%s1 + $0x1bf0] sm:$0xff]
  %v1053 = vld [vmem:[%s1 + $0x1bf8] sm:$0xff]
  %v1054 = vld [vmem:[%s1 + $0x1c00] sm:$0xff]
  %v1055 = vld [vmem:[%s1 + $0x1c08] sm:$0xff]
  %v1056 = vld [vmem:[%s1 + $0x1c10] sm:$0xff]
  %v1057 = vld [vmem:[%s1 + $0x1c18] sm:$0xff]
  %v1058 = vld [vmem:[%s1 + $0x1c20] sm:$0xff]
  %v1059 = vld [vmem:[%s1 + $0x1c28] sm:$0xff]
  %v1060 = vld [vmem:[%s1 + $0x1c30] sm:$0xff]
  %v1061 = vld [vmem:[%s1 + $0x1c38] sm:$0xff]
  %v1062 = vld [vmem:[%s1 + $0x1c40] sm:$0xff]
  %v1063 = vld [vmem:[%s1 + $0x1c48] sm:$0xff]
  %v1064 = vld [vmem:[%s1 + $0x1c50] sm:$0xff]
  %v1065 = vld [vmem:[%s1 + $0x1c58] sm:$0xff]
  %v1066 = vld [vmem:[%s1 + $0x1c60] sm:$0xff]
  %v1067 = vld [vmem:[%s1 + $0x1c68] sm:$0xff]
  %v1068 = vld [vmem:[%s1 + $0x1c70] sm:$0xff]
  %v1069 = vld [vmem:[%s1 + $0x1c78] sm:$0xff]
  %v1070 = vld [vmem:[%s1 + $0x1c80] sm:$0xff]
  %v1071 = vld [vmem:[%s1 + $0x1c88] sm:$0xff]
  %v1072 = vld [vmem:[%s1 + $0x1c90] sm:$0xff]
  %v1073 = vld [vmem:[%s1 + $0x1c98] sm:$0xff]
  %v1074 = vld [vmem:[%s1 + $0x1ca0] sm:$0xff]
  %v1075 = vld [vmem:[%s1 + $0x1ca8] sm:$0xff]
  %v1076 = vld [vmem:[%s1 + $0x1cb0] sm:$0xff]
  %v1077 = vld [vmem:[%s1 + $0x1cb8] sm:$0xff]
  %v1078 = vld [vmem:[%s1 + $0x1cc0] sm:$0xff]
  %v1079 = vld [vmem:[%s1 + $0x1cc8] sm:$0xff]
  %v1080 = vld [vmem:[%s1 + $0x1cd0] sm:$0xff]
  %v1081 = vld [vmem:[%s1 + $0x1cd8] sm:$0xff]
  %v1082 = vld [vmem:[%s1 + $0x1ce0] sm:$0xff]
  %v1083 = vld [vmem:[%s1 + $0x1ce8] sm:$0xff]
  %v1084 = vld [vmem:[%s1 + $0x1cf0] sm:$0xff]
  %v1085 = vld [vmem:[%s1 + $0x1cf8] sm:$0xff]
  %v1086 = vld [vmem:[%s1 + $0x1d00] sm:$0xff]
  %v1087 = vld [vmem:[%s1 + $0x1d08] sm:$0xff]
  %v1088 = vld [vmem:[%s1 + $0x1d10] sm:$0xff]
  %v1089 = vld [vmem:[%s1 + $0x1d18] sm:$0xff]
  %v1090 = vld [vmem:[%s1 + $0x1d20] sm:$0xff]
  %v1091 = vld [vmem:[%s1 + $0x1d28] sm:$0xff]
  %v1092 = vld [vmem:[%s1 + $0x1d30] sm:$0xff]
  %v1093 = vld [vmem:[%s1 + $0x1d38] sm:$0xff]
  %v1094 = vld [vmem:[%s1 + $0x1d40] sm:$0xff]
  %v1095 = vld [vmem:[%s1 + $0x1d48] sm:$0xff]
  %v1096 = vld [vmem:[%s1 + $0x1d50] sm:$0xff]
  %v1097 = vld [vmem:[%s1 + $0x1d58] sm:$0xff]
  %v1098 = vld [vmem:[%s1 + $0x1d60] sm:$0xff]
  %v1099 = vld [vmem:[%s1 + $0x1d68] sm:$0xff]
  %v1100 = vld [vmem:[%s1 + $0x1d70] sm:$0xff]
  %v1101 = vld [vmem:[%s1 + $0x1d78] sm:$0xff]
  %v1102 = vld [vmem:[%s1 + $0x1d80] sm:$0xff]
  %v1103 = vld [vmem:[%s1 + $0x1d88] sm:$0xff]
  %v1104 = vld [vmem:[%s1 + $0x1d90] sm:$0xff]
  %v1105 = vld [vmem:[%s1 + $0x1d98] sm:$0xff]
  %v1106 = vld [vmem:[%s1 + $0x1da0] sm:$0xff]
  %v1107 = vld [vmem:[%s1 + $0x1da8] sm:$0xff]
  %v1108 = vld [vmem:[%s1 + $0x1db0] sm:$0xff]
  %v1109 = vld [vmem:[%s1 + $0x1db8] sm:$0xff]
  %v1110 = vld [vmem:[%s1 + $0x1dc0] sm:$0xff]
  %v1111 = vld [vmem:[%s1 + $0x1dc8] sm:$0xff]
  %v1112 = vld [vmem:[%s1 + $0x1dd0] sm:$0xff]
  %v1113 = vld [vmem:[%s1 + $0x1dd8] sm:$0xff]
  %v1114 = vld [vmem:[%s1 + $0x1de0] sm:$0xff]
  %v1115 = vld [vmem:[%s1 + $0x1de8] sm:$0xff]
  %v1116 = vld [vmem:[%s1 + $0x1df0] sm:$0xff]
  %v1117 = vld [vmem:[%s1 + $0x1df8] sm:$0xff]
  %v1118 = vld [vmem:[%s1 + $0x1e00] sm:$0xff]
  %v1119 = vld [vmem:[%s1 + $0x1e08] sm:$0xff]
  %v1120 = vld [vmem:[%s1 + $0x1e10] sm:$0xff]
  %v1121 = vld [vmem:[%s1 + $0x1e18] sm:$0xff]
  %v1122 = vld [vmem:[%s1 + $0x1e20] sm:$0xff]
  %v1123 = vld [vmem:[%s1 + $0x1e28] sm:$0xff]
  %v1124 = vld [vmem:[%s1 + $0x1e30] sm:$0xff]
  %v1125 = vld [vmem:[%s1 + $0x1e38] sm:$0xff]
  %v1126 = vld [vmem:[%s1 + $0x1e40] sm:$0xff]
  %v1127 = vld [vmem:[%s1 + $0x1e48] sm:$0xff]
  %v1128 = vld [vmem:[%s1 + $0x1e50] sm:$0xff]
  %v1129 = vld [vmem:[%s1 + $0x1e58] sm:$0xff]
  %v1130 = vld [vmem:[%s1 + $0x1e60] sm:$0xff]
  %v1131 = vld [vmem:[%s1 + $0x1e68] sm:$0xff]
  %v1132 = vld [vmem:[%s1 + $0x1e70] sm:$0xff]
  %v1133 = vld [vmem:[%s1 + $0x1e78] sm:$0xff]
  %v1134 = vld [vmem:[%s1 + $0x1e80] sm:$0xff]
  %v1135 = vld [vmem:[%s1 + $0x1e88] sm:$0xff]
  %v1136 = vld [vmem:[%s1 + $0x1e90] sm:$0xff]
  %v1137 = vld [vmem:[%s1 + $0x1e98] sm:$0xff]
  %v1138 = vld [vmem:[%s1 + $0x1ea0] sm:$0xff]
  %v1139 = vld [vmem:[%s1 + $0x1ea8] sm:$0xff]
  %v1140 = vld [vmem:[%s1 + $0x1eb0] sm:$0xff]
  %v1141 = vld [vmem:[%s1 + $0x1eb8] sm:$0xff]
  %v1142 = vld [vmem:[%s1 + $0x1ec0] sm:$0xff]
  %v1143 = vld [vmem:[%s1 + $0x1ec8] sm:$0xff]
  %v1144 = vld [vmem:[%s1 + $0x1ed0] sm:$0xff]
  %v1145 = vld [vmem:[%s1 + $0x1ed8] sm:$0xff]
  %v1146 = vld [vmem:[%s1 + $0x1ee0] sm:$0xff]
  %v1147 = vld [vmem:[%s1 + $0x1ee8] sm:$0xff]
  %v1148 = vld [vmem:[%s1 + $0x1ef0] sm:$0xff]
  %v1149 = vld [vmem:[%s1 + $0x1ef8] sm:$0xff]
  %v1150 = vld [vmem:[%s1 + $0x1f00] sm:$0xff]
  %v1151 = vld [vmem:[%s1 + $0x1f08] sm:$0xff]
  %v1152 = vld [vmem:[%s1 + $0x1f10] sm:$0xff]
  %v1153 = vld [vmem:[%s1 + $0x1f18] sm:$0xff]
  %v1154 = vld [vmem:[%s1 + $0x1f20] sm:$0xff]
  %v1155 = vld [vmem:[%s1 + $0x1f28] sm:$0xff]
  %v1156 = vld [vmem:[%s1 + $0x1f30] sm:$0xff]
  %v1157 = vld [vmem:[%s1 + $0x1f38] sm:$0xff]
  %v1158 = vld [vmem:[%s1 + $0x1f40] sm:$0xff]
  %v1159 = vld [vmem:[%s1 + $0x1f48] sm:$0xff]
  %v1160 = vld [vmem:[%s1 + $0x1f50] sm:$0xff]
  %v1161 = vld [vmem:[%s1 + $0x1f58] sm:$0xff]
  %v1162 = vld [vmem:[%s1 + $0x1f60] sm:$0xff]
  %v1163 = vld [vmem:[%s1 + $0x1f68] sm:$0xff]
  %v1164 = vld [vmem:[%s1 + $0x1f70] sm:$0xff]
  %v1165 = vld [vmem:[%s1 + $0x1f78] sm:$0xff]
  %v1166 = vld [vmem:[%s1 + $0x1f80] sm:$0xff]
  %v1167 = vld [vmem:[%s1 + $0x1f88] sm:$0xff]
  %v1168 = vld [vmem:[%s1 + $0x1f90] sm:$0xff]
  %v1169 = vld [vmem:[%s1 + $0x1f98] sm:$0xff]
  %v1170 = vld [vmem:[%s1 + $0x1fa0] sm:$0xff]
  %v1171 = vld [vmem:[%s1 + $0x1fa8] sm:$0xff]
  %v1172 = vld [vmem:[%s1 + $0x1fb0] sm:$0xff]
  %v1173 = vld [vmem:[%s1 + $0x1fb8] sm:$0xff]
  %v1174 = vld [vmem:[%s1 + $0x1fc0] sm:$0xff]
  %v1175 = vld [vmem:[%s1 + $0x1fc8] sm:$0xff]
  %v1176 = vld [vmem:[%s1 + $0x1fd0] sm:$0xff]
  %v1177 = vld [vmem:[%s1 + $0x1fd8] sm:$0xff]
  %v1178 = vld [vmem:[%s1 + $0x1fe0] sm:$0xff]
  %v1179 = vld [vmem:[%s1 + $0x1fe8] sm:$0xff]
  %v1180 = vld [vmem:[%s1 + $0x1ff0] sm:$0xff]
  %v1181 = vld [vmem:[%s1 + $0x1ff8] sm:$0xff]
  %v1182 = vld [vmem:[%s1 + $0x2000] sm:$0xff]
  %v1183 = vld [vmem:[%s1 + $0x2008] sm:$0xff]
  %v1184 = vld [vmem:[%s1 + $0x2010] sm:$0xff]
  %v1185 = vld [vmem:[%s1 + $0x2018] sm:$0xff]
  %v1186 = vld [vmem:[%s1 + $0x2020] sm:$0xff]
  %v1187 = vld [vmem:[%s1 + $0x2028] sm:$0xff]
  %v1188 = vld [vmem:[%s1 + $0x2030] sm:$0xff]
  %v1189 = vld [vmem:[%s1 + $0x2038] sm:$0xff]
  %v1190 = vld [vmem:[%s1 + $0x2040] sm:$0xff]
  %v1191 = vld [vmem:[%s1 + $0x2048] sm:$0xff]
  %v1192 = vld [vmem:[%s1 + $0x2050] sm:$0xff]
  %v1193 = vld [vmem:[%s1 + $0x2058] sm:$0xff]
  %v1194 = vld [vmem:[%s1 + $0x2060] sm:$0xff]
  %v1195 = vld [vmem:[%s1 + $0x2068] sm:$0xff]
  %v1196 = vld [vmem:[%s1 + $0x2070] sm:$0xff]
  %v1197 = vld [vmem:[%s1 + $0x2078] sm:$0xff]
  %v1198 = vld [vmem:[%s1 + $0x2080] sm:$0xff]
  %v1199 = vld [vmem:[%s1 + $0x2088] sm:$0xff]
  %v1200 = vld [vmem:[%s1 + $0x2090] sm:$0xff]
  %v1201 = vld [vmem:[%s1 + $0x2098] sm:$0xff]
  %v1202 = vld [vmem:[%s1 + $0x20a0] sm:$0xff]
  %v1203 = vld [vmem:[%s1 + $0x20a8] sm:$0xff]
  %v1204 = vld [vmem:[%s1 + $0x20b0] sm:$0xff]
  %v1205 = vld [vmem:[%s1 + $0x20b8] sm:$0xff]
  %v1206 = vld [vmem:[%s1 + $0x20c0] sm:$0xff]
  %v1207 = vld [vmem:[%s1 + $0x20c8] sm:$0xff]
  %v1208 = vld [vmem:[%s1 + $0x20d0] sm:$0xff]
  %v1209 = vld [vmem:[%s1 + $0x20d8] sm:$0xff]
  %v1210 = vld [vmem:[%s1 + $0x20e0] sm:$0xff]
  %v1211 = vld [vmem:[%s1 + $0x20e8] sm:$0xff]
  %v1212 = vld [vmem:[%s1 + $0x20f0] sm:$0xff]
  %v1213 = vld [vmem:[%s1 + $0x20f8] sm:$0xff]
  %v1214 = vld [vmem:[%s1 + $0x2100] sm:$0xff]
  %v1215 = vld [vmem:[%s1 + $0x2108] sm:$0xff]
  %v1216 = vld [vmem:[%s1 + $0x2110] sm:$0xff]
  %v1217 = vld [vmem:[%s1 + $0x2118] sm:$0xff]
  %v1218 = vld [vmem:[%s1 + $0x2120] sm:$0xff]
  %v1219 = vld [vmem:[%s1 + $0x2128] sm:$0xff]
  %v1220 = vld [vmem:[%s1 + $0x2130] sm:$0xff]
  %v1221 = vld [vmem:[%s1 + $0x2138] sm:$0xff]
  %v1222 = vld [vmem:[%s1 + $0x2140] sm:$0xff]
  %v1223 = vld [vmem:[%s1 + $0x2148] sm:$0xff]
  %v1224 = vld [vmem:[%s1 + $0x2150] sm:$0xff]
  %v1225 = vld [vmem:[%s1 + $0x2158] sm:$0xff]
  %v1226 = vld [vmem:[%s1 + $0x2160] sm:$0xff]
  %v1227 = vld [vmem:[%s1 + $0x2168] sm:$0xff]
  %v1228 = vld [vmem:[%s1 + $0x2170] sm:$0xff]
  %v1229 = vld [vmem:[%s1 + $0x2178] sm:$0xff]
  %v1230 = vld [vmem:[%s1 + $0x2180] sm:$0xff]
  %v1231 = vld [vmem:[%s1 + $0x2188] sm:$0xff]
  %v1232 = vld [vmem:[%s1 + $0x2190] sm:$0xff]
  %v1233 = vld [vmem:[%s1 + $0x2198] sm:$0xff]
  %v1234 = vld [vmem:[%s1 + $0x21a0] sm:$0xff]
  %v1235 = vld [vmem:[%s1 + $0x21a8] sm:$0xff]
  %v1236 = vld [vmem:[%s1 + $0x21b0] sm:$0xff]
  %v1237 = vld [vmem:[%s1 + $0x21b8] sm:$0xff]
  %v1238 = vld [vmem:[%s1 + $0x21c0] sm:$0xff]
  %v1239 = vld [vmem:[%s1 + $0x21c8] sm:$0xff]
  %v1240 = vld [vmem:[%s1 + $0x21d0] sm:$0xff]
  %v1241 = vld [vmem:[%s1 + $0x21d8] sm:$0xff]
  %v1242 = vld [vmem:[%s1 + $0x21e0] sm:$0xff]
  %v1243 = vld [vmem:[%s1 + $0x21e8] sm:$0xff]
  %v1244 = vld [vmem:[%s1 + $0x21f0] sm:$0xff]
  %v1245 = vld [vmem:[%s1 + $0x21f8] sm:$0xff]
  %v1246 = vld [vmem:[%s1 + $0x2200] sm:$0xff]
  %v1247 = vld [vmem:[%s1 + $0x2208] sm:$0xff]
  %v1248 = vld [vmem:[%s1 + $0x2210] sm:$0xff]
  %v1249 = vld [vmem:[%s1 + $0x2218] sm:$0xff]
  %v1250 = vld [vmem:[%s1 + $0x2220] sm:$0xff]
  %v1251 = vld [vmem:[%s1 + $0x2228] sm:$0xff]
  %v1252 = vld [vmem:[%s1 + $0x2230] sm:$0xff]
  %v1253 = vld [vmem:[%s1 + $0x2238] sm:$0xff]
  %v1254 = vld [vmem:[%s1 + $0x2240] sm:$0xff]
  %v1255 = vld [vmem:[%s1 + $0x2248] sm:$0xff]
  %v1256 = vld [vmem:[%s1 + $0x2250] sm:$0xff]
  %v1257 = vld [vmem:[%s1 + $0x2258] sm:$0xff]
  %v1258 = vld [vmem:[%s1 + $0x2260] sm:$0xff]
  %v1259 = vld [vmem:[%s1 + $0x2268] sm:$0xff]
  %v1260 = vld [vmem:[%s1 + $0x2270] sm:$0xff]
  %v1261 = vld [vmem:[%s1 + $0x2278] sm:$0xff]
  %v1262 = vld [vmem:[%s1 + $0x2280] sm:$0xff]
  %v1263 = vld [vmem:[%s1 + $0x2288] sm:$0xff]
  %v1264 = vld [vmem:[%s1 + $0x2290] sm:$0xff]
  %v1265 = vld [vmem:[%s1 + $0x2298] sm:$0xff]
  %v1266 = vld [vmem:[%s1 + $0x22a0] sm:$0xff]
  %v1267 = vld [vmem:[%s1 + $0x22a8] sm:$0xff]
  %v1268 = vld [vmem:[%s1 + $0x22b0] sm:$0xff]
  %v1269 = vld [vmem:[%s1 + $0x22b8] sm:$0xff]
  %v1270 = vld [vmem:[%s1 + $0x22c0] sm:$0xff]
  %v1271 = vld [vmem:[%s1 + $0x22c8] sm:$0xff]
  %v1272 = vld [vmem:[%s1 + $0x22d0] sm:$0xff]
  %v1273 = vld [vmem:[%s1 + $0x22d8] sm:$0xff]
  %v1274 = vld [vmem:[%s1 + $0x22e0] sm:$0xff]
  %v1275 = vld [vmem:[%s1 + $0x22e8] sm:$0xff]
  %v1276 = vld [vmem:[%s1 + $0x22f0] sm:$0xff]
  %v1277 = vld [vmem:[%s1 + $0x22f8] sm:$0xff]
  %v1278 = vld [vmem:[%s1 + $0x2300] sm:$0xff]
  %v1279 = vld [vmem:[%s1 + $0x2308] sm:$0xff]
  %v1280 = vld [vmem:[%s1 + $0x2310] sm:$0xff]
  %v1281 = vld [vmem:[%s1 + $0x2318] sm:$0xff]
  %v1282 = vld [vmem:[%s1 + $0x2320] sm:$0xff]
  %v1283 = vld [vmem:[%s1 + $0x2328] sm:$0xff]
  %v1284 = vld [vmem:[%s1 + $0x2330] sm:$0xff]
  %v1285 = vld [vmem:[%s1 + $0x2338] sm:$0xff]
  %v1286 = vld [vmem:[%s1 + $0x2340] sm:$0xff]
  %v1287 = vld [vmem:[%s1 + $0x2348] sm:$0xff]
  %v1288 = vld [vmem:[%s1 + $0x2350] sm:$0xff]
  %v1289 = vld [vmem:[%s1 + $0x2358] sm:$0xff]
  %v1290 = vld [vmem:[%s1 + $0x2360] sm:$0xff]
  %v1291 = vld [vmem:[%s1 + $0x2368] sm:$0xff]
  %v1292 = vld [vmem:[%s1 + $0x2370] sm:$0xff]
  %v1293 = vld [vmem:[%s1 + $0x2378] sm:$0xff]
  %v1294 = vld [vmem:[%s1 + $0x2380] sm:$0xff]
  %v1295 = vld [vmem:[%s1 + $0x2388] sm:$0xff]
  %v1296 = vld [vmem:[%s1 + $0x2390] sm:$0xff]
  %v1297 = vld [vmem:[%s1 + $0x2398] sm:$0xff]
  %v1298 = vld [vmem:[%s1 + $0x23a0] sm:$0xff]
  %v1299 = vld [vmem:[%s1 + $0x23a8] sm:$0xff]
  %v1300 = vld [vmem:[%s1 + $0x23b0] sm:$0xff]
  %v1301 = vld [vmem:[%s1 + $0x23b8] sm:$0xff]
  %v1302 = vld [vmem:[%s1 + $0x23c0] sm:$0xff]
  %v1303 = vld [vmem:[%s1 + $0x23c8] sm:$0xff]
  %v1304 = vld [vmem:[%s1 + $0x23d0] sm:$0xff]
  %v1305 = vld [vmem:[%s1 + $0x23d8] sm:$0xff]
  %v1306 = vld [vmem:[%s1 + $0x23e0] sm:$0xff]
  %v1307 = vld [vmem:[%s1 + $0x23e8] sm:$0xff]
  %v1308 = vld [vmem:[%s1 + $0x23f0] sm:$0xff]
  %v1309 = vld [vmem:[%s1 + $0x23f8] sm:$0xff]
  %v1310 = vld [vmem:[%s2] sm:$0x3]
  %v1312 = vlaneseq
  %v1313 = vshrl.u32 %v1312, 7
  %v1314 = vsub.s32 0, %v1313
  %v1315 = vrot.slane %v1310, %v1314
  %v1316 = vlaneseq
  %v1317 = vshrl.u32 %v1316, 7
  %v1318 = vsub.s32 1, %v1317
  %v1319 = vrot.slane %v1310, %v1318
  %1322 = vmatprep.subr.mxu0 %v159
  %1323 = vmatpush1.msra.mxu0 %v158
  %1324 = vmatprep.subr.mxu0 %v161
  %1325 = vmatpush1.msra.mxu0 %v160
  %1326 = vmatprep.subr.mxu0 %v163
  %1327 = vmatpush1.msra.mxu0 %v162
  %1328 = vmatprep.subr.mxu0 %v165
  %1329 = vmatpush1.msra.mxu0 %v164
  %1330 = vmatprep.subr.mxu0 %v167
  %1331 = vmatpush1.msra.mxu0 %v166
  %1332 = vmatprep.subr.mxu0 %v169
  %1333 = vmatpush1.msra.mxu0 %v168
  %1334 = vmatprep.subr.mxu0 %v171
  %1335 = vmatpush1.msra.mxu0 %v170
  %1336 = vmatprep.subr.mxu0 %v173
  %1337 = vmatpush1.msra.mxu0 %v172
  %1338 = vmatprep.subr.mxu0 %v175
  %1339 = vmatpush1.msra.mxu0 %v174
  %1340 = vmatprep.subr.mxu0 %v177
  %1341 = vmatpush1.msra.mxu0 %v176
  %1342 = vmatprep.subr.mxu0 %v179
  %1343 = vmatpush1.msra.mxu0 %v178
  %1344 = vmatprep.subr.mxu0 %v181
  %1345 = vmatpush1.msra.mxu0 %v180
  %1346 = vmatprep.subr.mxu0 %v183
  %1347 = vmatpush1.msra.mxu0 %v182
  %1348 = vmatprep.subr.mxu0 %v185
  %1349 = vmatpush1.msra.mxu0 %v184
  %1350 = vmatprep.subr.mxu0 %v187
  %1351 = vmatpush1.msra.mxu0 %v186
  %1352 = vmatprep.subr.mxu0 %v189
  %1353 = vmatpush1.msra.mxu0 %v188
  %1354 = vmatprep.subr.mxu0 %v191
  %1355 = vmatpush1.msra.mxu0 %v190
  %1356 = vmatprep.subr.mxu0 %v193
  %1357 = vmatpush1.msra.mxu0 %v192
  %1358 = vmatprep.subr.mxu0 %v195
  %1359 = vmatpush1.msra.mxu0 %v194
  %1360 = vmatprep.subr.mxu0 %v197
  %1361 = vmatpush1.msra.mxu0 %v196
  %1362 = vmatprep.subr.mxu0 %v199
  %1363 = vmatpush1.msra.mxu0 %v198
  %1364 = vmatprep.subr.mxu0 %v201
  %1365 = vmatpush1.msra.mxu0 %v200
  %1366 = vmatprep.subr.mxu0 %v203
  %1367 = vmatpush1.msra.mxu0 %v202
  %1368 = vmatprep.subr.mxu0 %v205
  %1369 = vmatpush1.msra.mxu0 %v204
  %1370 = vmatprep.subr.mxu0 %v207
  %1371 = vmatpush1.msra.mxu0 %v206
  %1372 = vmatprep.subr.mxu0 %v209
  %1373 = vmatpush1.msra.mxu0 %v208
  %1374 = vmatprep.subr.mxu0 %v211
  %1375 = vmatpush1.msra.mxu0 %v210
  %1376 = vmatprep.subr.mxu0 %v213
  %1377 = vmatpush1.msra.mxu0 %v212
  %1378 = vmatprep.subr.mxu0 %v215
  %1379 = vmatpush1.msra.mxu0 %v214
  %1380 = vmatprep.subr.mxu0 %v217
  %1381 = vmatpush1.msra.mxu0 %v216
  %1382 = vmatprep.subr.mxu0 %v219
  %1383 = vmatpush1.msra.mxu0 %v218
  %1384 = vmatprep.subr.mxu0 %v221
  %1385 = vmatpush1.msra.mxu0 %v220
  %1386 = vmatprep.mubr.f32.mxu0 %v15
  %1387 = vmatmul.mubr.f32.gmra.mrb[0].mxu0 %v14
  %v1388 = vpop.f32.mrb[0].mxu0
  %v1389 = vadd.f32 %v1315, %v1388
  %v1390 = vpop.f32.mrb[0].mxu0
  %v1391 = vadd.f32 %v1319, %v1390
  %1392 = vmatprep.mubr.f32.mxu0 %v51
  %1393 = vmatmul.mubr.f32.gmra.mrb[0].mxu0 %v50
  %v1394 = vpop.f32.mrb[0].mxu0
  %v1395 = vadd.f32 %v1315, %v1394
  %v1396 = vpop.f32.mrb[0].mxu0
  %v1397 = vadd.f32 %v1319, %v1396
  %1398 = vmatprep.mubr.f32.mxu0 %v87
  %1399 = vmatmul.mubr.f32.gmra.mrb[0].mxu0 %v86
  %v1400 = vpop.f32.mrb[0].mxu0
  %v1401 = vadd.f32 %v1315, %v1400
  %v1402 = vpop.f32.mrb[0].mxu0
  %v1403 = vadd.f32 %v1319, %v1402
  %1404 = vmatprep.mubr.f32.mxu0 %v123
  %1405 = vmatmul.mubr.f32.gmra.mrb[0].mxu0 %v122
  %v1406 = vpop.f32.mrb[0].mxu0
  %v1407 = vadd.f32 %v1315, %v1406
  %v1408 = vpop.f32.mrb[0].mxu0
  %v1409 = vadd.f32 %v1319, %v1408
  %1410 = vdwg.mxu0
  %1411 = vmatprep.subr.mxu0 %v223
  %1412 = vmatpush1.msra.mxu0 %v222
  %1413 = vmatprep.subr.mxu0 %v225
  %1414 = vmatpush1.msra.mxu0 %v224
  %1415 = vmatprep.subr.mxu0 %v227
  %1416 = vmatpush1.msra.mxu0 %v226
  %1417 = vmatprep.subr.mxu0 %v229
  %1418 = vmatpush1.msra.mxu0 %v228
  %1419 = vmatprep.subr.mxu0 %v231
  %1420 = vmatpush1.msra.mxu0 %v230
  %1421 = vmatprep.subr.mxu0 %v233
  %1422 = vmatpush1.msra.mxu0 %v232
  %1423 = vmatprep.subr.mxu0 %v235
  %1424 = vmatpush1.msra.mxu0 %v234
  %1425 = vmatprep.subr.mxu0 %v237
  %1426 = vmatpush1.msra.mxu0 %v236
  %1427 = vmatprep.subr.mxu0 %v239
  %1428 = vmatpush1.msra.mxu0 %v238
  %1429 = vmatprep.subr.mxu0 %v241
  %1430 = vmatpush1.msra.mxu0 %v240
  %1431 = vmatprep.subr.mxu0 %v243
  %1432 = vmatpush1.msra.mxu0 %v242
  %1433 = vmatprep.subr.mxu0 %v245
  %1434 = vmatpush1.msra.mxu0 %v244
  %1435 = vmatprep.subr.mxu0 %v247
  %1436 = vmatpush1.msra.mxu0 %v246
  %1437 = vmatprep.subr.mxu0 %v249
  %1438 = vmatpush1.msra.mxu0 %v248
  %1439 = vmatprep.subr.mxu0 %v251
  %1440 = vmatpush1.msra.mxu0 %v250
  %1441 = vmatprep.subr.mxu0 %v253
  %1442 = vmatpush1.msra.mxu0 %v252
  %1443 = vmatprep.subr.mxu0 %v255
  %1444 = vmatpush1.msra.mxu0 %v254
  %1445 = vmatprep.subr.mxu0 %v257
  %1446 = vmatpush1.msra.mxu0 %v256
  %1447 = vmatprep.subr.mxu0 %v259
  %1448 = vmatpush1.msra.mxu0 %v258
  %1449 = vmatprep.subr.mxu0 %v261
  %1450 = vmatpush1.msra.mxu0 %v260
  %1451 = vmatprep.subr.mxu0 %v263
  %1452 = vmatpush1.msra.mxu0 %v262
  %1453 = vmatprep.subr.mxu0 %v265
  %1454 = vmatpush1.msra.mxu0 %v264
  %1455 = vmatprep.subr.mxu0 %v267
  %1456 = vmatpush1.msra.mxu0 %v266
  %1457 = vmatprep.subr.mxu0 %v269
  %1458 = vmatpush1.msra.mxu0 %v268
  %1459 = vmatprep.subr.mxu0 %v271
  %1460 = vmatpush1.msra.mxu0 %v270
  %1461 = vmatprep.subr.mxu0 %v273
  %1462 = vmatpush1.msra.mxu0 %v272
  %1463 = vmatprep.subr.mxu0 %v275
  %1464 = vmatpush1.msra.mxu0 %v274
  %1465 = vmatprep.subr.mxu0 %v277
  %1466 = vmatpush1.msra.mxu0 %v276
  %1467 = vmatprep.subr.mxu0 %v279
  %1468 = vmatpush1.msra.mxu0 %v278
  %1469 = vmatprep.subr.mxu0 %v281
  %1470 = vmatpush1.msra.mxu0 %v280
  %1471 = vmatprep.subr.mxu0 %v283
  %1472 = vmatpush1.msra.mxu0 %v282
  %1473 = vmatprep.subr.mxu0 %v285
  %1474 = vmatpush1.msra.mxu0 %v284
  %1475 = vmatprep.mubr.f32.mxu0 %v17
  %1476 = vmatmul.mubr.f32.gmra.mrb[0].mxu0 %v16
  %v1477 = vpop.f32.mrb[0].mxu0
  %v1478 = vadd.f32 %v1389, %v1477
  %v1479 = vpop.f32.mrb[0].mxu0
  %v1480 = vadd.f32 %v1391, %v1479
  %1481 = vmatprep.mubr.f32.mxu0 %v53
  %1482 = vmatmul.mubr.f32.gmra.mrb[0].mxu0 %v52
  %v1483 = vpop.f32.mrb[0].mxu0
  %v1484 = vadd.f32 %v1395, %v1483
  %v1485 = vpop.f32.mrb[0].mxu0
  %v1486 = vadd.f32 %v1397, %v1485
  %1487 = vmatprep.mubr.f32.mxu0 %v89
  %1488 = vmatmul.mubr.f32.gmra.mrb[0].mxu0 %v88
  %v1489 = vpop.f32.mrb[0].mxu0
  %v1490 = vadd.f32 %v1401, %v1489
  %v1491 = vpop.f32.mrb[0].mxu0
  %v1492 = vadd.f32 %v1403, %v1491
  %1493 = vmatprep.mubr.f32.mxu0 %v125
  %1494 = vmatmul.mubr.f32.gmra.mrb[0].mxu0 %v124
  %v1495 = vpop.f32.mrb[0].mxu0
  %v1496 = vadd.f32 %v1407, %v1495
  %v1497 = vpop.f32.mrb[0].mxu0
  %v1498 = vadd.f32 %v1409, %v1497
  %1499 = vdwg.mxu0
  %1500 = vmatprep.subr.mxu0 %v287
  %1501 = vmatpush1.msra.mxu0 %v286
  %1502 = vmatprep.subr.mxu0 %v289
  %1503 = vmatpush1.msra.mxu0 %v288
  %1504 = vmatprep.subr.mxu0 %v291
  %1505 = vmatpush1.msra.mxu0 %v290
  %1506 = vmatprep.subr.mxu0 %v293
  %1507 = vmatpush1.msra.mxu0 %v292
  %1508 = vmatprep.subr.mxu0 %v295
  %1509 = vmatpush1.msra.mxu0 %v294
  %1510 = vmatprep.subr.mxu0 %v297
  %1511 = vmatpush1.msra.mxu0 %v296
  %1512 = vmatprep.subr.mxu0 %v299
  %1513 = vmatpush1.msra.mxu0 %v298
  %1514 = vmatprep.subr.mxu0 %v301
  %1515 = vmatpush1.msra.mxu0 %v300
  %1516 = vmatprep.subr.mxu0 %v303
  %1517 = vmatpush1.msra.mxu0 %v302
  %1518 = vmatprep.subr.mxu0 %v305
  %1519 = vmatpush1.msra.mxu0 %v304
  %1520 = vmatprep.subr.mxu0 %v307
  %1521 = vmatpush1.msra.mxu0 %v306
  %1522 = vmatprep.subr.mxu0 %v309
  %1523 = vmatpush1.msra.mxu0 %v308
  %1524 = vmatprep.subr.mxu0 %v311
  %1525 = vmatpush1.msra.mxu0 %v310
  %1526 = vmatprep.subr.mxu0 %v313
  %1527 = vmatpush1.msra.mxu0 %v312
  %1528 = vmatprep.subr.mxu0 %v315
  %1529 = vmatpush1.msra.mxu0 %v314
  %1530 = vmatprep.subr.mxu0 %v317
  %1531 = vmatpush1.msra.mxu0 %v316
  %1532 = vmatprep.subr.mxu0 %v319
  %1533 = vmatpush1.msra.mxu0 %v318
  %1534 = vmatprep.subr.mxu0 %v321
  %1535 = vmatpush1.msra.mxu0 %v320
  %1536 = vmatprep.subr.mxu0 %v323
  %1537 = vmatpush1.msra.mxu0 %v322
  %1538 = vmatprep.subr.mxu0 %v325
  %1539 = vmatpush1.msra.mxu0 %v324
  %1540 = vmatprep.subr.mxu0 %v327
  %1541 = vmatpush1.msra.mxu0 %v326
  %1542 = vmatprep.subr.mxu0 %v329
  %1543 = vmatpush1.msra.mxu0 %v328
  %1544 = vmatprep.subr.mxu0 %v331
  %1545 = vmatpush1.msra.mxu0 %v330
  %1546 = vmatprep.subr.mxu0 %v333
  %1547 = vmatpush1.msra.mxu0 %v332
  %1548 = vmatprep.subr.mxu0 %v335
  %1549 = vmatpush1.msra.mxu0 %v334
  %1550 = vmatprep.subr.mxu0 %v337
  %1551 = vmatpush1.msra.mxu0 %v336
  %1552 = vmatprep.subr.mxu0 %v339
  %1553 = vmatpush1.msra.mxu0 %v338
  %1554 = vmatprep.subr.mxu0 %v341
  %1555 = vmatpush1.msra.mxu0 %v340
  %1556 = vmatprep.subr.mxu0 %v343
  %1557 = vmatpush1.msra.mxu0 %v342
  %1558 = vmatprep.subr.mxu0 %v345
  %1559 = vmatpush1.msra.mxu0 %v344
  %1560 = vmatprep.subr.mxu0 %v347
  %1561 = vmatpush1.msra.mxu0 %v346
  %1562 = vmatprep.subr.mxu0 %v349
  %1563 = vmatpush1.msra.mxu0 %v348
  %1564 = vmatprep.mubr.f32.mxu0 %v19
  %1565 = vmatmul.mubr.f32.gmra.mrb[0].mxu0 %v18
  %v1566 = vpop.f32.mrb[0].mxu0
  %v1567 = vadd.f32 %v1478, %v1566
  %v1568 = vpop.f32.mrb[0].mxu0
  %v1569 = vadd.f32 %v1480, %v1568
  %1570 = vmatprep.mubr.f32.mxu0 %v55
  %1571 = vmatmul.mubr.f32.gmra.mrb[0].mxu0 %v54
  %v1572 = vpop.f32.mrb[0].mxu0
  %v1573 = vadd.f32 %v1484, %v1572
  %v1574 = vpop.f32.mrb[0].mxu0
  %v1575 = vadd.f32 %v1486, %v1574
  %1576 = vmatprep.mubr.f32.mxu0 %v91
  %1577 = vmatmul.mubr.f32.gmra.mrb[0].mxu0 %v90
  %v1578 = vpop.f32.mrb[0].mxu0
  %v1579 = vadd.f32 %v1490, %v1578
  %v1580 = vpop.f32.mrb[0].mxu0
  %v1581 = vadd.f32 %v1492, %v1580
  %1582 = vmatprep.mubr.f32.mxu0 %v127
  %1583 = vmatmul.mubr.f32.gmra.mrb[0].mxu0 %v126
  %v1584 = vpop.f32.mrb[0].mxu0
  %v1585 = vadd.f32 %v1496, %v1584
  %v1586 = vpop.f32.mrb[0].mxu0
  %v1587 = vadd.f32 %v1498, %v1586
  %1588 = vdwg.mxu0
  %1589 = vmatprep.subr.mxu0 %v351
  %1590 = vmatpush1.msra.mxu0 %v350
  %1591 = vmatprep.subr.mxu0 %v353
  %1592 = vmatpush1.msra.mxu0 %v352
  %1593 = vmatprep.subr.mxu0 %v355
  %1594 = vmatpush1.msra.mxu0 %v354
  %1595 = vmatprep.subr.mxu0 %v357
  %1596 = vmatpush1.msra.mxu0 %v356
  %1597 = vmatprep.subr.mxu0 %v359
  %1598 = vmatpush1.msra.mxu0 %v358
  %1599 = vmatprep.subr.mxu0 %v361
  %1600 = vmatpush1.msra.mxu0 %v360
  %1601 = vmatprep.subr.mxu0 %v363
  %1602 = vmatpush1.msra.mxu0 %v362
  %1603 = vmatprep.subr.mxu0 %v365
  %1604 = vmatpush1.msra.mxu0 %v364
  %1605 = vmatprep.subr.mxu0 %v367
  %1606 = vmatpush1.msra.mxu0 %v366
  %1607 = vmatprep.subr.mxu0 %v369
  %1608 = vmatpush1.msra.mxu0 %v368
  %1609 = vmatprep.subr.mxu0 %v371
  %1610 = vmatpush1.msra.mxu0 %v370
  %1611 = vmatprep.subr.mxu0 %v373
  %1612 = vmatpush1.msra.mxu0 %v372
  %1613 = vmatprep.subr.mxu0 %v375
  %1614 = vmatpush1.msra.mxu0 %v374
  %1615 = vmatprep.subr.mxu0 %v377
  %1616 = vmatpush1.msra.mxu0 %v376
  %1617 = vmatprep.subr.mxu0 %v379
  %1618 = vmatpush1.msra.mxu0 %v378
  %1619 = vmatprep.subr.mxu0 %v381
  %1620 = vmatpush1.msra.mxu0 %v380
  %1621 = vmatprep.subr.mxu0 %v383
  %1622 = vmatpush1.msra.mxu0 %v382
  %1623 = vmatprep.subr.mxu0 %v385
  %1624 = vmatpush1.msra.mxu0 %v384
  %1625 = vmatprep.subr.mxu0 %v387
  %1626 = vmatpush1.msra.mxu0 %v386
  %1627 = vmatprep.subr.mxu0 %v389
  %1628 = vmatpush1.msra.mxu0 %v388
  %1629 = vmatprep.subr.mxu0 %v391
  %1630 = vmatpush1.msra.mxu0 %v390
  %1631 = vmatprep.subr.mxu0 %v393
  %1632 = vmatpush1.msra.mxu0 %v392
  %1633 = vmatprep.subr.mxu0 %v395
  %1634 = vmatpush1.msra.mxu0 %v394
  %1635 = vmatprep.subr.mxu0 %v397
  %1636 = vmatpush1.msra.mxu0 %v396
  %1637 = vmatprep.subr.mxu0 %v399
  %1638 = vmatpush1.msra.mxu0 %v398
  %1639 = vmatprep.subr.mxu0 %v401
  %1640 = vmatpush1.msra.mxu0 %v400
  %1641 = vmatprep.subr.mxu0 %v403
  %1642 = vmatpush1.msra.mxu0 %v402
  %1643 = vmatprep.subr.mxu0 %v405
  %1644 = vmatpush1.msra.mxu0 %v404
  %1645 = vmatprep.subr.mxu0 %v407
  %1646 = vmatpush1.msra.mxu0 %v406
  %1647 = vmatprep.subr.mxu0 %v409
  %1648 = vmatpush1.msra.mxu0 %v408
  %1649 = vmatprep.subr.mxu0 %v411
  %1650 = vmatpush1.msra.mxu0 %v410
  %1651 = vmatprep.subr.mxu0 %v413
  %1652 = vmatpush1.msra.mxu0 %v412
  %1653 = vmatprep.mubr.f32.mxu0 %v21
  %1654 = vmatmul.mubr.f32.gmra.mrb[0].mxu0 %v20
  %v1655 = vpop.f32.mrb[0].mxu0
  %v1656 = vadd.f32 %v1567, %v1655
  %v1657 = vpop.f32.mrb[0].mxu0
  %v1658 = vadd.f32 %v1569, %v1657
  %1659 = vmatprep.mubr.f32.mxu0 %v57
  %1660 = vmatmul.mubr.f32.gmra.mrb[0].mxu0 %v56
  %v1661 = vpop.f32.mrb[0].mxu0
  %v1662 = vadd.f32 %v1573, %v1661
  %v1663 = vpop.f32.mrb[0].mxu0
  %v1664 = vadd.f32 %v1575, %v1663
  %1665 = vmatprep.mubr.f32.mxu0 %v93
  %1666 = vmatmul.mubr.f32.gmra.mrb[0].mxu0 %v92
  %v1667 = vpop.f32.mrb[0].mxu0
  %v1668 = vadd.f32 %v1579, %v1667
  %v1669 = vpop.f32.mrb[0].mxu0
  %v1670 = vadd.f32 %v1581, %v1669
  %1671 = vmatprep.mubr.f32.mxu0 %v129
  %1672 = vmatmul.mubr.f32.gmra.mrb[0].mxu0 %v128
  %v1673 = vpop.f32.mrb[0].mxu0
  %v1674 = vadd.f32 %v1585, %v1673
  %v1675 = vpop.f32.mrb[0].mxu0
  %v1676 = vadd.f32 %v1587, %v1675
  %1677 = vdwg.mxu0
  %1678 = vmatprep.subr.mxu0 %v415
  %1679 = vmatpush1.msra.mxu0 %v414
  %1680 = vmatprep.subr.mxu0 %v417
  %1681 = vmatpush1.msra.mxu0 %v416
  %1682 = vmatprep.subr.mxu0 %v419
  %1683 = vmatpush1.msra.mxu0 %v418
  %1684 = vmatprep.subr.mxu0 %v421
  %1685 = vmatpush1.msra.mxu0 %v420
  %1686 = vmatprep.subr.mxu0 %v423
  %1687 = vmatpush1.msra.mxu0 %v422
  %1688 = vmatprep.subr.mxu0 %v425
  %1689 = vmatpush1.msra.mxu0 %v424
  %1690 = vmatprep.subr.mxu0 %v427
  %1691 = vmatpush1.msra.mxu0 %v426
  %1692 = vmatprep.subr.mxu0 %v429
  %1693 = vmatpush1.msra.mxu0 %v428
  %1694 = vmatprep.subr.mxu0 %v431
  %1695 = vmatpush1.msra.mxu0 %v430
  %1696 = vmatprep.subr.mxu0 %v433
  %1697 = vmatpush1.msra.mxu0 %v432
  %1698 = vmatprep.subr.mxu0 %v435
  %1699 = vmatpush1.msra.mxu0 %v434
  %1700 = vmatprep.subr.mxu0 %v437
  %1701 = vmatpush1.msra.mxu0 %v436
  %1702 = vmatprep.subr.mxu0 %v439
  %1703 = vmatpush1.msra.mxu0 %v438
  %1704 = vmatprep.subr.mxu0 %v441
  %1705 = vmatpush1.msra.mxu0 %v440
  %1706 = vmatprep.subr.mxu0 %v443
  %1707 = vmatpush1.msra.mxu0 %v442
  %1708 = vmatprep.subr.mxu0 %v445
  %1709 = vmatpush1.msra.mxu0 %v444
  %1710 = vmatprep.subr.mxu0 %v447
  %1711 = vmatpush1.msra.mxu0 %v446
  %1712 = vmatprep.subr.mxu0 %v449
  %1713 = vmatpush1.msra.mxu0 %v448
  %1714 = vmatprep.subr.mxu0 %v451
  %1715 = vmatpush1.msra.mxu0 %v450
  %1716 = vmatprep.subr.mxu0 %v453
  %1717 = vmatpush1.msra.mxu0 %v452
  %1718 = vmatprep.subr.mxu0 %v455
  %1719 = vmatpush1.msra.mxu0 %v454
  %1720 = vmatprep.subr.mxu0 %v457
  %1721 = vmatpush1.msra.mxu0 %v456
  %1722 = vmatprep.subr.mxu0 %v459
  %1723 = vmatpush1.msra.mxu0 %v458
  %1724 = vmatprep.subr.mxu0 %v461
  %1725 = vmatpush1.msra.mxu0 %v460
  %1726 = vmatprep.subr.mxu0 %v463
  %1727 = vmatpush1.msra.mxu0 %v462
  %1728 = vmatprep.subr.mxu0 %v465
  %1729 = vmatpush1.msra.mxu0 %v464
  %1730 = vmatprep.subr.mxu0 %v467
  %1731 = vmatpush1.msra.mxu0 %v466
  %1732 = vmatprep.subr.mxu0 %v469
  %1733 = vmatpush1.msra.mxu0 %v468
  %1734 = vmatprep.subr.mxu0 %v471
  %1735 = vmatpush1.msra.mxu0 %v470
  %1736 = vmatprep.subr.mxu0 %v473
  %1737 = vmatpush1.msra.mxu0 %v472
  %1738 = vmatprep.subr.mxu0 %v475
  %1739 = vmatpush1.msra.mxu0 %v474
  %1740 = vmatprep.subr.mxu0 %v477
  %1741 = vmatpush1.msra.mxu0 %v476
  %1742 = vmatprep.mubr.f32.mxu0 %v23
  %1743 = vmatmul.mubr.f32.gmra.mrb[0].mxu0 %v22
  %v1744 = vpop.f32.mrb[0].mxu0
  %v1745 = vadd.f32 %v1656, %v1744
  %v1746 = vpop.f32.mrb[0].mxu0
  %v1747 = vadd.f32 %v1658, %v1746
  %1748 = vmatprep.mubr.f32.mxu0 %v59
  %1749 = vmatmul.mubr.f32.gmra.mrb[0].mxu0 %v58
  %v1750 = vpop.f32.mrb[0].mxu0
  %v1751 = vadd.f32 %v1662, %v1750
  %v1752 = vpop.f32.mrb[0].mxu0
  %v1753 = vadd.f32 %v1664, %v1752
  %1754 = vmatprep.mubr.f32.mxu0 %v95
  %1755 = vmatmul.mubr.f32.gmra.mrb[0].mxu0 %v94
  %v1756 = vpop.f32.mrb[0].mxu0
  %v1757 = vadd.f32 %v1668, %v1756
  %v1758 = vpop.f32.mrb[0].mxu0
  %v1759 = vadd.f32 %v1670, %v1758
  %1760 = vmatprep.mubr.f32.mxu0 %v131
  %1761 = vmatmul.mubr.f32.gmra.mrb[0].mxu0 %v130
  %v1762 = vpop.f32.mrb[0].mxu0
  %v1763 = vadd.f32 %v1674, %v1762
  %v1764 = vpop.f32.mrb[0].mxu0
  %v1765 = vadd.f32 %v1676, %v1764
  %1766 = vdwg.mxu0
  %1767 = vmatprep.subr.mxu0 %v479
  %1768 = vmatpush1.msra.mxu0 %v478
  %1769 = vmatprep.subr.mxu0 %v481
  %1770 = vmatpush1.msra.mxu0 %v480
  %1771 = vmatprep.subr.mxu0 %v483
  %1772 = vmatpush1.msra.mxu0 %v482
  %1773 = vmatprep.subr.mxu0 %v485
  %1774 = vmatpush1.msra.mxu0 %v484
  %1775 = vmatprep.subr.mxu0 %v487
  %1776 = vmatpush1.msra.mxu0 %v486
  %1777 = vmatprep.subr.mxu0 %v489
  %1778 = vmatpush1.msra.mxu0 %v488
  %1779 = vmatprep.subr.mxu0 %v491
  %1780 = vmatpush1.msra.mxu0 %v490
  %1781 = vmatprep.subr.mxu0 %v493
  %1782 = vmatpush1.msra.mxu0 %v492
  %1783 = vmatprep.subr.mxu0 %v495
  %1784 = vmatpush1.msra.mxu0 %v494
  %1785 = vmatprep.subr.mxu0 %v497
  %1786 = vmatpush1.msra.mxu0 %v496
  %1787 = vmatprep.subr.mxu0 %v499
  %1788 = vmatpush1.msra.mxu0 %v498
  %1789 = vmatprep.subr.mxu0 %v501
  %1790 = vmatpush1.msra.mxu0 %v500
  %1791 = vmatprep.subr.mxu0 %v503
  %1792 = vmatpush1.msra.mxu0 %v502
  %1793 = vmatprep.subr.mxu0 %v505
  %1794 = vmatpush1.msra.mxu0 %v504
  %1795 = vmatprep.subr.mxu0 %v507
  %1796 = vmatpush1.msra.mxu0 %v506
  %1797 = vmatprep.subr.mxu0 %v509
  %1798 = vmatpush1.msra.mxu0 %v508
  %1799 = vmatprep.subr.mxu0 %v511
  %1800 = vmatpush1.msra.mxu0 %v510
  %1801 = vmatprep.subr.mxu0 %v513
  %1802 = vmatpush1.msra.mxu0 %v512
  %1803 = vmatprep.subr.mxu0 %v515
  %1804 = vmatpush1.msra.mxu0 %v514
  %1805 = vmatprep.subr.mxu0 %v517
  %1806 = vmatpush1.msra.mxu0 %v516
  %1807 = vmatprep.subr.mxu0 %v519
  %1808 = vmatpush1.msra.mxu0 %v518
  %1809 = vmatprep.subr.mxu0 %v521
  %1810 = vmatpush1.msra.mxu0 %v520
  %1811 = vmatprep.subr.mxu0 %v523
  %1812 = vmatpush1.msra.mxu0 %v522
  %1813 = vmatprep.subr.mxu0 %v525
  %1814 = vmatpush1.msra.mxu0 %v524
  %1815 = vmatprep.subr.mxu0 %v527
  %1816 = vmatpush1.msra.mxu0 %v526
  %1817 = vmatprep.subr.mxu0 %v529
  %1818 = vmatpush1.msra.mxu0 %v528
  %1819 = vmatprep.subr.mxu0 %v531
  %1820 = vmatpush1.msra.mxu0 %v530
  %1821 = vmatprep.subr.mxu0 %v533
  %1822 = vmatpush1.msra.mxu0 %v532
  %1823 = vmatprep.subr.mxu0 %v535
  %1824 = vmatpush1.msra.mxu0 %v534
  %1825 = vmatprep.subr.mxu0 %v537
  %1826 = vmatpush1.msra.mxu0 %v536
  %1827 = vmatprep.subr.mxu0 %v539
  %1828 = vmatpush1.msra.mxu0 %v538
  %1829 = vmatprep.subr.mxu0 %v541
  %1830 = vmatpush1.msra.mxu0 %v540
  %1831 = vmatprep.mubr.f32.mxu0 %v25
  %1832 = vmatmul.mubr.f32.gmra.mrb[0].mxu0 %v24
  %v1833 = vpop.f32.mrb[0].mxu0
  %v1834 = vadd.f32 %v1745, %v1833
  %v1835 = vpop.f32.mrb[0].mxu0
  %v1836 = vadd.f32 %v1747, %v1835
  %1837 = vmatprep.mubr.f32.mxu0 %v61
  %1838 = vmatmul.mubr.f32.gmra.mrb[0].mxu0 %v60
  %v1839 = vpop.f32.mrb[0].mxu0
  %v1840 = vadd.f32 %v1751, %v1839
  %v1841 = vpop.f32.mrb[0].mxu0
  %v1842 = vadd.f32 %v1753, %v1841
  %1843 = vmatprep.mubr.f32.mxu0 %v97
  %1844 = vmatmul.mubr.f32.gmra.mrb[0].mxu0 %v96
  %v1845 = vpop.f32.mrb[0].mxu0
  %v1846 = vadd.f32 %v1757, %v1845
  %v1847 = vpop.f32.mrb[0].mxu0
  %v1848 = vadd.f32 %v1759, %v1847
  %1849 = vmatprep.mubr.f32.mxu0 %v133
  %1850 = vmatmul.mubr.f32.gmra.mrb[0].mxu0 %v132
  %v1851 = vpop.f32.mrb[0].mxu0
  %v1852 = vadd.f32 %v1763, %v1851
  %v1853 = vpop.f32.mrb[0].mxu0
  %v1854 = vadd.f32 %v1765, %v1853
  %1855 = vdwg.mxu0
  %1856 = vmatprep.subr.mxu0 %v543
  %1857 = vmatpush1.msra.mxu0 %v542
  %1858 = vmatprep.subr.mxu0 %v545
  %1859 = vmatpush1.msra.mxu0 %v544
  %1860 = vmatprep.subr.mxu0 %v547
  %1861 = vmatpush1.msra.mxu0 %v546
  %1862 = vmatprep.subr.mxu0 %v549
  %1863 = vmatpush1.msra.mxu0 %v548
  %1864 = vmatprep.subr.mxu0 %v551
  %1865 = vmatpush1.msra.mxu0 %v550
  %1866 = vmatprep.subr.mxu0 %v553
  %1867 = vmatpush1.msra.mxu0 %v552
  %1868 = vmatprep.subr.mxu0 %v555
  %1869 = vmatpush1.msra.mxu0 %v554
  %1870 = vmatprep.subr.mxu0 %v557
  %1871 = vmatpush1.msra.mxu0 %v556
  %1872 = vmatprep.subr.mxu0 %v559
  %1873 = vmatpush1.msra.mxu0 %v558
  %1874 = vmatprep.subr.mxu0 %v561
  %1875 = vmatpush1.msra.mxu0 %v560
  %1876 = vmatprep.subr.mxu0 %v563
  %1877 = vmatpush1.msra.mxu0 %v562
  %1878 = vmatprep.subr.mxu0 %v565
  %1879 = vmatpush1.msra.mxu0 %v564
  %1880 = vmatprep.subr.mxu0 %v567
  %1881 = vmatpush1.msra.mxu0 %v566
  %1882 = vmatprep.subr.mxu0 %v569
  %1883 = vmatpush1.msra.mxu0 %v568
  %1884 = vmatprep.subr.mxu0 %v571
  %1885 = vmatpush1.msra.mxu0 %v570
  %1886 = vmatprep.subr.mxu0 %v573
  %1887 = vmatpush1.msra.mxu0 %v572
  %1888 = vmatprep.subr.mxu0 %v575
  %1889 = vmatpush1.msra.mxu0 %v574
  %1890 = vmatprep.subr.mxu0 %v577
  %1891 = vmatpush1.msra.mxu0 %v576
  %1892 = vmatprep.subr.mxu0 %v579
  %1893 = vmatpush1.msra.mxu0 %v578
  %1894 = vmatprep.subr.mxu0 %v581
  %1895 = vmatpush1.msra.mxu0 %v580
  %1896 = vmatprep.subr.mxu0 %v583
  %1897 = vmatpush1.msra.mxu0 %v582
  %1898 = vmatprep.subr.mxu0 %v585
  %1899 = vmatpush1.msra.mxu0 %v584
  %1900 = vmatprep.subr.mxu0 %v587
  %1901 = vmatpush1.msra.mxu0 %v586
  %1902 = vmatprep.subr.mxu0 %v589
  %1903 = vmatpush1.msra.mxu0 %v588
  %1904 = vmatprep.subr.mxu0 %v591
  %1905 = vmatpush1.msra.mxu0 %v590
  %1906 = vmatprep.subr.mxu0 %v593
  %1907 = vmatpush1.msra.mxu0 %v592
  %1908 = vmatprep.subr.mxu0 %v595
  %1909 = vmatpush1.msra.mxu0 %v594
  %1910 = vmatprep.subr.mxu0 %v597
  %1911 = vmatpush1.msra.mxu0 %v596
  %1912 = vmatprep.subr.mxu0 %v599
  %1913 = vmatpush1.msra.mxu0 %v598
  %1914 = vmatprep.subr.mxu0 %v601
  %1915 = vmatpush1.msra.mxu0 %v600
  %1916 = vmatprep.subr.mxu0 %v603
  %1917 = vmatpush1.msra.mxu0 %v602
  %1918 = vmatprep.subr.mxu0 %v605
  %1919 = vmatpush1.msra.mxu0 %v604
  %1920 = vmatprep.mubr.f32.mxu0 %v27
  %1921 = vmatmul.mubr.f32.gmra.mrb[0].mxu0 %v26
  %v1922 = vpop.f32.mrb[0].mxu0
  %v1923 = vadd.f32 %v1834, %v1922
  %v1924 = vpop.f32.mrb[0].mxu0
  %v1925 = vadd.f32 %v1836, %v1924
  %1926 = vmatprep.mubr.f32.mxu0 %v63
  %1927 = vmatmul.mubr.f32.gmra.mrb[0].mxu0 %v62
  %v1928 = vpop.f32.mrb[0].mxu0
  %v1929 = vadd.f32 %v1840, %v1928
  %v1930 = vpop.f32.mrb[0].mxu0
  %v1931 = vadd.f32 %v1842, %v1930
  %1932 = vmatprep.mubr.f32.mxu0 %v99
  %1933 = vmatmul.mubr.f32.gmra.mrb[0].mxu0 %v98
  %v1934 = vpop.f32.mrb[0].mxu0
  %v1935 = vadd.f32 %v1846, %v1934
  %v1936 = vpop.f32.mrb[0].mxu0
  %v1937 = vadd.f32 %v1848, %v1936
  %1938 = vmatprep.mubr.f32.mxu0 %v135
  %1939 = vmatmul.mubr.f32.gmra.mrb[0].mxu0 %v134
  %v1940 = vpop.f32.mrb[0].mxu0
  %v1941 = vadd.f32 %v1852, %v1940
  %v1942 = vpop.f32.mrb[0].mxu0
  %v1943 = vadd.f32 %v1854, %v1942
  %1944 = vdwg.mxu0
  %1945 = vmatprep.subr.mxu0 %v607
  %1946 = vmatpush1.msra.mxu0 %v606
  %1947 = vmatprep.subr.mxu0 %v609
  %1948 = vmatpush1.msra.mxu0 %v608
  %1949 = vmatprep.subr.mxu0 %v611
  %1950 = vmatpush1.msra.mxu0 %v610
  %1951 = vmatprep.subr.mxu0 %v613
  %1952 = vmatpush1.msra.mxu0 %v612
  %1953 = vmatprep.subr.mxu0 %v615
  %1954 = vmatpush1.msra.mxu0 %v614
  %1955 = vmatprep.subr.mxu0 %v617
  %1956 = vmatpush1.msra.mxu0 %v616
  %1957 = vmatprep.subr.mxu0 %v619
  %1958 = vmatpush1.msra.mxu0 %v618
  %1959 = vmatprep.subr.mxu0 %v621
  %1960 = vmatpush1.msra.mxu0 %v620
  %1961 = vmatprep.subr.mxu0 %v623
  %1962 = vmatpush1.msra.mxu0 %v622
  %1963 = vmatprep.subr.mxu0 %v625
  %1964 = vmatpush1.msra.mxu0 %v624
  %1965 = vmatprep.subr.mxu0 %v627
  %1966 = vmatpush1.msra.mxu0 %v626
  %1967 = vmatprep.subr.mxu0 %v629
  %1968 = vmatpush1.msra.mxu0 %v628
  %1969 = vmatprep.subr.mxu0 %v631
  %1970 = vmatpush1.msra.mxu0 %v630
  %1971 = vmatprep.subr.mxu0 %v633
  %1972 = vmatpush1.msra.mxu0 %v632
  %1973 = vmatprep.subr.mxu0 %v635
  %1974 = vmatpush1.msra.mxu0 %v634
  %1975 = vmatprep.subr.mxu0 %v637
  %1976 = vmatpush1.msra.mxu0 %v636
  %1977 = vmatprep.subr.mxu0 %v639
  %1978 = vmatpush1.msra.mxu0 %v638
  %1979 = vmatprep.subr.mxu0 %v641
  %1980 = vmatpush1.msra.mxu0 %v640
  %1981 = vmatprep.subr.mxu0 %v643
  %1982 = vmatpush1.msra.mxu0 %v642
  %1983 = vmatprep.subr.mxu0 %v645
  %1984 = vmatpush1.msra.mxu0 %v644
  %1985 = vmatprep.subr.mxu0 %v647
  %1986 = vmatpush1.msra.mxu0 %v646
  %1987 = vmatprep.subr.mxu0 %v649
  %1988 = vmatpush1.msra.mxu0 %v648
  %1989 = vmatprep.subr.mxu0 %v651
  %1990 = vmatpush1.msra.mxu0 %v650
  %1991 = vmatprep.subr.mxu0 %v653
  %1992 = vmatpush1.msra.mxu0 %v652
  %1993 = vmatprep.subr.mxu0 %v655
  %1994 = vmatpush1.msra.mxu0 %v654
  %1995 = vmatprep.subr.mxu0 %v657
  %1996 = vmatpush1.msra.mxu0 %v656
  %1997 = vmatprep.subr.mxu0 %v659
  %1998 = vmatpush1.msra.mxu0 %v658
  %1999 = vmatprep.subr.mxu0 %v661
  %2000 = vmatpush1.msra.mxu0 %v660
  %2001 = vmatprep.subr.mxu0 %v663
  %2002 = vmatpush1.msra.mxu0 %v662
  %2003 = vmatprep.subr.mxu0 %v665
  %2004 = vmatpush1.msra.mxu0 %v664
  %2005 = vmatprep.subr.mxu0 %v667
  %2006 = vmatpush1.msra.mxu0 %v666
  %2007 = vmatprep.subr.mxu0 %v669
  %2008 = vmatpush1.msra.mxu0 %v668
  %2009 = vmatprep.mubr.f32.mxu0 %v29
  %2010 = vmatmul.mubr.f32.gmra.mrb[0].mxu0 %v28
  %v2011 = vpop.f32.mrb[0].mxu0
  %v2012 = vadd.f32 %v1923, %v2011
  %v2013 = vpop.f32.mrb[0].mxu0
  %v2014 = vadd.f32 %v1925, %v2013
  %2015 = vmatprep.mubr.f32.mxu0 %v65
  %2016 = vmatmul.mubr.f32.gmra.mrb[0].mxu0 %v64
  %v2017 = vpop.f32.mrb[0].mxu0
  %v2018 = vadd.f32 %v1929, %v2017
  %v2019 = vpop.f32.mrb[0].mxu0
  %v2020 = vadd.f32 %v1931, %v2019
  %2021 = vmatprep.mubr.f32.mxu0 %v101
  %2022 = vmatmul.mubr.f32.gmra.mrb[0].mxu0 %v100
  %v2023 = vpop.f32.mrb[0].mxu0
  %v2024 = vadd.f32 %v1935, %v2023
  %v2025 = vpop.f32.mrb[0].mxu0
  %v2026 = vadd.f32 %v1937, %v2025
  %2027 = vmatprep.mubr.f32.mxu0 %v137
  %2028 = vmatmul.mubr.f32.gmra.mrb[0].mxu0 %v136
  %v2029 = vpop.f32.mrb[0].mxu0
  %v2030 = vadd.f32 %v1941, %v2029
  %v2031 = vpop.f32.mrb[0].mxu0
  %v2032 = vadd.f32 %v1943, %v2031
  %2033 = vdwg.mxu0
  %2034 = vmatprep.subr.mxu0 %v671
  %2035 = vmatpush1.msra.mxu0 %v670
  %2036 = vmatprep.subr.mxu0 %v673
  %2037 = vmatpush1.msra.mxu0 %v672
  %2038 = vmatprep.subr.mxu0 %v675
  %2039 = vmatpush1.msra.mxu0 %v674
  %2040 = vmatprep.subr.mxu0 %v677
  %2041 = vmatpush1.msra.mxu0 %v676
  %2042 = vmatprep.subr.mxu0 %v679
  %2043 = vmatpush1.msra.mxu0 %v678
  %2044 = vmatprep.subr.mxu0 %v681
  %2045 = vmatpush1.msra.mxu0 %v680
  %2046 = vmatprep.subr.mxu0 %v683
  %2047 = vmatpush1.msra.mxu0 %v682
  %2048 = vmatprep.subr.mxu0 %v685
  %2049 = vmatpush1.msra.mxu0 %v684
  %2050 = vmatprep.subr.mxu0 %v687
  %2051 = vmatpush1.msra.mxu0 %v686
  %2052 = vmatprep.subr.mxu0 %v689
  %2053 = vmatpush1.msra.mxu0 %v688
  %2054 = vmatprep.subr.mxu0 %v691
  %2055 = vmatpush1.msra.mxu0 %v690
  %2056 = vmatprep.subr.mxu0 %v693
  %2057 = vmatpush1.msra.mxu0 %v692
  %2058 = vmatprep.subr.mxu0 %v695
  %2059 = vmatpush1.msra.mxu0 %v694
  %2060 = vmatprep.subr.mxu0 %v697
  %2061 = vmatpush1.msra.mxu0 %v696
  %2062 = vmatprep.subr.mxu0 %v699
  %2063 = vmatpush1.msra.mxu0 %v698
  %2064 = vmatprep.subr.mxu0 %v701
  %2065 = vmatpush1.msra.mxu0 %v700
  %2066 = vmatprep.subr.mxu0 %v703
  %2067 = vmatpush1.msra.mxu0 %v702
  %2068 = vmatprep.subr.mxu0 %v705
  %2069 = vmatpush1.msra.mxu0 %v704
  %2070 = vmatprep.subr.mxu0 %v707
  %2071 = vmatpush1.msra.mxu0 %v706
  %2072 = vmatprep.subr.mxu0 %v709
  %2073 = vmatpush1.msra.mxu0 %v708
  %2074 = vmatprep.subr.mxu0 %v711
  %2075 = vmatpush1.msra.mxu0 %v710
  %2076 = vmatprep.subr.mxu0 %v713
  %2077 = vmatpush1.msra.mxu0 %v712
  %2078 = vmatprep.subr.mxu0 %v715
  %2079 = vmatpush1.msra.mxu0 %v714
  %2080 = vmatprep.subr.mxu0 %v717
  %2081 = vmatpush1.msra.mxu0 %v716
  %2082 = vmatprep.subr.mxu0 %v719
  %2083 = vmatpush1.msra.mxu0 %v718
  %2084 = vmatprep.subr.mxu0 %v721
  %2085 = vmatpush1.msra.mxu0 %v720
  %2086 = vmatprep.subr.mxu0 %v723
  %2087 = vmatpush1.msra.mxu0 %v722
  %2088 = vmatprep.subr.mxu0 %v725
  %2089 = vmatpush1.msra.mxu0 %v724
  %2090 = vmatprep.subr.mxu0 %v727
  %2091 = vmatpush1.msra.mxu0 %v726
  %2092 = vmatprep.subr.mxu0 %v729
  %2093 = vmatpush1.msra.mxu0 %v728
  %2094 = vmatprep.subr.mxu0 %v731
  %2095 = vmatpush1.msra.mxu0 %v730
  %2096 = vmatprep.subr.mxu0 %v733
  %2097 = vmatpush1.msra.mxu0 %v732
  %2098 = vmatprep.mubr.f32.mxu0 %v31
  %2099 = vmatmul.mubr.f32.gmra.mrb[0].mxu0 %v30
  %v2100 = vpop.f32.mrb[0].mxu0
  %v2101 = vadd.f32 %v2012, %v2100
  %v2102 = vpop.f32.mrb[0].mxu0
  %v2103 = vadd.f32 %v2014, %v2102
  %2104 = vmatprep.mubr.f32.mxu0 %v67
  %2105 = vmatmul.mubr.f32.gmra.mrb[0].mxu0 %v66
  %v2106 = vpop.f32.mrb[0].mxu0
  %v2107 = vadd.f32 %v2018, %v2106
  %v2108 = vpop.f32.mrb[0].mxu0
  %v2109 = vadd.f32 %v2020, %v2108
  %2110 = vmatprep.mubr.f32.mxu0 %v103
  %2111 = vmatmul.mubr.f32.gmra.mrb[0].mxu0 %v102
  %v2112 = vpop.f32.mrb[0].mxu0
  %v2113 = vadd.f32 %v2024, %v2112
  %v2114 = vpop.f32.mrb[0].mxu0
  %v2115 = vadd.f32 %v2026, %v2114
  %2116 = vmatprep.mubr.f32.mxu0 %v139
  %2117 = vmatmul.mubr.f32.gmra.mrb[0].mxu0 %v138
  %v2118 = vpop.f32.mrb[0].mxu0
  %v2119 = vadd.f32 %v2030, %v2118
  %v2120 = vpop.f32.mrb[0].mxu0
  %v2121 = vadd.f32 %v2032, %v2120
  %2122 = vdwg.mxu0
  %2123 = vmatprep.subr.mxu0 %v735
  %2124 = vmatpush1.msra.mxu0 %v734
  %2125 = vmatprep.subr.mxu0 %v737
  %2126 = vmatpush1.msra.mxu0 %v736
  %2127 = vmatprep.subr.mxu0 %v739
  %2128 = vmatpush1.msra.mxu0 %v738
  %2129 = vmatprep.subr.mxu0 %v741
  %2130 = vmatpush1.msra.mxu0 %v740
  %2131 = vmatprep.subr.mxu0 %v743
  %2132 = vmatpush1.msra.mxu0 %v742
  %2133 = vmatprep.subr.mxu0 %v745
  %2134 = vmatpush1.msra.mxu0 %v744
  %2135 = vmatprep.subr.mxu0 %v747
  %2136 = vmatpush1.msra.mxu0 %v746
  %2137 = vmatprep.subr.mxu0 %v749
  %2138 = vmatpush1.msra.mxu0 %v748
  %2139 = vmatprep.subr.mxu0 %v751
  %2140 = vmatpush1.msra.mxu0 %v750
  %2141 = vmatprep.subr.mxu0 %v753
  %2142 = vmatpush1.msra.mxu0 %v752
  %2143 = vmatprep.subr.mxu0 %v755
  %2144 = vmatpush1.msra.mxu0 %v754
  %2145 = vmatprep.subr.mxu0 %v757
  %2146 = vmatpush1.msra.mxu0 %v756
  %2147 = vmatprep.subr.mxu0 %v759
  %2148 = vmatpush1.msra.mxu0 %v758
  %2149 = vmatprep.subr.mxu0 %v761
  %2150 = vmatpush1.msra.mxu0 %v760
  %2151 = vmatprep.subr.mxu0 %v763
  %2152 = vmatpush1.msra.mxu0 %v762
  %2153 = vmatprep.subr.mxu0 %v765
  %2154 = vmatpush1.msra.mxu0 %v764
  %2155 = vmatprep.subr.mxu0 %v767
  %2156 = vmatpush1.msra.mxu0 %v766
  %2157 = vmatprep.subr.mxu0 %v769
  %2158 = vmatpush1.msra.mxu0 %v768
  %2159 = vmatprep.subr.mxu0 %v771
  %2160 = vmatpush1.msra.mxu0 %v770
  %2161 = vmatprep.subr.mxu0 %v773
  %2162 = vmatpush1.msra.mxu0 %v772
  %2163 = vmatprep.subr.mxu0 %v775
  %2164 = vmatpush1.msra.mxu0 %v774
  %2165 = vmatprep.subr.mxu0 %v777
  %2166 = vmatpush1.msra.mxu0 %v776
  %2167 = vmatprep.subr.mxu0 %v779
  %2168 = vmatpush1.msra.mxu0 %v778
  %2169 = vmatprep.subr.mxu0 %v781
  %2170 = vmatpush1.msra.mxu0 %v780
  %2171 = vmatprep.subr.mxu0 %v783
  %2172 = vmatpush1.msra.mxu0 %v782
  %2173 = vmatprep.subr.mxu0 %v785
  %2174 = vmatpush1.msra.mxu0 %v784
  %2175 = vmatprep.subr.mxu0 %v787
  %2176 = vmatpush1.msra.mxu0 %v786
  %2177 = vmatprep.subr.mxu0 %v789
  %2178 = vmatpush1.msra.mxu0 %v788
  %2179 = vmatprep.subr.mxu0 %v791
  %2180 = vmatpush1.msra.mxu0 %v790
  %2181 = vmatprep.subr.mxu0 %v793
  %2182 = vmatpush1.msra.mxu0 %v792
  %2183 = vmatprep.subr.mxu0 %v795
  %2184 = vmatpush1.msra.mxu0 %v794
  %2185 = vmatprep.subr.mxu0 %v797
  %2186 = vmatpush1.msra.mxu0 %v796
  %2187 = vmatprep.mubr.f32.mxu0 %v33
  %2188 = vmatmul.mubr.f32.gmra.mrb[0].mxu0 %v32
  %v2189 = vpop.f32.mrb[0].mxu0
  %v2190 = vadd.f32 %v2101, %v2189
  %v2191 = vpop.f32.mrb[0].mxu0
  %v2192 = vadd.f32 %v2103, %v2191
  %2193 = vmatprep.mubr.f32.mxu0 %v69
  %2194 = vmatmul.mubr.f32.gmra.mrb[0].mxu0 %v68
  %v2195 = vpop.f32.mrb[0].mxu0
  %v2196 = vadd.f32 %v2107, %v2195
  %v2197 = vpop.f32.mrb[0].mxu0
  %v2198 = vadd.f32 %v2109, %v2197
  %2199 = vmatprep.mubr.f32.mxu0 %v105
  %2200 = vmatmul.mubr.f32.gmra.mrb[0].mxu0 %v104
  %v2201 = vpop.f32.mrb[0].mxu0
  %v2202 = vadd.f32 %v2113, %v2201
  %v2203 = vpop.f32.mrb[0].mxu0
  %v2204 = vadd.f32 %v2115, %v2203
  %2205 = vmatprep.mubr.f32.mxu0 %v141
  %2206 = vmatmul.mubr.f32.gmra.mrb[0].mxu0 %v140
  %v2207 = vpop.f32.mrb[0].mxu0
  %v2208 = vadd.f32 %v2119, %v2207
  %v2209 = vpop.f32.mrb[0].mxu0
  %v2210 = vadd.f32 %v2121, %v2209
  %2211 = vdwg.mxu0
  %2212 = vmatprep.subr.mxu0 %v799
  %2213 = vmatpush1.msra.mxu0 %v798
  %2214 = vmatprep.subr.mxu0 %v801
  %2215 = vmatpush1.msra.mxu0 %v800
  %2216 = vmatprep.subr.mxu0 %v803
  %2217 = vmatpush1.msra.mxu0 %v802
  %2218 = vmatprep.subr.mxu0 %v805
  %2219 = vmatpush1.msra.mxu0 %v804
  %2220 = vmatprep.subr.mxu0 %v807
  %2221 = vmatpush1.msra.mxu0 %v806
  %2222 = vmatprep.subr.mxu0 %v809
  %2223 = vmatpush1.msra.mxu0 %v808
  %2224 = vmatprep.subr.mxu0 %v811
  %2225 = vmatpush1.msra.mxu0 %v810
  %2226 = vmatprep.subr.mxu0 %v813
  %2227 = vmatpush1.msra.mxu0 %v812
  %2228 = vmatprep.subr.mxu0 %v815
  %2229 = vmatpush1.msra.mxu0 %v814
  %2230 = vmatprep.subr.mxu0 %v817
  %2231 = vmatpush1.msra.mxu0 %v816
  %2232 = vmatprep.subr.mxu0 %v819
  %2233 = vmatpush1.msra.mxu0 %v818
  %2234 = vmatprep.subr.mxu0 %v821
  %2235 = vmatpush1.msra.mxu0 %v820
  %2236 = vmatprep.subr.mxu0 %v823
  %2237 = vmatpush1.msra.mxu0 %v822
  %2238 = vmatprep.subr.mxu0 %v825
  %2239 = vmatpush1.msra.mxu0 %v824
  %2240 = vmatprep.subr.mxu0 %v827
  %2241 = vmatpush1.msra.mxu0 %v826
  %2242 = vmatprep.subr.mxu0 %v829
  %2243 = vmatpush1.msra.mxu0 %v828
  %2244 = vmatprep.subr.mxu0 %v831
  %2245 = vmatpush1.msra.mxu0 %v830
  %2246 = vmatprep.subr.mxu0 %v833
  %2247 = vmatpush1.msra.mxu0 %v832
  %2248 = vmatprep.subr.mxu0 %v835
  %2249 = vmatpush1.msra.mxu0 %v834
  %2250 = vmatprep.subr.mxu0 %v837
  %2251 = vmatpush1.msra.mxu0 %v836
  %2252 = vmatprep.subr.mxu0 %v839
  %2253 = vmatpush1.msra.mxu0 %v838
  %2254 = vmatprep.subr.mxu0 %v841
  %2255 = vmatpush1.msra.mxu0 %v840
  %2256 = vmatprep.subr.mxu0 %v843
  %2257 = vmatpush1.msra.mxu0 %v842
  %2258 = vmatprep.subr.mxu0 %v845
  %2259 = vmatpush1.msra.mxu0 %v844
  %2260 = vmatprep.subr.mxu0 %v847
  %2261 = vmatpush1.msra.mxu0 %v846
  %2262 = vmatprep.subr.mxu0 %v849
  %2263 = vmatpush1.msra.mxu0 %v848
  %2264 = vmatprep.subr.mxu0 %v851
  %2265 = vmatpush1.msra.mxu0 %v850
  %2266 = vmatprep.subr.mxu0 %v853
  %2267 = vmatpush1.msra.mxu0 %v852
  %2268 = vmatprep.subr.mxu0 %v855
  %2269 = vmatpush1.msra.mxu0 %v854
  %2270 = vmatprep.subr.mxu0 %v857
  %2271 = vmatpush1.msra.mxu0 %v856
  %2272 = vmatprep.subr.mxu0 %v859
  %2273 = vmatpush1.msra.mxu0 %v858
  %2274 = vmatprep.subr.mxu0 %v861
  %2275 = vmatpush1.msra.mxu0 %v860
  %2276 = vmatprep.mubr.f32.mxu0 %v35
  %2277 = vmatmul.mubr.f32.gmra.mrb[0].mxu0 %v34
  %v2278 = vpop.f32.mrb[0].mxu0
  %v2279 = vadd.f32 %v2190, %v2278
  %v2280 = vpop.f32.mrb[0].mxu0
  %v2281 = vadd.f32 %v2192, %v2280
  %2282 = vmatprep.mubr.f32.mxu0 %v71
  %2283 = vmatmul.mubr.f32.gmra.mrb[0].mxu0 %v70
  %v2284 = vpop.f32.mrb[0].mxu0
  %v2285 = vadd.f32 %v2196, %v2284
  %v2286 = vpop.f32.mrb[0].mxu0
  %v2287 = vadd.f32 %v2198, %v2286
  %2288 = vmatprep.mubr.f32.mxu0 %v107
  %2289 = vmatmul.mubr.f32.gmra.mrb[0].mxu0 %v106
  %v2290 = vpop.f32.mrb[0].mxu0
  %v2291 = vadd.f32 %v2202, %v2290
  %v2292 = vpop.f32.mrb[0].mxu0
  %v2293 = vadd.f32 %v2204, %v2292
  %2294 = vmatprep.mubr.f32.mxu0 %v143
  %2295 = vmatmul.mubr.f32.gmra.mrb[0].mxu0 %v142
  %v2296 = vpop.f32.mrb[0].mxu0
  %v2297 = vadd.f32 %v2208, %v2296
  %v2298 = vpop.f32.mrb[0].mxu0
  %v2299 = vadd.f32 %v2210, %v2298
  %2300 = vdwg.mxu0
  %2301 = vmatprep.subr.mxu0 %v863
  %2302 = vmatpush1.msra.mxu0 %v862
  %2303 = vmatprep.subr.mxu0 %v865
  %2304 = vmatpush1.msra.mxu0 %v864
  %2305 = vmatprep.subr.mxu0 %v867
  %2306 = vmatpush1.msra.mxu0 %v866
  %2307 = vmatprep.subr.mxu0 %v869
  %2308 = vmatpush1.msra.mxu0 %v868
  %2309 = vmatprep.subr.mxu0 %v871
  %2310 = vmatpush1.msra.mxu0 %v870
  %2311 = vmatprep.subr.mxu0 %v873
  %2312 = vmatpush1.msra.mxu0 %v872
  %2313 = vmatprep.subr.mxu0 %v875
  %2314 = vmatpush1.msra.mxu0 %v874
  %2315 = vmatprep.subr.mxu0 %v877
  %2316 = vmatpush1.msra.mxu0 %v876
  %2317 = vmatprep.subr.mxu0 %v879
  %2318 = vmatpush1.msra.mxu0 %v878
  %2319 = vmatprep.subr.mxu0 %v881
  %2320 = vmatpush1.msra.mxu0 %v880
  %2321 = vmatprep.subr.mxu0 %v883
  %2322 = vmatpush1.msra.mxu0 %v882
  %2323 = vmatprep.subr.mxu0 %v885
  %2324 = vmatpush1.msra.mxu0 %v884
  %2325 = vmatprep.subr.mxu0 %v887
  %2326 = vmatpush1.msra.mxu0 %v886
  %2327 = vmatprep.subr.mxu0 %v889
  %2328 = vmatpush1.msra.mxu0 %v888
  %2329 = vmatprep.subr.mxu0 %v891
  %2330 = vmatpush1.msra.mxu0 %v890
  %2331 = vmatprep.subr.mxu0 %v893
  %2332 = vmatpush1.msra.mxu0 %v892
  %2333 = vmatprep.subr.mxu0 %v895
  %2334 = vmatpush1.msra.mxu0 %v894
  %2335 = vmatprep.subr.mxu0 %v897
  %2336 = vmatpush1.msra.mxu0 %v896
  %2337 = vmatprep.subr.mxu0 %v899
  %2338 = vmatpush1.msra.mxu0 %v898
  %2339 = vmatprep.subr.mxu0 %v901
  %2340 = vmatpush1.msra.mxu0 %v900
  %2341 = vmatprep.subr.mxu0 %v903
  %2342 = vmatpush1.msra.mxu0 %v902
  %2343 = vmatprep.subr.mxu0 %v905
  %2344 = vmatpush1.msra.mxu0 %v904
  %2345 = vmatprep.subr.mxu0 %v907
  %2346 = vmatpush1.msra.mxu0 %v906
  %2347 = vmatprep.subr.mxu0 %v909
  %2348 = vmatpush1.msra.mxu0 %v908
  %2349 = vmatprep.subr.mxu0 %v911
  %2350 = vmatpush1.msra.mxu0 %v910
  %2351 = vmatprep.subr.mxu0 %v913
  %2352 = vmatpush1.msra.mxu0 %v912
  %2353 = vmatprep.subr.mxu0 %v915
  %2354 = vmatpush1.msra.mxu0 %v914
  %2355 = vmatprep.subr.mxu0 %v917
  %2356 = vmatpush1.msra.mxu0 %v916
  %2357 = vmatprep.subr.mxu0 %v919
  %2358 = vmatpush1.msra.mxu0 %v918
  %2359 = vmatprep.subr.mxu0 %v921
  %2360 = vmatpush1.msra.mxu0 %v920
  %2361 = vmatprep.subr.mxu0 %v923
  %2362 = vmatpush1.msra.mxu0 %v922
  %2363 = vmatprep.subr.mxu0 %v925
  %2364 = vmatpush1.msra.mxu0 %v924
  %2365 = vmatprep.mubr.f32.mxu0 %v37
  %2366 = vmatmul.mubr.f32.gmra.mrb[0].mxu0 %v36
  %v2367 = vpop.f32.mrb[0].mxu0
  %v2368 = vadd.f32 %v2279, %v2367
  %v2369 = vpop.f32.mrb[0].mxu0
  %v2370 = vadd.f32 %v2281, %v2369
  %2371 = vmatprep.mubr.f32.mxu0 %v73
  %2372 = vmatmul.mubr.f32.gmra.mrb[0].mxu0 %v72
  %v2373 = vpop.f32.mrb[0].mxu0
  %v2374 = vadd.f32 %v2285, %v2373
  %v2375 = vpop.f32.mrb[0].mxu0
  %v2376 = vadd.f32 %v2287, %v2375
  %2377 = vmatprep.mubr.f32.mxu0 %v109
  %2378 = vmatmul.mubr.f32.gmra.mrb[0].mxu0 %v108
  %v2379 = vpop.f32.mrb[0].mxu0
  %v2380 = vadd.f32 %v2291, %v2379
  %v2381 = vpop.f32.mrb[0].mxu0
  %v2382 = vadd.f32 %v2293, %v2381
  %2383 = vmatprep.mubr.f32.mxu0 %v145
  %2384 = vmatmul.mubr.f32.gmra.mrb[0].mxu0 %v144
  %v2385 = vpop.f32.mrb[0].mxu0
  %v2386 = vadd.f32 %v2297, %v2385
  %v2387 = vpop.f32.mrb[0].mxu0
  %v2388 = vadd.f32 %v2299, %v2387
  %2389 = vdwg.mxu0
  %2390 = vmatprep.subr.mxu0 %v927
  %2391 = vmatpush1.msra.mxu0 %v926
  %2392 = vmatprep.subr.mxu0 %v929
  %2393 = vmatpush1.msra.mxu0 %v928
  %2394 = vmatprep.subr.mxu0 %v931
  %2395 = vmatpush1.msra.mxu0 %v930
  %2396 = vmatprep.subr.mxu0 %v933
  %2397 = vmatpush1.msra.mxu0 %v932
  %2398 = vmatprep.subr.mxu0 %v935
  %2399 = vmatpush1.msra.mxu0 %v934
  %2400 = vmatprep.subr.mxu0 %v937
  %2401 = vmatpush1.msra.mxu0 %v936
  %2402 = vmatprep.subr.mxu0 %v939
  %2403 = vmatpush1.msra.mxu0 %v938
  %2404 = vmatprep.subr.mxu0 %v941
  %2405 = vmatpush1.msra.mxu0 %v940
  %2406 = vmatprep.subr.mxu0 %v943
  %2407 = vmatpush1.msra.mxu0 %v942
  %2408 = vmatprep.subr.mxu0 %v945
  %2409 = vmatpush1.msra.mxu0 %v944
  %2410 = vmatprep.subr.mxu0 %v947
  %2411 = vmatpush1.msra.mxu0 %v946
  %2412 = vmatprep.subr.mxu0 %v949
  %2413 = vmatpush1.msra.mxu0 %v948
  %2414 = vmatprep.subr.mxu0 %v951
  %2415 = vmatpush1.msra.mxu0 %v950
  %2416 = vmatprep.subr.mxu0 %v953
  %2417 = vmatpush1.msra.mxu0 %v952
  %2418 = vmatprep.subr.mxu0 %v955
  %2419 = vmatpush1.msra.mxu0 %v954
  %2420 = vmatprep.subr.mxu0 %v957
  %2421 = vmatpush1.msra.mxu0 %v956
  %2422 = vmatprep.subr.mxu0 %v959
  %2423 = vmatpush1.msra.mxu0 %v958
  %2424 = vmatprep.subr.mxu0 %v961
  %2425 = vmatpush1.msra.mxu0 %v960
  %2426 = vmatprep.subr.mxu0 %v963
  %2427 = vmatpush1.msra.mxu0 %v962
  %2428 = vmatprep.subr.mxu0 %v965
  %2429 = vmatpush1.msra.mxu0 %v964
  %2430 = vmatprep.subr.mxu0 %v967
  %2431 = vmatpush1.msra.mxu0 %v966
  %2432 = vmatprep.subr.mxu0 %v969
  %2433 = vmatpush1.msra.mxu0 %v968
  %2434 = vmatprep.subr.mxu0 %v971
  %2435 = vmatpush1.msra.mxu0 %v970
  %2436 = vmatprep.subr.mxu0 %v973
  %2437 = vmatpush1.msra.mxu0 %v972
  %2438 = vmatprep.subr.mxu0 %v975
  %2439 = vmatpush1.msra.mxu0 %v974
  %2440 = vmatprep.subr.mxu0 %v977
  %2441 = vmatpush1.msra.mxu0 %v976
  %2442 = vmatprep.subr.mxu0 %v979
  %2443 = vmatpush1.msra.mxu0 %v978
  %2444 = vmatprep.subr.mxu0 %v981
  %2445 = vmatpush1.msra.mxu0 %v980
  %2446 = vmatprep.subr.mxu0 %v983
  %2447 = vmatpush1.msra.mxu0 %v982
  %2448 = vmatprep.subr.mxu0 %v985
  %2449 = vmatpush1.msra.mxu0 %v984
  %2450 = vmatprep.subr.mxu0 %v987
  %2451 = vmatpush1.msra.mxu0 %v986
  %2452 = vmatprep.subr.mxu0 %v989
  %2453 = vmatpush1.msra.mxu0 %v988
  %2454 = vmatprep.mubr.f32.mxu0 %v39
  %2455 = vmatmul.mubr.f32.gmra.mrb[0].mxu0 %v38
  %v2456 = vpop.f32.mrb[0].mxu0
  %v2457 = vadd.f32 %v2368, %v2456
  %v2458 = vpop.f32.mrb[0].mxu0
  %v2459 = vadd.f32 %v2370, %v2458
  %2460 = vmatprep.mubr.f32.mxu0 %v75
  %2461 = vmatmul.mubr.f32.gmra.mrb[0].mxu0 %v74
  %v2462 = vpop.f32.mrb[0].mxu0
  %v2463 = vadd.f32 %v2374, %v2462
  %v2464 = vpop.f32.mrb[0].mxu0
  %v2465 = vadd.f32 %v2376, %v2464
  %2466 = vmatprep.mubr.f32.mxu0 %v111
  %2467 = vmatmul.mubr.f32.gmra.mrb[0].mxu0 %v110
  %v2468 = vpop.f32.mrb[0].mxu0
  %v2469 = vadd.f32 %v2380, %v2468
  %v2470 = vpop.f32.mrb[0].mxu0
  %v2471 = vadd.f32 %v2382, %v2470
  %2472 = vmatprep.mubr.f32.mxu0 %v147
  %2473 = vmatmul.mubr.f32.gmra.mrb[0].mxu0 %v146
  %v2474 = vpop.f32.mrb[0].mxu0
  %v2475 = vadd.f32 %v2386, %v2474
  %v2476 = vpop.f32.mrb[0].mxu0
  %v2477 = vadd.f32 %v2388, %v2476
  %2478 = vdwg.mxu0
  %2479 = vmatprep.subr.mxu0 %v991
  %2480 = vmatpush1.msra.mxu0 %v990
  %2481 = vmatprep.subr.mxu0 %v993
  %2482 = vmatpush1.msra.mxu0 %v992
  %2483 = vmatprep.subr.mxu0 %v995
  %2484 = vmatpush1.msra.mxu0 %v994
  %2485 = vmatprep.subr.mxu0 %v997
  %2486 = vmatpush1.msra.mxu0 %v996
  %2487 = vmatprep.subr.mxu0 %v999
  %2488 = vmatpush1.msra.mxu0 %v998
  %2489 = vmatprep.subr.mxu0 %v1001
  %2490 = vmatpush1.msra.mxu0 %v1000
  %2491 = vmatprep.subr.mxu0 %v1003
  %2492 = vmatpush1.msra.mxu0 %v1002
  %2493 = vmatprep.subr.mxu0 %v1005
  %2494 = vmatpush1.msra.mxu0 %v1004
  %2495 = vmatprep.subr.mxu0 %v1007
  %2496 = vmatpush1.msra.mxu0 %v1006
  %2497 = vmatprep.subr.mxu0 %v1009
  %2498 = vmatpush1.msra.mxu0 %v1008
  %2499 = vmatprep.subr.mxu0 %v1011
  %2500 = vmatpush1.msra.mxu0 %v1010
  %2501 = vmatprep.subr.mxu0 %v1013
  %2502 = vmatpush1.msra.mxu0 %v1012
  %2503 = vmatprep.subr.mxu0 %v1015
  %2504 = vmatpush1.msra.mxu0 %v1014
  %2505 = vmatprep.subr.mxu0 %v1017
  %2506 = vmatpush1.msra.mxu0 %v1016
  %2507 = vmatprep.subr.mxu0 %v1019
  %2508 = vmatpush1.msra.mxu0 %v1018
  %2509 = vmatprep.subr.mxu0 %v1021
  %2510 = vmatpush1.msra.mxu0 %v1020
  %2511 = vmatprep.subr.mxu0 %v1023
  %2512 = vmatpush1.msra.mxu0 %v1022
  %2513 = vmatprep.subr.mxu0 %v1025
  %2514 = vmatpush1.msra.mxu0 %v1024
  %2515 = vmatprep.subr.mxu0 %v1027
  %2516 = vmatpush1.msra.mxu0 %v1026
  %2517 = vmatprep.subr.mxu0 %v1029
  %2518 = vmatpush1.msra.mxu0 %v1028
  %2519 = vmatprep.subr.mxu0 %v1031
  %2520 = vmatpush1.msra.mxu0 %v1030
  %2521 = vmatprep.subr.mxu0 %v1033
  %2522 = vmatpush1.msra.mxu0 %v1032
  %2523 = vmatprep.subr.mxu0 %v1035
  %2524 = vmatpush1.msra.mxu0 %v1034
  %2525 = vmatprep.subr.mxu0 %v1037
  %2526 = vmatpush1.msra.mxu0 %v1036
  %2527 = vmatprep.subr.mxu0 %v1039
  %2528 = vmatpush1.msra.mxu0 %v1038
  %2529 = vmatprep.subr.mxu0 %v1041
  %2530 = vmatpush1.msra.mxu0 %v1040
  %2531 = vmatprep.subr.mxu0 %v1043
  %2532 = vmatpush1.msra.mxu0 %v1042
  %2533 = vmatprep.subr.mxu0 %v1045
  %2534 = vmatpush1.msra.mxu0 %v1044
  %2535 = vmatprep.subr.mxu0 %v1047
  %2536 = vmatpush1.msra.mxu0 %v1046
  %2537 = vmatprep.subr.mxu0 %v1049
  %2538 = vmatpush1.msra.mxu0 %v1048
  %2539 = vmatprep.subr.mxu0 %v1051
  %2540 = vmatpush1.msra.mxu0 %v1050
  %2541 = vmatprep.subr.mxu0 %v1053
  %2542 = vmatpush1.msra.mxu0 %v1052
  %2543 = vmatprep.mubr.f32.mxu0 %v41
  %2544 = vmatmul.mubr.f32.gmra.mrb[0].mxu0 %v40
  %v2545 = vpop.f32.mrb[0].mxu0
  %v2546 = vadd.f32 %v2457, %v2545
  %v2547 = vpop.f32.mrb[0].mxu0
  %v2548 = vadd.f32 %v2459, %v2547
  %2549 = vmatprep.mubr.f32.mxu0 %v77
  %2550 = vmatmul.mubr.f32.gmra.mrb[0].mxu0 %v76
  %v2551 = vpop.f32.mrb[0].mxu0
  %v2552 = vadd.f32 %v2463, %v2551
  %v2553 = vpop.f32.mrb[0].mxu0
  %v2554 = vadd.f32 %v2465, %v2553
  %2555 = vmatprep.mubr.f32.mxu0 %v113
  %2556 = vmatmul.mubr.f32.gmra.mrb[0].mxu0 %v112
  %v2557 = vpop.f32.mrb[0].mxu0
  %v2558 = vadd.f32 %v2469, %v2557
  %v2559 = vpop.f32.mrb[0].mxu0
  %v2560 = vadd.f32 %v2471, %v2559
  %2561 = vmatprep.mubr.f32.mxu0 %v149
  %2562 = vmatmul.mubr.f32.gmra.mrb[0].mxu0 %v148
  %v2563 = vpop.f32.mrb[0].mxu0
  %v2564 = vadd.f32 %v2475, %v2563
  %v2565 = vpop.f32.mrb[0].mxu0
  %v2566 = vadd.f32 %v2477, %v2565
  %2567 = vdwg.mxu0
  %2568 = vmatprep.subr.mxu0 %v1055
  %2569 = vmatpush1.msra.mxu0 %v1054
  %2570 = vmatprep.subr.mxu0 %v1057
  %2571 = vmatpush1.msra.mxu0 %v1056
  %2572 = vmatprep.subr.mxu0 %v1059
  %2573 = vmatpush1.msra.mxu0 %v1058
  %2574 = vmatprep.subr.mxu0 %v1061
  %2575 = vmatpush1.msra.mxu0 %v1060
  %2576 = vmatprep.subr.mxu0 %v1063
  %2577 = vmatpush1.msra.mxu0 %v1062
  %2578 = vmatprep.subr.mxu0 %v1065
  %2579 = vmatpush1.msra.mxu0 %v1064
  %2580 = vmatprep.subr.mxu0 %v1067
  %2581 = vmatpush1.msra.mxu0 %v1066
  %2582 = vmatprep.subr.mxu0 %v1069
  %2583 = vmatpush1.msra.mxu0 %v1068
  %2584 = vmatprep.subr.mxu0 %v1071
  %2585 = vmatpush1.msra.mxu0 %v1070
  %2586 = vmatprep.subr.mxu0 %v1073
  %2587 = vmatpush1.msra.mxu0 %v1072
  %2588 = vmatprep.subr.mxu0 %v1075
  %2589 = vmatpush1.msra.mxu0 %v1074
  %2590 = vmatprep.subr.mxu0 %v1077
  %2591 = vmatpush1.msra.mxu0 %v1076
  %2592 = vmatprep.subr.mxu0 %v1079
  %2593 = vmatpush1.msra.mxu0 %v1078
  %2594 = vmatprep.subr.mxu0 %v1081
  %2595 = vmatpush1.msra.mxu0 %v1080
  %2596 = vmatprep.subr.mxu0 %v1083
  %2597 = vmatpush1.msra.mxu0 %v1082
  %2598 = vmatprep.subr.mxu0 %v1085
  %2599 = vmatpush1.msra.mxu0 %v1084
  %2600 = vmatprep.subr.mxu0 %v1087
  %2601 = vmatpush1.msra.mxu0 %v1086
  %2602 = vmatprep.subr.mxu0 %v1089
  %2603 = vmatpush1.msra.mxu0 %v1088
  %2604 = vmatprep.subr.mxu0 %v1091
  %2605 = vmatpush1.msra.mxu0 %v1090
  %2606 = vmatprep.subr.mxu0 %v1093
  %2607 = vmatpush1.msra.mxu0 %v1092
  %2608 = vmatprep.subr.mxu0 %v1095
  %2609 = vmatpush1.msra.mxu0 %v1094
  %2610 = vmatprep.subr.mxu0 %v1097
  %2611 = vmatpush1.msra.mxu0 %v1096
  %2612 = vmatprep.subr.mxu0 %v1099
  %2613 = vmatpush1.msra.mxu0 %v1098
  %2614 = vmatprep.subr.mxu0 %v1101
  %2615 = vmatpush1.msra.mxu0 %v1100
  %2616 = vmatprep.subr.mxu0 %v1103
  %2617 = vmatpush1.msra.mxu0 %v1102
  %2618 = vmatprep.subr.mxu0 %v1105
  %2619 = vmatpush1.msra.mxu0 %v1104
  %2620 = vmatprep.subr.mxu0 %v1107
  %2621 = vmatpush1.msra.mxu0 %v1106
  %2622 = vmatprep.subr.mxu0 %v1109
  %2623 = vmatpush1.msra.mxu0 %v1108
  %2624 = vmatprep.subr.mxu0 %v1111
  %2625 = vmatpush1.msra.mxu0 %v1110
  %2626 = vmatprep.subr.mxu0 %v1113
  %2627 = vmatpush1.msra.mxu0 %v1112
  %2628 = vmatprep.subr.mxu0 %v1115
  %2629 = vmatpush1.msra.mxu0 %v1114
  %2630 = vmatprep.subr.mxu0 %v1117
  %2631 = vmatpush1.msra.mxu0 %v1116
  %2632 = vmatprep.mubr.f32.mxu0 %v43
  %2633 = vmatmul.mubr.f32.gmra.mrb[0].mxu0 %v42
  %v2634 = vpop.f32.mrb[0].mxu0
  %v2635 = vadd.f32 %v2546, %v2634
  %v2636 = vpop.f32.mrb[0].mxu0
  %v2637 = vadd.f32 %v2548, %v2636
  %2638 = vmatprep.mubr.f32.mxu0 %v79
  %2639 = vmatmul.mubr.f32.gmra.mrb[0].mxu0 %v78
  %v2640 = vpop.f32.mrb[0].mxu0
  %v2641 = vadd.f32 %v2552, %v2640
  %v2642 = vpop.f32.mrb[0].mxu0
  %v2643 = vadd.f32 %v2554, %v2642
  %2644 = vmatprep.mubr.f32.mxu0 %v115
  %2645 = vmatmul.mubr.f32.gmra.mrb[0].mxu0 %v114
  %v2646 = vpop.f32.mrb[0].mxu0
  %v2647 = vadd.f32 %v2558, %v2646
  %v2648 = vpop.f32.mrb[0].mxu0
  %v2649 = vadd.f32 %v2560, %v2648
  %2650 = vmatprep.mubr.f32.mxu0 %v151
  %2651 = vmatmul.mubr.f32.gmra.mrb[0].mxu0 %v150
  %v2652 = vpop.f32.mrb[0].mxu0
  %v2653 = vadd.f32 %v2564, %v2652
  %v2654 = vpop.f32.mrb[0].mxu0
  %v2655 = vadd.f32 %v2566, %v2654
  %2656 = vdwg.mxu0
  %2657 = vmatprep.subr.mxu0 %v1119
  %2658 = vmatpush1.msra.mxu0 %v1118
  %2659 = vmatprep.subr.mxu0 %v1121
  %2660 = vmatpush1.msra.mxu0 %v1120
  %2661 = vmatprep.subr.mxu0 %v1123
  %2662 = vmatpush1.msra.mxu0 %v1122
  %2663 = vmatprep.subr.mxu0 %v1125
  %2664 = vmatpush1.msra.mxu0 %v1124
  %2665 = vmatprep.subr.mxu0 %v1127
  %2666 = vmatpush1.msra.mxu0 %v1126
  %2667 = vmatprep.subr.mxu0 %v1129
  %2668 = vmatpush1.msra.mxu0 %v1128
  %2669 = vmatprep.subr.mxu0 %v1131
  %2670 = vmatpush1.msra.mxu0 %v1130
  %2671 = vmatprep.subr.mxu0 %v1133
  %2672 = vmatpush1.msra.mxu0 %v1132
  %2673 = vmatprep.subr.mxu0 %v1135
  %2674 = vmatpush1.msra.mxu0 %v1134
  %2675 = vmatprep.subr.mxu0 %v1137
  %2676 = vmatpush1.msra.mxu0 %v1136
  %2677 = vmatprep.subr.mxu0 %v1139
  %2678 = vmatpush1.msra.mxu0 %v1138
  %2679 = vmatprep.subr.mxu0 %v1141
  %2680 = vmatpush1.msra.mxu0 %v1140
  %2681 = vmatprep.subr.mxu0 %v1143
  %2682 = vmatpush1.msra.mxu0 %v1142
  %2683 = vmatprep.subr.mxu0 %v1145
  %2684 = vmatpush1.msra.mxu0 %v1144
  %2685 = vmatprep.subr.mxu0 %v1147
  %2686 = vmatpush1.msra.mxu0 %v1146
  %2687 = vmatprep.subr.mxu0 %v1149
  %2688 = vmatpush1.msra.mxu0 %v1148
  %2689 = vmatprep.subr.mxu0 %v1151
  %2690 = vmatpush1.msra.mxu0 %v1150
  %2691 = vmatprep.subr.mxu0 %v1153
  %2692 = vmatpush1.msra.mxu0 %v1152
  %2693 = vmatprep.subr.mxu0 %v1155
  %2694 = vmatpush1.msra.mxu0 %v1154
  %2695 = vmatprep.subr.mxu0 %v1157
  %2696 = vmatpush1.msra.mxu0 %v1156
  %2697 = vmatprep.subr.mxu0 %v1159
  %2698 = vmatpush1.msra.mxu0 %v1158
  %2699 = vmatprep.subr.mxu0 %v1161
  %2700 = vmatpush1.msra.mxu0 %v1160
  %2701 = vmatprep.subr.mxu0 %v1163
  %2702 = vmatpush1.msra.mxu0 %v1162
  %2703 = vmatprep.subr.mxu0 %v1165
  %2704 = vmatpush1.msra.mxu0 %v1164
  %2705 = vmatprep.subr.mxu0 %v1167
  %2706 = vmatpush1.msra.mxu0 %v1166
  %2707 = vmatprep.subr.mxu0 %v1169
  %2708 = vmatpush1.msra.mxu0 %v1168
  %2709 = vmatprep.subr.mxu0 %v1171
  %2710 = vmatpush1.msra.mxu0 %v1170
  %2711 = vmatprep.subr.mxu0 %v1173
  %2712 = vmatpush1.msra.mxu0 %v1172
  %2713 = vmatprep.subr.mxu0 %v1175
  %2714 = vmatpush1.msra.mxu0 %v1174
  %2715 = vmatprep.subr.mxu0 %v1177
  %2716 = vmatpush1.msra.mxu0 %v1176
  %2717 = vmatprep.subr.mxu0 %v1179
  %2718 = vmatpush1.msra.mxu0 %v1178
  %2719 = vmatprep.subr.mxu0 %v1181
  %2720 = vmatpush1.msra.mxu0 %v1180
  %2721 = vmatprep.mubr.f32.mxu0 %v45
  %2722 = vmatmul.mubr.f32.gmra.mrb[0].mxu0 %v44
  %v2723 = vpop.f32.mrb[0].mxu0
  %v2724 = vadd.f32 %v2635, %v2723
  %v2725 = vpop.f32.mrb[0].mxu0
  %v2726 = vadd.f32 %v2637, %v2725
  %2727 = vmatprep.mubr.f32.mxu0 %v81
  %2728 = vmatmul.mubr.f32.gmra.mrb[0].mxu0 %v80
  %v2729 = vpop.f32.mrb[0].mxu0
  %v2730 = vadd.f32 %v2641, %v2729
  %v2731 = vpop.f32.mrb[0].mxu0
  %v2732 = vadd.f32 %v2643, %v2731
  %2733 = vmatprep.mubr.f32.mxu0 %v117
  %2734 = vmatmul.mubr.f32.gmra.mrb[0].mxu0 %v116
  %v2735 = vpop.f32.mrb[0].mxu0
  %v2736 = vadd.f32 %v2647, %v2735
  %v2737 = vpop.f32.mrb[0].mxu0
  %v2738 = vadd.f32 %v2649, %v2737
  %2739 = vmatprep.mubr.f32.mxu0 %v153
  %2740 = vmatmul.mubr.f32.gmra.mrb[0].mxu0 %v152
  %v2741 = vpop.f32.mrb[0].mxu0
  %v2742 = vadd.f32 %v2653, %v2741
  %v2743 = vpop.f32.mrb[0].mxu0
  %v2744 = vadd.f32 %v2655, %v2743
  %2745 = vdwg.mxu0
  %2746 = vmatprep.subr.mxu0 %v1183
  %2747 = vmatpush1.msra.mxu0 %v1182
  %2748 = vmatprep.subr.mxu0 %v1185
  %2749 = vmatpush1.msra.mxu0 %v1184
  %2750 = vmatprep.subr.mxu0 %v1187
  %2751 = vmatpush1.msra.mxu0 %v1186
  %2752 = vmatprep.subr.mxu0 %v1189
  %2753 = vmatpush1.msra.mxu0 %v1188
  %2754 = vmatprep.subr.mxu0 %v1191
  %2755 = vmatpush1.msra.mxu0 %v1190
  %2756 = vmatprep.subr.mxu0 %v1193
  %2757 = vmatpush1.msra.mxu0 %v1192
  %2758 = vmatprep.subr.mxu0 %v1195
  %2759 = vmatpush1.msra.mxu0 %v1194
  %2760 = vmatprep.subr.mxu0 %v1197
  %2761 = vmatpush1.msra.mxu0 %v1196
  %2762 = vmatprep.subr.mxu0 %v1199
  %2763 = vmatpush1.msra.mxu0 %v1198
  %2764 = vmatprep.subr.mxu0 %v1201
  %2765 = vmatpush1.msra.mxu0 %v1200
  %2766 = vmatprep.subr.mxu0 %v1203
  %2767 = vmatpush1.msra.mxu0 %v1202
  %2768 = vmatprep.subr.mxu0 %v1205
  %2769 = vmatpush1.msra.mxu0 %v1204
  %2770 = vmatprep.subr.mxu0 %v1207
  %2771 = vmatpush1.msra.mxu0 %v1206
  %2772 = vmatprep.subr.mxu0 %v1209
  %2773 = vmatpush1.msra.mxu0 %v1208
  %2774 = vmatprep.subr.mxu0 %v1211
  %2775 = vmatpush1.msra.mxu0 %v1210
  %2776 = vmatprep.subr.mxu0 %v1213
  %2777 = vmatpush1.msra.mxu0 %v1212
  %2778 = vmatprep.subr.mxu0 %v1215
  %2779 = vmatpush1.msra.mxu0 %v1214
  %2780 = vmatprep.subr.mxu0 %v1217
  %2781 = vmatpush1.msra.mxu0 %v1216
  %2782 = vmatprep.subr.mxu0 %v1219
  %2783 = vmatpush1.msra.mxu0 %v1218
  %2784 = vmatprep.subr.mxu0 %v1221
  %2785 = vmatpush1.msra.mxu0 %v1220
  %2786 = vmatprep.subr.mxu0 %v1223
  %2787 = vmatpush1.msra.mxu0 %v1222
  %2788 = vmatprep.subr.mxu0 %v1225
  %2789 = vmatpush1.msra.mxu0 %v1224
  %2790 = vmatprep.subr.mxu0 %v1227
  %2791 = vmatpush1.msra.mxu0 %v1226
  %2792 = vmatprep.subr.mxu0 %v1229
  %2793 = vmatpush1.msra.mxu0 %v1228
  %2794 = vmatprep.subr.mxu0 %v1231
  %2795 = vmatpush1.msra.mxu0 %v1230
  %2796 = vmatprep.subr.mxu0 %v1233
  %2797 = vmatpush1.msra.mxu0 %v1232
  %2798 = vmatprep.subr.mxu0 %v1235
  %2799 = vmatpush1.msra.mxu0 %v1234
  %2800 = vmatprep.subr.mxu0 %v1237
  %2801 = vmatpush1.msra.mxu0 %v1236
  %2802 = vmatprep.subr.mxu0 %v1239
  %2803 = vmatpush1.msra.mxu0 %v1238
  %2804 = vmatprep.subr.mxu0 %v1241
  %2805 = vmatpush1.msra.mxu0 %v1240
  %2806 = vmatprep.subr.mxu0 %v1243
  %2807 = vmatpush1.msra.mxu0 %v1242
  %2808 = vmatprep.subr.mxu0 %v1245
  %2809 = vmatpush1.msra.mxu0 %v1244
  %2810 = vmatprep.mubr.f32.mxu0 %v47
  %2811 = vmatmul.mubr.f32.gmra.mrb[0].mxu0 %v46
  %v2812 = vpop.f32.mrb[0].mxu0
  %v2813 = vadd.f32 %v2724, %v2812
  %v2814 = vpop.f32.mrb[0].mxu0
  %v2815 = vadd.f32 %v2726, %v2814
  %2816 = vmatprep.mubr.f32.mxu0 %v83
  %2817 = vmatmul.mubr.f32.gmra.mrb[0].mxu0 %v82
  %v2818 = vpop.f32.mrb[0].mxu0
  %v2819 = vadd.f32 %v2730, %v2818
  %v2820 = vpop.f32.mrb[0].mxu0
  %v2821 = vadd.f32 %v2732, %v2820
  %2822 = vmatprep.mubr.f32.mxu0 %v119
  %2823 = vmatmul.mubr.f32.gmra.mrb[0].mxu0 %v118
  %v2824 = vpop.f32.mrb[0].mxu0
  %v2825 = vadd.f32 %v2736, %v2824
  %v2826 = vpop.f32.mrb[0].mxu0
  %v2827 = vadd.f32 %v2738, %v2826
  %2828 = vmatprep.mubr.f32.mxu0 %v155
  %2829 = vmatmul.mubr.f32.gmra.mrb[0].mxu0 %v154
  %v2830 = vpop.f32.mrb[0].mxu0
  %v2831 = vadd.f32 %v2742, %v2830
  %v2832 = vpop.f32.mrb[0].mxu0
  %v2833 = vadd.f32 %v2744, %v2832
  %2834 = vdwg.mxu0
  %2835 = vmatprep.subr.mxu0 %v1247
  %2836 = vmatpush1.msra.mxu0 %v1246
  %2837 = vmatprep.subr.mxu0 %v1249
  %2838 = vmatpush1.msra.mxu0 %v1248
  %2839 = vmatprep.subr.mxu0 %v1251
  %2840 = vmatpush1.msra.mxu0 %v1250
  %2841 = vmatprep.subr.mxu0 %v1253
  %2842 = vmatpush1.msra.mxu0 %v1252
  %2843 = vmatprep.subr.mxu0 %v1255
  %2844 = vmatpush1.msra.mxu0 %v1254
  %2845 = vmatprep.subr.mxu0 %v1257
  %2846 = vmatpush1.msra.mxu0 %v1256
  %2847 = vmatprep.subr.mxu0 %v1259
  %2848 = vmatpush1.msra.mxu0 %v1258
  %2849 = vmatprep.subr.mxu0 %v1261
  %2850 = vmatpush1.msra.mxu0 %v1260
  %2851 = vmatprep.subr.mxu0 %v1263
  %2852 = vmatpush1.msra.mxu0 %v1262
  %2853 = vmatprep.subr.mxu0 %v1265
  %2854 = vmatpush1.msra.mxu0 %v1264
  %2855 = vmatprep.subr.mxu0 %v1267
  %2856 = vmatpush1.msra.mxu0 %v1266
  %2857 = vmatprep.subr.mxu0 %v1269
  %2858 = vmatpush1.msra.mxu0 %v1268
  %2859 = vmatprep.subr.mxu0 %v1271
  %2860 = vmatpush1.msra.mxu0 %v1270
  %2861 = vmatprep.subr.mxu0 %v1273
  %2862 = vmatpush1.msra.mxu0 %v1272
  %2863 = vmatprep.subr.mxu0 %v1275
  %2864 = vmatpush1.msra.mxu0 %v1274
  %2865 = vmatprep.subr.mxu0 %v1277
  %2866 = vmatpush1.msra.mxu0 %v1276
  %2867 = vmatprep.subr.mxu0 %v1279
  %2868 = vmatpush1.msra.mxu0 %v1278
  %2869 = vmatprep.subr.mxu0 %v1281
  %2870 = vmatpush1.msra.mxu0 %v1280
  %2871 = vmatprep.subr.mxu0 %v1283
  %2872 = vmatpush1.msra.mxu0 %v1282
  %2873 = vmatprep.subr.mxu0 %v1285
  %2874 = vmatpush1.msra.mxu0 %v1284
  %2875 = vmatprep.subr.mxu0 %v1287
  %2876 = vmatpush1.msra.mxu0 %v1286
  %2877 = vmatprep.subr.mxu0 %v1289
  %2878 = vmatpush1.msra.mxu0 %v1288
  %2879 = vmatprep.subr.mxu0 %v1291
  %2880 = vmatpush1.msra.mxu0 %v1290
  %2881 = vmatprep.subr.mxu0 %v1293
  %2882 = vmatpush1.msra.mxu0 %v1292
  %2883 = vmatprep.subr.mxu0 %v1295
  %2884 = vmatpush1.msra.mxu0 %v1294
  %2885 = vmatprep.subr.mxu0 %v1297
  %2886 = vmatpush1.msra.mxu0 %v1296
  %2887 = vmatprep.subr.mxu0 %v1299
  %2888 = vmatpush1.msra.mxu0 %v1298
  %2889 = vmatprep.subr.mxu0 %v1301
  %2890 = vmatpush1.msra.mxu0 %v1300
  %2891 = vmatprep.subr.mxu0 %v1303
  %2892 = vmatpush1.msra.mxu0 %v1302
  %2893 = vmatprep.subr.mxu0 %v1305
  %2894 = vmatpush1.msra.mxu0 %v1304
  %2895 = vmatprep.subr.mxu0 %v1307
  %2896 = vmatpush1.msra.mxu0 %v1306
  %2897 = vmatprep.subr.mxu0 %v1309
  %2898 = vmatpush1.msra.mxu0 %v1308
  %2899 = vmatprep.mubr.f32.mxu0 %v49
  %2900 = vmatmul.mubr.f32.gmra.mrb[0].mxu0 %v48
  %v2901 = vpop.f32.mrb[0].mxu0
  %v2902 = vadd.f32 %v2813, %v2901
  %v2903 = vpop.f32.mrb[0].mxu0
  %v2904 = vadd.f32 %v2815, %v2903
  %2905 = vmatprep.mubr.f32.mxu0 %v85
  %2906 = vmatmul.mubr.f32.gmra.mrb[0].mxu0 %v84
  %v2907 = vpop.f32.mrb[0].mxu0
  %v2908 = vadd.f32 %v2819, %v2907
  %v2909 = vpop.f32.mrb[0].mxu0
  %v2910 = vadd.f32 %v2821, %v2909
  %2911 = vmatprep.mubr.f32.mxu0 %v121
  %2912 = vmatmul.mubr.f32.gmra.mrb[0].mxu0 %v120
  %v2913 = vpop.f32.mrb[0].mxu0
  %v2914 = vadd.f32 %v2825, %v2913
  %v2915 = vpop.f32.mrb[0].mxu0
  %v2916 = vadd.f32 %v2827, %v2915
  %2917 = vmatprep.mubr.f32.mxu0 %v157
  %2918 = vmatmul.mubr.f32.gmra.mrb[0].mxu0 %v156
  %v2919 = vpop.f32.mrb[0].mxu0
  %v2920 = vadd.f32 %v2831, %v2919
  %v2921 = vpop.f32.mrb[0].mxu0
  %v2922 = vadd.f32 %v2833, %v2921
  %2923 = vdwg.mxu0
  %2924 = vst [vmem:[%s3] sm:$0xff] %v2902
  %2925 = vst [vmem:[%s3 + $0x8] sm:$0xff] %v2904
  %2926 = vst [vmem:[%s3 + $0x10] sm:$0xff] %v2908
  %2927 = vst [vmem:[%s3 + $0x18] sm:$0xff] %v2910
  %2928 = vst [vmem:[%s3 + $0x20] sm:$0xff] %v2914
  %2929 = vst [vmem:[%s3 + $0x28] sm:$0xff] %v2916
  %2930 = vst [vmem:[%s3 + $0x30] sm:$0xff] %v2920
  %2931 = vst [vmem:[%s3 + $0x38] sm:$0xff] %v2922
  // Predicated region
  $region14: #{basic_block_forward.58} parent=0 // pred_check
    _
  $region15: #{basic_block_forward.58} parent=0 // pred_check_branch
    %2933 = sbr.rel (0) target = $region17
  $region16: #{basic_block_forward.58} parent=0 // pred_region
    _
  $region17: #{basic_block_forward.58} parent=0 // pred_fallthru
    _
  // Predicated region
  $region18: #{basic_block_forward.58} parent=0 // pred_check
    _
  $region19: #{basic_block_forward.58} parent=0 // pred_check_branch
    %2935 = sbr.rel (0) target = $region21
  $region20: #{basic_block_forward.58} parent=0 // pred_region
    _
  $region21: #{basic_block_forward.58} parent=0 // pred_fallthru
    _

// kernel: basic_block_forward.67
$region0: #{basic_block_forward.67}
  #allocation0 [shape = 'u32[]', space=smem, size = 0x4, offset = 0x4, fixed_abs, tag = 'smem constant byte address 0x4 - core index']
  #allocation1 [shape = 'u32[144,128]{1,0:T(1,128)}', space=vmem, size = 0x12000, scoped, tag = 'internal scratch']
  %s0 = inlined_call_operand.vmem [shape: f32[32,256], index: 0, kind: input, shape index: {}]
  %s1 = inlined_call_operand.vmem [shape: f32[256,256], index: 1, kind: input, shape index: {}]
  %s2 = inlined_call_operand.vmem [shape: f32[1,256], index: 2, kind: input, shape index: {}]
  %s3 = inlined_call_operand.vmem [shape: f32[32,256], index: 3, kind: output, shape index: {}]
  %s4 = sld [smem:[#allocation0]]
  $region22: #{basic_block_forward.67} parent=0
    _
  %s6 = ssub.s32 1, %s4
  %s7 = scalar_select 0, %s6, %s4
  // Predicated region
  $region2: #{basic_block_forward.67} parent=0 // pred_check
    _
  $region3: #{basic_block_forward.67} parent=0 // pred_check_branch
    %9 = sbr.rel (0) target = $region5
  $region4: #{basic_block_forward.67} parent=0 // pred_region
    _
  $region5: #{basic_block_forward.67} parent=0 // pred_fallthru
    _
  // Predicated region
  $region6: #{basic_block_forward.67} parent=0 // pred_check
    _
  $region7: #{basic_block_forward.67} parent=0 // pred_check_branch
    %11 = sbr.rel (0) target = $region9
  $region8: #{basic_block_forward.67} parent=0 // pred_region
    _
  $region9: #{basic_block_forward.67} parent=0 // pred_fallthru
    _
  // Predicated region
  $region10: #{basic_block_forward.67} parent=0 // pred_check
    _
  $region11: #{basic_block_forward.67} parent=0 // pred_check_branch
    %13 = sbr.rel (0) target = $region13
  $region12: #{basic_block_forward.67} parent=0 // pred_region
    _
  $region13: #{basic_block_forward.67} parent=0 // pred_fallthru
    _
  %v14 = vld [vmem:[%s0] sm:$0xff]
  %v15 = vld [vmem:[%s0 + $0x8] sm:$0xff]
  %v16 = vld [vmem:[%s0 + $0x10] sm:$0xff]
  %v17 = vld [vmem:[%s0 + $0x18] sm:$0xff]
  %v18 = vld [vmem:[%s0 + $0x20] sm:$0xff]
  %v19 = vld [vmem:[%s0 + $0x28] sm:$0xff]
  %v20 = vld [vmem:[%s0 + $0x30] sm:$0xff]
  %v21 = vld [vmem:[%s0 + $0x38] sm:$0xff]
  %v22 = vld [vmem:[%s1] sm:$0xff]
  %v23 = vld [vmem:[%s1 + $0x8] sm:$0xff]
  %v24 = vld [vmem:[%s1 + $0x10] sm:$0xff]
  %v25 = vld [vmem:[%s1 + $0x18] sm:$0xff]
  %v26 = vld [vmem:[%s1 + $0x20] sm:$0xff]
  %v27 = vld [vmem:[%s1 + $0x28] sm:$0xff]
  %v28 = vld [vmem:[%s1 + $0x30] sm:$0xff]
  %v29 = vld [vmem:[%s1 + $0x38] sm:$0xff]
  %v30 = vld [vmem:[%s1 + $0x40] sm:$0xff]
  %v31 = vld [vmem:[%s1 + $0x48] sm:$0xff]
  %v32 = vld [vmem:[%s1 + $0x50] sm:$0xff]
  %v33 = vld [vmem:[%s1 + $0x58] sm:$0xff]
  %v34 = vld [vmem:[%s1 + $0x60] sm:$0xff]
  %v35 = vld [vmem:[%s1 + $0x68] sm:$0xff]
  %v36 = vld [vmem:[%s1 + $0x70] sm:$0xff]
  %v37 = vld [vmem:[%s1 + $0x78] sm:$0xff]
  %v38 = vld [vmem:[%s1 + $0x80] sm:$0xff]
  %v39 = vld [vmem:[%s1 + $0x88] sm:$0xff]
  %v40 = vld [vmem:[%s1 + $0x90] sm:$0xff]
  %v41 = vld [vmem:[%s1 + $0x98] sm:$0xff]
  %v42 = vld [vmem:[%s1 + $0xa0] sm:$0xff]
  %v43 = vld [vmem:[%s1 + $0xa8] sm:$0xff]
  %v44 = vld [vmem:[%s1 + $0xb0] sm:$0xff]
  %v45 = vld [vmem:[%s1 + $0xb8] sm:$0xff]
  %v46 = vld [vmem:[%s1 + $0xc0] sm:$0xff]
  %v47 = vld [vmem:[%s1 + $0xc8] sm:$0xff]
  %v48 = vld [vmem:[%s1 + $0xd0] sm:$0xff]
  %v49 = vld [vmem:[%s1 + $0xd8] sm:$0xff]
  %v50 = vld [vmem:[%s1 + $0xe0] sm:$0xff]
  %v51 = vld [vmem:[%s1 + $0xe8] sm:$0xff]
  %v52 = vld [vmem:[%s1 + $0xf0] sm:$0xff]
  %v53 = vld [vmem:[%s1 + $0xf8] sm:$0xff]
  %v54 = vld [vmem:[%s1 + $0x100] sm:$0xff]
  %v55 = vld [vmem:[%s1 + $0x108] sm:$0xff]
  %v56 = vld [vmem:[%s1 + $0x110] sm:$0xff]
  %v57 = vld [vmem:[%s1 + $0x118] sm:$0xff]
  %v58 = vld [vmem:[%s1 + $0x120] sm:$0xff]
  %v59 = vld [vmem:[%s1 + $0x128] sm:$0xff]
  %v60 = vld [vmem:[%s1 + $0x130] sm:$0xff]
  %v61 = vld [vmem:[%s1 + $0x138] sm:$0xff]
  %v62 = vld [vmem:[%s1 + $0x140] sm:$0xff]
  %v63 = vld [vmem:[%s1 + $0x148] sm:$0xff]
  %v64 = vld [vmem:[%s1 + $0x150] sm:$0xff]
  %v65 = vld [vmem:[%s1 + $0x158] sm:$0xff]
  %v66 = vld [vmem:[%s1 + $0x160] sm:$0xff]
  %v67 = vld [vmem:[%s1 + $0x168] sm:$0xff]
  %v68 = vld [vmem:[%s1 + $0x170] sm:$0xff]
  %v69 = vld [vmem:[%s1 + $0x178] sm:$0xff]
  %v70 = vld [vmem:[%s1 + $0x180] sm:$0xff]
  %v71 = vld [vmem:[%s1 + $0x188] sm:$0xff]
  %v72 = vld [vmem:[%s1 + $0x190] sm:$0xff]
  %v73 = vld [vmem:[%s1 + $0x198] sm:$0xff]
  %v74 = vld [vmem:[%s1 + $0x1a0] sm:$0xff]
  %v75 = vld [vmem:[%s1 + $0x1a8] sm:$0xff]
  %v76 = vld [vmem:[%s1 + $0x1b0] sm:$0xff]
  %v77 = vld [vmem:[%s1 + $0x1b8] sm:$0xff]
  %v78 = vld [vmem:[%s1 + $0x1c0] sm:$0xff]
  %v79 = vld [vmem:[%s1 + $0x1c8] sm:$0xff]
  %v80 = vld [vmem:[%s1 + $0x1d0] sm:$0xff]
  %v81 = vld [vmem:[%s1 + $0x1d8] sm:$0xff]
  %v82 = vld [vmem:[%s1 + $0x1e0] sm:$0xff]
  %v83 = vld [vmem:[%s1 + $0x1e8] sm:$0xff]
  %v84 = vld [vmem:[%s1 + $0x1f0] sm:$0xff]
  %v85 = vld [vmem:[%s1 + $0x1f8] sm:$0xff]
  %v86 = vld [vmem:[%s2] sm:$0x3]
  %v88 = vlaneseq
  %v89 = vshrl.u32 %v88, 7
  %v90 = vsub.s32 0, %v89
  %v91 = vrot.slane %v86, %v90
  %v92 = vlaneseq
  %v93 = vshrl.u32 %v92, 7
  %v94 = vsub.s32 1, %v93
  %v95 = vrot.slane %v86, %v94
  %98 = vmatprep.subr.mxu0 %v23
  %99 = vmatpush1.msra.mxu0 %v22
  %100 = vmatprep.subr.mxu0 %v25
  %101 = vmatpush1.msra.mxu0 %v24
  %102 = vmatprep.subr.mxu0 %v27
  %103 = vmatpush1.msra.mxu0 %v26
  %104 = vmatprep.subr.mxu0 %v29
  %105 = vmatpush1.msra.mxu0 %v28
  %106 = vmatprep.subr.mxu0 %v31
  %107 = vmatpush1.msra.mxu0 %v30
  %108 = vmatprep.subr.mxu0 %v33
  %109 = vmatpush1.msra.mxu0 %v32
  %110 = vmatprep.subr.mxu0 %v35
  %111 = vmatpush1.msra.mxu0 %v34
  %112 = vmatprep.subr.mxu0 %v37
  %113 = vmatpush1.msra.mxu0 %v36
  %114 = vmatprep.subr.mxu0 %v39
  %115 = vmatpush1.msra.mxu0 %v38
  %116 = vmatprep.subr.mxu0 %v41
  %117 = vmatpush1.msra.mxu0 %v40
  %118 = vmatprep.subr.mxu0 %v43
  %119 = vmatpush1.msra.mxu0 %v42
  %120 = vmatprep.subr.mxu0 %v45
  %121 = vmatpush1.msra.mxu0 %v44
  %122 = vmatprep.subr.mxu0 %v47
  %123 = vmatpush1.msra.mxu0 %v46
  %124 = vmatprep.subr.mxu0 %v49
  %125 = vmatpush1.msra.mxu0 %v48
  %126 = vmatprep.subr.mxu0 %v51
  %127 = vmatpush1.msra.mxu0 %v50
  %128 = vmatprep.subr.mxu0 %v53
  %129 = vmatpush1.msra.mxu0 %v52
  %130 = vmatprep.subr.mxu0 %v55
  %131 = vmatpush1.msra.mxu0 %v54
  %132 = vmatprep.subr.mxu0 %v57
  %133 = vmatpush1.msra.mxu0 %v56
  %134 = vmatprep.subr.mxu0 %v59
  %135 = vmatpush1.msra.mxu0 %v58
  %136 = vmatprep.subr.mxu0 %v61
  %137 = vmatpush1.msra.mxu0 %v60
  %138 = vmatprep.subr.mxu0 %v63
  %139 = vmatpush1.msra.mxu0 %v62
  %140 = vmatprep.subr.mxu0 %v65
  %141 = vmatpush1.msra.mxu0 %v64
  %142 = vmatprep.subr.mxu0 %v67
  %143 = vmatpush1.msra.mxu0 %v66
  %144 = vmatprep.subr.mxu0 %v69
  %145 = vmatpush1.msra.mxu0 %v68
  %146 = vmatprep.subr.mxu0 %v71
  %147 = vmatpush1.msra.mxu0 %v70
  %148 = vmatprep.subr.mxu0 %v73
  %149 = vmatpush1.msra.mxu0 %v72
  %150 = vmatprep.subr.mxu0 %v75
  %151 = vmatpush1.msra.mxu0 %v74
  %152 = vmatprep.subr.mxu0 %v77
  %153 = vmatpush1.msra.mxu0 %v76
  %154 = vmatprep.subr.mxu0 %v79
  %155 = vmatpush1.msra.mxu0 %v78
  %156 = vmatprep.subr.mxu0 %v81
  %157 = vmatpush1.msra.mxu0 %v80
  %158 = vmatprep.subr.mxu0 %v83
  %159 = vmatpush1.msra.mxu0 %v82
  %160 = vmatprep.subr.mxu0 %v85
  %161 = vmatpush1.msra.mxu0 %v84
  %162 = vmatprep.mubr.f32.mxu0 %v15
  %163 = vmatmul.mubr.f32.gmra.mrb[0].mxu0 %v14
  %v164 = vpop.f32.mrb[0].mxu0
  %v165 = vadd.f32 %v91, %v164
  %v166 = vpop.f32.mrb[0].mxu0
  %v167 = vadd.f32 %v95, %v166
  %168 = vmatprep.mubr.f32.mxu0 %v17
  %169 = vmatmul.mubr.f32.gmra.mrb[0].mxu0 %v16
  %v170 = vpop.f32.mrb[0].mxu0
  %v171 = vadd.f32 %v91, %v170
  %v172 = vpop.f32.mrb[0].mxu0
  %v173 = vadd.f32 %v95, %v172
  %174 = vmatprep.mubr.f32.mxu0 %v19
  %175 = vmatmul.mubr.f32.gmra.mrb[0].mxu0 %v18
  %v176 = vpop.f32.mrb[0].mxu0
  %v177 = vadd.f32 %v91, %v176
  %v178 = vpop.f32.mrb[0].mxu0
  %v179 = vadd.f32 %v95, %v178
  %180 = vmatprep.mubr.f32.mxu0 %v21
  %181 = vmatmul.mubr.f32.gmra.mrb[0].mxu0 %v20
  %v182 = vpop.f32.mrb[0].mxu0
  %v183 = vadd.f32 %v91, %v182
  %v184 = vpop.f32.mrb[0].mxu0
  %v185 = vadd.f32 %v95, %v184
  %186 = vdwg.mxu0
  %187 = vst [vmem:[%s3] sm:$0xff] %v165
  %188 = vst [vmem:[%s3 + $0x8] sm:$0xff] %v167
  %189 = vst [vmem:[%s3 + $0x10] sm:$0xff] %v171
  %190 = vst [vmem:[%s3 + $0x18] sm:$0xff] %v173
  %191 = vst [vmem:[%s3 + $0x20] sm:$0xff] %v177
  %192 = vst [vmem:[%s3 + $0x28] sm:$0xff] %v179
  %193 = vst [vmem:[%s3 + $0x30] sm:$0xff] %v183
  %194 = vst [vmem:[%s3 + $0x38] sm:$0xff] %v185
  // Predicated region
  $region14: #{basic_block_forward.67} parent=0 // pred_check
    _
  $region15: #{basic_block_forward.67} parent=0 // pred_check_branch
    %196 = sbr.rel (0) target = $region17
  $region16: #{basic_block_forward.67} parent=0 // pred_region
    _
  $region17: #{basic_block_forward.67} parent=0 // pred_fallthru
    _
  // Predicated region
  $region18: #{basic_block_forward.67} parent=0 // pred_check
    _
  $region19: #{basic_block_forward.67} parent=0 // pred_check_branch
    %198 = sbr.rel (0) target = $region21
  $region20: #{basic_block_forward.67} parent=0 // pred_region
    _
  $region21: #{basic_block_forward.67} parent=0 // pred_fallthru
    _

// kernel: basic_block_forward.69
$region0: #{basic_block_forward.69}
  #allocation0 [shape = 'u32[]', space=smem, size = 0x4, offset = 0x4, fixed_abs, tag = 'smem constant byte address 0x4 - core index']
  #allocation1 [shape = 'u32[144,128]{1,0:T(1,128)}', space=vmem, size = 0x12000, scoped, tag = 'internal scratch']
  %s0 = inlined_call_operand.vmem [shape: f32[32,256], index: 0, kind: input, shape index: {}]
  %s1 = inlined_call_operand.vmem [shape: f32[32,1], index: 1, kind: output, shape index: {0}]
  %s2 = inlined_call_operand.vmem [shape: f32[32,1], index: 2, kind: output, shape index: {1}]
  %3 = xla_tuple %s1, %s2
  %s4 = sld [smem:[#allocation0]]
  $region22: #{basic_block_forward.69} parent=0
    _
  %s6 = ssub.s32 1, %s4
  %s7 = scalar_select 0, %s6, %s4
  // Predicated region
  $region2: #{basic_block_forward.69} parent=0 // pred_check
    _
  $region3: #{basic_block_forward.69} parent=0 // pred_check_branch
    %9 = sbr.rel (0) target = $region5
  $region4: #{basic_block_forward.69} parent=0 // pred_region
    _
  $region5: #{basic_block_forward.69} parent=0 // pred_fallthru
    _
  %v10 = vld [vmem:[%s0] sm:$0xff]
  %v11 = vld [vmem:[%s0 + $0x8] sm:$0xff]
  %v12 = vld [vmem:[%s0 + $0x10] sm:$0xff]
  %v13 = vld [vmem:[%s0 + $0x18] sm:$0xff]
  %v14 = vld [vmem:[%s0 + $0x20] sm:$0xff]
  %v15 = vld [vmem:[%s0 + $0x28] sm:$0xff]
  %v16 = vld [vmem:[%s0 + $0x30] sm:$0xff]
  %v17 = vld [vmem:[%s0 + $0x38] sm:$0xff]
  %v18 = vadd.f32 %v10, %v11
  %19 = vadd.xlane.f32.xlu0 %v18
  %v20 = vpop.xlane.xlu0 %19
  %v21 = vadd.f32 %v12, %v13
  %22 = vadd.xlane.f32.xlu0 %v21
  %v23 = vpop.xlane.xlu0 %22
  %v24 = vadd.f32 %v14, %v15
  %25 = vadd.xlane.f32.xlu0 %v24
  %v26 = vpop.xlane.xlu0 %25
  %v27 = vadd.f32 %v16, %v17
  %28 = vadd.xlane.f32.xlu0 %v27
  %v29 = vpop.xlane.xlu0 %28
  %v30 = vrcp.pop 256.0
  %v31 = vmul.f32 %v20, %v30
  %v32 = vmul.f32 %v23, %v30
  %v33 = vmul.f32 %v26, %v30
  %v34 = vmul.f32 %v29, %v30
  %vm35 = vcmask 7168
  %36 = vst.msk [vmem:[%s1] sm:$0xff] %vm35, %v31
  %37 = vst.msk [vmem:[%s1 + $0x8] sm:$0xff] %vm35, %v32
  %38 = vst.msk [vmem:[%s1 + $0x10] sm:$0xff] %vm35, %v33
  %39 = vst.msk [vmem:[%s1 + $0x18] sm:$0xff] %vm35, %v34
  %v40 = vmax.f32 %v10, %v11
  %41 = vmax.xlane.f32.xlu0 %v40
  %v42 = vpop.xlane.xlu0 %41
  %v43 = vmax.f32 %v12, %v13
  %44 = vmax.xlane.f32.xlu0 %v43
  %v45 = vpop.xlane.xlu0 %44
  %v46 = vmax.f32 %v14, %v15
  %47 = vmax.xlane.f32.xlu0 %v46
  %v48 = vpop.xlane.xlu0 %47
  %v49 = vmax.f32 %v16, %v17
  %50 = vmax.xlane.f32.xlu0 %v49
  %v51 = vpop.xlane.xlu0 %50
  %52 = vst.msk [vmem:[%s2] sm:$0xff] %vm35, %v42
  %53 = vst.msk [vmem:[%s2 + $0x8] sm:$0xff] %vm35, %v45
  %54 = vst.msk [vmem:[%s2 + $0x10] sm:$0xff] %vm35, %v48
  %55 = vst.msk [vmem:[%s2 + $0x18] sm:$0xff] %vm35, %v51
  // Predicated region
  $region6: #{basic_block_forward.69} parent=0 // pred_check
    _
  $region7: #{basic_block_forward.69} parent=0 // pred_check_branch
    %57 = sbr.rel (0) target = $region9
  $region8: #{basic_block_forward.69} parent=0 // pred_region
    _
  $region9: #{basic_block_forward.69} parent=0 // pred_fallthru
    _
  // Predicated region
  $region10: #{basic_block_forward.69} parent=0 // pred_check
    _
  $region11: #{basic_block_forward.69} parent=0 // pred_check_branch
    %59 = sbr.rel (0) target = $region13
  $region12: #{basic_block_forward.69} parent=0 // pred_region
    _
  $region13: #{basic_block_forward.69} parent=0 // pred_fallthru
    _
  // Predicated region
  $region14: #{basic_block_forward.69} parent=0 // pred_check
    _
  $region15: #{basic_block_forward.69} parent=0 // pred_check_branch
    %61 = sbr.rel (0) target = $region17
  $region16: #{basic_block_forward.69} parent=0 // pred_region
    _
  $region17: #{basic_block_forward.69} parent=0 // pred_fallthru
    _
  // Predicated region
  $region18: #{basic_block_forward.69} parent=0 // pred_check
    _
  $region19: #{basic_block_forward.69} parent=0 // pred_check_branch
    %63 = sbr.rel (0) target = $region21
  $region20: #{basic_block_forward.69} parent=0 // pred_region
    _
  $region21: #{basic_block_forward.69} parent=0 // pred_fallthru
    _

// kernel: basic_block_forward.68
$region0: #{basic_block_forward.68}
  #allocation0 [shape = 'u32[]', space=smem, size = 0x4, offset = 0x4, fixed_abs, tag = 'smem constant byte address 0x4 - core index']
  #allocation1 [shape = 'u32[144,128]{1,0:T(1,128)}', space=vmem, size = 0x12000, scoped, tag = 'internal scratch']
  %s0 = inlined_call_operand.vmem [shape: f32[2,16,256], index: 0, kind: input, shape index: {}]
  %s1 = inlined_call_operand.vmem [shape: f32[256,16], index: 1, kind: input, shape index: {}]
  %s2 = inlined_call_operand.vmem [shape: f32[1,16], index: 2, kind: input, shape index: {}]
  %s3 = inlined_call_operand.vmem [shape: f32[16,256], index: 3, kind: input, shape index: {}]
  %s4 = inlined_call_operand.vmem [shape: f32[1,256], index: 4, kind: input, shape index: {}]
  %s5 = inlined_call_operand.vmem [shape: f32[2,16,256], index: 5, kind: output, shape index: {}]
  %s6 = sld [smem:[#allocation0]]
  $region53: #{basic_block_forward.68} parent=0
    _
  %s8 = ssub.s32 1, %s6
  %s9 = scalar_select 0, %s8, %s6
  loop: start=0, step=1, limit=4
  $region2: #{basic_block_forward.68} parent=0 // loop_pre_header
    _
  $region3: #{basic_block_forward.68} parent=0 // loop_header
    %s11 = sphi 0, %s15
    %p12 = scmp.ge.s32.totalorder %s11, 4
    %s21 = sphi 0, %s23
    %s24 = sphi 0, %s21
    %s25 = sphi 0, %s24
    %s41 = sphi 0, %s25
    %s45 = sphi 0, %s45
    %s47 = sphi 0, %s45
    %s48 = sphi 0, %s47
    %s62 = sphi 0, %s48
    %s66 = sphi 0, %s66
    %s68 = sphi 0, %s66
    %s69 = sphi 0, %s68
    %s83 = sphi 0, %s69
    %s87 = sphi 0, %s87
    %s89 = sphi 0, %s87
    %s90 = sphi 0, %s89
    %s104 = sphi 0, %s90
    %s108 = sphi 0, %s108
    %s110 = sphi 0, %s108
    %s111 = sphi 0, %s110
    %s125 = sphi 0, %s111
    %s131 = sphi 0, %s133
    %s134 = sphi 0, %s131
    %s135 = sphi 0, %s134
    %s151 = sphi 0, %s135
  $region4: #{basic_block_forward.68} parent=0 // loop_header_branch
    %14 = sbr.rel (%p12) target = $region8
  $region5: #{basic_block_forward.68} parent=0 // loop_body
    %s16 = ssub.s32 %s11, 1
    %s17 = ssub.s32 %s11, 2
    %s18 = sadd.s32 %s11, 1
    %s19 = ssub.s32 %s11, %s18
    %p20 = scmp.eq.s32.totalorder %s19, 0
    %s22 = sadd.s32 %s21, 1
    %s23 = scalar_select %p20, %s21, %s22
    %p26 = pneg %p20
    %p27 = scmp.eq.s32.totalorder %s11, 1
    %p28 = por %p26, %p27
    %p29 = scmp.ne.s32.totalorder %s21, %s24
    %p30 = scmp.eq.s32.totalorder %s11, 0
    %p31 = por %p29, %p30
    %p32 = scmp.ne.s32.totalorder %s21, %s24
    %p33 = scmp.eq.s32.totalorder %s16, 1
    %p34 = por %p32, %p33
    %p35 = scmp.ne.s32.totalorder %s24, %s25
    %p36 = scmp.eq.s32.totalorder %s16, 0
    %p37 = por %p35, %p36
    %p38 = scmp.ne.s32.totalorder %s24, %s25
    %p39 = scmp.eq.s32.totalorder %s17, 1
    %p40 = por %p38, %p39
    %p42 = scmp.ne.s32.totalorder %s25, %s41
    %p43 = scmp.eq.s32.totalorder %s17, 0
    %p44 = por %p42, %p43
    %s46 = sadd.s32 %s45, 1
    %p49 = scmp.eq.s32.totalorder %s11, 1
    %p50 = scmp.ne.s32.totalorder %s45, %s47
    %p51 = scmp.eq.s32.totalorder %s11, 0
    %p52 = por %p50, %p51
    %p53 = scmp.ne.s32.totalorder %s45, %s47
    %p54 = scmp.eq.s32.totalorder %s16, 1
    %p55 = por %p53, %p54
    %p56 = scmp.ne.s32.totalorder %s47, %s48
    %p57 = scmp.eq.s32.totalorder %s16, 0
    %p58 = por %p56, %p57
    %p59 = scmp.ne.s32.totalorder %s47, %s48
    %p60 = scmp.eq.s32.totalorder %s17, 1
    %p61 = por %p59, %p60
    %p63 = scmp.ne.s32.totalorder %s48, %s62
    %p64 = scmp.eq.s32.totalorder %s17, 0
    %p65 = por %p63, %p64
    %s67 = sadd.s32 %s66, 1
    %p70 = scmp.eq.s32.totalorder %s11, 1
    %p71 = scmp.ne.s32.totalorder %s66, %s68
    %p72 = scmp.eq.s32.totalorder %s11, 0
    %p73 = por %p71, %p72
    %p74 = scmp.ne.s32.totalorder %s66, %s68
    %p75 = scmp.eq.s32.totalorder %s16, 1
    %p76 = por %p74, %p75
    %p77 = scmp.ne.s32.totalorder %s68, %s69
    %p78 = scmp.eq.s32.totalorder %s16, 0
    %p79 = por %p77, %p78
    %p80 = scmp.ne.s32.totalorder %s68, %s69
    %p81 = scmp.eq.s32.totalorder %s17, 1
    %p82 = por %p80, %p81
    %p84 = scmp.ne.s32.totalorder %s69, %s83
    %p85 = scmp.eq.s32.totalorder %s17, 0
    %p86 = por %p84, %p85
    %s88 = sadd.s32 %s87, 1
    %p91 = scmp.eq.s32.totalorder %s11, 1
    %p92 = scmp.ne.s32.totalorder %s87, %s89
    %p93 = scmp.eq.s32.totalorder %s11, 0
    %p94 = por %p92, %p93
    %p95 = scmp.ne.s32.totalorder %s87, %s89
    %p96 = scmp.eq.s32.totalorder %s16, 1
    %p97 = por %p95, %p96
    %p98 = scmp.ne.s32.totalorder %s89, %s90
    %p99 = scmp.eq.s32.totalorder %s16, 0
    %p100 = por %p98, %p99
    %p101 = scmp.ne.s32.totalorder %s89, %s90
    %p102 = scmp.eq.s32.totalorder %s17, 1
    %p103 = por %p101, %p102
    %p105 = scmp.ne.s32.totalorder %s90, %s104
    %p106 = scmp.eq.s32.totalorder %s17, 0
    %p107 = por %p105, %p106
    %s109 = sadd.s32 %s108, 1
    %p112 = scmp.eq.s32.totalorder %s11, 1
    %p113 = scmp.ne.s32.totalorder %s108, %s110
    %p114 = scmp.eq.s32.totalorder %s11, 0
    %p115 = por %p113, %p114
    %p116 = scmp.ne.s32.totalorder %s108, %s110
    %p117 = scmp.eq.s32.totalorder %s16, 1
    %p118 = por %p116, %p117
    %p119 = scmp.ne.s32.totalorder %s110, %s111
    %p120 = scmp.eq.s32.totalorder %s16, 0
    %p121 = por %p119, %p120
    %p122 = scmp.ne.s32.totalorder %s110, %s111
    %p123 = scmp.eq.s32.totalorder %s17, 1
    %p124 = por %p122, %p123
    %p126 = scmp.ne.s32.totalorder %s111, %s125
    %p127 = scmp.eq.s32.totalorder %s17, 0
    %p128 = por %p126, %p127
    %s129 = ssub.s32 %s11, %s18
    %p130 = scmp.eq.s32.totalorder %s129, 0
    %s132 = sadd.s32 %s131, 1
    %s133 = scalar_select %p130, %s131, %s132
    %p136 = pneg %p130
    %p137 = scmp.eq.s32.totalorder %s11, 1
    %p138 = por %p136, %p137
    %p139 = scmp.ne.s32.totalorder %s131, %s134
    %p140 = scmp.eq.s32.totalorder %s11, 0
    %p141 = por %p139, %p140
    %p142 = scmp.ne.s32.totalorder %s131, %s134
    %p143 = scmp.eq.s32.totalorder %s16, 1
    %p144 = por %p142, %p143
    %p145 = scmp.ne.s32.totalorder %s134, %s135
    %p146 = scmp.eq.s32.totalorder %s16, 0
    %p147 = por %p145, %p146
    %p148 = scmp.ne.s32.totalorder %s134, %s135
    %p149 = scmp.eq.s32.totalorder %s17, 1
    %p150 = por %p148, %p149
    %p152 = scmp.ne.s32.totalorder %s135, %s151
    %p153 = scmp.eq.s32.totalorder %s17, 0
    %p154 = por %p152, %p153
    %p155 = scmp.le.s32.totalorder 1, %s11
    %p156 = scmp.lt.s32.totalorder %s11, 3
    %p157 = pnand %p155, %p156
    %p158 = pneg %p157
    // Predicated region
    $region9: #{basic_block_forward.68} parent=5 // pred_check
      _
    $region10: #{basic_block_forward.68} parent=5 // pred_check_branch
      %160 = sbr.rel (%p157) target = $region12
    $region11: #{basic_block_forward.68} parent=5 // pred_region
      %s161 = ssub.s32 %s11, 1
      // Predicated region
      $region13: #{basic_block_forward.68} parent=11 // pred_check
        %p162 = pneg %p58
      $region14: #{basic_block_forward.68} parent=11 // pred_check_branch
        %164 = sbr.rel (%p162) target = $region16
      $region15: #{basic_block_forward.68} parent=11 // pred_region
        _
      $region16: #{basic_block_forward.68} parent=11 // pred_fallthru
        _
      // Predicated region
      $region17: #{basic_block_forward.68} parent=11 // pred_check
        %p165 = pneg %p79
      $region18: #{basic_block_forward.68} parent=11 // pred_check_branch
        %167 = sbr.rel (%p165) target = $region20
      $region19: #{basic_block_forward.68} parent=11 // pred_region
        _
      $region20: #{basic_block_forward.68} parent=11 // pred_fallthru
        _
      // Predicated region
      $region21: #{basic_block_forward.68} parent=11 // pred_check
        %p168 = pneg %p100
      $region22: #{basic_block_forward.68} parent=11 // pred_check_branch
        %170 = sbr.rel (%p168) target = $region24
      $region23: #{basic_block_forward.68} parent=11 // pred_region
        _
      $region24: #{basic_block_forward.68} parent=11 // pred_fallthru
        _
      // Predicated region
      $region25: #{basic_block_forward.68} parent=11 // pred_check
        %p171 = pneg %p121
      $region26: #{basic_block_forward.68} parent=11 // pred_check_branch
        %173 = sbr.rel (%p171) target = $region28
      $region27: #{basic_block_forward.68} parent=11 // pred_region
        _
      $region28: #{basic_block_forward.68} parent=11 // pred_fallthru
        _
    $region12: #{basic_block_forward.68} parent=5 // pred_fallthru
      _
    %p174 = scmp.lt.s32.totalorder %s11, 2
    // Predicated region
    $region29: #{basic_block_forward.68} parent=5 // pred_check
      %p175 = pneg %p174
    $region30: #{basic_block_forward.68} parent=5 // pred_check_branch
      %177 = sbr.rel (%p175) target = $region32
    $region31: #{basic_block_forward.68} parent=5 // pred_region
      // Predicated region
      $region33: #{basic_block_forward.68} parent=31 // pred_check
        %p178 = pneg %p31
      $region34: #{basic_block_forward.68} parent=31 // pred_check_branch
        %180 = sbr.rel (%p178) target = $region36
      $region35: #{basic_block_forward.68} parent=31 // pred_region
        %p181 = scmp.lt.s32.totalorder %s11, 1
        %s182 = scalar_select %p181, %s11, 1
        %s183 = smul.addr %s182, 4
        %s184 = smul.addr %s183, 8
        %s185 = scalar_lea.vmem %s0, %s184
      $region36: #{basic_block_forward.68} parent=31 // pred_fallthru
        _
    $region32: #{basic_block_forward.68} parent=5 // pred_fallthru
      _
    %p186 = scmp.le.s32.totalorder 1, %s11
    %p187 = scmp.lt.s32.totalorder %s11, 3
    %p188 = pnand %p186, %p187
    %p189 = pneg %p188
    // Predicated region
    $region37: #{basic_block_forward.68} parent=5 // pred_check
      _
    $region38: #{basic_block_forward.68} parent=5 // pred_check_branch
      %191 = sbr.rel (%p188) target = $region40
    $region39: #{basic_block_forward.68} parent=5 // pred_region
      %s192 = ssub.s32 %s11, 1
      %p193 = scmp.lt.s32.totalorder %s16, 1
      %s194 = scalar_select %p193, %s16, 1
      %s195 = smul.addr %s194, 4
      %s196 = smul.addr %s195, 8
      %s197 = scalar_lea.vmem %s0, %s196
      %p198 = pneg %p37
      %p199 = pneg %p34
      %p200 = pneg %p58
      %p201 = pneg %p55
      %p202 = pneg %p79
      %p203 = pneg %p76
      %p204 = pneg %p100
      %p205 = pneg %p97
      %p206 = pneg %p121
      %p207 = pneg %p118
      %p208 = pneg %p147
      %p209 = pneg %p144
      %p210 = scmp.lt.s32.totalorder %s16, 1
      %s211 = scalar_select %p210, %s16, 1
      %s212 = smul.addr %s211, 4
      %s213 = smul.addr %s212, 8
      %s214 = scalar_lea.vmem %s5, %s213
      %p215 = scmp.lt.s32.totalorder %s16, 1
      %s216 = scalar_select %p215, %s16, 1
      %s217 = smul.addr %s216, 4
      %s218 = smul.addr %s217, 8
      %s219 = scalar_lea.vmem %s0, %s218
      %p220 = scmp.lt.s32.totalorder %s16, 1
      %s221 = scalar_select %p220, %s16, 1
      %s222 = smul.addr %s221, 4
      %s223 = smul.addr %s222, 8
      %s224 = scalar_lea.vmem %s5, %s223
      %v225 = vld [vmem:[%s219] sm:$0xff]
      %v226 = vld [vmem:[%s219 + $0x8] sm:$0xff]
      %v227 = vld [vmem:[%s219 + $0x10] sm:$0xff]
      %v228 = vld [vmem:[%s219 + $0x18] sm:$0xff]
      %v229 = vadd.f32 %v225, %v227
      %v230 = vrot.slane %v229, 4
      %v231 = vadd.f32 %v229, %v230
      %v232 = vrot.slane %v231, 2
      %v233 = vadd.f32 %v231, %v232
      %v234 = vrot.slane %v233, 1
      %v235 = vadd.f32 %v233, %v234
      %v236 = vadd.f32 %v226, %v228
      %v237 = vrot.slane %v236, 4
      %v238 = vadd.f32 %v236, %v237
      %v239 = vrot.slane %v238, 2
      %v240 = vadd.f32 %v238, %v239
      %v241 = vrot.slane %v240, 1
      %v242 = vadd.f32 %v240, %v241
      %v243 = vrcp.pop 16.0
      %v244 = vmul.f32 %v235, %v243
      %v245 = vmul.f32 %v242, %v243
      %v246 = vmax.f32 %v225, %v227
      %v247 = vrot.slane %v246, 4
      %v248 = vmax.f32 %v246, %v247
      %v249 = vrot.slane %v248, 2
      %v250 = vmax.f32 %v248, %v249
      %v251 = vrot.slane %v250, 1
      %v252 = vmax.f32 %v250, %v251
      %v253 = vmax.f32 %v226, %v228
      %v254 = vrot.slane %v253, 4
      %v255 = vmax.f32 %v253, %v254
      %v256 = vrot.slane %v255, 2
      %v257 = vmax.f32 %v255, %v256
      %v258 = vrot.slane %v257, 1
      %v259 = vmax.f32 %v257, %v258
      %v260 = vld [vmem:[%s1] sm:$0xff]
      %v261 = vld [vmem:[%s1 + $0x8] sm:$0xff]
      %v262 = vld [vmem:[%s1 + $0x10] sm:$0xff]
      %v263 = vld [vmem:[%s1 + $0x18] sm:$0xff]
      %v264 = vld [vmem:[%s1 + $0x20] sm:$0xff]
      %v265 = vld [vmem:[%s1 + $0x28] sm:$0xff]
      %v266 = vld [vmem:[%s1 + $0x30] sm:$0xff]
      %v267 = vld [vmem:[%s1 + $0x38] sm:$0xff]
      %v268 = vld [vmem:[%s1 + $0x40] sm:$0xff]
      %v269 = vld [vmem:[%s1 + $0x48] sm:$0xff]
      %v270 = vld [vmem:[%s1 + $0x50] sm:$0xff]
      %v271 = vld [vmem:[%s1 + $0x58] sm:$0xff]
      %v272 = vld [vmem:[%s1 + $0x60] sm:$0xff]
      %v273 = vld [vmem:[%s1 + $0x68] sm:$0xff]
      %v274 = vld [vmem:[%s1 + $0x70] sm:$0xff]
      %v275 = vld [vmem:[%s1 + $0x78] sm:$0xff]
      %v276 = vld [vmem:[%s1 + $0x80] sm:$0xff]
      %v277 = vld [vmem:[%s1 + $0x88] sm:$0xff]
      %v278 = vld [vmem:[%s1 + $0x90] sm:$0xff]
      %v279 = vld [vmem:[%s1 + $0x98] sm:$0xff]
      %v280 = vld [vmem:[%s1 + $0xa0] sm:$0xff]
      %v281 = vld [vmem:[%s1 + $0xa8] sm:$0xff]
      %v282 = vld [vmem:[%s1 + $0xb0] sm:$0xff]
      %v283 = vld [vmem:[%s1 + $0xb8] sm:$0xff]
      %v284 = vld [vmem:[%s1 + $0xc0] sm:$0xff]
      %v285 = vld [vmem:[%s1 + $0xc8] sm:$0xff]
      %v286 = vld [vmem:[%s1 + $0xd0] sm:$0xff]
      %v287 = vld [vmem:[%s1 + $0xd8] sm:$0xff]
      %v288 = vld [vmem:[%s1 + $0xe0] sm:$0xff]
      %v289 = vld [vmem:[%s1 + $0xe8] sm:$0xff]
      %v290 = vld [vmem:[%s1 + $0xf0] sm:$0xff]
      %v291 = vld [vmem:[%s1 + $0xf8] sm:$0xff]
      %v292 = vld [vmem:[%s2] sm:$0x1]
      %293 = vmatprep.subr.mxu0 0.0
      %294 = vmatpush1.msra.mxu0 %v260
      %295 = vmatprep.subr.mxu0 0.0
      %296 = vmatpush1.msra.mxu0 %v261
      %297 = vmatprep.subr.mxu0 0.0
      %298 = vmatpush1.msra.mxu0 %v262
      %299 = vmatprep.subr.mxu0 0.0
      %300 = vmatpush1.msra.mxu0 %v263
      %301 = vmatprep.subr.mxu0 0.0
      %302 = vmatpush1.msra.mxu0 %v264
      %303 = vmatprep.subr.mxu0 0.0
      %304 = vmatpush1.msra.mxu0 %v265
      %305 = vmatprep.subr.mxu0 0.0
      %306 = vmatpush1.msra.mxu0 %v266
      %307 = vmatprep.subr.mxu0 0.0
      %308 = vmatpush1.msra.mxu0 %v267
      %309 = vmatprep.subr.mxu0 0.0
      %310 = vmatpush1.msra.mxu0 %v268
      %311 = vmatprep.subr.mxu0 0.0
      %312 = vmatpush1.msra.mxu0 %v269
      %313 = vmatprep.subr.mxu0 0.0
      %314 = vmatpush1.msra.mxu0 %v270
      %315 = vmatprep.subr.mxu0 0.0
      %316 = vmatpush1.msra.mxu0 %v271
      %317 = vmatprep.subr.mxu0 0.0
      %318 = vmatpush1.msra.mxu0 %v272
      %319 = vmatprep.subr.mxu0 0.0
      %320 = vmatpush1.msra.mxu0 %v273
      %321 = vmatprep.subr.mxu0 0.0
      %322 = vmatpush1.msra.mxu0 %v274
      %323 = vmatprep.subr.mxu0 0.0
      %324 = vmatpush1.msra.mxu0 %v275
      %325 = vmatprep.subr.mxu0 0.0
      %326 = vmatpush1.msra.mxu0 %v276
      %327 = vmatprep.subr.mxu0 0.0
      %328 = vmatpush1.msra.mxu0 %v277
      %329 = vmatprep.subr.mxu0 0.0
      %330 = vmatpush1.msra.mxu0 %v278
      %331 = vmatprep.subr.mxu0 0.0
      %332 = vmatpush1.msra.mxu0 %v279
      %333 = vmatprep.subr.mxu0 0.0
      %334 = vmatpush1.msra.mxu0 %v280
      %335 = vmatprep.subr.mxu0 0.0
      %336 = vmatpush1.msra.mxu0 %v281
      %337 = vmatprep.subr.mxu0 0.0
      %338 = vmatpush1.msra.mxu0 %v282
      %339 = vmatprep.subr.mxu0 0.0
      %340 = vmatpush1.msra.mxu0 %v283
      %341 = vmatprep.subr.mxu0 0.0
      %342 = vmatpush1.msra.mxu0 %v284
      %343 = vmatprep.subr.mxu0 0.0
      %344 = vmatpush1.msra.mxu0 %v285
      %345 = vmatprep.subr.mxu0 0.0
      %346 = vmatpush1.msra.mxu0 %v286
      %347 = vmatprep.subr.mxu0 0.0
      %348 = vmatpush1.msra.mxu0 %v287
      %349 = vmatprep.subr.mxu0 0.0
      %350 = vmatpush1.msra.mxu0 %v288
      %351 = vmatprep.subr.mxu0 0.0
      %352 = vmatpush1.msra.mxu0 %v289
      %353 = vmatprep.subr.mxu0 0.0
      %354 = vmatpush1.msra.mxu0 %v290
      %355 = vmatprep.subr.mxu0 0.0
      %356 = vmatpush1.msra.mxu0 %v291
      %357 = vmatprep.mubr.f32.mxu0 %v245
      %358 = vmatmul.mubr.f32.gmra.mrb[0].mxu0 %v244
      %v359 = vpop.f32.mrb[0].mxu0
      %v360 = vadd.f32 %v292, %v359
      %v361 = vpop.f32.mrb[0].mxu0
      %362 = vdwg.mxu0
      %v363 = vmax.f32 %v360, 0.0
      %v364 = vld [vmem:[%s3] sm:$0xff]
      %v365 = vld [vmem:[%s3 + $0x8] sm:$0xff]
      %v366 = vld [vmem:[%s3 + $0x10] sm:$0xff]
      %v367 = vld [vmem:[%s3 + $0x18] sm:$0xff]
      %v368 = vld [vmem:[%s4] sm:$0x3]
      %v370 = vlaneseq
      %v371 = vshrl.u32 %v370, 7
      %v372 = vsub.s32 0, %v371
      %v373 = vrot.slane %v368, %v372
      %v374 = vlaneseq
      %v375 = vshrl.u32 %v374, 7
      %v376 = vsub.s32 1, %v375
      %v377 = vrot.slane %v368, %v376
      %vm380 = vcmask 130048
      %v382 = vsel %vm380, %v363, 0
      %384 = vmatprep.subr.mxu0 %v365
      %385 = vmatpush1.msra.mxu0 %v364
      %386 = vmatprep.subr.mxu0 %v367
      %387 = vmatpush1.msra.mxu0 %v366
      %388 = vmatprep.subr.mxu0 0.0
      %389 = vmatpush1.msra.mxu0 0.0
      %390 = vmatprep.subr.mxu0 0.0
      %391 = vmatpush1.msra.mxu0 0.0
      %392 = vmatprep.subr.mxu0 0.0
      %393 = vmatpush1.msra.mxu0 0.0
      %394 = vmatprep.subr.mxu0 0.0
      %395 = vmatpush1.msra.mxu0 0.0
      %396 = vmatprep.subr.mxu0 0.0
      %397 = vmatpush1.msra.mxu0 0.0
      %398 = vmatprep.subr.mxu0 0.0
      %399 = vmatpush1.msra.mxu0 0.0
      %400 = vmatprep.subr.mxu0 0.0
      %401 = vmatpush1.msra.mxu0 0.0
      %402 = vmatprep.subr.mxu0 0.0
      %403 = vmatpush1.msra.mxu0 0.0
      %404 = vmatprep.subr.mxu0 0.0
      %405 = vmatpush1.msra.mxu0 0.0
      %406 = vmatprep.subr.mxu0 0.0
      %407 = vmatpush1.msra.mxu0 0.0
      %408 = vmatprep.subr.mxu0 0.0
      %409 = vmatpush1.msra.mxu0 0.0
      %410 = vmatprep.subr.mxu0 0.0
      %411 = vmatpush1.msra.mxu0 0.0
      %412 = vmatprep.subr.mxu0 0.0
      %413 = vmatpush1.msra.mxu0 0.0
      %414 = vmatprep.subr.mxu0 0.0
      %415 = vmatpush1.msra.mxu0 0.0
      %416 = vmatprep.subr.mxu0 0.0
      %417 = vmatpush1.msra.mxu0 0.0
      %418 = vmatprep.subr.mxu0 0.0
      %419 = vmatpush1.msra.mxu0 0.0
      %420 = vmatprep.subr.mxu0 0.0
      %421 = vmatpush1.msra.mxu0 0.0
      %422 = vmatprep.subr.mxu0 0.0
      %423 = vmatpush1.msra.mxu0 0.0
      %424 = vmatprep.subr.mxu0 0.0
      %425 = vmatpush1.msra.mxu0 0.0
      %426 = vmatprep.subr.mxu0 0.0
      %427 = vmatpush1.msra.mxu0 0.0
      %428 = vmatprep.subr.mxu0 0.0
      %429 = vmatpush1.msra.mxu0 0.0
      %430 = vmatprep.subr.mxu0 0.0
      %431 = vmatpush1.msra.mxu0 0.0
      %432 = vmatprep.subr.mxu0 0.0
      %433 = vmatpush1.msra.mxu0 0.0
      %434 = vmatprep.subr.mxu0 0.0
      %435 = vmatpush1.msra.mxu0 0.0
      %436 = vmatprep.subr.mxu0 0.0
      %437 = vmatpush1.msra.mxu0 0.0
      %438 = vmatprep.subr.mxu0 0.0
      %439 = vmatpush1.msra.mxu0 0.0
      %440 = vmatprep.subr.mxu0 0.0
      %441 = vmatpush1.msra.mxu0 0.0
      %442 = vmatprep.subr.mxu0 0.0
      %443 = vmatpush1.msra.mxu0 0.0
      %444 = vmatprep.subr.mxu0 0.0
      %445 = vmatpush1.msra.mxu0 0.0
      %446 = vmatprep.subr.mxu0 0.0
      %447 = vmatpush1.msra.mxu0 0.0
      %448 = vmatprep.mubr.f32.mxu0 0.0
      %449 = vmatmul.mubr.f32.gmra.mrb[0].mxu0 %v382
      %v450 = vpop.f32.mrb[0].mxu0
      %v451 = vadd.f32 %v373, %v450
      %v452 = vpop.f32.mrb[0].mxu0
      %v453 = vadd.f32 %v377, %v452
      %454 = vdwg.mxu0
      %455 = vmatprep.subr.mxu0 0.0
      %456 = vmatpush1.msra.mxu0 %v260
      %457 = vmatprep.subr.mxu0 0.0
      %458 = vmatpush1.msra.mxu0 %v261
      %459 = vmatprep.subr.mxu0 0.0
      %460 = vmatpush1.msra.mxu0 %v262
      %461 = vmatprep.subr.mxu0 0.0
      %462 = vmatpush1.msra.mxu0 %v263
      %463 = vmatprep.subr.mxu0 0.0
      %464 = vmatpush1.msra.mxu0 %v264
      %465 = vmatprep.subr.mxu0 0.0
      %466 = vmatpush1.msra.mxu0 %v265
      %467 = vmatprep.subr.mxu0 0.0
      %468 = vmatpush1.msra.mxu0 %v266
      %469 = vmatprep.subr.mxu0 0.0
      %470 = vmatpush1.msra.mxu0 %v267
      %471 = vmatprep.subr.mxu0 0.0
      %472 = vmatpush1.msra.mxu0 %v268
      %473 = vmatprep.subr.mxu0 0.0
      %474 = vmatpush1.msra.mxu0 %v269
      %475 = vmatprep.subr.mxu0 0.0
      %476 = vmatpush1.msra.mxu0 %v270
      %477 = vmatprep.subr.mxu0 0.0
      %478 = vmatpush1.msra.mxu0 %v271
      %479 = vmatprep.subr.mxu0 0.0
      %480 = vmatpush1.msra.mxu0 %v272
      %481 = vmatprep.subr.mxu0 0.0
      %482 = vmatpush1.msra.mxu0 %v273
      %483 = vmatprep.subr.mxu0 0.0
      %484 = vmatpush1.msra.mxu0 %v274
      %485 = vmatprep.subr.mxu0 0.0
      %486 = vmatpush1.msra.mxu0 %v275
      %487 = vmatprep.subr.mxu0 0.0
      %488 = vmatpush1.msra.mxu0 %v276
      %489 = vmatprep.subr.mxu0 0.0
      %490 = vmatpush1.msra.mxu0 %v277
      %491 = vmatprep.subr.mxu0 0.0
      %492 = vmatpush1.msra.mxu0 %v278
      %493 = vmatprep.subr.mxu0 0.0
      %494 = vmatpush1.msra.mxu0 %v279
      %495 = vmatprep.subr.mxu0 0.0
      %496 = vmatpush1.msra.mxu0 %v280
      %497 = vmatprep.subr.mxu0 0.0
      %498 = vmatpush1.msra.mxu0 %v281
      %499 = vmatprep.subr.mxu0 0.0
      %500 = vmatpush1.msra.mxu0 %v282
      %501 = vmatprep.subr.mxu0 0.0
      %502 = vmatpush1.msra.mxu0 %v283
      %503 = vmatprep.subr.mxu0 0.0
      %504 = vmatpush1.msra.mxu0 %v284
      %505 = vmatprep.subr.mxu0 0.0
      %506 = vmatpush1.msra.mxu0 %v285
      %507 = vmatprep.subr.mxu0 0.0
      %508 = vmatpush1.msra.mxu0 %v286
      %509 = vmatprep.subr.mxu0 0.0
      %510 = vmatpush1.msra.mxu0 %v287
      %511 = vmatprep.subr.mxu0 0.0
      %512 = vmatpush1.msra.mxu0 %v288
      %513 = vmatprep.subr.mxu0 0.0
      %514 = vmatpush1.msra.mxu0 %v289
      %515 = vmatprep.subr.mxu0 0.0
      %516 = vmatpush1.msra.mxu0 %v290
      %517 = vmatprep.subr.mxu0 0.0
      %518 = vmatpush1.msra.mxu0 %v291
      %519 = vmatprep.mubr.f32.mxu0 %v259
      %520 = vmatmul.mubr.f32.gmra.mrb[0].mxu0 %v252
      %v521 = vpop.f32.mrb[0].mxu0
      %v522 = vadd.f32 %v292, %v521
      %v523 = vpop.f32.mrb[0].mxu0
      %524 = vdwg.mxu0
      %v525 = vmax.f32 %v522, 0.0
      %v527 = vsel %vm380, %v525, 0
      %529 = vmatprep.subr.mxu0 %v365
      %530 = vmatpush1.msra.mxu0 %v364
      %531 = vmatprep.subr.mxu0 %v367
      %532 = vmatpush1.msra.mxu0 %v366
      %533 = vmatprep.subr.mxu0 0.0
      %534 = vmatpush1.msra.mxu0 0.0
      %535 = vmatprep.subr.mxu0 0.0
      %536 = vmatpush1.msra.mxu0 0.0
      %537 = vmatprep.subr.mxu0 0.0
      %538 = vmatpush1.msra.mxu0 0.0
      %539 = vmatprep.subr.mxu0 0.0
      %540 = vmatpush1.msra.mxu0 0.0
      %541 = vmatprep.subr.mxu0 0.0
      %542 = vmatpush1.msra.mxu0 0.0
      %543 = vmatprep.subr.mxu0 0.0
      %544 = vmatpush1.msra.mxu0 0.0
      %545 = vmatprep.subr.mxu0 0.0
      %546 = vmatpush1.msra.mxu0 0.0
      %547 = vmatprep.subr.mxu0 0.0
      %548 = vmatpush1.msra.mxu0 0.0
      %549 = vmatprep.subr.mxu0 0.0
      %550 = vmatpush1.msra.mxu0 0.0
      %551 = vmatprep.subr.mxu0 0.0
      %552 = vmatpush1.msra.mxu0 0.0
      %553 = vmatprep.subr.mxu0 0.0
      %554 = vmatpush1.msra.mxu0 0.0
      %555 = vmatprep.subr.mxu0 0.0
      %556 = vmatpush1.msra.mxu0 0.0
      %557 = vmatprep.subr.mxu0 0.0
      %558 = vmatpush1.msra.mxu0 0.0
      %559 = vmatprep.subr.mxu0 0.0
      %560 = vmatpush1.msra.mxu0 0.0
      %561 = vmatprep.subr.mxu0 0.0
      %562 = vmatpush1.msra.mxu0 0.0
      %563 = vmatprep.subr.mxu0 0.0
      %564 = vmatpush1.msra.mxu0 0.0
      %565 = vmatprep.subr.mxu0 0.0
      %566 = vmatpush1.msra.mxu0 0.0
      %567 = vmatprep.subr.mxu0 0.0
      %568 = vmatpush1.msra.mxu0 0.0
      %569 = vmatprep.subr.mxu0 0.0
      %570 = vmatpush1.msra.mxu0 0.0
      %571 = vmatprep.subr.mxu0 0.0
      %572 = vmatpush1.msra.mxu0 0.0
      %573 = vmatprep.subr.mxu0 0.0
      %574 = vmatpush1.msra.mxu0 0.0
      %575 = vmatprep.subr.mxu0 0.0
      %576 = vmatpush1.msra.mxu0 0.0
      %577 = vmatprep.subr.mxu0 0.0
      %578 = vmatpush1.msra.mxu0 0.0
      %579 = vmatprep.subr.mxu0 0.0
      %580 = vmatpush1.msra.mxu0 0.0
      %581 = vmatprep.subr.mxu0 0.0
      %582 = vmatpush1.msra.mxu0 0.0
      %583 = vmatprep.subr.mxu0 0.0
      %584 = vmatpush1.msra.mxu0 0.0
      %585 = vmatprep.subr.mxu0 0.0
      %586 = vmatpush1.msra.mxu0 0.0
      %587 = vmatprep.subr.mxu0 0.0
      %588 = vmatpush1.msra.mxu0 0.0
      %589 = vmatprep.subr.mxu0 0.0
      %590 = vmatpush1.msra.mxu0 0.0
      %591 = vmatprep.subr.mxu0 0.0
      %592 = vmatpush1.msra.mxu0 0.0
      %593 = vmatprep.mubr.f32.mxu0 0.0
      %594 = vmatmul.mubr.f32.gmra.mrb[0].mxu0 %v527
      %v595 = vpop.f32.mrb[0].mxu0
      %v596 = vadd.f32 %v373, %v595
      %v597 = vpop.f32.mrb[0].mxu0
      %v598 = vadd.f32 %v377, %v597
      %599 = vdwg.mxu0
      %v600 = vadd.f32 %v451, %v596
      %v601 = vadd.f32 %v453, %v598
      %v602 = vsub.f32 0.0, %v600
      %v603 = vsub.f32 0.0, %v601
      %v604 = vmul.f32 %v602, 1.442695
      %v605 = vpow.pop %v604
      %v606 = vmul.f32 %v603, 1.442695
      %v607 = vpow.pop %v606
      %v608 = vadd.f32 %v605, 1.0
      %v609 = vadd.f32 %v607, 1.0
      %v610 = vrcp.pop %v608
      %v611 = vmul.f32 1.0, %v610
      %v612 = vrcp.pop %v609
      %v613 = vmul.f32 1.0, %v612
      %v614 = vlaneseq
      %v615 = vshrl.u32 %v614, 7
      %v616 = vsub.s32 0, %v615
      %v617 = vrot.slane %v611, %v616
      %v618 = vlaneseq
      %v619 = vshrl.u32 %v618, 7
      %v620 = vsub.s32 0, %v619
      %v621 = vrot.slane %v613, %v620
      %v622 = vmul.f32 %v225, %v617
      %v623 = vmul.f32 %v226, %v621
      %v624 = vmul.f32 %v227, %v617
      %v625 = vmul.f32 %v228, %v621
      %626 = vst [vmem:[%s224] sm:$0xff] %v622
      %627 = vst [vmem:[%s224 + $0x8] sm:$0xff] %v623
      %628 = vst [vmem:[%s224 + $0x10] sm:$0xff] %v624
      %629 = vst [vmem:[%s224 + $0x18] sm:$0xff] %v625
      %p630 = scmp.lt.s32.totalorder %s16, 1
      %s631 = scalar_select %p630, %s16, 1
      %s632 = smul.addr %s631, 4
      %s633 = smul.addr %s632, 8
      %s634 = scalar_lea.vmem %s5, %s633
      // Predicated region
      $region41: #{basic_block_forward.68} parent=39 // pred_check
        %p635 = pneg %p144
      $region42: #{basic_block_forward.68} parent=39 // pred_check_branch
        %637 = sbr.rel (%p635) target = $region44
      $region43: #{basic_block_forward.68} parent=39 // pred_region
        _
      $region44: #{basic_block_forward.68} parent=39 // pred_fallthru
        _
    $region40: #{basic_block_forward.68} parent=5 // pred_fallthru
      _
    %p638 = scmp.le.s32.totalorder 2, %s11
    // Predicated region
    $region45: #{basic_block_forward.68} parent=5 // pred_check
      %p639 = pneg %p638
    $region46: #{basic_block_forward.68} parent=5 // pred_check_branch
      %641 = sbr.rel (%p639) target = $region48
    $region47: #{basic_block_forward.68} parent=5 // pred_region
      %s642 = ssub.s32 %s11, 2
      // Predicated region
      $region49: #{basic_block_forward.68} parent=47 // pred_check
        %p643 = pneg %p150
      $region50: #{basic_block_forward.68} parent=47 // pred_check_branch
        %645 = sbr.rel (%p643) target = $region52
      $region51: #{basic_block_forward.68} parent=47 // pred_region
        %p646 = scmp.lt.s32.totalorder %s17, 1
        %s647 = scalar_select %p646, %s17, 1
        %s648 = smul.addr %s647, 4
        %s649 = smul.addr %s648, 8
        %s650 = scalar_lea.vmem %s5, %s649
      $region52: #{basic_block_forward.68} parent=47 // pred_fallthru
        _
    $region48: #{basic_block_forward.68} parent=5 // pred_fallthru
      _
  $region6: #{basic_block_forward.68} parent=0 // loop_footer
    %s15 = sadd.s32 1, %s11
  $region7: #{basic_block_forward.68} parent=0 // loop_footer_branch
    %10 = sbr.rel target = $region3
  $region8: #{basic_block_forward.68} parent=0 // loop_exit
    _

// kernel: basic_block_forward.71
$region0: #{basic_block_forward.71}
  #allocation0 [shape = 'u32[]', space=smem, size = 0x4, offset = 0x4, fixed_abs, tag = 'smem constant byte address 0x4 - core index']
  #allocation1 [shape = 'u32[144,128]{1,0:T(1,128)}', space=vmem, size = 0x12000, scoped, tag = 'internal scratch']
  %s0 = inlined_call_operand.vmem [shape: f32[32,256], index: 0, kind: input, shape index: {}]
  %s1 = inlined_call_operand.vmem [shape: f32[32,1], index: 1, kind: input, shape index: {}]
  %s2 = inlined_call_operand.vmem [shape: f32[32,256], index: 2, kind: output, shape index: {}]
  %s3 = sld [smem:[#allocation0]]
  $region18: #{basic_block_forward.71} parent=0
    _
  %s5 = ssub.s32 1, %s3
  %s6 = scalar_select 0, %s5, %s3
  // Predicated region
  $region2: #{basic_block_forward.71} parent=0 // pred_check
    _
  $region3: #{basic_block_forward.71} parent=0 // pred_check_branch
    %8 = sbr.rel (0) target = $region5
  $region4: #{basic_block_forward.71} parent=0 // pred_region
    _
  $region5: #{basic_block_forward.71} parent=0 // pred_fallthru
    _
  // Predicated region
  $region6: #{basic_block_forward.71} parent=0 // pred_check
    _
  $region7: #{basic_block_forward.71} parent=0 // pred_check_branch
    %10 = sbr.rel (0) target = $region9
  $region8: #{basic_block_forward.71} parent=0 // pred_region
    _
  $region9: #{basic_block_forward.71} parent=0 // pred_fallthru
    _
  %v11 = vld [vmem:[%s0] sm:$0xff]
  %v12 = vld [vmem:[%s0 + $0x8] sm:$0xff]
  %v13 = vld [vmem:[%s0 + $0x10] sm:$0xff]
  %v14 = vld [vmem:[%s0 + $0x18] sm:$0xff]
  %v15 = vld [vmem:[%s0 + $0x20] sm:$0xff]
  %v16 = vld [vmem:[%s0 + $0x28] sm:$0xff]
  %v17 = vld [vmem:[%s0 + $0x30] sm:$0xff]
  %v18 = vld [vmem:[%s0 + $0x38] sm:$0xff]
  %v19 = vld [vmem:[%s1] sm:$0xff]
  %v20 = vld [vmem:[%s1 + $0x8] sm:$0xff]
  %v21 = vld [vmem:[%s1 + $0x10] sm:$0xff]
  %v22 = vld [vmem:[%s1 + $0x18] sm:$0xff]
  %24 = vset.pattern.permute.xlu0 0
  %25 = vperm.xlu0 %24, %v19
  %v26 = vpop.permute.xlu0 %25
  %29 = vset.pattern.permute.xlu0 0
  %30 = vperm.xlu0 %29, %v20
  %v31 = vpop.permute.xlu0 %30
  %34 = vset.pattern.permute.xlu0 0
  %35 = vperm.xlu0 %34, %v21
  %v36 = vpop.permute.xlu0 %35
  %39 = vset.pattern.permute.xlu0 0
  %40 = vperm.xlu0 %39, %v22
  %v41 = vpop.permute.xlu0 %40
  %v43 = vmul.f32 %v11, %v26
  %v44 = vmul.f32 %v12, %v26
  %v45 = vmul.f32 %v13, %v31
  %v46 = vmul.f32 %v14, %v31
  %v47 = vmul.f32 %v15, %v36
  %v48 = vmul.f32 %v16, %v36
  %v49 = vmul.f32 %v17, %v41
  %v50 = vmul.f32 %v18, %v41
  %51 = vst [vmem:[%s2] sm:$0xff] %v43
  %52 = vst [vmem:[%s2 + $0x8] sm:$0xff] %v44
  %53 = vst [vmem:[%s2 + $0x10] sm:$0xff] %v45
  %54 = vst [vmem:[%s2 + $0x18] sm:$0xff] %v46
  %55 = vst [vmem:[%s2 + $0x20] sm:$0xff] %v47
  %56 = vst [vmem:[%s2 + $0x28] sm:$0xff] %v48
  %57 = vst [vmem:[%s2 + $0x30] sm:$0xff] %v49
  %58 = vst [vmem:[%s2 + $0x38] sm:$0xff] %v50
  // Predicated region
  $region10: #{basic_block_forward.71} parent=0 // pred_check
    _
  $region11: #{basic_block_forward.71} parent=0 // pred_check_branch
    %60 = sbr.rel (0) target = $region13
  $region12: #{basic_block_forward.71} parent=0 // pred_region
    _
  $region13: #{basic_block_forward.71} parent=0 // pred_fallthru
    _
  // Predicated region
  $region14: #{basic_block_forward.71} parent=0 // pred_check
    _
  $region15: #{basic_block_forward.71} parent=0 // pred_check_branch
    %62 = sbr.rel (0) target = $region17
  $region16: #{basic_block_forward.71} parent=0 // pred_region
    _
  $region17: #{basic_block_forward.71} parent=0 // pred_fallthru
    _

// kernel: basic_block_forward.70
$region0: #{basic_block_forward.70}
  #allocation0 [shape = 'u32[]', space=smem, size = 0x4, offset = 0x4, fixed_abs, tag = 'smem constant byte address 0x4 - core index']
  #allocation1 [shape = 'u32[144,128]{1,0:T(1,128)}', space=vmem, size = 0x12000, scoped, tag = 'internal scratch']
  %s0 = inlined_call_operand.vmem [shape: f32[32,98], index: 0, kind: input, shape index: {}]
  %s1 = inlined_call_operand.vmem [shape: f32[98,128], index: 1, kind: input, shape index: {}]
  %s2 = inlined_call_operand.vmem [shape: f32[1,128], index: 2, kind: input, shape index: {}]
  %s3 = inlined_call_operand.vmem [shape: f32[32,128], index: 3, kind: output, shape index: {}]
  %s4 = sld [smem:[#allocation0]]
  $region22: #{basic_block_forward.70} parent=0
    _
  %s6 = ssub.s32 1, %s4
  %s7 = scalar_select 0, %s6, %s4
  // Predicated region
  $region2: #{basic_block_forward.70} parent=0 // pred_check
    _
  $region3: #{basic_block_forward.70} parent=0 // pred_check_branch
    %9 = sbr.rel (0) target = $region5
  $region4: #{basic_block_forward.70} parent=0 // pred_region
    _
  $region5: #{basic_block_forward.70} parent=0 // pred_fallthru
    _
  // Predicated region
  $region6: #{basic_block_forward.70} parent=0 // pred_check
    _
  $region7: #{basic_block_forward.70} parent=0 // pred_check_branch
    %11 = sbr.rel (0) target = $region9
  $region8: #{basic_block_forward.70} parent=0 // pred_region
    _
  $region9: #{basic_block_forward.70} parent=0 // pred_fallthru
    _
  // Predicated region
  $region10: #{basic_block_forward.70} parent=0 // pred_check
    _
  $region11: #{basic_block_forward.70} parent=0 // pred_check_branch
    %13 = sbr.rel (0) target = $region13
  $region12: #{basic_block_forward.70} parent=0 // pred_region
    _
  $region13: #{basic_block_forward.70} parent=0 // pred_fallthru
    _
  %v14 = vld [vmem:[%s0] sm:$0xff]
  %v15 = vld [vmem:[%s0 + $0x8] sm:$0xff]
  %v16 = vld [vmem:[%s0 + $0x10] sm:$0xff]
  %v17 = vld [vmem:[%s0 + $0x18] sm:$0xff]
  %v18 = vld [vmem:[%s1] sm:$0xff]
  %v19 = vld [vmem:[%s1 + $0x8] sm:$0xff]
  %v20 = vld [vmem:[%s1 + $0x10] sm:$0xff]
  %v21 = vld [vmem:[%s1 + $0x18] sm:$0xff]
  %v22 = vld [vmem:[%s1 + $0x20] sm:$0xff]
  %v23 = vld [vmem:[%s1 + $0x28] sm:$0xff]
  %v24 = vld [vmem:[%s1 + $0x30] sm:$0xff]
  %v25 = vld [vmem:[%s1 + $0x38] sm:$0xff]
  %v26 = vld [vmem:[%s1 + $0x40] sm:$0xff]
  %v27 = vld [vmem:[%s1 + $0x48] sm:$0xff]
  %v28 = vld [vmem:[%s1 + $0x50] sm:$0xff]
  %v29 = vld [vmem:[%s1 + $0x58] sm:$0xff]
  %v30 = vld [vmem:[%s1 + $0x60] sm:$0x3]
  %v31 = vld [vmem:[%s2] sm:$0x1]
  %v33 = vlaneseq
  %v34 = vshrl.u32 %v33, 7
  %v35 = vsub.s32 0, %v34
  %v36 = vrot.slane %v31, %v35
  %vm38 = vcmask 801792
  %v40 = vsel %vm38, %v14, 0
  %v43 = vsel %vm38, %v15, 0
  %v46 = vsel %vm38, %v16, 0
  %v49 = vsel %vm38, %v17, 0
  %vm51 = vcmask 1041408
  %v53 = vsel %vm51, %v30, 0
  %55 = vmatprep.subr.mxu0 0.0
  %56 = vmatpush1.msra.mxu0 %v18
  %57 = vmatprep.subr.mxu0 0.0
  %58 = vmatpush1.msra.mxu0 %v19
  %59 = vmatprep.subr.mxu0 0.0
  %60 = vmatpush1.msra.mxu0 %v20
  %61 = vmatprep.subr.mxu0 0.0
  %62 = vmatpush1.msra.mxu0 %v21
  %63 = vmatprep.subr.mxu0 0.0
  %64 = vmatpush1.msra.mxu0 %v22
  %65 = vmatprep.subr.mxu0 0.0
  %66 = vmatpush1.msra.mxu0 %v23
  %67 = vmatprep.subr.mxu0 0.0
  %68 = vmatpush1.msra.mxu0 %v24
  %69 = vmatprep.subr.mxu0 0.0
  %70 = vmatpush1.msra.mxu0 %v25
  %71 = vmatprep.subr.mxu0 0.0
  %72 = vmatpush1.msra.mxu0 %v26
  %73 = vmatprep.subr.mxu0 0.0
  %74 = vmatpush1.msra.mxu0 %v27
  %75 = vmatprep.subr.mxu0 0.0
  %76 = vmatpush1.msra.mxu0 %v28
  %77 = vmatprep.subr.mxu0 0.0
  %78 = vmatpush1.msra.mxu0 %v29
  %79 = vmatprep.subr.mxu0 0.0
  %80 = vmatpush1.msra.mxu0 %v53
  %81 = vmatprep.subr.mxu0 0.0
  %82 = vmatpush1.msra.mxu0 0.0
  %83 = vmatprep.subr.mxu0 0.0
  %84 = vmatpush1.msra.mxu0 0.0
  %85 = vmatprep.subr.mxu0 0.0
  %86 = vmatpush1.msra.mxu0 0.0
  %87 = vmatprep.subr.mxu0 0.0
  %88 = vmatpush1.msra.mxu0 0.0
  %89 = vmatprep.subr.mxu0 0.0
  %90 = vmatpush1.msra.mxu0 0.0
  %91 = vmatprep.subr.mxu0 0.0
  %92 = vmatpush1.msra.mxu0 0.0
  %93 = vmatprep.subr.mxu0 0.0
  %94 = vmatpush1.msra.mxu0 0.0
  %95 = vmatprep.subr.mxu0 0.0
  %96 = vmatpush1.msra.mxu0 0.0
  %97 = vmatprep.subr.mxu0 0.0
  %98 = vmatpush1.msra.mxu0 0.0
  %99 = vmatprep.subr.mxu0 0.0
  %100 = vmatpush1.msra.mxu0 0.0
  %101 = vmatprep.subr.mxu0 0.0
  %102 = vmatpush1.msra.mxu0 0.0
  %103 = vmatprep.subr.mxu0 0.0
  %104 = vmatpush1.msra.mxu0 0.0
  %105 = vmatprep.subr.mxu0 0.0
  %106 = vmatpush1.msra.mxu0 0.0
  %107 = vmatprep.subr.mxu0 0.0
  %108 = vmatpush1.msra.mxu0 0.0
  %109 = vmatprep.subr.mxu0 0.0
  %110 = vmatpush1.msra.mxu0 0.0
  %111 = vmatprep.subr.mxu0 0.0
  %112 = vmatpush1.msra.mxu0 0.0
  %113 = vmatprep.subr.mxu0 0.0
  %114 = vmatpush1.msra.mxu0 0.0
  %115 = vmatprep.subr.mxu0 0.0
  %116 = vmatpush1.msra.mxu0 0.0
  %117 = vmatprep.subr.mxu0 0.0
  %118 = vmatpush1.msra.mxu0 0.0
  %119 = vmatprep.mubr.f32.mxu0 0.0
  %120 = vmatmul.mubr.f32.gmra.mrb[0].mxu0 %v40
  %v121 = vpop.f32.mrb[0].mxu0
  %v122 = vadd.f32 %v36, %v121
  %v123 = vpop.f32.mrb[0].mxu0
  %124 = vmatprep.mubr.f32.mxu0 0.0
  %125 = vmatmul.mubr.f32.gmra.mrb[0].mxu0 %v43
  %v126 = vpop.f32.mrb[0].mxu0
  %v127 = vadd.f32 %v36, %v126
  %v128 = vpop.f32.mrb[0].mxu0
  %129 = vmatprep.mubr.f32.mxu0 0.0
  %130 = vmatmul.mubr.f32.gmra.mrb[0].mxu0 %v46
  %v131 = vpop.f32.mrb[0].mxu0
  %v132 = vadd.f32 %v36, %v131
  %v133 = vpop.f32.mrb[0].mxu0
  %134 = vmatprep.mubr.f32.mxu0 0.0
  %135 = vmatmul.mubr.f32.gmra.mrb[0].mxu0 %v49
  %v136 = vpop.f32.mrb[0].mxu0
  %v137 = vadd.f32 %v36, %v136
  %v138 = vpop.f32.mrb[0].mxu0
  %139 = vdwg.mxu0
  %v140 = vsub.f32 0.0, %v122
  %v141 = vsub.f32 0.0, %v127
  %v142 = vsub.f32 0.0, %v132
  %v143 = vsub.f32 0.0, %v137
  %v144 = vmul.f32 %v140, 1.442695
  %v145 = vpow.pop %v144
  %v146 = vmul.f32 %v141, 1.442695
  %v147 = vpow.pop %v146
  %v148 = vmul.f32 %v142, 1.442695
  %v149 = vpow.pop %v148
  %v150 = vmul.f32 %v143, 1.442695
  %v151 = vpow.pop %v150
  %v152 = vadd.f32 %v145, 1.0
  %v153 = vadd.f32 %v147, 1.0
  %v154 = vadd.f32 %v149, 1.0
  %v155 = vadd.f32 %v151, 1.0
  %v156 = vrcp.pop %v152
  %v157 = vmul.f32 1.0, %v156
  %v158 = vrcp.pop %v153
  %v159 = vmul.f32 1.0, %v158
  %v160 = vrcp.pop %v154
  %v161 = vmul.f32 1.0, %v160
  %v162 = vrcp.pop %v155
  %v163 = vmul.f32 1.0, %v162
  %164 = vst [vmem:[%s3] sm:$0xff] %v157
  %165 = vst [vmem:[%s3 + $0x8] sm:$0xff] %v159
  %166 = vst [vmem:[%s3 + $0x10] sm:$0xff] %v161
  %167 = vst [vmem:[%s3 + $0x18] sm:$0xff] %v163
  // Predicated region
  $region14: #{basic_block_forward.70} parent=0 // pred_check
    _
  $region15: #{basic_block_forward.70} parent=0 // pred_check_branch
    %169 = sbr.rel (0) target = $region17
  $region16: #{basic_block_forward.70} parent=0 // pred_region
    _
  $region17: #{basic_block_forward.70} parent=0 // pred_fallthru
    _
  // Predicated region
  $region18: #{basic_block_forward.70} parent=0 // pred_check
    _
  $region19: #{basic_block_forward.70} parent=0 // pred_check_branch
    %171 = sbr.rel (0) target = $region21
  $region20: #{basic_block_forward.70} parent=0 // pred_region
    _
  $region21: #{basic_block_forward.70} parent=0 // pred_fallthru
    _

</llo_original>
